<compile_context>
chip_gen: v6e
topology: v6e:2x2x1
jax: 0.10.0
libtpu: 0.0.40
codegen_flags: <defaults>
</compile_context>

<pallas_src>
import jax
import jax.numpy as jnp
from jax.experimental import pallas as pl
from jax.experimental.pallas import tpu as pltpu


# ----------------------- 1x1 conv + BN + ReLU kernels ----------------------- #

def _proj1_kernel(x_ref, w_ref, s_ref, b_ref, o_ref):
    # x: (tM, Cin)  w: (Cin, Cout)  s/b: (1, Cout) fused eval-mode BN
    y = jnp.dot(x_ref[...], w_ref[...], preferred_element_type=jnp.float32)
    y = jnp.maximum(y * s_ref[...] + b_ref[...], 0.0)          # BN + ReLU
    o_ref[...] = y.astype(o_ref.dtype)


def _proj2_kernel(x_ref, w1_ref, s1_ref, b1_ref, w2_ref, s2_ref, b2_ref, o_ref):
    # two chained (Conv1x1 -> BN -> ReLU) layers fused in one kernel
    y = jnp.dot(x_ref[...], w1_ref[...], preferred_element_type=jnp.float32)
    y = jnp.maximum(y * s1_ref[...] + b1_ref[...], 0.0)
    y = jnp.dot(y, w2_ref[...], preferred_element_type=jnp.float32)
    y = jnp.maximum(y * s2_ref[...] + b2_ref[...], 0.0)
    o_ref[...] = y.astype(o_ref.dtype)


def conv1x1_bn_relu(x2d, w, scale, bias, *, out_dtype=jnp.float32):
    M, Cin = x2d.shape
    Cout = w.shape[1]
    tile_m = 256 if M % 256 == 0 else M
    return pl.pallas_call(
        _proj1_kernel,
        out_shape=jax.ShapeDtypeStruct((M, Cout), out_dtype),
        grid=(M // tile_m,),
        in_specs=[
            pl.BlockSpec((tile_m, Cin), lambda i: (i, 0)),
            pl.BlockSpec((Cin, Cout), lambda i: (0, 0)),
            pl.BlockSpec((1, Cout), lambda i: (0, 0)),
            pl.BlockSpec((1, Cout), lambda i: (0, 0)),
        ],
        out_specs=pl.BlockSpec((tile_m, Cout), lambda i: (i, 0)),
        compiler_params=pltpu.CompilerParams(dimension_semantics=("parallel",)),
    )(x2d, w, scale, bias)


def conv1x1_bn_relu_x2(x2d, w1, s1, b1, w2, s2, b2, *, out_dtype=jnp.float32):
    M, Cin = x2d.shape
    Cmid = w1.shape[1]
    Cout = w2.shape[1]
    tile_m = 256 if M % 256 == 0 else M
    return pl.pallas_call(
        _proj2_kernel,
        out_shape=jax.ShapeDtypeStruct((M, Cout), out_dtype),
        grid=(M // tile_m,),
        in_specs=[
            pl.BlockSpec((tile_m, Cin), lambda i: (i, 0)),
            pl.BlockSpec((Cin, Cmid), lambda i: (0, 0)),
            pl.BlockSpec((1, Cmid), lambda i: (0, 0)),
            pl.BlockSpec((1, Cmid), lambda i: (0, 0)),
            pl.BlockSpec((Cmid, Cout), lambda i: (0, 0)),
            pl.BlockSpec((1, Cout), lambda i: (0, 0)),
            pl.BlockSpec((1, Cout), lambda i: (0, 0)),
        ],
        out_specs=pl.BlockSpec((tile_m, Cout), lambda i: (i, 0)),
        compiler_params=pltpu.CompilerParams(dimension_semantics=("parallel",)),
    )(x2d, w1, s1, b1, w2, s2, b2)


# -------------------------- attention context kernel ------------------------ #

def _attn_kernel(q_ref, k_ref, v_ref, o_ref):
    # q: (1, Nq, Ct)  k/v: (1, Nk, Ct)  ->  o: (1, Nq, Ct)
    q = q_ref[0]
    k = k_ref[0]
    v = v_ref[0]
    ct = q.shape[-1]
    s = jax.lax.dot_general(q, k, dimension_numbers=(((1,), (1,)), ((), ())),
                            preferred_element_type=jnp.float32)
    s = s * (float(ct) ** -0.5)                                  # matmul_norm
    m = jnp.max(s, axis=-1, keepdims=True)                       # stable softmax
    p = jnp.exp(s - m)
    l = jnp.sum(p, axis=-1, keepdims=True)
    ctx = jnp.dot(p, v, preferred_element_type=jnp.float32)
    o_ref[0] = (ctx / l).astype(o_ref.dtype)


def attention_context(q, k, v):
    B, Nq, Ct = q.shape
    Nk = k.shape[1]
    return pl.pallas_call(
        _attn_kernel,
        out_shape=jax.ShapeDtypeStruct((B, Nq, Ct), jnp.float32),
        grid=(B,),
        in_specs=[
            pl.BlockSpec((1, Nq, Ct), lambda b: (b, 0, 0)),
            pl.BlockSpec((1, Nk, Ct), lambda b: (b, 0, 0)),
            pl.BlockSpec((1, Nk, Ct), lambda b: (b, 0, 0)),
        ],
        out_specs=pl.BlockSpec((1, Nq, Ct), lambda b: (b, 0, 0)),
        compiler_params=pltpu.CompilerParams(dimension_semantics=("parallel",)),
    )(q, k, v)


# ----------------- bottleneck: 3x3 conv + BN + ReLU on concat --------------- #

def _bottleneck_kernel(ctx_ref, q_ref, w_ref, s_ref, b_ref, o_ref, xpad_ref):
    # ctx_ref, q_ref: (1, H, W, C) bf16   w_ref: (3, 3, 2C, Cout) bf16
    # s_ref, b_ref:   (1, Cout) f32       o_ref: (1, H, W, Cout) f32
    # xpad_ref:       (H+2, W+2, 2C) f32 VMEM scratch (halo pad + channel concat
    #                 built in VMEM -> no HBM pad / cat tensor)
    H, W, Cout = o_ref.shape[1], o_ref.shape[2], o_ref.shape[3]
    C = ctx_ref.shape[3]
    Cin = xpad_ref.shape[2]

    xpad_ref[...] = jnp.zeros_like(xpad_ref)                     # zero halo
    xpad_ref[1:H + 1, 1:W + 1, 0:C] = ctx_ref[0].astype(jnp.float32)
    xpad_ref[1:H + 1, 1:W + 1, C:Cin] = q_ref[0].astype(jnp.float32)

    acc = jnp.zeros((H * W, Cout), jnp.float32)
    for dy in range(3):                                          # static 3x3 taps
        for dx in range(3):
            patch = xpad_ref[dy:dy + H, dx:dx + W, :].reshape(H * W, Cin)
            acc = acc + jnp.dot(patch.astype(jnp.bfloat16), w_ref[dy, dx],
                                preferred_element_type=jnp.float32)
    y = acc * s_ref[...] + b_ref[...]                            # fused BN (eval)
    y = jnp.maximum(y, 0.0)                                      # fused ReLU
    o_ref[0] = y.reshape(H, W, Cout).astype(o_ref.dtype)


def bottleneck_conv3x3_bn_relu(ctx_nhwc, qf_nhwc, w, scale, bias):
    B, H, W, C = ctx_nhwc.shape
    Cin = w.shape[2]                                             # = 2*C
    Cout = w.shape[3]
    return pl.pallas_call(
        _bottleneck_kernel,
        out_shape=jax.ShapeDtypeStruct((B, H, W, Cout), jnp.float32),
        grid=(B,),
        in_specs=[
            pl.BlockSpec((1, H, W, C), lambda b: (b, 0, 0, 0)),
            pl.BlockSpec((1, H, W, C), lambda b: (b, 0, 0, 0)),
            pl.BlockSpec((3, 3, Cin, Cout), lambda b: (0, 0, 0, 0)),
            pl.BlockSpec((1, Cout), lambda b: (0, 0)),
            pl.BlockSpec((1, Cout), lambda b: (0, 0)),
        ],
        out_specs=pl.BlockSpec((1, H, W, Cout), lambda b: (b, 0, 0, 0)),
        scratch_shapes=[pltpu.VMEM((H + 2, W + 2, Cin), jnp.float32)],
        compiler_params=pltpu.CompilerParams(dimension_semantics=("parallel",)),
    )(ctx_nhwc, qf_nhwc, w, scale, bias)


# ------------------------------- forward glue ------------------------------- #

def object_context_block(query_feats, key_feats, p):
    """query_feats, key_feats: (B, C, H, W) f32 NCHW. Returns (B, C, H, W)."""
    B, C, H, W = query_feats.shape
    Ct = p['q_w1'].shape[1]

    # single NCHW -> NHWC transpose of each input; everything else stays NHWC
    q_nhwc = jnp.transpose(query_feats, (0, 2, 3, 1))
    k_nhwc = jnp.transpose(key_feats, (0, 2, 3, 1))
    M = B * H * W
    q2d = q_nhwc.reshape(M, C)
    k2d = k_nhwc.reshape(M, C)

    query = conv1x1_bn_relu_x2(q2d, p['q_w1'], p['q_s1'], p['q_b1'],
                               p['q_w2'], p['q_s2'], p['q_b2'])
    key_ = conv1x1_bn_relu_x2(k2d, p['k_w1'], p['k_s1'], p['k_b1'],
                              p['k_w2'], p['k_s2'], p['k_b2'])
    value = conv1x1_bn_relu(k2d, p['v_w'], p['v_s'], p['v_b'])

    context = attention_context(query.reshape(B, H * W, Ct),
                                key_.reshape(B, H * W, Ct),
                                value.reshape(B, H * W, Ct)).reshape(M, Ct)

    # out_project emits bf16 directly -> halves HBM traffic into the bottleneck
    ctx2d = conv1x1_bn_relu(context, p['o_w'], p['o_s'], p['o_b'],
                            out_dtype=jnp.bfloat16)
    ctx_nhwc = ctx2d.reshape(B, H, W, C)

    out_nhwc = bottleneck_conv3x3_bn_relu(ctx_nhwc,
                                          q_nhwc.astype(jnp.bfloat16),
                                          p['bt_w'], p['bt_s'], p['bt_b'])
    return jnp.transpose(out_nhwc, (0, 3, 1, 2))


# --------------------------------- helpers ---------------------------------- #

def make_bn(key, c, eps=1e-5):
    k1, k2, k3, k4 = jax.random.split(key, 4)
    gamma = 1.0 + 0.1 * jax.random.normal(k1, (c,), jnp.float32)
    beta = 0.1 * jax.random.normal(k2, (c,), jnp.float32)
    mean = 0.1 * jax.random.normal(k3, (c,), jnp.float32)
    var = 0.5 + jax.random.uniform(k4, (c,), jnp.float32)
    scale = gamma / jnp.sqrt(var + eps)
    bias = beta - mean * scale
    return scale.reshape(1, c), bias.reshape(1, c)


def conv1x1_weight(key, cin, cout, std=0.05):
    # PyTorch layout (Cout, Cin, 1, 1) -> matmul layout (Cin, Cout)
    w_oihw = std * jax.random.normal(key, (cout, cin, 1, 1), jnp.float32)
    return jnp.transpose(w_oihw[:, :, 0, 0], (1, 0))


# ----------------------------------- main ------------------------------------ #

if __name__ == "__main__":
    root = jax.random.PRNGKey(0)
    keys = jax.random.split(root, 20)

    # small spatial / batch; channel dims chosen lane-dense (multiples of 128)
    B, C, H, W = 2, 128, 16, 16        # in_channels = 128
    Ct = 128                           # transform_channels = 128

    query_feats = jax.random.normal(keys[0], (B, C, H, W), jnp.float32)
    key_feats = jax.random.normal(keys[1], (B, C, H, W), jnp.float32)

    p = {}
    # query_project: 2 x (Conv1x1 no-bias -> BN -> ReLU)
    p['q_w1'] = conv1x1_weight(keys[2], C, Ct)
    p['q_s1'], p['q_b1'] = make_bn(keys[3], Ct)
    p['q_w2'] = conv1x1_weight(keys[4], Ct, Ct)
    p['q_s2'], p['q_b2'] = make_bn(keys[5], Ct)
    # key_project: 2 x (Conv1x1 no-bias -> BN -> ReLU)
    p['k_w1'] = conv1x1_weight(keys[6], C, Ct)
    p['k_s1'], p['k_b1'] = make_bn(keys[7], Ct)
    p['k_w2'] = conv1x1_weight(keys[8], Ct, Ct)
    p['k_s2'], p['k_b2'] = make_bn(keys[9], Ct)
    # value_project: 1 x (Conv1x1 -> BN -> ReLU), out = transform_channels
    p['v_w'] = conv1x1_weight(keys[10], C, Ct)
    p['v_s'], p['v_b'] = make_bn(keys[11], Ct)
    # out_project: 1 x (Conv1x1 -> BN -> ReLU), transform_channels -> in_channels
    p['o_w'] = conv1x1_weight(keys[12], Ct, C)
    p['o_s'], p['o_b'] = make_bn(keys[13], C)
    # bottleneck: Conv3x3(2C -> C, pad 1, no bias) -> BN -> ReLU
    bt_oihw = 0.05 * jax.random.normal(keys[14], (C, 2 * C, 3, 3), jnp.float32)
    p['bt_w'] = jnp.transpose(bt_oihw, (2, 3, 1, 0)).astype(jnp.bfloat16)
    p['bt_s'], p['bt_b'] = make_bn(keys[15], C)

    fwd = jax.jit(object_context_block)
    out = fwd(query_feats, key_feats, p)
    jax.block_until_ready(out)

    assert out.shape == (B, C, H, W)
    assert bool(jnp.all(jnp.isfinite(out)))
    print("KERNEL_OK")
</pallas_src>

<mosaic_0001>
module attributes {stable_mosaic.version = 11 : i64} {
  func.func @_proj2_kernel(%arg0: i32, %arg1: memref<256x128xf32, #tpu.memory_space<vmem>>, %arg2: memref<128x128xf32, #tpu.memory_space<vmem>>, %arg3: memref<1x128xf32, #tpu.memory_space<vmem>>, %arg4: memref<1x128xf32, #tpu.memory_space<vmem>>, %arg5: memref<128x128xf32, #tpu.memory_space<vmem>>, %arg6: memref<1x128xf32, #tpu.memory_space<vmem>>, %arg7: memref<1x128xf32, #tpu.memory_space<vmem>>, %arg8: memref<256x128xf32, #tpu.memory_space<vmem>>) attributes {dimension_semantics = [#tpu.dimension_semantics<parallel>], iteration_bounds = array<i64: 2>, scalar_prefetch = 0 : i64, scratch_operands = 0 : i64, tpu.core_type = #tpu.core_type<tc>, window_params = [{transform_indices = @transform_0, window_bounds = array<i64: 256, 128>}, {pipeline_mode = #tpu.pipeline_mode<synchronous>, transform_indices = @transform_1, window_bounds = array<i64: 128, 128>}, {pipeline_mode = #tpu.pipeline_mode<synchronous>, transform_indices = @transform_2, window_bounds = array<i64: 1, 128>}, {pipeline_mode = #tpu.pipeline_mode<synchronous>, transform_indices = @transform_3, window_bounds = array<i64: 1, 128>}, {pipeline_mode = #tpu.pipeline_mode<synchronous>, transform_indices = @transform_4, window_bounds = array<i64: 128, 128>}, {pipeline_mode = #tpu.pipeline_mode<synchronous>, transform_indices = @transform_5, window_bounds = array<i64: 1, 128>}, {pipeline_mode = #tpu.pipeline_mode<synchronous>, transform_indices = @transform_6, window_bounds = array<i64: 1, 128>}, {transform_indices = @transform_7, window_bounds = array<i64: 256, 128>}]} {
    %c0 = arith.constant 0 : index
    %c0_0 = arith.constant 0 : index
    %0 = vector.load %arg1[%c0, %c0_0] : memref<256x128xf32, #tpu.memory_space<vmem>>, vector<256x128xf32>
    %c0_1 = arith.constant 0 : index
    %c0_2 = arith.constant 0 : index
    %1 = vector.load %arg2[%c0_1, %c0_2] : memref<128x128xf32, #tpu.memory_space<vmem>>, vector<128x128xf32>
    %cst = arith.constant dense<0.000000e+00> : vector<256x128xf32>
    %2 = tpu.matmul %0, %1, %cst {dimension_numbers = #tpu.dot_dimension_numbers<[1], [0], [0], [1], [0, 0, 1, 1], [], []>} : vector<256x128xf32>, vector<128x128xf32>, vector<256x128xf32> -> vector<256x128xf32>
    %c0_3 = arith.constant 0 : index
    %c0_4 = arith.constant 0 : index
    %3 = vector.load %arg3[%c0_3, %c0_4] : memref<1x128xf32, #tpu.memory_space<vmem>>, vector<1x128xf32>
    %4 = vector.broadcast %3 : vector<1x128xf32> to vector<256x128xf32>
    %5 = arith.mulf %2, %4 : vector<256x128xf32>
    %c0_5 = arith.constant 0 : index
    %c0_6 = arith.constant 0 : index
    %6 = vector.load %arg4[%c0_5, %c0_6] : memref<1x128xf32, #tpu.memory_space<vmem>>, vector<1x128xf32>
    %7 = vector.broadcast %6 : vector<1x128xf32> to vector<256x128xf32>
    %8 = arith.addf %5, %7 : vector<256x128xf32>
    %cst_7 = arith.constant 0.000000e+00 : f32
    %9 = vector.broadcast %cst_7 : f32 to vector<256x128xf32>
    %10 = arith.maximumf %8, %9 : vector<256x128xf32>
    %c0_8 = arith.constant 0 : index
    %c0_9 = arith.constant 0 : index
    %11 = vector.load %arg5[%c0_8, %c0_9] : memref<128x128xf32, #tpu.memory_space<vmem>>, vector<128x128xf32>
    %cst_10 = arith.constant dense<0.000000e+00> : vector<256x128xf32>
    %12 = tpu.matmul %10, %11, %cst_10 {dimension_numbers = #tpu.dot_dimension_numbers<[1], [0], [0], [1], [0, 0, 1, 1], [], []>} : vector<256x128xf32>, vector<128x128xf32>, vector<256x128xf32> -> vector<256x128xf32>
    %c0_11 = arith.constant 0 : index
    %c0_12 = arith.constant 0 : index
    %13 = vector.load %arg6[%c0_11, %c0_12] : memref<1x128xf32, #tpu.memory_space<vmem>>, vector<1x128xf32>
    %14 = vector.broadcast %13 : vector<1x128xf32> to vector<256x128xf32>
    %15 = arith.mulf %12, %14 : vector<256x128xf32>
    %c0_13 = arith.constant 0 : index
    %c0_14 = arith.constant 0 : index
    %16 = vector.load %arg7[%c0_13, %c0_14] : memref<1x128xf32, #tpu.memory_space<vmem>>, vector<1x128xf32>
    %17 = vector.broadcast %16 : vector<1x128xf32> to vector<256x128xf32>
    %18 = arith.addf %15, %17 : vector<256x128xf32>
    %cst_15 = arith.constant 0.000000e+00 : f32
    %19 = vector.broadcast %cst_15 : f32 to vector<256x128xf32>
    %20 = arith.maximumf %18, %19 : vector<256x128xf32>
    %c0_16 = arith.constant 0 : index
    %c0_17 = arith.constant 0 : index
    %21 = vector.load %arg8[%c0_16, %c0_17] : memref<256x128xf32, #tpu.memory_space<vmem>>, vector<256x128xf32>
    tpu.vector_store %arg8[%c0_16, %c0_17], %20 {strides = array<i32>} : memref<256x128xf32, #tpu.memory_space<vmem>>, vector<256x128xf32>,
    return
  }
  func.func @transform_0(%arg0: i32) -> (i32, i32) {
    %c0_i32 = arith.constant 0 : i32
    %c0_i32_0 = arith.constant 0 : i32
    return %arg0, %c0_i32 : i32, i32
  }
  func.func @transform_1(%arg0: i32) -> (i32, i32) {
    %c0_i32 = arith.constant 0 : i32
    %c0_i32_0 = arith.constant 0 : i32
    %c0_i32_1 = arith.constant 0 : i32
    return %c0_i32, %c0_i32_0 : i32, i32
  }
  func.func @transform_2(%arg0: i32) -> (i32, i32) {
    %c0_i32 = arith.constant 0 : i32
    %c0_i32_0 = arith.constant 0 : i32
    %c0_i32_1 = arith.constant 0 : i32
    return %c0_i32, %c0_i32_0 : i32, i32
  }
  func.func @transform_3(%arg0: i32) -> (i32, i32) {
    %c0_i32 = arith.constant 0 : i32
    %c0_i32_0 = arith.constant 0 : i32
    %c0_i32_1 = arith.constant 0 : i32
    return %c0_i32, %c0_i32_0 : i32, i32
  }
  func.func @transform_4(%arg0: i32) -> (i32, i32) {
    %c0_i32 = arith.constant 0 : i32
    %c0_i32_0 = arith.constant 0 : i32
    %c0_i32_1 = arith.constant 0 : i32
    return %c0_i32, %c0_i32_0 : i32, i32
  }
  func.func @transform_5(%arg0: i32) -> (i32, i32) {
    %c0_i32 = arith.constant 0 : i32
    %c0_i32_0 = arith.constant 0 : i32
    %c0_i32_1 = arith.constant 0 : i32
    return %c0_i32, %c0_i32_0 : i32, i32
  }
  func.func @transform_6(%arg0: i32) -> (i32, i32) {
    %c0_i32 = arith.constant 0 : i32
    %c0_i32_0 = arith.constant 0 : i32
    %c0_i32_1 = arith.constant 0 : i32
    return %c0_i32, %c0_i32_0 : i32, i32
  }
  func.func @transform_7(%arg0: i32) -> (i32, i32) {
    %c0_i32 = arith.constant 0 : i32
    %c0_i32_0 = arith.constant 0 : i32
    return %arg0, %c0_i32 : i32, i32
  }
}

module attributes {stable_mosaic.version = 11 : i64} {
  func.func @_attn_kernel(%arg0: i32, %arg1: memref<1x256x128xf32, #tpu.memory_space<vmem>>, %arg2: memref<1x256x128xf32, #tpu.memory_space<vmem>>, %arg3: memref<1x256x128xf32, #tpu.memory_space<vmem>>, %arg4: memref<1x256x128xf32, #tpu.memory_space<vmem>>) attributes {dimension_semantics = [#tpu.dimension_semantics<parallel>], iteration_bounds = array<i64: 2>, scalar_prefetch = 0 : i64, scratch_operands = 0 : i64, tpu.core_type = #tpu.core_type<tc>, window_params = [{transform_indices = @transform_0, window_bounds = array<i64: 1, 256, 128>}, {transform_indices = @transform_1, window_bounds = array<i64: 1, 256, 128>}, {transform_indices = @transform_2, window_bounds = array<i64: 1, 256, 128>}, {transform_indices = @transform_3, window_bounds = array<i64: 1, 256, 128>}]} {
    %c0 = arith.constant 0 : index
    %c0_0 = arith.constant 0 : index
    %c0_1 = arith.constant 0 : index
    %0 = vector.load %arg1[%c0, %c0_0, %c0_1] : memref<1x256x128xf32, #tpu.memory_space<vmem>>, vector<1x256x128xf32>
    %1 = vector.shape_cast %0 : vector<1x256x128xf32> to vector<256x128xf32>
    %c0_2 = arith.constant 0 : index
    %c0_3 = arith.constant 0 : index
    %c0_4 = arith.constant 0 : index
    %2 = vector.load %arg2[%c0_2, %c0_3, %c0_4] : memref<1x256x128xf32, #tpu.memory_space<vmem>>, vector<1x256x128xf32>
    %3 = vector.shape_cast %2 : vector<1x256x128xf32> to vector<256x128xf32>
    %c0_5 = arith.constant 0 : index
    %c0_6 = arith.constant 0 : index
    %c0_7 = arith.constant 0 : index
    %4 = vector.load %arg3[%c0_5, %c0_6, %c0_7] : memref<1x256x128xf32, #tpu.memory_space<vmem>>, vector<1x256x128xf32>
    %5 = vector.shape_cast %4 : vector<1x256x128xf32> to vector<256x128xf32>
    %cst = arith.constant dense<0.000000e+00> : vector<256x256xf32>
    %6 = tpu.matmul %1, %3, %cst {dimension_numbers = #tpu.dot_dimension_numbers<[1], [1], [0], [0], [0, 0, 1, 0], [], []>} : vector<256x128xf32>, vector<256x128xf32>, vector<256x256xf32> -> vector<256x256xf32>
    %cst_8 = arith.constant 0.0883883461 : f32
    %7 = vector.broadcast %cst_8 : f32 to vector<256x256xf32>
    %8 = arith.mulf %6, %7 : vector<256x256xf32>
    %cst_9 = arith.constant dense<0xFF800000> : vector<256xf32>
    %9 = vector.multi_reduction <maximumf>, %8, %cst_9 [1] : vector<256x256xf32> to vector<256xf32>
    %10 = vector.shape_cast %9 : vector<256xf32> to vector<256x1xf32>
    %11 = vector.broadcast %10 : vector<256x1xf32> to vector<256x256xf32>
    %12 = arith.subf %8, %11 : vector<256x256xf32>
    %13 = math.exp %12 : vector<256x256xf32>
    %cst_10 = arith.constant dense<0.000000e+00> : vector<256xf32>
    %14 = vector.multi_reduction <add>, %13, %cst_10 [1] : vector<256x256xf32> to vector<256xf32>
    %15 = vector.shape_cast %14 : vector<256xf32> to vector<256x1xf32>
    %cst_11 = arith.constant dense<0.000000e+00> : vector<256x128xf32>
    %16 = tpu.matmul %13, %5, %cst_11 {dimension_numbers = #tpu.dot_dimension_numbers<[1], [0], [0], [1], [0, 0, 1, 1], [], []>} : vector<256x256xf32>, vector<256x128xf32>, vector<256x128xf32> -> vector<256x128xf32>
    %17 = vector.broadcast %15 : vector<256x1xf32> to vector<256x128xf32>
    %18 = arith.divf %16, %17 : vector<256x128xf32>
    %c0_12 = arith.constant 0 : index
    %c0_13 = arith.constant 0 : index
    %c0_14 = arith.constant 0 : index
    %19 = vector.load %arg4[%c0_12, %c0_13, %c0_14] : memref<1x256x128xf32, #tpu.memory_space<vmem>>, vector<1x256x128xf32>
    %20 = vector.shape_cast %19 : vector<1x256x128xf32> to vector<256x128xf32>
    %21 = vector.shape_cast %18 : vector<256x128xf32> to vector<1x256x128xf32>
    tpu.vector_store %arg4[%c0_12, %c0_13, %c0_14], %21 {strides = array<i32>} : memref<1x256x128xf32, #tpu.memory_space<vmem>>, vector<1x256x128xf32>,
    return
  }
  func.func @transform_0(%arg0: i32) -> (i32, i32, i32) {
    %c0_i32 = arith.constant 0 : i32
    %c0_i32_0 = arith.constant 0 : i32
    %c0_i32_1 = arith.constant 0 : i32
    return %arg0, %c0_i32, %c0_i32_0 : i32, i32, i32
  }
  func.func @transform_1(%arg0: i32) -> (i32, i32, i32) {
    %c0_i32 = arith.constant 0 : i32
    %c0_i32_0 = arith.constant 0 : i32
    %c0_i32_1 = arith.constant 0 : i32
    return %arg0, %c0_i32, %c0_i32_0 : i32, i32, i32
  }
  func.func @transform_2(%arg0: i32) -> (i32, i32, i32) {
    %c0_i32 = arith.constant 0 : i32
    %c0_i32_0 = arith.constant 0 : i32
    %c0_i32_1 = arith.constant 0 : i32
    return %arg0, %c0_i32, %c0_i32_0 : i32, i32, i32
  }
  func.func @transform_3(%arg0: i32) -> (i32, i32, i32) {
    %c0_i32 = arith.constant 0 : i32
    %c0_i32_0 = arith.constant 0 : i32
    %c0_i32_1 = arith.constant 0 : i32
    return %arg0, %c0_i32, %c0_i32_0 : i32, i32, i32
  }
}

module attributes {stable_mosaic.version = 11 : i64} {
  func.func @_proj1_kernel(%arg0: i32, %arg1: memref<256x128xf32, #tpu.memory_space<vmem>>, %arg2: memref<128x128xf32, #tpu.memory_space<vmem>>, %arg3: memref<1x128xf32, #tpu.memory_space<vmem>>, %arg4: memref<1x128xf32, #tpu.memory_space<vmem>>, %arg5: memref<256x128xf32, #tpu.memory_space<vmem>>) attributes {dimension_semantics = [#tpu.dimension_semantics<parallel>], iteration_bounds = array<i64: 2>, scalar_prefetch = 0 : i64, scratch_operands = 0 : i64, tpu.core_type = #tpu.core_type<tc>, window_params = [{transform_indices = @transform_0, window_bounds = array<i64: 256, 128>}, {pipeline_mode = #tpu.pipeline_mode<synchronous>, transform_indices = @transform_1, window_bounds = array<i64: 128, 128>}, {pipeline_mode = #tpu.pipeline_mode<synchronous>, transform_indices = @transform_2, window_bounds = array<i64: 1, 128>}, {pipeline_mode = #tpu.pipeline_mode<synchronous>, transform_indices = @transform_3, window_bounds = array<i64: 1, 128>}, {transform_indices = @transform_4, window_bounds = array<i64: 256, 128>}]} {
    %c0 = arith.constant 0 : index
    %c0_0 = arith.constant 0 : index
    %0 = vector.load %arg1[%c0, %c0_0] : memref<256x128xf32, #tpu.memory_space<vmem>>, vector<256x128xf32>
    %c0_1 = arith.constant 0 : index
    %c0_2 = arith.constant 0 : index
    %1 = vector.load %arg2[%c0_1, %c0_2] : memref<128x128xf32, #tpu.memory_space<vmem>>, vector<128x128xf32>
    %cst = arith.constant dense<0.000000e+00> : vector<256x128xf32>
    %2 = tpu.matmul %0, %1, %cst {dimension_numbers = #tpu.dot_dimension_numbers<[1], [0], [0], [1], [0, 0, 1, 1], [], []>} : vector<256x128xf32>, vector<128x128xf32>, vector<256x128xf32> -> vector<256x128xf32>
    %c0_3 = arith.constant 0 : index
    %c0_4 = arith.constant 0 : index
    %3 = vector.load %arg3[%c0_3, %c0_4] : memref<1x128xf32, #tpu.memory_space<vmem>>, vector<1x128xf32>
    %4 = vector.broadcast %3 : vector<1x128xf32> to vector<256x128xf32>
    %5 = arith.mulf %2, %4 : vector<256x128xf32>
    %c0_5 = arith.constant 0 : index
    %c0_6 = arith.constant 0 : index
    %6 = vector.load %arg4[%c0_5, %c0_6] : memref<1x128xf32, #tpu.memory_space<vmem>>, vector<1x128xf32>
    %7 = vector.broadcast %6 : vector<1x128xf32> to vector<256x128xf32>
    %8 = arith.addf %5, %7 : vector<256x128xf32>
    %cst_7 = arith.constant 0.000000e+00 : f32
    %9 = vector.broadcast %cst_7 : f32 to vector<256x128xf32>
    %10 = arith.maximumf %8, %9 : vector<256x128xf32>
    %c0_8 = arith.constant 0 : index
    %c0_9 = arith.constant 0 : index
    %11 = vector.load %arg5[%c0_8, %c0_9] : memref<256x128xf32, #tpu.memory_space<vmem>>, vector<256x128xf32>
    tpu.vector_store %arg5[%c0_8, %c0_9], %10 {strides = array<i32>} : memref<256x128xf32, #tpu.memory_space<vmem>>, vector<256x128xf32>,
    return
  }
  func.func @transform_0(%arg0: i32) -> (i32, i32) {
    %c0_i32 = arith.constant 0 : i32
    %c0_i32_0 = arith.constant 0 : i32
    return %arg0, %c0_i32 : i32, i32
  }
  func.func @transform_1(%arg0: i32) -> (i32, i32) {
    %c0_i32 = arith.constant 0 : i32
    %c0_i32_0 = arith.constant 0 : i32
    %c0_i32_1 = arith.constant 0 : i32
    return %c0_i32, %c0_i32_0 : i32, i32
  }
  func.func @transform_2(%arg0: i32) -> (i32, i32) {
    %c0_i32 = arith.constant 0 : i32
    %c0_i32_0 = arith.constant 0 : i32
    %c0_i32_1 = arith.constant 0 : i32
    return %c0_i32, %c0_i32_0 : i32, i32
  }
  func.func @transform_3(%arg0: i32) -> (i32, i32) {
    %c0_i32 = arith.constant 0 : i32
    %c0_i32_0 = arith.constant 0 : i32
    %c0_i32_1 = arith.constant 0 : i32
    return %c0_i32, %c0_i32_0 : i32, i32
  }
  func.func @transform_4(%arg0: i32) -> (i32, i32) {
    %c0_i32 = arith.constant 0 : i32
    %c0_i32_0 = arith.constant 0 : i32
    return %arg0, %c0_i32 : i32, i32
  }
}

module attributes {stable_mosaic.version = 11 : i64} {
  func.func @_proj2_kernel(%arg0: i32, %arg1: memref<256x128xf32, #tpu.memory_space<vmem>>, %arg2: memref<128x128xf32, #tpu.memory_space<vmem>>, %arg3: memref<1x128xf32, #tpu.memory_space<vmem>>, %arg4: memref<1x128xf32, #tpu.memory_space<vmem>>, %arg5: memref<128x128xf32, #tpu.memory_space<vmem>>, %arg6: memref<1x128xf32, #tpu.memory_space<vmem>>, %arg7: memref<1x128xf32, #tpu.memory_space<vmem>>, %arg8: memref<256x128xf32, #tpu.memory_space<vmem>>) attributes {dimension_semantics = [#tpu.dimension_semantics<parallel>], iteration_bounds = array<i64: 2>, scalar_prefetch = 0 : i64, scratch_operands = 0 : i64, tpu.core_type = #tpu.core_type<tc>, window_params = [{transform_indices = @transform_0, window_bounds = array<i64: 256, 128>}, {pipeline_mode = #tpu.pipeline_mode<synchronous>, transform_indices = @transform_1, window_bounds = array<i64: 128, 128>}, {pipeline_mode = #tpu.pipeline_mode<synchronous>, transform_indices = @transform_2, window_bounds = array<i64: 1, 128>}, {pipeline_mode = #tpu.pipeline_mode<synchronous>, transform_indices = @transform_3, window_bounds = array<i64: 1, 128>}, {pipeline_mode = #tpu.pipeline_mode<synchronous>, transform_indices = @transform_4, window_bounds = array<i64: 128, 128>}, {pipeline_mode = #tpu.pipeline_mode<synchronous>, transform_indices = @transform_5, window_bounds = array<i64: 1, 128>}, {pipeline_mode = #tpu.pipeline_mode<synchronous>, transform_indices = @transform_6, window_bounds = array<i64: 1, 128>}, {transform_indices = @transform_7, window_bounds = array<i64: 256, 128>}]} {
    %c0 = arith.constant 0 : index
    %c0_0 = arith.constant 0 : index
    %0 = vector.load %arg1[%c0, %c0_0] : memref<256x128xf32, #tpu.memory_space<vmem>>, vector<256x128xf32>
    %c0_1 = arith.constant 0 : index
    %c0_2 = arith.constant 0 : index
    %1 = vector.load %arg2[%c0_1, %c0_2] : memref<128x128xf32, #tpu.memory_space<vmem>>, vector<128x128xf32>
    %cst = arith.constant dense<0.000000e+00> : vector<256x128xf32>
    %2 = tpu.matmul %0, %1, %cst {dimension_numbers = #tpu.dot_dimension_numbers<[1], [0], [0], [1], [0, 0, 1, 1], [], []>} : vector<256x128xf32>, vector<128x128xf32>, vector<256x128xf32> -> vector<256x128xf32>
    %c0_3 = arith.constant 0 : index
    %c0_4 = arith.constant 0 : index
    %3 = vector.load %arg3[%c0_3, %c0_4] : memref<1x128xf32, #tpu.memory_space<vmem>>, vector<1x128xf32>
    %4 = vector.broadcast %3 : vector<1x128xf32> to vector<256x128xf32>
    %5 = arith.mulf %2, %4 : vector<256x128xf32>
    %c0_5 = arith.constant 0 : index
    %c0_6 = arith.constant 0 : index
    %6 = vector.load %arg4[%c0_5, %c0_6] : memref<1x128xf32, #tpu.memory_space<vmem>>, vector<1x128xf32>
    %7 = vector.broadcast %6 : vector<1x128xf32> to vector<256x128xf32>
    %8 = arith.addf %5, %7 : vector<256x128xf32>
    %cst_7 = arith.constant 0.000000e+00 : f32
    %9 = vector.broadcast %cst_7 : f32 to vector<256x128xf32>
    %10 = arith.maximumf %8, %9 : vector<256x128xf32>
    %c0_8 = arith.constant 0 : index
    %c0_9 = arith.constant 0 : index
    %11 = vector.load %arg5[%c0_8, %c0_9] : memref<128x128xf32, #tpu.memory_space<vmem>>, vector<128x128xf32>
    %cst_10 = arith.constant dense<0.000000e+00> : vector<256x128xf32>
    %12 = tpu.matmul %10, %11, %cst_10 {dimension_numbers = #tpu.dot_dimension_numbers<[1], [0], [0], [1], [0, 0, 1, 1], [], []>} : vector<256x128xf32>, vector<128x128xf32>, vector<256x128xf32> -> vector<256x128xf32>
    %c0_11 = arith.constant 0 : index
    %c0_12 = arith.constant 0 : index
    %13 = vector.load %arg6[%c0_11, %c0_12] : memref<1x128xf32, #tpu.memory_space<vmem>>, vector<1x128xf32>
    %14 = vector.broadcast %13 : vector<1x128xf32> to vector<256x128xf32>
    %15 = arith.mulf %12, %14 : vector<256x128xf32>
    %c0_13 = arith.constant 0 : index
    %c0_14 = arith.constant 0 : index
    %16 = vector.load %arg7[%c0_13, %c0_14] : memref<1x128xf32, #tpu.memory_space<vmem>>, vector<1x128xf32>
    %17 = vector.broadcast %16 : vector<1x128xf32> to vector<256x128xf32>
    %18 = arith.addf %15, %17 : vector<256x128xf32>
    %cst_15 = arith.constant 0.000000e+00 : f32
    %19 = vector.broadcast %cst_15 : f32 to vector<256x128xf32>
    %20 = arith.maximumf %18, %19 : vector<256x128xf32>
    %c0_16 = arith.constant 0 : index
    %c0_17 = arith.constant 0 : index
    %21 = vector.load %arg8[%c0_16, %c0_17] : memref<256x128xf32, #tpu.memory_space<vmem>>, vector<256x128xf32>
    tpu.vector_store %arg8[%c0_16, %c0_17], %20 {strides = array<i32>} : memref<256x128xf32, #tpu.memory_space<vmem>>, vector<256x128xf32>,
    return
  }
  func.func @transform_0(%arg0: i32) -> (i32, i32) {
    %c0_i32 = arith.constant 0 : i32
    %c0_i32_0 = arith.constant 0 : i32
    return %arg0, %c0_i32 : i32, i32
  }
  func.func @transform_1(%arg0: i32) -> (i32, i32) {
    %c0_i32 = arith.constant 0 : i32
    %c0_i32_0 = arith.constant 0 : i32
    %c0_i32_1 = arith.constant 0 : i32
    return %c0_i32, %c0_i32_0 : i32, i32
  }
  func.func @transform_2(%arg0: i32) -> (i32, i32) {
    %c0_i32 = arith.constant 0 : i32
    %c0_i32_0 = arith.constant 0 : i32
    %c0_i32_1 = arith.constant 0 : i32
    return %c0_i32, %c0_i32_0 : i32, i32
  }
  func.func @transform_3(%arg0: i32) -> (i32, i32) {
    %c0_i32 = arith.constant 0 : i32
    %c0_i32_0 = arith.constant 0 : i32
    %c0_i32_1 = arith.constant 0 : i32
    return %c0_i32, %c0_i32_0 : i32, i32
  }
  func.func @transform_4(%arg0: i32) -> (i32, i32) {
    %c0_i32 = arith.constant 0 : i32
    %c0_i32_0 = arith.constant 0 : i32
    %c0_i32_1 = arith.constant 0 : i32
    return %c0_i32, %c0_i32_0 : i32, i32
  }
  func.func @transform_5(%arg0: i32) -> (i32, i32) {
    %c0_i32 = arith.constant 0 : i32
    %c0_i32_0 = arith.constant 0 : i32
    %c0_i32_1 = arith.constant 0 : i32
    return %c0_i32, %c0_i32_0 : i32, i32
  }
  func.func @transform_6(%arg0: i32) -> (i32, i32) {
    %c0_i32 = arith.constant 0 : i32
    %c0_i32_0 = arith.constant 0 : i32
    %c0_i32_1 = arith.constant 0 : i32
    return %c0_i32, %c0_i32_0 : i32, i32
  }
  func.func @transform_7(%arg0: i32) -> (i32, i32) {
    %c0_i32 = arith.constant 0 : i32
    %c0_i32_0 = arith.constant 0 : i32
    return %arg0, %c0_i32 : i32, i32
  }
}

module attributes {stable_mosaic.version = 11 : i64} {
  func.func @_proj1_kernel(%arg0: i32, %arg1: memref<256x128xf32, #tpu.memory_space<vmem>>, %arg2: memref<128x128xf32, #tpu.memory_space<vmem>>, %arg3: memref<1x128xf32, #tpu.memory_space<vmem>>, %arg4: memref<1x128xf32, #tpu.memory_space<vmem>>, %arg5: memref<256x128xbf16, #tpu.memory_space<vmem>>) attributes {dimension_semantics = [#tpu.dimension_semantics<parallel>], iteration_bounds = array<i64: 2>, scalar_prefetch = 0 : i64, scratch_operands = 0 : i64, tpu.core_type = #tpu.core_type<tc>, window_params = [{transform_indices = @transform_0, window_bounds = array<i64: 256, 128>}, {pipeline_mode = #tpu.pipeline_mode<synchronous>, transform_indices = @transform_1, window_bounds = array<i64: 128, 128>}, {pipeline_mode = #tpu.pipeline_mode<synchronous>, transform_indices = @transform_2, window_bounds = array<i64: 1, 128>}, {pipeline_mode = #tpu.pipeline_mode<synchronous>, transform_indices = @transform_3, window_bounds = array<i64: 1, 128>}, {transform_indices = @transform_4, window_bounds = array<i64: 256, 128>}]} {
    %c0 = arith.constant 0 : index
    %c0_0 = arith.constant 0 : index
    %0 = vector.load %arg1[%c0, %c0_0] : memref<256x128xf32, #tpu.memory_space<vmem>>, vector<256x128xf32>
    %c0_1 = arith.constant 0 : index
    %c0_2 = arith.constant 0 : index
    %1 = vector.load %arg2[%c0_1, %c0_2] : memref<128x128xf32, #tpu.memory_space<vmem>>, vector<128x128xf32>
    %cst = arith.constant dense<0.000000e+00> : vector<256x128xf32>
    %2 = tpu.matmul %0, %1, %cst {dimension_numbers = #tpu.dot_dimension_numbers<[1], [0], [0], [1], [0, 0, 1, 1], [], []>} : vector<256x128xf32>, vector<128x128xf32>, vector<256x128xf32> -> vector<256x128xf32>
    %c0_3 = arith.constant 0 : index
    %c0_4 = arith.constant 0 : index
    %3 = vector.load %arg3[%c0_3, %c0_4] : memref<1x128xf32, #tpu.memory_space<vmem>>, vector<1x128xf32>
    %4 = vector.broadcast %3 : vector<1x128xf32> to vector<256x128xf32>
    %5 = arith.mulf %2, %4 : vector<256x128xf32>
    %c0_5 = arith.constant 0 : index
    %c0_6 = arith.constant 0 : index
    %6 = vector.load %arg4[%c0_5, %c0_6] : memref<1x128xf32, #tpu.memory_space<vmem>>, vector<1x128xf32>
    %7 = vector.broadcast %6 : vector<1x128xf32> to vector<256x128xf32>
    %8 = arith.addf %5, %7 : vector<256x128xf32>
    %cst_7 = arith.constant 0.000000e+00 : f32
    %9 = vector.broadcast %cst_7 : f32 to vector<256x128xf32>
    %10 = arith.maximumf %8, %9 : vector<256x128xf32>
    %11 = arith.truncf %10 : vector<256x128xf32> to vector<256x128xbf16>
    %c0_8 = arith.constant 0 : index
    %c0_9 = arith.constant 0 : index
    %12 = vector.load %arg5[%c0_8, %c0_9] : memref<256x128xbf16, #tpu.memory_space<vmem>>, vector<256x128xbf16>
    tpu.vector_store %arg5[%c0_8, %c0_9], %11 {strides = array<i32>} : memref<256x128xbf16, #tpu.memory_space<vmem>>, vector<256x128xbf16>,
    return
  }
  func.func @transform_0(%arg0: i32) -> (i32, i32) {
    %c0_i32 = arith.constant 0 : i32
    %c0_i32_0 = arith.constant 0 : i32
    return %arg0, %c0_i32 : i32, i32
  }
  func.func @transform_1(%arg0: i32) -> (i32, i32) {
    %c0_i32 = arith.constant 0 : i32
    %c0_i32_0 = arith.constant 0 : i32
    %c0_i32_1 = arith.constant 0 : i32
    return %c0_i32, %c0_i32_0 : i32, i32
  }
  func.func @transform_2(%arg0: i32) -> (i32, i32) {
    %c0_i32 = arith.constant 0 : i32
    %c0_i32_0 = arith.constant 0 : i32
    %c0_i32_1 = arith.constant 0 : i32
    return %c0_i32, %c0_i32_0 : i32, i32
  }
  func.func @transform_3(%arg0: i32) -> (i32, i32) {
    %c0_i32 = arith.constant 0 : i32
    %c0_i32_0 = arith.constant 0 : i32
    %c0_i32_1 = arith.constant 0 : i32
    return %c0_i32, %c0_i32_0 : i32, i32
  }
  func.func @transform_4(%arg0: i32) -> (i32, i32) {
    %c0_i32 = arith.constant 0 : i32
    %c0_i32_0 = arith.constant 0 : i32
    return %arg0, %c0_i32 : i32, i32
  }
}

module attributes {stable_mosaic.version = 11 : i64} {
  func.func @_bottleneck_kernel(%arg0: i32, %arg1: memref<1x16x16x128xbf16, #tpu.memory_space<vmem>>, %arg2: memref<1x16x16x128xbf16, #tpu.memory_space<vmem>>, %arg3: memref<3x3x256x128xbf16, #tpu.memory_space<vmem>>, %arg4: memref<1x128xf32, #tpu.memory_space<vmem>>, %arg5: memref<1x128xf32, #tpu.memory_space<vmem>>, %arg6: memref<1x16x16x128xf32, #tpu.memory_space<vmem>>, %arg7: memref<18x18x256xf32, #tpu.memory_space<vmem>>) attributes {dimension_semantics = [#tpu.dimension_semantics<parallel>], iteration_bounds = array<i64: 2>, scalar_prefetch = 0 : i64, scratch_operands = 1 : i64, tpu.core_type = #tpu.core_type<tc>, window_params = [{transform_indices = @transform_0, window_bounds = array<i64: 1, 16, 16, 128>}, {transform_indices = @transform_1, window_bounds = array<i64: 1, 16, 16, 128>}, {pipeline_mode = #tpu.pipeline_mode<synchronous>, transform_indices = @transform_2, window_bounds = array<i64: 3, 3, 256, 128>}, {pipeline_mode = #tpu.pipeline_mode<synchronous>, transform_indices = @transform_3, window_bounds = array<i64: 1, 128>}, {pipeline_mode = #tpu.pipeline_mode<synchronous>, transform_indices = @transform_4, window_bounds = array<i64: 1, 128>}, {transform_indices = @transform_5, window_bounds = array<i64: 1, 16, 16, 128>}]} {
    %cst = arith.constant 0.000000e+00 : f32
    %0 = vector.broadcast %cst : f32 to vector<18x18x256xf32>
    %c0 = arith.constant 0 : index
    %c0_0 = arith.constant 0 : index
    %c0_1 = arith.constant 0 : index
    %1 = vector.load %arg7[%c0, %c0_0, %c0_1] : memref<18x18x256xf32, #tpu.memory_space<vmem>>, vector<18x18x256xf32>
    tpu.vector_store %arg7[%c0, %c0_0, %c0_1], %0 {strides = array<i32>} : memref<18x18x256xf32, #tpu.memory_space<vmem>>, vector<18x18x256xf32>,
    %c0_2 = arith.constant 0 : index
    %c0_3 = arith.constant 0 : index
    %c0_4 = arith.constant 0 : index
    %c0_5 = arith.constant 0 : index
    %2 = vector.load %arg1[%c0_2, %c0_3, %c0_4, %c0_5] : memref<1x16x16x128xbf16, #tpu.memory_space<vmem>>, vector<1x16x16x128xbf16>
    %3 = vector.shape_cast %2 : vector<1x16x16x128xbf16> to vector<16x16x128xbf16>
    %4 = arith.extf %3 : vector<16x16x128xbf16> to vector<16x16x128xf32>
    %c1 = arith.constant 1 : index
    %c1_6 = arith.constant 1 : index
    %c0_7 = arith.constant 0 : index
    %5 = vector.load %arg7[%c1, %c1_6, %c0_7] : memref<18x18x256xf32, #tpu.memory_space<vmem>>, vector<16x16x128xf32>
    tpu.vector_store %arg7[%c1, %c1_6, %c0_7], %4 {strides = array<i32>} : memref<18x18x256xf32, #tpu.memory_space<vmem>>, vector<16x16x128xf32>,
    %c0_8 = arith.constant 0 : index
    %c0_9 = arith.constant 0 : index
    %c0_10 = arith.constant 0 : index
    %c0_11 = arith.constant 0 : index
    %6 = vector.load %arg2[%c0_8, %c0_9, %c0_10, %c0_11] : memref<1x16x16x128xbf16, #tpu.memory_space<vmem>>, vector<1x16x16x128xbf16>
    %7 = vector.shape_cast %6 : vector<1x16x16x128xbf16> to vector<16x16x128xbf16>
    %8 = arith.extf %7 : vector<16x16x128xbf16> to vector<16x16x128xf32>
    %c1_12 = arith.constant 1 : index
    %c1_13 = arith.constant 1 : index
    %c128 = arith.constant 128 : index
    %9 = vector.load %arg7[%c1_12, %c1_13, %c128] : memref<18x18x256xf32, #tpu.memory_space<vmem>>, vector<16x16x128xf32>
    tpu.vector_store %arg7[%c1_12, %c1_13, %c128], %8 {strides = array<i32>} : memref<18x18x256xf32, #tpu.memory_space<vmem>>, vector<16x16x128xf32>,
    %cst_14 = arith.constant 0.000000e+00 : f32
    %10 = vector.broadcast %cst_14 : f32 to vector<256x128xf32>
    %c0_15 = arith.constant 0 : index
    %c0_16 = arith.constant 0 : index
    %c0_17 = arith.constant 0 : index
    %11 = vector.load %arg7[%c0_15, %c0_16, %c0_17] : memref<18x18x256xf32, #tpu.memory_space<vmem>>, vector<16x16x256xf32>
    %12 = vector.shape_cast %11 : vector<16x16x256xf32> to vector<256x256xf32>
    %13 = arith.truncf %12 : vector<256x256xf32> to vector<256x256xbf16>
    %c0_18 = arith.constant 0 : index
    %c0_19 = arith.constant 0 : index
    %c0_20 = arith.constant 0 : index
    %c0_21 = arith.constant 0 : index
    %14 = vector.load %arg3[%c0_18, %c0_19, %c0_20, %c0_21] : memref<3x3x256x128xbf16, #tpu.memory_space<vmem>>, vector<1x1x256x128xbf16>
    %15 = vector.shape_cast %14 : vector<1x1x256x128xbf16> to vector<256x128xbf16>
    %cst_22 = arith.constant dense<0.000000e+00> : vector<256x128xf32>
    %16 = tpu.matmul %13, %15, %cst_22 {dimension_numbers = #tpu.dot_dimension_numbers<[1], [0], [0], [1], [0, 0, 1, 1], [], []>} : vector<256x256xbf16>, vector<256x128xbf16>, vector<256x128xf32> -> vector<256x128xf32>
    %17 = arith.addf %10, %16 : vector<256x128xf32>
    %c0_23 = arith.constant 0 : index
    %c1_24 = arith.constant 1 : index
    %c0_25 = arith.constant 0 : index
    %18 = vector.load %arg7[%c0_23, %c1_24, %c0_25] : memref<18x18x256xf32, #tpu.memory_space<vmem>>, vector<16x16x256xf32>
    %19 = vector.shape_cast %18 : vector<16x16x256xf32> to vector<256x256xf32>
    %20 = arith.truncf %19 : vector<256x256xf32> to vector<256x256xbf16>
    %c0_26 = arith.constant 0 : index
    %c1_27 = arith.constant 1 : index
    %c0_28 = arith.constant 0 : index
    %c0_29 = arith.constant 0 : index
    %21 = vector.load %arg3[%c0_26, %c1_27, %c0_28, %c0_29] : memref<3x3x256x128xbf16, #tpu.memory_space<vmem>>, vector<1x1x256x128xbf16>
    %22 = vector.shape_cast %21 : vector<1x1x256x128xbf16> to vector<256x128xbf16>
    %cst_30 = arith.constant dense<0.000000e+00> : vector<256x128xf32>
    %23 = tpu.matmul %20, %22, %cst_30 {dimension_numbers = #tpu.dot_dimension_numbers<[1], [0], [0], [1], [0, 0, 1, 1], [], []>} : vector<256x256xbf16>, vector<256x128xbf16>, vector<256x128xf32> -> vector<256x128xf32>
    %24 = arith.addf %17, %23 : vector<256x128xf32>
    %c0_31 = arith.constant 0 : index
    %c2 = arith.constant 2 : index
    %c0_32 = arith.constant 0 : index
    %25 = vector.load %arg7[%c0_31, %c2, %c0_32] : memref<18x18x256xf32, #tpu.memory_space<vmem>>, vector<16x16x256xf32>
    %26 = vector.shape_cast %25 : vector<16x16x256xf32> to vector<256x256xf32>
    %27 = arith.truncf %26 : vector<256x256xf32> to vector<256x256xbf16>
    %c0_33 = arith.constant 0 : index
    %c2_34 = arith.constant 2 : index
    %c0_35 = arith.constant 0 : index
    %c0_36 = arith.constant 0 : index
    %28 = vector.load %arg3[%c0_33, %c2_34, %c0_35, %c0_36] : memref<3x3x256x128xbf16, #tpu.memory_space<vmem>>, vector<1x1x256x128xbf16>
    %29 = vector.shape_cast %28 : vector<1x1x256x128xbf16> to vector<256x128xbf16>
    %cst_37 = arith.constant dense<0.000000e+00> : vector<256x128xf32>
    %30 = tpu.matmul %27, %29, %cst_37 {dimension_numbers = #tpu.dot_dimension_numbers<[1], [0], [0], [1], [0, 0, 1, 1], [], []>} : vector<256x256xbf16>, vector<256x128xbf16>, vector<256x128xf32> -> vector<256x128xf32>
    %31 = arith.addf %24, %30 : vector<256x128xf32>
    %c1_38 = arith.constant 1 : index
    %c0_39 = arith.constant 0 : index
    %c0_40 = arith.constant 0 : index
    %32 = vector.load %arg7[%c1_38, %c0_39, %c0_40] : memref<18x18x256xf32, #tpu.memory_space<vmem>>, vector<16x16x256xf32>
    %33 = vector.shape_cast %32 : vector<16x16x256xf32> to vector<256x256xf32>
    %34 = arith.truncf %33 : vector<256x256xf32> to vector<256x256xbf16>
    %c1_41 = arith.constant 1 : index
    %c0_42 = arith.constant 0 : index
    %c0_43 = arith.constant 0 : index
    %c0_44 = arith.constant 0 : index
    %35 = vector.load %arg3[%c1_41, %c0_42, %c0_43, %c0_44] : memref<3x3x256x128xbf16, #tpu.memory_space<vmem>>, vector<1x1x256x128xbf16>
    %36 = vector.shape_cast %35 : vector<1x1x256x128xbf16> to vector<256x128xbf16>
    %cst_45 = arith.constant dense<0.000000e+00> : vector<256x128xf32>
    %37 = tpu.matmul %34, %36, %cst_45 {dimension_numbers = #tpu.dot_dimension_numbers<[1], [0], [0], [1], [0, 0, 1, 1], [], []>} : vector<256x256xbf16>, vector<256x128xbf16>, vector<256x128xf32> -> vector<256x128xf32>
    %38 = arith.addf %31, %37 : vector<256x128xf32>
    %c1_46 = arith.constant 1 : index
    %c1_47 = arith.constant 1 : index
    %c0_48 = arith.constant 0 : index
    %39 = vector.load %arg7[%c1_46, %c1_47, %c0_48] : memref<18x18x256xf32, #tpu.memory_space<vmem>>, vector<16x16x256xf32>
    %40 = vector.shape_cast %39 : vector<16x16x256xf32> to vector<256x256xf32>
    %41 = arith.truncf %40 : vector<256x256xf32> to vector<256x256xbf16>
    %c1_49 = arith.constant 1 : index
    %c1_50 = arith.constant 1 : index
    %c0_51 = arith.constant 0 : index
    %c0_52 = arith.constant 0 : index
    %42 = vector.load %arg3[%c1_49, %c1_50, %c0_51, %c0_52] : memref<3x3x256x128xbf16, #tpu.memory_space<vmem>>, vector<1x1x256x128xbf16>
    %43 = vector.shape_cast %42 : vector<1x1x256x128xbf16> to vector<256x128xbf16>
    %cst_53 = arith.constant dense<0.000000e+00> : vector<256x128xf32>
    %44 = tpu.matmul %41, %43, %cst_53 {dimension_numbers = #tpu.dot_dimension_numbers<[1], [0], [0], [1], [0, 0, 1, 1], [], []>} : vector<256x256xbf16>, vector<256x128xbf16>, vector<256x128xf32> -> vector<256x128xf32>
    %45 = arith.addf %38, %44 : vector<256x128xf32>
    %c1_54 = arith.constant 1 : index
    %c2_55 = arith.constant 2 : index
    %c0_56 = arith.constant 0 : index
    %46 = vector.load %arg7[%c1_54, %c2_55, %c0_56] : memref<18x18x256xf32, #tpu.memory_space<vmem>>, vector<16x16x256xf32>
    %47 = vector.shape_cast %46 : vector<16x16x256xf32> to vector<256x256xf32>
    %48 = arith.truncf %47 : vector<256x256xf32> to vector<256x256xbf16>
    %c1_57 = arith.constant 1 : index
    %c2_58 = arith.constant 2 : index
    %c0_59 = arith.constant 0 : index
    %c0_60 = arith.constant 0 : index
    %49 = vector.load %arg3[%c1_57, %c2_58, %c0_59, %c0_60] : memref<3x3x256x128xbf16, #tpu.memory_space<vmem>>, vector<1x1x256x128xbf16>
    %50 = vector.shape_cast %49 : vector<1x1x256x128xbf16> to vector<256x128xbf16>
    %cst_61 = arith.constant dense<0.000000e+00> : vector<256x128xf32>
    %51 = tpu.matmul %48, %50, %cst_61 {dimension_numbers = #tpu.dot_dimension_numbers<[1], [0], [0], [1], [0, 0, 1, 1], [], []>} : vector<256x256xbf16>, vector<256x128xbf16>, vector<256x128xf32> -> vector<256x128xf32>
    %52 = arith.addf %45, %51 : vector<256x128xf32>
    %c2_62 = arith.constant 2 : index
    %c0_63 = arith.constant 0 : index
    %c0_64 = arith.constant 0 : index
    %53 = vector.load %arg7[%c2_62, %c0_63, %c0_64] : memref<18x18x256xf32, #tpu.memory_space<vmem>>, vector<16x16x256xf32>
    %54 = vector.shape_cast %53 : vector<16x16x256xf32> to vector<256x256xf32>
    %55 = arith.truncf %54 : vector<256x256xf32> to vector<256x256xbf16>
    %c2_65 = arith.constant 2 : index
    %c0_66 = arith.constant 0 : index
    %c0_67 = arith.constant 0 : index
    %c0_68 = arith.constant 0 : index
    %56 = vector.load %arg3[%c2_65, %c0_66, %c0_67, %c0_68] : memref<3x3x256x128xbf16, #tpu.memory_space<vmem>>, vector<1x1x256x128xbf16>
    %57 = vector.shape_cast %56 : vector<1x1x256x128xbf16> to vector<256x128xbf16>
    %cst_69 = arith.constant dense<0.000000e+00> : vector<256x128xf32>
    %58 = tpu.matmul %55, %57, %cst_69 {dimension_numbers = #tpu.dot_dimension_numbers<[1], [0], [0], [1], [0, 0, 1, 1], [], []>} : vector<256x256xbf16>, vector<256x128xbf16>, vector<256x128xf32> -> vector<256x128xf32>
    %59 = arith.addf %52, %58 : vector<256x128xf32>
    %c2_70 = arith.constant 2 : index
    %c1_71 = arith.constant 1 : index
    %c0_72 = arith.constant 0 : index
    %60 = vector.load %arg7[%c2_70, %c1_71, %c0_72] : memref<18x18x256xf32, #tpu.memory_space<vmem>>, vector<16x16x256xf32>
    %61 = vector.shape_cast %60 : vector<16x16x256xf32> to vector<256x256xf32>
    %62 = arith.truncf %61 : vector<256x256xf32> to vector<256x256xbf16>
    %c2_73 = arith.constant 2 : index
    %c1_74 = arith.constant 1 : index
    %c0_75 = arith.constant 0 : index
    %c0_76 = arith.constant 0 : index
    %63 = vector.load %arg3[%c2_73, %c1_74, %c0_75, %c0_76] : memref<3x3x256x128xbf16, #tpu.memory_space<vmem>>, vector<1x1x256x128xbf16>
    %64 = vector.shape_cast %63 : vector<1x1x256x128xbf16> to vector<256x128xbf16>
    %cst_77 = arith.constant dense<0.000000e+00> : vector<256x128xf32>
    %65 = tpu.matmul %62, %64, %cst_77 {dimension_numbers = #tpu.dot_dimension_numbers<[1], [0], [0], [1], [0, 0, 1, 1], [], []>} : vector<256x256xbf16>, vector<256x128xbf16>, vector<256x128xf32> -> vector<256x128xf32>
    %66 = arith.addf %59, %65 : vector<256x128xf32>
    %c2_78 = arith.constant 2 : index
    %c2_79 = arith.constant 2 : index
    %c0_80 = arith.constant 0 : index
    %67 = vector.load %arg7[%c2_78, %c2_79, %c0_80] : memref<18x18x256xf32, #tpu.memory_space<vmem>>, vector<16x16x256xf32>
    %68 = vector.shape_cast %67 : vector<16x16x256xf32> to vector<256x256xf32>
    %69 = arith.truncf %68 : vector<256x256xf32> to vector<256x256xbf16>
    %c2_81 = arith.constant 2 : index
    %c2_82 = arith.constant 2 : index
    %c0_83 = arith.constant 0 : index
    %c0_84 = arith.constant 0 : index
    %70 = vector.load %arg3[%c2_81, %c2_82, %c0_83, %c0_84] : memref<3x3x256x128xbf16, #tpu.memory_space<vmem>>, vector<1x1x256x128xbf16>
    %71 = vector.shape_cast %70 : vector<1x1x256x128xbf16> to vector<256x128xbf16>
    %cst_85 = arith.constant dense<0.000000e+00> : vector<256x128xf32>
    %72 = tpu.matmul %69, %71, %cst_85 {dimension_numbers = #tpu.dot_dimension_numbers<[1], [0], [0], [1], [0, 0, 1, 1], [], []>} : vector<256x256xbf16>, vector<256x128xbf16>, vector<256x128xf32> -> vector<256x128xf32>
    %73 = arith.addf %66, %72 : vector<256x128xf32>
    %c0_86 = arith.constant 0 : index
    %c0_87 = arith.constant 0 : index
    %74 = vector.load %arg4[%c0_86, %c0_87] : memref<1x128xf32, #tpu.memory_space<vmem>>, vector<1x128xf32>
    %75 = vector.broadcast %74 : vector<1x128xf32> to vector<256x128xf32>
    %76 = arith.mulf %73, %75 : vector<256x128xf32>
    %c0_88 = arith.constant 0 : index
    %c0_89 = arith.constant 0 : index
    %77 = vector.load %arg5[%c0_88, %c0_89] : memref<1x128xf32, #tpu.memory_space<vmem>>, vector<1x128xf32>
    %78 = vector.broadcast %77 : vector<1x128xf32> to vector<256x128xf32>
    %79 = arith.addf %76, %78 : vector<256x128xf32>
    %cst_90 = arith.constant 0.000000e+00 : f32
    %80 = vector.broadcast %cst_90 : f32 to vector<256x128xf32>
    %81 = arith.maximumf %79, %80 : vector<256x128xf32>
    %82 = vector.shape_cast %81 : vector<256x128xf32> to vector<16x16x128xf32>
    %c0_91 = arith.constant 0 : index
    %c0_92 = arith.constant 0 : index
    %c0_93 = arith.constant 0 : index
    %c0_94 = arith.constant 0 : index
    %83 = vector.load %arg6[%c0_91, %c0_92, %c0_93, %c0_94] : memref<1x16x16x128xf32, #tpu.memory_space<vmem>>, vector<1x16x16x128xf32>
    %84 = vector.shape_cast %83 : vector<1x16x16x128xf32> to vector<16x16x128xf32>
    %85 = vector.shape_cast %82 : vector<16x16x128xf32> to vector<1x16x16x128xf32>
    tpu.vector_store %arg6[%c0_91, %c0_92, %c0_93, %c0_94], %85 {strides = array<i32>} : memref<1x16x16x128xf32, #tpu.memory_space<vmem>>, vector<1x16x16x128xf32>,
    return
  }
  func.func @transform_0(%arg0: i32) -> (i32, i32, i32, i32) {
    %c0_i32 = arith.constant 0 : i32
    %c0_i32_0 = arith.constant 0 : i32
    %c0_i32_1 = arith.constant 0 : i32
    %c0_i32_2 = arith.constant 0 : i32
    return %arg0, %c0_i32, %c0_i32_0, %c0_i32_1 : i32, i32, i32, i32
  }
  func.func @transform_1(%arg0: i32) -> (i32, i32, i32, i32) {
    %c0_i32 = arith.constant 0 : i32
    %c0_i32_0 = arith.constant 0 : i32
    %c0_i32_1 = arith.constant 0 : i32
    %c0_i32_2 = arith.constant 0 : i32
    return %arg0, %c0_i32, %c0_i32_0, %c0_i32_1 : i32, i32, i32, i32
  }
  func.func @transform_2(%arg0: i32) -> (i32, i32, i32, i32) {
    %c0_i32 = arith.constant 0 : i32
    %c0_i32_0 = arith.constant 0 : i32
    %c0_i32_1 = arith.constant 0 : i32
    %c0_i32_2 = arith.constant 0 : i32
    %c0_i32_3 = arith.constant 0 : i32
    return %c0_i32, %c0_i32_0, %c0_i32_1, %c0_i32_2 : i32, i32, i32, i32
  }
  func.func @transform_3(%arg0: i32) -> (i32, i32) {
    %c0_i32 = arith.constant 0 : i32
    %c0_i32_0 = arith.constant 0 : i32
    %c0_i32_1 = arith.constant 0 : i32
    return %c0_i32, %c0_i32_0 : i32, i32
  }
  func.func @transform_4(%arg0: i32) -> (i32, i32) {
    %c0_i32 = arith.constant 0 : i32
    %c0_i32_0 = arith.constant 0 : i32
    %c0_i32_1 = arith.constant 0 : i32
    return %c0_i32, %c0_i32_0 : i32, i32
  }
  func.func @transform_5(%arg0: i32) -> (i32, i32, i32, i32) {
    %c0_i32 = arith.constant 0 : i32
    %c0_i32_0 = arith.constant 0 : i32
    %c0_i32_1 = arith.constant 0 : i32
    %c0_i32_2 = arith.constant 0 : i32
    return %arg0, %c0_i32, %c0_i32_0, %c0_i32_1 : i32, i32, i32, i32
  }
}

</mosaic_0001>

<llo_original>
// kernel: object_context_block.8
$region0: #{object_context_block.8}
  #allocation0 [shape = 'u32[]', space=smem, size = 0x4, offset = 0x4, fixed_abs, tag = 'smem constant byte address 0x4 - core index']
  #allocation1 [shape = 'u32[144,128]{1,0:T(1,128)}', space=vmem, size = 0x12000, scoped, tag = 'internal scratch']
  %s0 = inlined_call_operand.vmem [shape: f32[512,128], index: 0, kind: input, shape index: {}]
  %s1 = inlined_call_operand.vmem [shape: f32[128,128], index: 1, kind: input, shape index: {}]
  %s2 = inlined_call_operand.vmem [shape: f32[1,128], index: 2, kind: input, shape index: {}]
  %s3 = inlined_call_operand.vmem [shape: f32[1,128], index: 3, kind: input, shape index: {}]
  %s4 = inlined_call_operand.vmem [shape: f32[512,128], index: 4, kind: output, shape index: {}]
  %s5 = sld [smem:[#allocation0]]
  $region49: #{object_context_block.8} parent=0
    _
  %s7 = ssub.s32 1, %s5
  %s8 = scalar_select 0, %s7, %s5
  loop: start=0, step=1, limit=4
  $region2: #{object_context_block.8} parent=0 // loop_pre_header
    _
  $region3: #{object_context_block.8} parent=0 // loop_header
    %s10 = sphi 0, %s14
    %p11 = scmp.ge.s32.totalorder %s10, 4
    %s20 = sphi 0, %s22
    %s23 = sphi 0, %s20
    %s24 = sphi 0, %s23
    %s40 = sphi 0, %s24
    %s44 = sphi 0, %s44
    %s46 = sphi 0, %s44
    %s47 = sphi 0, %s46
    %s61 = sphi 0, %s47
    %s65 = sphi 0, %s65
    %s67 = sphi 0, %s65
    %s68 = sphi 0, %s67
    %s82 = sphi 0, %s68
    %s86 = sphi 0, %s86
    %s88 = sphi 0, %s86
    %s89 = sphi 0, %s88
    %s103 = sphi 0, %s89
    %s109 = sphi 0, %s111
    %s112 = sphi 0, %s109
    %s113 = sphi 0, %s112
    %s129 = sphi 0, %s113
  $region4: #{object_context_block.8} parent=0 // loop_header_branch
    %13 = sbr.rel (%p11) target = $region8
  $region5: #{object_context_block.8} parent=0 // loop_body
    %s15 = ssub.s32 %s10, 1
    %s16 = ssub.s32 %s10, 2
    %s17 = sadd.s32 %s10, 1
    %s18 = ssub.s32 %s10, %s17
    %p19 = scmp.eq.s32.totalorder %s18, 0
    %s21 = sadd.s32 %s20, 1
    %s22 = scalar_select %p19, %s20, %s21
    %p25 = pneg %p19
    %p26 = scmp.eq.s32.totalorder %s10, 1
    %p27 = por %p25, %p26
    %p28 = scmp.ne.s32.totalorder %s20, %s23
    %p29 = scmp.eq.s32.totalorder %s10, 0
    %p30 = por %p28, %p29
    %p31 = scmp.ne.s32.totalorder %s20, %s23
    %p32 = scmp.eq.s32.totalorder %s15, 1
    %p33 = por %p31, %p32
    %p34 = scmp.ne.s32.totalorder %s23, %s24
    %p35 = scmp.eq.s32.totalorder %s15, 0
    %p36 = por %p34, %p35
    %p37 = scmp.ne.s32.totalorder %s23, %s24
    %p38 = scmp.eq.s32.totalorder %s16, 1
    %p39 = por %p37, %p38
    %p41 = scmp.ne.s32.totalorder %s24, %s40
    %p42 = scmp.eq.s32.totalorder %s16, 0
    %p43 = por %p41, %p42
    %s45 = sadd.s32 %s44, 1
    %p48 = scmp.eq.s32.totalorder %s10, 1
    %p49 = scmp.ne.s32.totalorder %s44, %s46
    %p50 = scmp.eq.s32.totalorder %s10, 0
    %p51 = por %p49, %p50
    %p52 = scmp.ne.s32.totalorder %s44, %s46
    %p53 = scmp.eq.s32.totalorder %s15, 1
    %p54 = por %p52, %p53
    %p55 = scmp.ne.s32.totalorder %s46, %s47
    %p56 = scmp.eq.s32.totalorder %s15, 0
    %p57 = por %p55, %p56
    %p58 = scmp.ne.s32.totalorder %s46, %s47
    %p59 = scmp.eq.s32.totalorder %s16, 1
    %p60 = por %p58, %p59
    %p62 = scmp.ne.s32.totalorder %s47, %s61
    %p63 = scmp.eq.s32.totalorder %s16, 0
    %p64 = por %p62, %p63
    %s66 = sadd.s32 %s65, 1
    %p69 = scmp.eq.s32.totalorder %s10, 1
    %p70 = scmp.ne.s32.totalorder %s65, %s67
    %p71 = scmp.eq.s32.totalorder %s10, 0
    %p72 = por %p70, %p71
    %p73 = scmp.ne.s32.totalorder %s65, %s67
    %p74 = scmp.eq.s32.totalorder %s15, 1
    %p75 = por %p73, %p74
    %p76 = scmp.ne.s32.totalorder %s67, %s68
    %p77 = scmp.eq.s32.totalorder %s15, 0
    %p78 = por %p76, %p77
    %p79 = scmp.ne.s32.totalorder %s67, %s68
    %p80 = scmp.eq.s32.totalorder %s16, 1
    %p81 = por %p79, %p80
    %p83 = scmp.ne.s32.totalorder %s68, %s82
    %p84 = scmp.eq.s32.totalorder %s16, 0
    %p85 = por %p83, %p84
    %s87 = sadd.s32 %s86, 1
    %p90 = scmp.eq.s32.totalorder %s10, 1
    %p91 = scmp.ne.s32.totalorder %s86, %s88
    %p92 = scmp.eq.s32.totalorder %s10, 0
    %p93 = por %p91, %p92
    %p94 = scmp.ne.s32.totalorder %s86, %s88
    %p95 = scmp.eq.s32.totalorder %s15, 1
    %p96 = por %p94, %p95
    %p97 = scmp.ne.s32.totalorder %s88, %s89
    %p98 = scmp.eq.s32.totalorder %s15, 0
    %p99 = por %p97, %p98
    %p100 = scmp.ne.s32.totalorder %s88, %s89
    %p101 = scmp.eq.s32.totalorder %s16, 1
    %p102 = por %p100, %p101
    %p104 = scmp.ne.s32.totalorder %s89, %s103
    %p105 = scmp.eq.s32.totalorder %s16, 0
    %p106 = por %p104, %p105
    %s107 = ssub.s32 %s10, %s17
    %p108 = scmp.eq.s32.totalorder %s107, 0
    %s110 = sadd.s32 %s109, 1
    %s111 = scalar_select %p108, %s109, %s110
    %p114 = pneg %p108
    %p115 = scmp.eq.s32.totalorder %s10, 1
    %p116 = por %p114, %p115
    %p117 = scmp.ne.s32.totalorder %s109, %s112
    %p118 = scmp.eq.s32.totalorder %s10, 0
    %p119 = por %p117, %p118
    %p120 = scmp.ne.s32.totalorder %s109, %s112
    %p121 = scmp.eq.s32.totalorder %s15, 1
    %p122 = por %p120, %p121
    %p123 = scmp.ne.s32.totalorder %s112, %s113
    %p124 = scmp.eq.s32.totalorder %s15, 0
    %p125 = por %p123, %p124
    %p126 = scmp.ne.s32.totalorder %s112, %s113
    %p127 = scmp.eq.s32.totalorder %s16, 1
    %p128 = por %p126, %p127
    %p130 = scmp.ne.s32.totalorder %s113, %s129
    %p131 = scmp.eq.s32.totalorder %s16, 0
    %p132 = por %p130, %p131
    %p133 = scmp.le.s32.totalorder 1, %s10
    %p134 = scmp.lt.s32.totalorder %s10, 3
    %p135 = pnand %p133, %p134
    %p136 = pneg %p135
    // Predicated region
    $region9: #{object_context_block.8} parent=5 // pred_check
      _
    $region10: #{object_context_block.8} parent=5 // pred_check_branch
      %138 = sbr.rel (%p135) target = $region12
    $region11: #{object_context_block.8} parent=5 // pred_region
      %s139 = ssub.s32 %s10, 1
      // Predicated region
      $region13: #{object_context_block.8} parent=11 // pred_check
        %p140 = pneg %p57
      $region14: #{object_context_block.8} parent=11 // pred_check_branch
        %142 = sbr.rel (%p140) target = $region16
      $region15: #{object_context_block.8} parent=11 // pred_region
        _
      $region16: #{object_context_block.8} parent=11 // pred_fallthru
        _
      // Predicated region
      $region17: #{object_context_block.8} parent=11 // pred_check
        %p143 = pneg %p78
      $region18: #{object_context_block.8} parent=11 // pred_check_branch
        %145 = sbr.rel (%p143) target = $region20
      $region19: #{object_context_block.8} parent=11 // pred_region
        _
      $region20: #{object_context_block.8} parent=11 // pred_fallthru
        _
      // Predicated region
      $region21: #{object_context_block.8} parent=11 // pred_check
        %p146 = pneg %p99
      $region22: #{object_context_block.8} parent=11 // pred_check_branch
        %148 = sbr.rel (%p146) target = $region24
      $region23: #{object_context_block.8} parent=11 // pred_region
        _
      $region24: #{object_context_block.8} parent=11 // pred_fallthru
        _
    $region12: #{object_context_block.8} parent=5 // pred_fallthru
      _
    %p149 = scmp.lt.s32.totalorder %s10, 2
    // Predicated region
    $region25: #{object_context_block.8} parent=5 // pred_check
      %p150 = pneg %p149
    $region26: #{object_context_block.8} parent=5 // pred_check_branch
      %152 = sbr.rel (%p150) target = $region28
    $region27: #{object_context_block.8} parent=5 // pred_region
      // Predicated region
      $region29: #{object_context_block.8} parent=27 // pred_check
        %p153 = pneg %p30
      $region30: #{object_context_block.8} parent=27 // pred_check_branch
        %155 = sbr.rel (%p153) target = $region32
      $region31: #{object_context_block.8} parent=27 // pred_region
        %s156 = smul.u32 32, %s10
        %p157 = scmp.lt.s32.totalorder %s156, 63
        %s158 = scalar_select %p157, %s156, 63
        %s159 = smul.addr %s158, 8
        %s160 = scalar_lea.vmem %s0, %s159
        %s161 = smul.u32 32, %s10
      $region32: #{object_context_block.8} parent=27 // pred_fallthru
        _
    $region28: #{object_context_block.8} parent=5 // pred_fallthru
      _
    %p162 = scmp.le.s32.totalorder 1, %s10
    %p163 = scmp.lt.s32.totalorder %s10, 3
    %p164 = pnand %p162, %p163
    %p165 = pneg %p164
    // Predicated region
    $region33: #{object_context_block.8} parent=5 // pred_check
      _
    $region34: #{object_context_block.8} parent=5 // pred_check_branch
      %167 = sbr.rel (%p164) target = $region36
    $region35: #{object_context_block.8} parent=5 // pred_region
      %s168 = ssub.s32 %s10, 1
      %s169 = smul.u32 32, %s15
      %p170 = scmp.lt.s32.totalorder %s169, 63
      %s171 = scalar_select %p170, %s169, 63
      %s172 = smul.addr %s171, 8
      %s173 = scalar_lea.vmem %s0, %s172
      %p174 = pneg %p36
      %p175 = pneg %p33
      %p176 = pneg %p57
      %p177 = pneg %p54
      %p178 = pneg %p78
      %p179 = pneg %p75
      %p180 = pneg %p99
      %p181 = pneg %p96
      %p182 = pneg %p125
      %p183 = pneg %p122
      %s184 = smul.u32 32, %s15
      %p185 = scmp.lt.s32.totalorder %s184, 63
      %s186 = scalar_select %p185, %s184, 63
      %s187 = smul.addr %s186, 8
      %s188 = scalar_lea.vmem %s4, %s187
      %s189 = smul.u32 32, %s15
      %p190 = scmp.lt.s32.totalorder %s189, 63
      %s191 = scalar_select %p190, %s189, 63
      %s192 = smul.addr %s191, 8
      %s193 = scalar_lea.vmem %s0, %s192
      %s194 = smul.u32 32, %s15
      %s195 = smul.u32 32, %s15
      %p196 = scmp.lt.s32.totalorder %s195, 63
      %s197 = scalar_select %p196, %s195, 63
      %s198 = smul.addr %s197, 8
      %s199 = scalar_lea.vmem %s4, %s198
      %s200 = smul.u32 32, %s15
      %v201 = vld [vmem:[%s193] sm:$0xff]
      %v202 = vld [vmem:[%s193 + $0x8] sm:$0xff]
      %v203 = vld [vmem:[%s193 + $0x10] sm:$0xff]
      %v204 = vld [vmem:[%s193 + $0x18] sm:$0xff]
      %v205 = vld [vmem:[%s193 + $0x20] sm:$0xff]
      %v206 = vld [vmem:[%s193 + $0x28] sm:$0xff]
      %v207 = vld [vmem:[%s193 + $0x30] sm:$0xff]
      %v208 = vld [vmem:[%s193 + $0x38] sm:$0xff]
      %v209 = vld [vmem:[%s193 + $0x40] sm:$0xff]
      %v210 = vld [vmem:[%s193 + $0x48] sm:$0xff]
      %v211 = vld [vmem:[%s193 + $0x50] sm:$0xff]
      %v212 = vld [vmem:[%s193 + $0x58] sm:$0xff]
      %v213 = vld [vmem:[%s193 + $0x60] sm:$0xff]
      %v214 = vld [vmem:[%s193 + $0x68] sm:$0xff]
      %v215 = vld [vmem:[%s193 + $0x70] sm:$0xff]
      %v216 = vld [vmem:[%s193 + $0x78] sm:$0xff]
      %v217 = vld [vmem:[%s193 + $0x80] sm:$0xff]
      %v218 = vld [vmem:[%s193 + $0x88] sm:$0xff]
      %v219 = vld [vmem:[%s193 + $0x90] sm:$0xff]
      %v220 = vld [vmem:[%s193 + $0x98] sm:$0xff]
      %v221 = vld [vmem:[%s193 + $0xa0] sm:$0xff]
      %v222 = vld [vmem:[%s193 + $0xa8] sm:$0xff]
      %v223 = vld [vmem:[%s193 + $0xb0] sm:$0xff]
      %v224 = vld [vmem:[%s193 + $0xb8] sm:$0xff]
      %v225 = vld [vmem:[%s193 + $0xc0] sm:$0xff]
      %v226 = vld [vmem:[%s193 + $0xc8] sm:$0xff]
      %v227 = vld [vmem:[%s193 + $0xd0] sm:$0xff]
      %v228 = vld [vmem:[%s193 + $0xd8] sm:$0xff]
      %v229 = vld [vmem:[%s193 + $0xe0] sm:$0xff]
      %v230 = vld [vmem:[%s193 + $0xe8] sm:$0xff]
      %v231 = vld [vmem:[%s193 + $0xf0] sm:$0xff]
      %v232 = vld [vmem:[%s193 + $0xf8] sm:$0xff]
      %v233 = vld [vmem:[%s1] sm:$0xff]
      %v234 = vld [vmem:[%s1 + $0x8] sm:$0xff]
      %v235 = vld [vmem:[%s1 + $0x10] sm:$0xff]
      %v236 = vld [vmem:[%s1 + $0x18] sm:$0xff]
      %v237 = vld [vmem:[%s1 + $0x20] sm:$0xff]
      %v238 = vld [vmem:[%s1 + $0x28] sm:$0xff]
      %v239 = vld [vmem:[%s1 + $0x30] sm:$0xff]
      %v240 = vld [vmem:[%s1 + $0x38] sm:$0xff]
      %v241 = vld [vmem:[%s1 + $0x40] sm:$0xff]
      %v242 = vld [vmem:[%s1 + $0x48] sm:$0xff]
      %v243 = vld [vmem:[%s1 + $0x50] sm:$0xff]
      %v244 = vld [vmem:[%s1 + $0x58] sm:$0xff]
      %v245 = vld [vmem:[%s1 + $0x60] sm:$0xff]
      %v246 = vld [vmem:[%s1 + $0x68] sm:$0xff]
      %v247 = vld [vmem:[%s1 + $0x70] sm:$0xff]
      %v248 = vld [vmem:[%s1 + $0x78] sm:$0xff]
      %249 = vmatprep.subr.mxu0 0.0
      %250 = vmatpush1.msra.mxu0 %v248
      %251 = vmatprep.subr.mxu0 0.0
      %252 = vmatpush1.msra.mxu0 %v247
      %253 = vmatprep.subr.mxu0 0.0
      %254 = vmatpush1.msra.mxu0 %v246
      %255 = vmatprep.subr.mxu0 0.0
      %256 = vmatpush1.msra.mxu0 %v245
      %257 = vmatprep.subr.mxu0 0.0
      %258 = vmatpush1.msra.mxu0 %v244
      %259 = vmatprep.subr.mxu0 0.0
      %260 = vmatpush1.msra.mxu0 %v243
      %261 = vmatprep.subr.mxu0 0.0
      %262 = vmatpush1.msra.mxu0 %v242
      %263 = vmatprep.subr.mxu0 0.0
      %264 = vmatpush1.msra.mxu0 %v241
      %265 = vmatprep.subr.mxu0 0.0
      %266 = vmatpush1.msra.mxu0 %v240
      %267 = vmatprep.subr.mxu0 0.0
      %268 = vmatpush1.msra.mxu0 %v239
      %269 = vmatprep.subr.mxu0 0.0
      %270 = vmatpush1.msra.mxu0 %v238
      %271 = vmatprep.subr.mxu0 0.0
      %272 = vmatpush1.msra.mxu0 %v237
      %273 = vmatprep.subr.mxu0 0.0
      %274 = vmatpush1.msra.mxu0 %v236
      %275 = vmatprep.subr.mxu0 0.0
      %276 = vmatpush1.msra.mxu0 %v235
      %277 = vmatprep.subr.mxu0 0.0
      %278 = vmatpush1.msra.mxu0 %v234
      %279 = vmatprep.subr.mxu0 0.0
      %280 = vmatpush1.msra.mxu0 %v233
      %281 = vmatprep.subr.mxu0 0.0
      %282 = vmatpush2.msra.mxu0 0.0
      %283 = vmatprep.subr.mxu0 0.0
      %284 = vmatpush2.msra.mxu0 0.0
      %285 = vmatprep.subr.mxu0 0.0
      %286 = vmatpush2.msra.mxu0 0.0
      %287 = vmatprep.subr.mxu0 0.0
      %288 = vmatpush2.msra.mxu0 0.0
      %289 = vmatprep.subr.mxu0 0.0
      %290 = vmatpush2.msra.mxu0 0.0
      %291 = vmatprep.subr.mxu0 0.0
      %292 = vmatpush2.msra.mxu0 0.0
      %293 = vmatprep.subr.mxu0 0.0
      %294 = vmatpush2.msra.mxu0 0.0
      %295 = vmatprep.subr.mxu0 0.0
      %296 = vmatpush2.msra.mxu0 0.0
      %297 = vmatprep.subr.mxu0 0.0
      %298 = vmatpush2.msra.mxu0 0.0
      %299 = vmatprep.subr.mxu0 0.0
      %300 = vmatpush2.msra.mxu0 0.0
      %301 = vmatprep.subr.mxu0 0.0
      %302 = vmatpush2.msra.mxu0 0.0
      %303 = vmatprep.subr.mxu0 0.0
      %304 = vmatpush2.msra.mxu0 0.0
      %305 = vmatprep.subr.mxu0 0.0
      %306 = vmatpush2.msra.mxu0 0.0
      %307 = vmatprep.subr.mxu0 0.0
      %308 = vmatpush2.msra.mxu0 0.0
      %309 = vmatprep.subr.mxu0 0.0
      %310 = vmatpush2.msra.mxu0 0.0
      %311 = vmatprep.subr.mxu0 0.0
      %312 = vmatpush2.msra.mxu0 0.0
      %313 = vmatprep.mubr.f32.mxu0 0.0
      %314 = vmatmul.mubr.f32.gmra.mxu0 %v201
      %v315 = vpop.f32.mrf.mxu0
      %v316 = vadd.f32 0.0, %v315
      %v317 = vpop.f32.mrf.mxu0
      %318 = vmatprep.mubr.f32.mxu0 0.0
      %319 = vmatmul.mubr.f32.gmra.mxu0 %v202
      %v320 = vpop.f32.mrf.mxu0
      %v321 = vadd.f32 0.0, %v320
      %v322 = vpop.f32.mrf.mxu0
      %323 = vmatprep.mubr.f32.mxu0 0.0
      %324 = vmatmul.mubr.f32.gmra.mxu0 %v203
      %v325 = vpop.f32.mrf.mxu0
      %v326 = vadd.f32 0.0, %v325
      %v327 = vpop.f32.mrf.mxu0
      %328 = vmatprep.mubr.f32.mxu0 0.0
      %329 = vmatmul.mubr.f32.gmra.mxu0 %v204
      %v330 = vpop.f32.mrf.mxu0
      %v331 = vadd.f32 0.0, %v330
      %v332 = vpop.f32.mrf.mxu0
      %333 = vmatprep.mubr.f32.mxu0 0.0
      %334 = vmatmul.mubr.f32.gmra.mxu0 %v205
      %v335 = vpop.f32.mrf.mxu0
      %v336 = vadd.f32 0.0, %v335
      %v337 = vpop.f32.mrf.mxu0
      %338 = vmatprep.mubr.f32.mxu0 0.0
      %339 = vmatmul.mubr.f32.gmra.mxu0 %v206
      %v340 = vpop.f32.mrf.mxu0
      %v341 = vadd.f32 0.0, %v340
      %v342 = vpop.f32.mrf.mxu0
      %343 = vmatprep.mubr.f32.mxu0 0.0
      %344 = vmatmul.mubr.f32.gmra.mxu0 %v207
      %v345 = vpop.f32.mrf.mxu0
      %v346 = vadd.f32 0.0, %v345
      %v347 = vpop.f32.mrf.mxu0
      %348 = vmatprep.mubr.f32.mxu0 0.0
      %349 = vmatmul.mubr.f32.gmra.mxu0 %v208
      %v350 = vpop.f32.mrf.mxu0
      %v351 = vadd.f32 0.0, %v350
      %v352 = vpop.f32.mrf.mxu0
      %353 = vmatprep.mubr.f32.mxu0 0.0
      %354 = vmatmul.mubr.f32.gmra.mxu0 %v209
      %v355 = vpop.f32.mrf.mxu0
      %v356 = vadd.f32 0.0, %v355
      %v357 = vpop.f32.mrf.mxu0
      %358 = vmatprep.mubr.f32.mxu0 0.0
      %359 = vmatmul.mubr.f32.gmra.mxu0 %v210
      %v360 = vpop.f32.mrf.mxu0
      %v361 = vadd.f32 0.0, %v360
      %v362 = vpop.f32.mrf.mxu0
      %363 = vmatprep.mubr.f32.mxu0 0.0
      %364 = vmatmul.mubr.f32.gmra.mxu0 %v211
      %v365 = vpop.f32.mrf.mxu0
      %v366 = vadd.f32 0.0, %v365
      %v367 = vpop.f32.mrf.mxu0
      %368 = vmatprep.mubr.f32.mxu0 0.0
      %369 = vmatmul.mubr.f32.gmra.mxu0 %v212
      %v370 = vpop.f32.mrf.mxu0
      %v371 = vadd.f32 0.0, %v370
      %v372 = vpop.f32.mrf.mxu0
      %373 = vmatprep.mubr.f32.mxu0 0.0
      %374 = vmatmul.mubr.f32.gmra.mxu0 %v213
      %v375 = vpop.f32.mrf.mxu0
      %v376 = vadd.f32 0.0, %v375
      %v377 = vpop.f32.mrf.mxu0
      %378 = vmatprep.mubr.f32.mxu0 0.0
      %379 = vmatmul.mubr.f32.gmra.mxu0 %v214
      %v380 = vpop.f32.mrf.mxu0
      %v381 = vadd.f32 0.0, %v380
      %v382 = vpop.f32.mrf.mxu0
      %383 = vmatprep.mubr.f32.mxu0 0.0
      %384 = vmatmul.mubr.f32.gmra.mxu0 %v215
      %v385 = vpop.f32.mrf.mxu0
      %v386 = vadd.f32 0.0, %v385
      %v387 = vpop.f32.mrf.mxu0
      %388 = vmatprep.mubr.f32.mxu0 0.0
      %389 = vmatmul.mubr.f32.gmra.mxu0 %v216
      %v390 = vpop.f32.mrf.mxu0
      %v391 = vadd.f32 0.0, %v390
      %v392 = vpop.f32.mrf.mxu0
      %393 = vmatprep.mubr.f32.mxu0 0.0
      %394 = vmatmul.mubr.f32.gmra.mxu0 %v217
      %v395 = vpop.f32.mrf.mxu0
      %v396 = vadd.f32 0.0, %v395
      %v397 = vpop.f32.mrf.mxu0
      %398 = vmatprep.mubr.f32.mxu0 0.0
      %399 = vmatmul.mubr.f32.gmra.mxu0 %v218
      %v400 = vpop.f32.mrf.mxu0
      %v401 = vadd.f32 0.0, %v400
      %v402 = vpop.f32.mrf.mxu0
      %403 = vmatprep.mubr.f32.mxu0 0.0
      %404 = vmatmul.mubr.f32.gmra.mxu0 %v219
      %v405 = vpop.f32.mrf.mxu0
      %v406 = vadd.f32 0.0, %v405
      %v407 = vpop.f32.mrf.mxu0
      %408 = vmatprep.mubr.f32.mxu0 0.0
      %409 = vmatmul.mubr.f32.gmra.mxu0 %v220
      %v410 = vpop.f32.mrf.mxu0
      %v411 = vadd.f32 0.0, %v410
      %v412 = vpop.f32.mrf.mxu0
      %413 = vmatprep.mubr.f32.mxu0 0.0
      %414 = vmatmul.mubr.f32.gmra.mxu0 %v221
      %v415 = vpop.f32.mrf.mxu0
      %v416 = vadd.f32 0.0, %v415
      %v417 = vpop.f32.mrf.mxu0
      %418 = vmatprep.mubr.f32.mxu0 0.0
      %419 = vmatmul.mubr.f32.gmra.mxu0 %v222
      %v420 = vpop.f32.mrf.mxu0
      %v421 = vadd.f32 0.0, %v420
      %v422 = vpop.f32.mrf.mxu0
      %423 = vmatprep.mubr.f32.mxu0 0.0
      %424 = vmatmul.mubr.f32.gmra.mxu0 %v223
      %v425 = vpop.f32.mrf.mxu0
      %v426 = vadd.f32 0.0, %v425
      %v427 = vpop.f32.mrf.mxu0
      %428 = vmatprep.mubr.f32.mxu0 0.0
      %429 = vmatmul.mubr.f32.gmra.mxu0 %v224
      %v430 = vpop.f32.mrf.mxu0
      %v431 = vadd.f32 0.0, %v430
      %v432 = vpop.f32.mrf.mxu0
      %433 = vmatprep.mubr.f32.mxu0 0.0
      %434 = vmatmul.mubr.f32.gmra.mxu0 %v225
      %v435 = vpop.f32.mrf.mxu0
      %v436 = vadd.f32 0.0, %v435
      %v437 = vpop.f32.mrf.mxu0
      %438 = vmatprep.mubr.f32.mxu0 0.0
      %439 = vmatmul.mubr.f32.gmra.mxu0 %v226
      %v440 = vpop.f32.mrf.mxu0
      %v441 = vadd.f32 0.0, %v440
      %v442 = vpop.f32.mrf.mxu0
      %443 = vmatprep.mubr.f32.mxu0 0.0
      %444 = vmatmul.mubr.f32.gmra.mxu0 %v227
      %v445 = vpop.f32.mrf.mxu0
      %v446 = vadd.f32 0.0, %v445
      %v447 = vpop.f32.mrf.mxu0
      %448 = vmatprep.mubr.f32.mxu0 0.0
      %449 = vmatmul.mubr.f32.gmra.mxu0 %v228
      %v450 = vpop.f32.mrf.mxu0
      %v451 = vadd.f32 0.0, %v450
      %v452 = vpop.f32.mrf.mxu0
      %453 = vmatprep.mubr.f32.mxu0 0.0
      %454 = vmatmul.mubr.f32.gmra.mxu0 %v229
      %v455 = vpop.f32.mrf.mxu0
      %v456 = vadd.f32 0.0, %v455
      %v457 = vpop.f32.mrf.mxu0
      %458 = vmatprep.mubr.f32.mxu0 0.0
      %459 = vmatmul.mubr.f32.gmra.mxu0 %v230
      %v460 = vpop.f32.mrf.mxu0
      %v461 = vadd.f32 0.0, %v460
      %v462 = vpop.f32.mrf.mxu0
      %463 = vmatprep.mubr.f32.mxu0 0.0
      %464 = vmatmul.mubr.f32.gmra.mxu0 %v231
      %v465 = vpop.f32.mrf.mxu0
      %v466 = vadd.f32 0.0, %v465
      %v467 = vpop.f32.mrf.mxu0
      %468 = vmatprep.mubr.f32.mxu0 0.0
      %469 = vmatmul.mubr.f32.gmra.mxu0 %v232
      %v470 = vpop.f32.mrf.mxu0
      %v471 = vadd.f32 0.0, %v470
      %v472 = vpop.f32.mrf.mxu0
      %473 = vdwg.mxu0
      %v474 = vld [vmem:[%s2] sm:$0x1]
      %v476 = vlaneseq
      %v477 = vshrl.u32 %v476, 7
      %v478 = vsub.s32 0, %v477
      %v479 = vrot.slane %v474, %v478
      %v481 = vmul.f32 %v316, %v479
      %v482 = vmul.f32 %v321, %v479
      %v483 = vmul.f32 %v326, %v479
      %v484 = vmul.f32 %v331, %v479
      %v485 = vmul.f32 %v336, %v479
      %v486 = vmul.f32 %v341, %v479
      %v487 = vmul.f32 %v346, %v479
      %v488 = vmul.f32 %v351, %v479
      %v489 = vmul.f32 %v356, %v479
      %v490 = vmul.f32 %v361, %v479
      %v491 = vmul.f32 %v366, %v479
      %v492 = vmul.f32 %v371, %v479
      %v493 = vmul.f32 %v376, %v479
      %v494 = vmul.f32 %v381, %v479
      %v495 = vmul.f32 %v386, %v479
      %v496 = vmul.f32 %v391, %v479
      %v497 = vmul.f32 %v396, %v479
      %v498 = vmul.f32 %v401, %v479
      %v499 = vmul.f32 %v406, %v479
      %v500 = vmul.f32 %v411, %v479
      %v501 = vmul.f32 %v416, %v479
      %v502 = vmul.f32 %v421, %v479
      %v503 = vmul.f32 %v426, %v479
      %v504 = vmul.f32 %v431, %v479
      %v505 = vmul.f32 %v436, %v479
      %v506 = vmul.f32 %v441, %v479
      %v507 = vmul.f32 %v446, %v479
      %v508 = vmul.f32 %v451, %v479
      %v509 = vmul.f32 %v456, %v479
      %v510 = vmul.f32 %v461, %v479
      %v511 = vmul.f32 %v466, %v479
      %v512 = vmul.f32 %v471, %v479
      %v513 = vld [vmem:[%s3] sm:$0x1]
      %v515 = vlaneseq
      %v516 = vshrl.u32 %v515, 7
      %v517 = vsub.s32 0, %v516
      %v518 = vrot.slane %v513, %v517
      %v520 = vadd.f32 %v481, %v518
      %v521 = vadd.f32 %v482, %v518
      %v522 = vadd.f32 %v483, %v518
      %v523 = vadd.f32 %v484, %v518
      %v524 = vadd.f32 %v485, %v518
      %v525 = vadd.f32 %v486, %v518
      %v526 = vadd.f32 %v487, %v518
      %v527 = vadd.f32 %v488, %v518
      %v528 = vadd.f32 %v489, %v518
      %v529 = vadd.f32 %v490, %v518
      %v530 = vadd.f32 %v491, %v518
      %v531 = vadd.f32 %v492, %v518
      %v532 = vadd.f32 %v493, %v518
      %v533 = vadd.f32 %v494, %v518
      %v534 = vadd.f32 %v495, %v518
      %v535 = vadd.f32 %v496, %v518
      %v536 = vadd.f32 %v497, %v518
      %v537 = vadd.f32 %v498, %v518
      %v538 = vadd.f32 %v499, %v518
      %v539 = vadd.f32 %v500, %v518
      %v540 = vadd.f32 %v501, %v518
      %v541 = vadd.f32 %v502, %v518
      %v542 = vadd.f32 %v503, %v518
      %v543 = vadd.f32 %v504, %v518
      %v544 = vadd.f32 %v505, %v518
      %v545 = vadd.f32 %v506, %v518
      %v546 = vadd.f32 %v507, %v518
      %v547 = vadd.f32 %v508, %v518
      %v548 = vadd.f32 %v509, %v518
      %v549 = vadd.f32 %v510, %v518
      %v550 = vadd.f32 %v511, %v518
      %v551 = vadd.f32 %v512, %v518
      %v552 = vmax.f32 %v520, 0.0
      %v553 = vmax.f32 %v521, 0.0
      %v554 = vmax.f32 %v522, 0.0
      %v555 = vmax.f32 %v523, 0.0
      %v556 = vmax.f32 %v524, 0.0
      %v557 = vmax.f32 %v525, 0.0
      %v558 = vmax.f32 %v526, 0.0
      %v559 = vmax.f32 %v527, 0.0
      %v560 = vmax.f32 %v528, 0.0
      %v561 = vmax.f32 %v529, 0.0
      %v562 = vmax.f32 %v530, 0.0
      %v563 = vmax.f32 %v531, 0.0
      %v564 = vmax.f32 %v532, 0.0
      %v565 = vmax.f32 %v533, 0.0
      %v566 = vmax.f32 %v534, 0.0
      %v567 = vmax.f32 %v535, 0.0
      %v568 = vmax.f32 %v536, 0.0
      %v569 = vmax.f32 %v537, 0.0
      %v570 = vmax.f32 %v538, 0.0
      %v571 = vmax.f32 %v539, 0.0
      %v572 = vmax.f32 %v540, 0.0
      %v573 = vmax.f32 %v541, 0.0
      %v574 = vmax.f32 %v542, 0.0
      %v575 = vmax.f32 %v543, 0.0
      %v576 = vmax.f32 %v544, 0.0
      %v577 = vmax.f32 %v545, 0.0
      %v578 = vmax.f32 %v546, 0.0
      %v579 = vmax.f32 %v547, 0.0
      %v580 = vmax.f32 %v548, 0.0
      %v581 = vmax.f32 %v549, 0.0
      %v582 = vmax.f32 %v550, 0.0
      %v583 = vmax.f32 %v551, 0.0
      %584 = vst [vmem:[%s199] sm:$0xff] %v552
      %585 = vst [vmem:[%s199 + $0x8] sm:$0xff] %v553
      %586 = vst [vmem:[%s199 + $0x10] sm:$0xff] %v554
      %587 = vst [vmem:[%s199 + $0x18] sm:$0xff] %v555
      %588 = vst [vmem:[%s199 + $0x20] sm:$0xff] %v556
      %589 = vst [vmem:[%s199 + $0x28] sm:$0xff] %v557
      %590 = vst [vmem:[%s199 + $0x30] sm:$0xff] %v558
      %591 = vst [vmem:[%s199 + $0x38] sm:$0xff] %v559
      %592 = vst [vmem:[%s199 + $0x40] sm:$0xff] %v560
      %593 = vst [vmem:[%s199 + $0x48] sm:$0xff] %v561
      %594 = vst [vmem:[%s199 + $0x50] sm:$0xff] %v562
      %595 = vst [vmem:[%s199 + $0x58] sm:$0xff] %v563
      %596 = vst [vmem:[%s199 + $0x60] sm:$0xff] %v564
      %597 = vst [vmem:[%s199 + $0x68] sm:$0xff] %v565
      %598 = vst [vmem:[%s199 + $0x70] sm:$0xff] %v566
      %599 = vst [vmem:[%s199 + $0x78] sm:$0xff] %v567
      %600 = vst [vmem:[%s199 + $0x80] sm:$0xff] %v568
      %601 = vst [vmem:[%s199 + $0x88] sm:$0xff] %v569
      %602 = vst [vmem:[%s199 + $0x90] sm:$0xff] %v570
      %603 = vst [vmem:[%s199 + $0x98] sm:$0xff] %v571
      %604 = vst [vmem:[%s199 + $0xa0] sm:$0xff] %v572
      %605 = vst [vmem:[%s199 + $0xa8] sm:$0xff] %v573
      %606 = vst [vmem:[%s199 + $0xb0] sm:$0xff] %v574
      %607 = vst [vmem:[%s199 + $0xb8] sm:$0xff] %v575
      %608 = vst [vmem:[%s199 + $0xc0] sm:$0xff] %v576
      %609 = vst [vmem:[%s199 + $0xc8] sm:$0xff] %v577
      %610 = vst [vmem:[%s199 + $0xd0] sm:$0xff] %v578
      %611 = vst [vmem:[%s199 + $0xd8] sm:$0xff] %v579
      %612 = vst [vmem:[%s199 + $0xe0] sm:$0xff] %v580
      %613 = vst [vmem:[%s199 + $0xe8] sm:$0xff] %v581
      %614 = vst [vmem:[%s199 + $0xf0] sm:$0xff] %v582
      %615 = vst [vmem:[%s199 + $0xf8] sm:$0xff] %v583
      %s616 = smul.u32 32, %s15
      %p617 = scmp.lt.s32.totalorder %s616, 63
      %s618 = scalar_select %p617, %s616, 63
      %s619 = smul.addr %s618, 8
      %s620 = scalar_lea.vmem %s4, %s619
      // Predicated region
      $region37: #{object_context_block.8} parent=35 // pred_check
        %p621 = pneg %p122
      $region38: #{object_context_block.8} parent=35 // pred_check_branch
        %623 = sbr.rel (%p621) target = $region40
      $region39: #{object_context_block.8} parent=35 // pred_region
        %s624 = smul.u32 32, %s15
      $region40: #{object_context_block.8} parent=35 // pred_fallthru
        _
    $region36: #{object_context_block.8} parent=5 // pred_fallthru
      _
    %p625 = scmp.le.s32.totalorder 2, %s10
    // Predicated region
    $region41: #{object_context_block.8} parent=5 // pred_check
      %p626 = pneg %p625
    $region42: #{object_context_block.8} parent=5 // pred_check_branch
      %628 = sbr.rel (%p626) target = $region44
    $region43: #{object_context_block.8} parent=5 // pred_region
      %s629 = ssub.s32 %s10, 2
      // Predicated region
      $region45: #{object_context_block.8} parent=43 // pred_check
        %p630 = pneg %p128
      $region46: #{object_context_block.8} parent=43 // pred_check_branch
        %632 = sbr.rel (%p630) target = $region48
      $region47: #{object_context_block.8} parent=43 // pred_region
        %s633 = smul.u32 32, %s16
        %p634 = scmp.lt.s32.totalorder %s633, 63
        %s635 = scalar_select %p634, %s633, 63
        %s636 = smul.addr %s635, 8
        %s637 = scalar_lea.vmem %s4, %s636
      $region48: #{object_context_block.8} parent=43 // pred_fallthru
        _
    $region44: #{object_context_block.8} parent=5 // pred_fallthru
      _
  $region6: #{object_context_block.8} parent=0 // loop_footer
    %s14 = sadd.s32 1, %s10
  $region7: #{object_context_block.8} parent=0 // loop_footer_branch
    %9 = sbr.rel target = $region3
  $region8: #{object_context_block.8} parent=0 // loop_exit
    _

// kernel: object_context_block.9
$region0: #{object_context_block.9}
  #allocation0 [shape = 'u32[]', space=smem, size = 0x4, offset = 0x4, fixed_abs, tag = 'smem constant byte address 0x4 - core index']
  #allocation1 [shape = 'u32[144,128]{1,0:T(1,128)}', space=vmem, size = 0x12000, scoped, tag = 'internal scratch']
  %s0 = inlined_call_operand.vmem [shape: f32[2,256,128], index: 0, kind: input, shape index: {}]
  %s1 = inlined_call_operand.vmem [shape: f32[2,256,128], index: 1, kind: input, shape index: {}]
  %s2 = inlined_call_operand.vmem [shape: f32[2,256,128], index: 2, kind: input, shape index: {}]
  %s3 = inlined_call_operand.vmem [shape: f32[2,256,128], index: 3, kind: output, shape index: {}]
  %s4 = sld [smem:[#allocation0]]
  $region45: #{object_context_block.9} parent=0
    _
  %s6 = ssub.s32 1, %s4
  %s7 = scalar_select 0, %s6, %s4
  loop: start=0, step=1, limit=4
  $region2: #{object_context_block.9} parent=0 // loop_pre_header
    _
  $region3: #{object_context_block.9} parent=0 // loop_header
    %s9 = sphi 0, %s13
    %p10 = scmp.ge.s32.totalorder %s9, 4
    %s19 = sphi 0, %s21
    %s22 = sphi 0, %s19
    %s23 = sphi 0, %s22
    %s39 = sphi 0, %s23
    %s45 = sphi 0, %s47
    %s48 = sphi 0, %s45
    %s49 = sphi 0, %s48
    %s65 = sphi 0, %s49
    %s71 = sphi 0, %s73
    %s74 = sphi 0, %s71
    %s75 = sphi 0, %s74
    %s91 = sphi 0, %s75
    %s97 = sphi 0, %s99
    %s100 = sphi 0, %s97
    %s101 = sphi 0, %s100
    %s117 = sphi 0, %s101
  $region4: #{object_context_block.9} parent=0 // loop_header_branch
    %12 = sbr.rel (%p10) target = $region8
  $region5: #{object_context_block.9} parent=0 // loop_body
    %s14 = ssub.s32 %s9, 1
    %s15 = ssub.s32 %s9, 2
    %s16 = sadd.s32 %s9, 1
    %s17 = ssub.s32 %s9, %s16
    %p18 = scmp.eq.s32.totalorder %s17, 0
    %s20 = sadd.s32 %s19, 1
    %s21 = scalar_select %p18, %s19, %s20
    %p24 = pneg %p18
    %p25 = scmp.eq.s32.totalorder %s9, 1
    %p26 = por %p24, %p25
    %p27 = scmp.ne.s32.totalorder %s19, %s22
    %p28 = scmp.eq.s32.totalorder %s9, 0
    %p29 = por %p27, %p28
    %p30 = scmp.ne.s32.totalorder %s19, %s22
    %p31 = scmp.eq.s32.totalorder %s14, 1
    %p32 = por %p30, %p31
    %p33 = scmp.ne.s32.totalorder %s22, %s23
    %p34 = scmp.eq.s32.totalorder %s14, 0
    %p35 = por %p33, %p34
    %p36 = scmp.ne.s32.totalorder %s22, %s23
    %p37 = scmp.eq.s32.totalorder %s15, 1
    %p38 = por %p36, %p37
    %p40 = scmp.ne.s32.totalorder %s23, %s39
    %p41 = scmp.eq.s32.totalorder %s15, 0
    %p42 = por %p40, %p41
    %s43 = ssub.s32 %s9, %s16
    %p44 = scmp.eq.s32.totalorder %s43, 0
    %s46 = sadd.s32 %s45, 1
    %s47 = scalar_select %p44, %s45, %s46
    %p50 = pneg %p44
    %p51 = scmp.eq.s32.totalorder %s9, 1
    %p52 = por %p50, %p51
    %p53 = scmp.ne.s32.totalorder %s45, %s48
    %p54 = scmp.eq.s32.totalorder %s9, 0
    %p55 = por %p53, %p54
    %p56 = scmp.ne.s32.totalorder %s45, %s48
    %p57 = scmp.eq.s32.totalorder %s14, 1
    %p58 = por %p56, %p57
    %p59 = scmp.ne.s32.totalorder %s48, %s49
    %p60 = scmp.eq.s32.totalorder %s14, 0
    %p61 = por %p59, %p60
    %p62 = scmp.ne.s32.totalorder %s48, %s49
    %p63 = scmp.eq.s32.totalorder %s15, 1
    %p64 = por %p62, %p63
    %p66 = scmp.ne.s32.totalorder %s49, %s65
    %p67 = scmp.eq.s32.totalorder %s15, 0
    %p68 = por %p66, %p67
    %s69 = ssub.s32 %s9, %s16
    %p70 = scmp.eq.s32.totalorder %s69, 0
    %s72 = sadd.s32 %s71, 1
    %s73 = scalar_select %p70, %s71, %s72
    %p76 = pneg %p70
    %p77 = scmp.eq.s32.totalorder %s9, 1
    %p78 = por %p76, %p77
    %p79 = scmp.ne.s32.totalorder %s71, %s74
    %p80 = scmp.eq.s32.totalorder %s9, 0
    %p81 = por %p79, %p80
    %p82 = scmp.ne.s32.totalorder %s71, %s74
    %p83 = scmp.eq.s32.totalorder %s14, 1
    %p84 = por %p82, %p83
    %p85 = scmp.ne.s32.totalorder %s74, %s75
    %p86 = scmp.eq.s32.totalorder %s14, 0
    %p87 = por %p85, %p86
    %p88 = scmp.ne.s32.totalorder %s74, %s75
    %p89 = scmp.eq.s32.totalorder %s15, 1
    %p90 = por %p88, %p89
    %p92 = scmp.ne.s32.totalorder %s75, %s91
    %p93 = scmp.eq.s32.totalorder %s15, 0
    %p94 = por %p92, %p93
    %s95 = ssub.s32 %s9, %s16
    %p96 = scmp.eq.s32.totalorder %s95, 0
    %s98 = sadd.s32 %s97, 1
    %s99 = scalar_select %p96, %s97, %s98
    %p102 = pneg %p96
    %p103 = scmp.eq.s32.totalorder %s9, 1
    %p104 = por %p102, %p103
    %p105 = scmp.ne.s32.totalorder %s97, %s100
    %p106 = scmp.eq.s32.totalorder %s9, 0
    %p107 = por %p105, %p106
    %p108 = scmp.ne.s32.totalorder %s97, %s100
    %p109 = scmp.eq.s32.totalorder %s14, 1
    %p110 = por %p108, %p109
    %p111 = scmp.ne.s32.totalorder %s100, %s101
    %p112 = scmp.eq.s32.totalorder %s14, 0
    %p113 = por %p111, %p112
    %p114 = scmp.ne.s32.totalorder %s100, %s101
    %p115 = scmp.eq.s32.totalorder %s15, 1
    %p116 = por %p114, %p115
    %p118 = scmp.ne.s32.totalorder %s101, %s117
    %p119 = scmp.eq.s32.totalorder %s15, 0
    %p120 = por %p118, %p119
    %p121 = scmp.le.s32.totalorder 1, %s9
    %p122 = scmp.lt.s32.totalorder %s9, 3
    %p123 = pnand %p121, %p122
    %p124 = pneg %p123
    // Predicated region
    $region9: #{object_context_block.9} parent=5 // pred_check
      _
    $region10: #{object_context_block.9} parent=5 // pred_check_branch
      %126 = sbr.rel (%p123) target = $region12
    $region11: #{object_context_block.9} parent=5 // pred_region
      %s127 = ssub.s32 %s9, 1
    $region12: #{object_context_block.9} parent=5 // pred_fallthru
      _
    %p128 = scmp.lt.s32.totalorder %s9, 2
    // Predicated region
    $region13: #{object_context_block.9} parent=5 // pred_check
      %p129 = pneg %p128
    $region14: #{object_context_block.9} parent=5 // pred_check_branch
      %131 = sbr.rel (%p129) target = $region16
    $region15: #{object_context_block.9} parent=5 // pred_region
      // Predicated region
      $region17: #{object_context_block.9} parent=15 // pred_check
        %p132 = pneg %p29
      $region18: #{object_context_block.9} parent=15 // pred_check_branch
        %134 = sbr.rel (%p132) target = $region20
      $region19: #{object_context_block.9} parent=15 // pred_region
        %p135 = scmp.lt.s32.totalorder %s9, 1
        %s136 = scalar_select %p135, %s9, 1
        %s137 = smul.addr %s136, 32
        %s138 = smul.addr %s137, 8
        %s139 = scalar_lea.vmem %s0, %s138
      $region20: #{object_context_block.9} parent=15 // pred_fallthru
        _
      // Predicated region
      $region21: #{object_context_block.9} parent=15 // pred_check
        %p140 = pneg %p55
      $region22: #{object_context_block.9} parent=15 // pred_check_branch
        %142 = sbr.rel (%p140) target = $region24
      $region23: #{object_context_block.9} parent=15 // pred_region
        %p143 = scmp.lt.s32.totalorder %s9, 1
        %s144 = scalar_select %p143, %s9, 1
        %s145 = smul.addr %s144, 32
        %s146 = smul.addr %s145, 8
        %s147 = scalar_lea.vmem %s1, %s146
      $region24: #{object_context_block.9} parent=15 // pred_fallthru
        _
      // Predicated region
      $region25: #{object_context_block.9} parent=15 // pred_check
        %p148 = pneg %p81
      $region26: #{object_context_block.9} parent=15 // pred_check_branch
        %150 = sbr.rel (%p148) target = $region28
      $region27: #{object_context_block.9} parent=15 // pred_region
        %p151 = scmp.lt.s32.totalorder %s9, 1
        %s152 = scalar_select %p151, %s9, 1
        %s153 = smul.addr %s152, 32
        %s154 = smul.addr %s153, 8
        %s155 = scalar_lea.vmem %s2, %s154
      $region28: #{object_context_block.9} parent=15 // pred_fallthru
        _
    $region16: #{object_context_block.9} parent=5 // pred_fallthru
      _
    %p156 = scmp.le.s32.totalorder 1, %s9
    %p157 = scmp.lt.s32.totalorder %s9, 3
    %p158 = pnand %p156, %p157
    %p159 = pneg %p158
    // Predicated region
    $region29: #{object_context_block.9} parent=5 // pred_check
      _
    $region30: #{object_context_block.9} parent=5 // pred_check_branch
      %161 = sbr.rel (%p158) target = $region32
    $region31: #{object_context_block.9} parent=5 // pred_region
      %s162 = ssub.s32 %s9, 1
      %p163 = scmp.lt.s32.totalorder %s14, 1
      %s164 = scalar_select %p163, %s14, 1
      %s165 = smul.addr %s164, 32
      %s166 = smul.addr %s165, 8
      %s167 = scalar_lea.vmem %s0, %s166
      %p168 = pneg %p35
      %p169 = pneg %p32
      %p170 = scmp.lt.s32.totalorder %s14, 1
      %s171 = scalar_select %p170, %s14, 1
      %s172 = smul.addr %s171, 32
      %s173 = smul.addr %s172, 8
      %s174 = scalar_lea.vmem %s1, %s173
      %p175 = pneg %p61
      %p176 = pneg %p58
      %p177 = scmp.lt.s32.totalorder %s14, 1
      %s178 = scalar_select %p177, %s14, 1
      %s179 = smul.addr %s178, 32
      %s180 = smul.addr %s179, 8
      %s181 = scalar_lea.vmem %s2, %s180
      %p182 = pneg %p87
      %p183 = pneg %p84
      %p184 = pneg %p113
      %p185 = pneg %p110
      %p186 = scmp.lt.s32.totalorder %s14, 1
      %s187 = scalar_select %p186, %s14, 1
      %s188 = smul.addr %s187, 32
      %s189 = smul.addr %s188, 8
      %s190 = scalar_lea.vmem %s3, %s189
      %p191 = scmp.lt.s32.totalorder %s14, 1
      %s192 = scalar_select %p191, %s14, 1
      %s193 = smul.addr %s192, 32
      %s194 = smul.addr %s193, 8
      %s195 = scalar_lea.vmem %s0, %s194
      %p196 = scmp.lt.s32.totalorder %s14, 1
      %s197 = scalar_select %p196, %s14, 1
      %s198 = smul.addr %s197, 32
      %s199 = smul.addr %s198, 8
      %s200 = scalar_lea.vmem %s1, %s199
      %p201 = scmp.lt.s32.totalorder %s14, 1
      %s202 = scalar_select %p201, %s14, 1
      %s203 = smul.addr %s202, 32
      %s204 = smul.addr %s203, 8
      %s205 = scalar_lea.vmem %s2, %s204
      %p206 = scmp.lt.s32.totalorder %s14, 1
      %s207 = scalar_select %p206, %s14, 1
      %s208 = smul.addr %s207, 32
      %s209 = smul.addr %s208, 8
      %s210 = scalar_lea.vmem %s3, %s209
      %v211 = vld [vmem:[%s195] sm:$0xff]
      %v212 = vld [vmem:[%s195 + $0x8] sm:$0xff]
      %v213 = vld [vmem:[%s195 + $0x10] sm:$0xff]
      %v214 = vld [vmem:[%s195 + $0x18] sm:$0xff]
      %v215 = vld [vmem:[%s195 + $0x20] sm:$0xff]
      %v216 = vld [vmem:[%s195 + $0x28] sm:$0xff]
      %v217 = vld [vmem:[%s195 + $0x30] sm:$0xff]
      %v218 = vld [vmem:[%s195 + $0x38] sm:$0xff]
      %v219 = vld [vmem:[%s195 + $0x40] sm:$0xff]
      %v220 = vld [vmem:[%s195 + $0x48] sm:$0xff]
      %v221 = vld [vmem:[%s195 + $0x50] sm:$0xff]
      %v222 = vld [vmem:[%s195 + $0x58] sm:$0xff]
      %v223 = vld [vmem:[%s195 + $0x60] sm:$0xff]
      %v224 = vld [vmem:[%s195 + $0x68] sm:$0xff]
      %v225 = vld [vmem:[%s195 + $0x70] sm:$0xff]
      %v226 = vld [vmem:[%s195 + $0x78] sm:$0xff]
      %v227 = vld [vmem:[%s195 + $0x80] sm:$0xff]
      %v228 = vld [vmem:[%s195 + $0x88] sm:$0xff]
      %v229 = vld [vmem:[%s195 + $0x90] sm:$0xff]
      %v230 = vld [vmem:[%s195 + $0x98] sm:$0xff]
      %v231 = vld [vmem:[%s195 + $0xa0] sm:$0xff]
      %v232 = vld [vmem:[%s195 + $0xa8] sm:$0xff]
      %v233 = vld [vmem:[%s195 + $0xb0] sm:$0xff]
      %v234 = vld [vmem:[%s195 + $0xb8] sm:$0xff]
      %v235 = vld [vmem:[%s195 + $0xc0] sm:$0xff]
      %v236 = vld [vmem:[%s195 + $0xc8] sm:$0xff]
      %v237 = vld [vmem:[%s195 + $0xd0] sm:$0xff]
      %v238 = vld [vmem:[%s195 + $0xd8] sm:$0xff]
      %v239 = vld [vmem:[%s195 + $0xe0] sm:$0xff]
      %v240 = vld [vmem:[%s195 + $0xe8] sm:$0xff]
      %v241 = vld [vmem:[%s195 + $0xf0] sm:$0xff]
      %v242 = vld [vmem:[%s195 + $0xf8] sm:$0xff]
      %v243 = vld [vmem:[%s200] sm:$0xff]
      %v244 = vld [vmem:[%s200 + $0x8] sm:$0xff]
      %v245 = vld [vmem:[%s200 + $0x10] sm:$0xff]
      %v246 = vld [vmem:[%s200 + $0x18] sm:$0xff]
      %v247 = vld [vmem:[%s200 + $0x20] sm:$0xff]
      %v248 = vld [vmem:[%s200 + $0x28] sm:$0xff]
      %v249 = vld [vmem:[%s200 + $0x30] sm:$0xff]
      %v250 = vld [vmem:[%s200 + $0x38] sm:$0xff]
      %v251 = vld [vmem:[%s200 + $0x40] sm:$0xff]
      %v252 = vld [vmem:[%s200 + $0x48] sm:$0xff]
      %v253 = vld [vmem:[%s200 + $0x50] sm:$0xff]
      %v254 = vld [vmem:[%s200 + $0x58] sm:$0xff]
      %v255 = vld [vmem:[%s200 + $0x60] sm:$0xff]
      %v256 = vld [vmem:[%s200 + $0x68] sm:$0xff]
      %v257 = vld [vmem:[%s200 + $0x70] sm:$0xff]
      %v258 = vld [vmem:[%s200 + $0x78] sm:$0xff]
      %v259 = vld [vmem:[%s200 + $0x80] sm:$0xff]
      %v260 = vld [vmem:[%s200 + $0x88] sm:$0xff]
      %v261 = vld [vmem:[%s200 + $0x90] sm:$0xff]
      %v262 = vld [vmem:[%s200 + $0x98] sm:$0xff]
      %v263 = vld [vmem:[%s200 + $0xa0] sm:$0xff]
      %v264 = vld [vmem:[%s200 + $0xa8] sm:$0xff]
      %v265 = vld [vmem:[%s200 + $0xb0] sm:$0xff]
      %v266 = vld [vmem:[%s200 + $0xb8] sm:$0xff]
      %v267 = vld [vmem:[%s200 + $0xc0] sm:$0xff]
      %v268 = vld [vmem:[%s200 + $0xc8] sm:$0xff]
      %v269 = vld [vmem:[%s200 + $0xd0] sm:$0xff]
      %v270 = vld [vmem:[%s200 + $0xd8] sm:$0xff]
      %v271 = vld [vmem:[%s200 + $0xe0] sm:$0xff]
      %v272 = vld [vmem:[%s200 + $0xe8] sm:$0xff]
      %v273 = vld [vmem:[%s200 + $0xf0] sm:$0xff]
      %v274 = vld [vmem:[%s200 + $0xf8] sm:$0xff]
      %v275 = vld [vmem:[%s205] sm:$0xff]
      %v276 = vld [vmem:[%s205 + $0x8] sm:$0xff]
      %v277 = vld [vmem:[%s205 + $0x10] sm:$0xff]
      %v278 = vld [vmem:[%s205 + $0x18] sm:$0xff]
      %v279 = vld [vmem:[%s205 + $0x20] sm:$0xff]
      %v280 = vld [vmem:[%s205 + $0x28] sm:$0xff]
      %v281 = vld [vmem:[%s205 + $0x30] sm:$0xff]
      %v282 = vld [vmem:[%s205 + $0x38] sm:$0xff]
      %v283 = vld [vmem:[%s205 + $0x40] sm:$0xff]
      %v284 = vld [vmem:[%s205 + $0x48] sm:$0xff]
      %v285 = vld [vmem:[%s205 + $0x50] sm:$0xff]
      %v286 = vld [vmem:[%s205 + $0x58] sm:$0xff]
      %v287 = vld [vmem:[%s205 + $0x60] sm:$0xff]
      %v288 = vld [vmem:[%s205 + $0x68] sm:$0xff]
      %v289 = vld [vmem:[%s205 + $0x70] sm:$0xff]
      %v290 = vld [vmem:[%s205 + $0x78] sm:$0xff]
      %v291 = vld [vmem:[%s205 + $0x80] sm:$0xff]
      %v292 = vld [vmem:[%s205 + $0x88] sm:$0xff]
      %v293 = vld [vmem:[%s205 + $0x90] sm:$0xff]
      %v294 = vld [vmem:[%s205 + $0x98] sm:$0xff]
      %v295 = vld [vmem:[%s205 + $0xa0] sm:$0xff]
      %v296 = vld [vmem:[%s205 + $0xa8] sm:$0xff]
      %v297 = vld [vmem:[%s205 + $0xb0] sm:$0xff]
      %v298 = vld [vmem:[%s205 + $0xb8] sm:$0xff]
      %v299 = vld [vmem:[%s205 + $0xc0] sm:$0xff]
      %v300 = vld [vmem:[%s205 + $0xc8] sm:$0xff]
      %v301 = vld [vmem:[%s205 + $0xd0] sm:$0xff]
      %v302 = vld [vmem:[%s205 + $0xd8] sm:$0xff]
      %v303 = vld [vmem:[%s205 + $0xe0] sm:$0xff]
      %v304 = vld [vmem:[%s205 + $0xe8] sm:$0xff]
      %v305 = vld [vmem:[%s205 + $0xf0] sm:$0xff]
      %v306 = vld [vmem:[%s205 + $0xf8] sm:$0xff]
      %307 = vmatprep.subr.mxu0 0.0
      %308 = vmatpush1.xpose.msra.mxu0 %v258
      %309 = vmatprep.subr.mxu0 0.0
      %310 = vmatpush1.xpose.msra.mxu0 %v257
      %311 = vmatprep.subr.mxu0 0.0
      %312 = vmatpush1.xpose.msra.mxu0 %v256
      %313 = vmatprep.subr.mxu0 0.0
      %314 = vmatpush1.xpose.msra.mxu0 %v255
      %315 = vmatprep.subr.mxu0 0.0
      %316 = vmatpush1.xpose.msra.mxu0 %v254
      %317 = vmatprep.subr.mxu0 0.0
      %318 = vmatpush1.xpose.msra.mxu0 %v253
      %319 = vmatprep.subr.mxu0 0.0
      %320 = vmatpush1.xpose.msra.mxu0 %v252
      %321 = vmatprep.subr.mxu0 0.0
      %322 = vmatpush1.xpose.msra.mxu0 %v251
      %323 = vmatprep.subr.mxu0 0.0
      %324 = vmatpush1.xpose.msra.mxu0 %v250
      %325 = vmatprep.subr.mxu0 0.0
      %326 = vmatpush1.xpose.msra.mxu0 %v249
      %327 = vmatprep.subr.mxu0 0.0
      %328 = vmatpush1.xpose.msra.mxu0 %v248
      %329 = vmatprep.subr.mxu0 0.0
      %330 = vmatpush1.xpose.msra.mxu0 %v247
      %331 = vmatprep.subr.mxu0 0.0
      %332 = vmatpush1.xpose.msra.mxu0 %v246
      %333 = vmatprep.subr.mxu0 0.0
      %334 = vmatpush1.xpose.msra.mxu0 %v245
      %335 = vmatprep.subr.mxu0 0.0
      %336 = vmatpush1.xpose.msra.mxu0 %v244
      %337 = vmatprep.subr.mxu0 0.0
      %338 = vmatpush1.xpose.msra.mxu0 %v243
      %339 = vmatprep.subr.mxu0 0.0
      %340 = vmatpush2.xpose.msra.mxu0 %v274
      %341 = vmatprep.subr.mxu0 0.0
      %342 = vmatpush2.xpose.msra.mxu0 %v273
      %343 = vmatprep.subr.mxu0 0.0
      %344 = vmatpush2.xpose.msra.mxu0 %v272
      %345 = vmatprep.subr.mxu0 0.0
      %346 = vmatpush2.xpose.msra.mxu0 %v271
      %347 = vmatprep.subr.mxu0 0.0
      %348 = vmatpush2.xpose.msra.mxu0 %v270
      %349 = vmatprep.subr.mxu0 0.0
      %350 = vmatpush2.xpose.msra.mxu0 %v269
      %351 = vmatprep.subr.mxu0 0.0
      %352 = vmatpush2.xpose.msra.mxu0 %v268
      %353 = vmatprep.subr.mxu0 0.0
      %354 = vmatpush2.xpose.msra.mxu0 %v267
      %355 = vmatprep.subr.mxu0 0.0
      %356 = vmatpush2.xpose.msra.mxu0 %v266
      %357 = vmatprep.subr.mxu0 0.0
      %358 = vmatpush2.xpose.msra.mxu0 %v265
      %359 = vmatprep.subr.mxu0 0.0
      %360 = vmatpush2.xpose.msra.mxu0 %v264
      %361 = vmatprep.subr.mxu0 0.0
      %362 = vmatpush2.xpose.msra.mxu0 %v263
      %363 = vmatprep.subr.mxu0 0.0
      %364 = vmatpush2.xpose.msra.mxu0 %v262
      %365 = vmatprep.subr.mxu0 0.0
      %366 = vmatpush2.xpose.msra.mxu0 %v261
      %367 = vmatprep.subr.mxu0 0.0
      %368 = vmatpush2.xpose.msra.mxu0 %v260
      %369 = vmatprep.subr.mxu0 0.0
      %370 = vmatpush2.xpose.msra.mxu0 %v259
      %371 = vmatprep.mubr.f32.mxu0 0.0
      %372 = vmatmul.mubr.f32.gmra.mxu0 %v211
      %v373 = vpop.f32.mrf.mxu0
      %v374 = vadd.f32 0.0, %v373
      %v375 = vpop.f32.mrf.mxu0
      %v376 = vadd.f32 0.0, %v375
      %377 = vmatprep.mubr.f32.mxu0 0.0
      %378 = vmatmul.mubr.f32.gmra.mxu0 %v212
      %v379 = vpop.f32.mrf.mxu0
      %v380 = vadd.f32 0.0, %v379
      %v381 = vpop.f32.mrf.mxu0
      %v382 = vadd.f32 0.0, %v381
      %383 = vmatprep.mubr.f32.mxu0 0.0
      %384 = vmatmul.mubr.f32.gmra.mxu0 %v213
      %v385 = vpop.f32.mrf.mxu0
      %v386 = vadd.f32 0.0, %v385
      %v387 = vpop.f32.mrf.mxu0
      %v388 = vadd.f32 0.0, %v387
      %389 = vmatprep.mubr.f32.mxu0 0.0
      %390 = vmatmul.mubr.f32.gmra.mxu0 %v214
      %v391 = vpop.f32.mrf.mxu0
      %v392 = vadd.f32 0.0, %v391
      %v393 = vpop.f32.mrf.mxu0
      %v394 = vadd.f32 0.0, %v393
      %395 = vmatprep.mubr.f32.mxu0 0.0
      %396 = vmatmul.mubr.f32.gmra.mxu0 %v215
      %v397 = vpop.f32.mrf.mxu0
      %v398 = vadd.f32 0.0, %v397
      %v399 = vpop.f32.mrf.mxu0
      %v400 = vadd.f32 0.0, %v399
      %401 = vmatprep.mubr.f32.mxu0 0.0
      %402 = vmatmul.mubr.f32.gmra.mxu0 %v216
      %v403 = vpop.f32.mrf.mxu0
      %v404 = vadd.f32 0.0, %v403
      %v405 = vpop.f32.mrf.mxu0
      %v406 = vadd.f32 0.0, %v405
      %407 = vmatprep.mubr.f32.mxu0 0.0
      %408 = vmatmul.mubr.f32.gmra.mxu0 %v217
      %v409 = vpop.f32.mrf.mxu0
      %v410 = vadd.f32 0.0, %v409
      %v411 = vpop.f32.mrf.mxu0
      %v412 = vadd.f32 0.0, %v411
      %413 = vmatprep.mubr.f32.mxu0 0.0
      %414 = vmatmul.mubr.f32.gmra.mxu0 %v218
      %v415 = vpop.f32.mrf.mxu0
      %v416 = vadd.f32 0.0, %v415
      %v417 = vpop.f32.mrf.mxu0
      %v418 = vadd.f32 0.0, %v417
      %419 = vmatprep.mubr.f32.mxu0 0.0
      %420 = vmatmul.mubr.f32.gmra.mxu0 %v219
      %v421 = vpop.f32.mrf.mxu0
      %v422 = vadd.f32 0.0, %v421
      %v423 = vpop.f32.mrf.mxu0
      %v424 = vadd.f32 0.0, %v423
      %425 = vmatprep.mubr.f32.mxu0 0.0
      %426 = vmatmul.mubr.f32.gmra.mxu0 %v220
      %v427 = vpop.f32.mrf.mxu0
      %v428 = vadd.f32 0.0, %v427
      %v429 = vpop.f32.mrf.mxu0
      %v430 = vadd.f32 0.0, %v429
      %431 = vmatprep.mubr.f32.mxu0 0.0
      %432 = vmatmul.mubr.f32.gmra.mxu0 %v221
      %v433 = vpop.f32.mrf.mxu0
      %v434 = vadd.f32 0.0, %v433
      %v435 = vpop.f32.mrf.mxu0
      %v436 = vadd.f32 0.0, %v435
      %437 = vmatprep.mubr.f32.mxu0 0.0
      %438 = vmatmul.mubr.f32.gmra.mxu0 %v222
      %v439 = vpop.f32.mrf.mxu0
      %v440 = vadd.f32 0.0, %v439
      %v441 = vpop.f32.mrf.mxu0
      %v442 = vadd.f32 0.0, %v441
      %443 = vmatprep.mubr.f32.mxu0 0.0
      %444 = vmatmul.mubr.f32.gmra.mxu0 %v223
      %v445 = vpop.f32.mrf.mxu0
      %v446 = vadd.f32 0.0, %v445
      %v447 = vpop.f32.mrf.mxu0
      %v448 = vadd.f32 0.0, %v447
      %449 = vmatprep.mubr.f32.mxu0 0.0
      %450 = vmatmul.mubr.f32.gmra.mxu0 %v224
      %v451 = vpop.f32.mrf.mxu0
      %v452 = vadd.f32 0.0, %v451
      %v453 = vpop.f32.mrf.mxu0
      %v454 = vadd.f32 0.0, %v453
      %455 = vmatprep.mubr.f32.mxu0 0.0
      %456 = vmatmul.mubr.f32.gmra.mxu0 %v225
      %v457 = vpop.f32.mrf.mxu0
      %v458 = vadd.f32 0.0, %v457
      %v459 = vpop.f32.mrf.mxu0
      %v460 = vadd.f32 0.0, %v459
      %461 = vmatprep.mubr.f32.mxu0 0.0
      %462 = vmatmul.mubr.f32.gmra.mxu0 %v226
      %v463 = vpop.f32.mrf.mxu0
      %v464 = vadd.f32 0.0, %v463
      %v465 = vpop.f32.mrf.mxu0
      %v466 = vadd.f32 0.0, %v465
      %467 = vmatprep.mubr.f32.mxu0 0.0
      %468 = vmatmul.mubr.f32.gmra.mxu0 %v227
      %v469 = vpop.f32.mrf.mxu0
      %v470 = vadd.f32 0.0, %v469
      %v471 = vpop.f32.mrf.mxu0
      %v472 = vadd.f32 0.0, %v471
      %473 = vmatprep.mubr.f32.mxu0 0.0
      %474 = vmatmul.mubr.f32.gmra.mxu0 %v228
      %v475 = vpop.f32.mrf.mxu0
      %v476 = vadd.f32 0.0, %v475
      %v477 = vpop.f32.mrf.mxu0
      %v478 = vadd.f32 0.0, %v477
      %479 = vmatprep.mubr.f32.mxu0 0.0
      %480 = vmatmul.mubr.f32.gmra.mxu0 %v229
      %v481 = vpop.f32.mrf.mxu0
      %v482 = vadd.f32 0.0, %v481
      %v483 = vpop.f32.mrf.mxu0
      %v484 = vadd.f32 0.0, %v483
      %485 = vmatprep.mubr.f32.mxu0 0.0
      %486 = vmatmul.mubr.f32.gmra.mxu0 %v230
      %v487 = vpop.f32.mrf.mxu0
      %v488 = vadd.f32 0.0, %v487
      %v489 = vpop.f32.mrf.mxu0
      %v490 = vadd.f32 0.0, %v489
      %491 = vmatprep.mubr.f32.mxu0 0.0
      %492 = vmatmul.mubr.f32.gmra.mxu0 %v231
      %v493 = vpop.f32.mrf.mxu0
      %v494 = vadd.f32 0.0, %v493
      %v495 = vpop.f32.mrf.mxu0
      %v496 = vadd.f32 0.0, %v495
      %497 = vmatprep.mubr.f32.mxu0 0.0
      %498 = vmatmul.mubr.f32.gmra.mxu0 %v232
      %v499 = vpop.f32.mrf.mxu0
      %v500 = vadd.f32 0.0, %v499
      %v501 = vpop.f32.mrf.mxu0
      %v502 = vadd.f32 0.0, %v501
      %503 = vmatprep.mubr.f32.mxu0 0.0
      %504 = vmatmul.mubr.f32.gmra.mxu0 %v233
      %v505 = vpop.f32.mrf.mxu0
      %v506 = vadd.f32 0.0, %v505
      %v507 = vpop.f32.mrf.mxu0
      %v508 = vadd.f32 0.0, %v507
      %509 = vmatprep.mubr.f32.mxu0 0.0
      %510 = vmatmul.mubr.f32.gmra.mxu0 %v234
      %v511 = vpop.f32.mrf.mxu0
      %v512 = vadd.f32 0.0, %v511
      %v513 = vpop.f32.mrf.mxu0
      %v514 = vadd.f32 0.0, %v513
      %515 = vmatprep.mubr.f32.mxu0 0.0
      %516 = vmatmul.mubr.f32.gmra.mxu0 %v235
      %v517 = vpop.f32.mrf.mxu0
      %v518 = vadd.f32 0.0, %v517
      %v519 = vpop.f32.mrf.mxu0
      %v520 = vadd.f32 0.0, %v519
      %521 = vmatprep.mubr.f32.mxu0 0.0
      %522 = vmatmul.mubr.f32.gmra.mxu0 %v236
      %v523 = vpop.f32.mrf.mxu0
      %v524 = vadd.f32 0.0, %v523
      %v525 = vpop.f32.mrf.mxu0
      %v526 = vadd.f32 0.0, %v525
      %527 = vmatprep.mubr.f32.mxu0 0.0
      %528 = vmatmul.mubr.f32.gmra.mxu0 %v237
      %v529 = vpop.f32.mrf.mxu0
      %v530 = vadd.f32 0.0, %v529
      %v531 = vpop.f32.mrf.mxu0
      %v532 = vadd.f32 0.0, %v531
      %533 = vmatprep.mubr.f32.mxu0 0.0
      %534 = vmatmul.mubr.f32.gmra.mxu0 %v238
      %v535 = vpop.f32.mrf.mxu0
      %v536 = vadd.f32 0.0, %v535
      %v537 = vpop.f32.mrf.mxu0
      %v538 = vadd.f32 0.0, %v537
      %539 = vmatprep.mubr.f32.mxu0 0.0
      %540 = vmatmul.mubr.f32.gmra.mxu0 %v239
      %v541 = vpop.f32.mrf.mxu0
      %v542 = vadd.f32 0.0, %v541
      %v543 = vpop.f32.mrf.mxu0
      %v544 = vadd.f32 0.0, %v543
      %545 = vmatprep.mubr.f32.mxu0 0.0
      %546 = vmatmul.mubr.f32.gmra.mxu0 %v240
      %v547 = vpop.f32.mrf.mxu0
      %v548 = vadd.f32 0.0, %v547
      %v549 = vpop.f32.mrf.mxu0
      %v550 = vadd.f32 0.0, %v549
      %551 = vmatprep.mubr.f32.mxu0 0.0
      %552 = vmatmul.mubr.f32.gmra.mxu0 %v241
      %v553 = vpop.f32.mrf.mxu0
      %v554 = vadd.f32 0.0, %v553
      %v555 = vpop.f32.mrf.mxu0
      %v556 = vadd.f32 0.0, %v555
      %557 = vmatprep.mubr.f32.mxu0 0.0
      %558 = vmatmul.mubr.f32.gmra.mxu0 %v242
      %v559 = vpop.f32.mrf.mxu0
      %v560 = vadd.f32 0.0, %v559
      %v561 = vpop.f32.mrf.mxu0
      %v562 = vadd.f32 0.0, %v561
      %563 = vdwg.mxu0
      %v564 = vmul.f32 %v374, 0.088388346
      %v565 = vmul.f32 %v376, 0.088388346
      %v566 = vmul.f32 %v380, 0.088388346
      %v567 = vmul.f32 %v382, 0.088388346
      %v568 = vmul.f32 %v386, 0.088388346
      %v569 = vmul.f32 %v388, 0.088388346
      %v570 = vmul.f32 %v392, 0.088388346
      %v571 = vmul.f32 %v394, 0.088388346
      %v572 = vmul.f32 %v398, 0.088388346
      %v573 = vmul.f32 %v400, 0.088388346
      %v574 = vmul.f32 %v404, 0.088388346
      %v575 = vmul.f32 %v406, 0.088388346
      %v576 = vmul.f32 %v410, 0.088388346
      %v577 = vmul.f32 %v412, 0.088388346
      %v578 = vmul.f32 %v416, 0.088388346
      %v579 = vmul.f32 %v418, 0.088388346
      %v580 = vmul.f32 %v422, 0.088388346
      %v581 = vmul.f32 %v424, 0.088388346
      %v582 = vmul.f32 %v428, 0.088388346
      %v583 = vmul.f32 %v430, 0.088388346
      %v584 = vmul.f32 %v434, 0.088388346
      %v585 = vmul.f32 %v436, 0.088388346
      %v586 = vmul.f32 %v440, 0.088388346
      %v587 = vmul.f32 %v442, 0.088388346
      %v588 = vmul.f32 %v446, 0.088388346
      %v589 = vmul.f32 %v448, 0.088388346
      %v590 = vmul.f32 %v452, 0.088388346
      %v591 = vmul.f32 %v454, 0.088388346
      %v592 = vmul.f32 %v458, 0.088388346
      %v593 = vmul.f32 %v460, 0.088388346
      %v594 = vmul.f32 %v464, 0.088388346
      %v595 = vmul.f32 %v466, 0.088388346
      %v596 = vmul.f32 %v470, 0.088388346
      %v597 = vmul.f32 %v472, 0.088388346
      %v598 = vmul.f32 %v476, 0.088388346
      %v599 = vmul.f32 %v478, 0.088388346
      %v600 = vmul.f32 %v482, 0.088388346
      %v601 = vmul.f32 %v484, 0.088388346
      %v602 = vmul.f32 %v488, 0.088388346
      %v603 = vmul.f32 %v490, 0.088388346
      %v604 = vmul.f32 %v494, 0.088388346
      %v605 = vmul.f32 %v496, 0.088388346
      %v606 = vmul.f32 %v500, 0.088388346
      %v607 = vmul.f32 %v502, 0.088388346
      %v608 = vmul.f32 %v506, 0.088388346
      %v609 = vmul.f32 %v508, 0.088388346
      %v610 = vmul.f32 %v512, 0.088388346
      %v611 = vmul.f32 %v514, 0.088388346
      %v612 = vmul.f32 %v518, 0.088388346
      %v613 = vmul.f32 %v520, 0.088388346
      %v614 = vmul.f32 %v524, 0.088388346
      %v615 = vmul.f32 %v526, 0.088388346
      %v616 = vmul.f32 %v530, 0.088388346
      %v617 = vmul.f32 %v532, 0.088388346
      %v618 = vmul.f32 %v536, 0.088388346
      %v619 = vmul.f32 %v538, 0.088388346
      %v620 = vmul.f32 %v542, 0.088388346
      %v621 = vmul.f32 %v544, 0.088388346
      %v622 = vmul.f32 %v548, 0.088388346
      %v623 = vmul.f32 %v550, 0.088388346
      %v624 = vmul.f32 %v554, 0.088388346
      %v625 = vmul.f32 %v556, 0.088388346
      %v626 = vmul.f32 %v560, 0.088388346
      %v627 = vmul.f32 %v562, 0.088388346
      %v628 = vmax.f32 %v564, %v565
      %629 = vmax.xlane.f32.xlu0 %v628
      %v630 = vpop.xlane.xlu0 %629
      %v631 = vmax.f32 %v566, %v567
      %632 = vmax.xlane.f32.xlu0 %v631
      %v633 = vpop.xlane.xlu0 %632
      %v634 = vmax.f32 %v568, %v569
      %635 = vmax.xlane.f32.xlu0 %v634
      %v636 = vpop.xlane.xlu0 %635
      %v637 = vmax.f32 %v570, %v571
      %638 = vmax.xlane.f32.xlu0 %v637
      %v639 = vpop.xlane.xlu0 %638
      %v640 = vmax.f32 %v572, %v573
      %641 = vmax.xlane.f32.xlu0 %v640
      %v642 = vpop.xlane.xlu0 %641
      %v643 = vmax.f32 %v574, %v575
      %644 = vmax.xlane.f32.xlu0 %v643
      %v645 = vpop.xlane.xlu0 %644
      %v646 = vmax.f32 %v576, %v577
      %647 = vmax.xlane.f32.xlu0 %v646
      %v648 = vpop.xlane.xlu0 %647
      %v649 = vmax.f32 %v578, %v579
      %650 = vmax.xlane.f32.xlu0 %v649
      %v651 = vpop.xlane.xlu0 %650
      %v652 = vmax.f32 %v580, %v581
      %653 = vmax.xlane.f32.xlu0 %v652
      %v654 = vpop.xlane.xlu0 %653
      %v655 = vmax.f32 %v582, %v583
      %656 = vmax.xlane.f32.xlu0 %v655
      %v657 = vpop.xlane.xlu0 %656
      %v658 = vmax.f32 %v584, %v585
      %659 = vmax.xlane.f32.xlu0 %v658
      %v660 = vpop.xlane.xlu0 %659
      %v661 = vmax.f32 %v586, %v587
      %662 = vmax.xlane.f32.xlu0 %v661
      %v663 = vpop.xlane.xlu0 %662
      %v664 = vmax.f32 %v588, %v589
      %665 = vmax.xlane.f32.xlu0 %v664
      %v666 = vpop.xlane.xlu0 %665
      %v667 = vmax.f32 %v590, %v591
      %668 = vmax.xlane.f32.xlu0 %v667
      %v669 = vpop.xlane.xlu0 %668
      %v670 = vmax.f32 %v592, %v593
      %671 = vmax.xlane.f32.xlu0 %v670
      %v672 = vpop.xlane.xlu0 %671
      %v673 = vmax.f32 %v594, %v595
      %674 = vmax.xlane.f32.xlu0 %v673
      %v675 = vpop.xlane.xlu0 %674
      %v676 = vmax.f32 %v596, %v597
      %677 = vmax.xlane.f32.xlu0 %v676
      %v678 = vpop.xlane.xlu0 %677
      %v679 = vmax.f32 %v598, %v599
      %680 = vmax.xlane.f32.xlu0 %v679
      %v681 = vpop.xlane.xlu0 %680
      %v682 = vmax.f32 %v600, %v601
      %683 = vmax.xlane.f32.xlu0 %v682
      %v684 = vpop.xlane.xlu0 %683
      %v685 = vmax.f32 %v602, %v603
      %686 = vmax.xlane.f32.xlu0 %v685
      %v687 = vpop.xlane.xlu0 %686
      %v688 = vmax.f32 %v604, %v605
      %689 = vmax.xlane.f32.xlu0 %v688
      %v690 = vpop.xlane.xlu0 %689
      %v691 = vmax.f32 %v606, %v607
      %692 = vmax.xlane.f32.xlu0 %v691
      %v693 = vpop.xlane.xlu0 %692
      %v694 = vmax.f32 %v608, %v609
      %695 = vmax.xlane.f32.xlu0 %v694
      %v696 = vpop.xlane.xlu0 %695
      %v697 = vmax.f32 %v610, %v611
      %698 = vmax.xlane.f32.xlu0 %v697
      %v699 = vpop.xlane.xlu0 %698
      %v700 = vmax.f32 %v612, %v613
      %701 = vmax.xlane.f32.xlu0 %v700
      %v702 = vpop.xlane.xlu0 %701
      %v703 = vmax.f32 %v614, %v615
      %704 = vmax.xlane.f32.xlu0 %v703
      %v705 = vpop.xlane.xlu0 %704
      %v706 = vmax.f32 %v616, %v617
      %707 = vmax.xlane.f32.xlu0 %v706
      %v708 = vpop.xlane.xlu0 %707
      %v709 = vmax.f32 %v618, %v619
      %710 = vmax.xlane.f32.xlu0 %v709
      %v711 = vpop.xlane.xlu0 %710
      %v712 = vmax.f32 %v620, %v621
      %713 = vmax.xlane.f32.xlu0 %v712
      %v714 = vpop.xlane.xlu0 %713
      %v715 = vmax.f32 %v622, %v623
      %716 = vmax.xlane.f32.xlu0 %v715
      %v717 = vpop.xlane.xlu0 %716
      %v718 = vmax.f32 %v624, %v625
      %719 = vmax.xlane.f32.xlu0 %v718
      %v720 = vpop.xlane.xlu0 %719
      %v721 = vmax.f32 %v626, %v627
      %722 = vmax.xlane.f32.xlu0 %v721
      %v723 = vpop.xlane.xlu0 %722
      %v724 = vsub.f32 %v564, %v630
      %v725 = vsub.f32 %v565, %v630
      %v726 = vsub.f32 %v566, %v633
      %v727 = vsub.f32 %v567, %v633
      %v728 = vsub.f32 %v568, %v636
      %v729 = vsub.f32 %v569, %v636
      %v730 = vsub.f32 %v570, %v639
      %v731 = vsub.f32 %v571, %v639
      %v732 = vsub.f32 %v572, %v642
      %v733 = vsub.f32 %v573, %v642
      %v734 = vsub.f32 %v574, %v645
      %v735 = vsub.f32 %v575, %v645
      %v736 = vsub.f32 %v576, %v648
      %v737 = vsub.f32 %v577, %v648
      %v738 = vsub.f32 %v578, %v651
      %v739 = vsub.f32 %v579, %v651
      %v740 = vsub.f32 %v580, %v654
      %v741 = vsub.f32 %v581, %v654
      %v742 = vsub.f32 %v582, %v657
      %v743 = vsub.f32 %v583, %v657
      %v744 = vsub.f32 %v584, %v660
      %v745 = vsub.f32 %v585, %v660
      %v746 = vsub.f32 %v586, %v663
      %v747 = vsub.f32 %v587, %v663
      %v748 = vsub.f32 %v588, %v666
      %v749 = vsub.f32 %v589, %v666
      %v750 = vsub.f32 %v590, %v669
      %v751 = vsub.f32 %v591, %v669
      %v752 = vsub.f32 %v592, %v672
      %v753 = vsub.f32 %v593, %v672
      %v754 = vsub.f32 %v594, %v675
      %v755 = vsub.f32 %v595, %v675
      %v756 = vsub.f32 %v596, %v678
      %v757 = vsub.f32 %v597, %v678
      %v758 = vsub.f32 %v598, %v681
      %v759 = vsub.f32 %v599, %v681
      %v760 = vsub.f32 %v600, %v684
      %v761 = vsub.f32 %v601, %v684
      %v762 = vsub.f32 %v602, %v687
      %v763 = vsub.f32 %v603, %v687
      %v764 = vsub.f32 %v604, %v690
      %v765 = vsub.f32 %v605, %v690
      %v766 = vsub.f32 %v606, %v693
      %v767 = vsub.f32 %v607, %v693
      %v768 = vsub.f32 %v608, %v696
      %v769 = vsub.f32 %v609, %v696
      %v770 = vsub.f32 %v610, %v699
      %v771 = vsub.f32 %v611, %v699
      %v772 = vsub.f32 %v612, %v702
      %v773 = vsub.f32 %v613, %v702
      %v774 = vsub.f32 %v614, %v705
      %v775 = vsub.f32 %v615, %v705
      %v776 = vsub.f32 %v616, %v708
      %v777 = vsub.f32 %v617, %v708
      %v778 = vsub.f32 %v618, %v711
      %v779 = vsub.f32 %v619, %v711
      %v780 = vsub.f32 %v620, %v714
      %v781 = vsub.f32 %v621, %v714
      %v782 = vsub.f32 %v622, %v717
      %v783 = vsub.f32 %v623, %v717
      %v784 = vsub.f32 %v624, %v720
      %v785 = vsub.f32 %v625, %v720
      %v786 = vsub.f32 %v626, %v723
      %v787 = vsub.f32 %v627, %v723
      %v788 = vmul.f32 %v724, 1.442695
      %v789 = vpow.pop %v788
      %v790 = vmul.f32 %v725, 1.442695
      %v791 = vpow.pop %v790
      %v792 = vmul.f32 %v726, 1.442695
      %v793 = vpow.pop %v792
      %v794 = vmul.f32 %v727, 1.442695
      %v795 = vpow.pop %v794
      %v796 = vmul.f32 %v728, 1.442695
      %v797 = vpow.pop %v796
      %v798 = vmul.f32 %v729, 1.442695
      %v799 = vpow.pop %v798
      %v800 = vmul.f32 %v730, 1.442695
      %v801 = vpow.pop %v800
      %v802 = vmul.f32 %v731, 1.442695
      %v803 = vpow.pop %v802
      %v804 = vmul.f32 %v732, 1.442695
      %v805 = vpow.pop %v804
      %v806 = vmul.f32 %v733, 1.442695
      %v807 = vpow.pop %v806
      %v808 = vmul.f32 %v734, 1.442695
      %v809 = vpow.pop %v808
      %v810 = vmul.f32 %v735, 1.442695
      %v811 = vpow.pop %v810
      %v812 = vmul.f32 %v736, 1.442695
      %v813 = vpow.pop %v812
      %v814 = vmul.f32 %v737, 1.442695
      %v815 = vpow.pop %v814
      %v816 = vmul.f32 %v738, 1.442695
      %v817 = vpow.pop %v816
      %v818 = vmul.f32 %v739, 1.442695
      %v819 = vpow.pop %v818
      %v820 = vmul.f32 %v740, 1.442695
      %v821 = vpow.pop %v820
      %v822 = vmul.f32 %v741, 1.442695
      %v823 = vpow.pop %v822
      %v824 = vmul.f32 %v742, 1.442695
      %v825 = vpow.pop %v824
      %v826 = vmul.f32 %v743, 1.442695
      %v827 = vpow.pop %v826
      %v828 = vmul.f32 %v744, 1.442695
      %v829 = vpow.pop %v828
      %v830 = vmul.f32 %v745, 1.442695
      %v831 = vpow.pop %v830
      %v832 = vmul.f32 %v746, 1.442695
      %v833 = vpow.pop %v832
      %v834 = vmul.f32 %v747, 1.442695
      %v835 = vpow.pop %v834
      %v836 = vmul.f32 %v748, 1.442695
      %v837 = vpow.pop %v836
      %v838 = vmul.f32 %v749, 1.442695
      %v839 = vpow.pop %v838
      %v840 = vmul.f32 %v750, 1.442695
      %v841 = vpow.pop %v840
      %v842 = vmul.f32 %v751, 1.442695
      %v843 = vpow.pop %v842
      %v844 = vmul.f32 %v752, 1.442695
      %v845 = vpow.pop %v844
      %v846 = vmul.f32 %v753, 1.442695
      %v847 = vpow.pop %v846
      %v848 = vmul.f32 %v754, 1.442695
      %v849 = vpow.pop %v848
      %v850 = vmul.f32 %v755, 1.442695
      %v851 = vpow.pop %v850
      %v852 = vmul.f32 %v756, 1.442695
      %v853 = vpow.pop %v852
      %v854 = vmul.f32 %v757, 1.442695
      %v855 = vpow.pop %v854
      %v856 = vmul.f32 %v758, 1.442695
      %v857 = vpow.pop %v856
      %v858 = vmul.f32 %v759, 1.442695
      %v859 = vpow.pop %v858
      %v860 = vmul.f32 %v760, 1.442695
      %v861 = vpow.pop %v860
      %v862 = vmul.f32 %v761, 1.442695
      %v863 = vpow.pop %v862
      %v864 = vmul.f32 %v762, 1.442695
      %v865 = vpow.pop %v864
      %v866 = vmul.f32 %v763, 1.442695
      %v867 = vpow.pop %v866
      %v868 = vmul.f32 %v764, 1.442695
      %v869 = vpow.pop %v868
      %v870 = vmul.f32 %v765, 1.442695
      %v871 = vpow.pop %v870
      %v872 = vmul.f32 %v766, 1.442695
      %v873 = vpow.pop %v872
      %v874 = vmul.f32 %v767, 1.442695
      %v875 = vpow.pop %v874
      %v876 = vmul.f32 %v768, 1.442695
      %v877 = vpow.pop %v876
      %v878 = vmul.f32 %v769, 1.442695
      %v879 = vpow.pop %v878
      %v880 = vmul.f32 %v770, 1.442695
      %v881 = vpow.pop %v880
      %v882 = vmul.f32 %v771, 1.442695
      %v883 = vpow.pop %v882
      %v884 = vmul.f32 %v772, 1.442695
      %v885 = vpow.pop %v884
      %v886 = vmul.f32 %v773, 1.442695
      %v887 = vpow.pop %v886
      %v888 = vmul.f32 %v774, 1.442695
      %v889 = vpow.pop %v888
      %v890 = vmul.f32 %v775, 1.442695
      %v891 = vpow.pop %v890
      %v892 = vmul.f32 %v776, 1.442695
      %v893 = vpow.pop %v892
      %v894 = vmul.f32 %v777, 1.442695
      %v895 = vpow.pop %v894
      %v896 = vmul.f32 %v778, 1.442695
      %v897 = vpow.pop %v896
      %v898 = vmul.f32 %v779, 1.442695
      %v899 = vpow.pop %v898
      %v900 = vmul.f32 %v780, 1.442695
      %v901 = vpow.pop %v900
      %v902 = vmul.f32 %v781, 1.442695
      %v903 = vpow.pop %v902
      %v904 = vmul.f32 %v782, 1.442695
      %v905 = vpow.pop %v904
      %v906 = vmul.f32 %v783, 1.442695
      %v907 = vpow.pop %v906
      %v908 = vmul.f32 %v784, 1.442695
      %v909 = vpow.pop %v908
      %v910 = vmul.f32 %v785, 1.442695
      %v911 = vpow.pop %v910
      %v912 = vmul.f32 %v786, 1.442695
      %v913 = vpow.pop %v912
      %v914 = vmul.f32 %v787, 1.442695
      %v915 = vpow.pop %v914
      %v916 = vadd.f32 %v789, %v791
      %917 = vadd.xlane.f32.xlu0 %v916
      %v918 = vpop.xlane.xlu0 %917
      %v919 = vadd.f32 %v793, %v795
      %920 = vadd.xlane.f32.xlu0 %v919
      %v921 = vpop.xlane.xlu0 %920
      %v922 = vadd.f32 %v797, %v799
      %923 = vadd.xlane.f32.xlu0 %v922
      %v924 = vpop.xlane.xlu0 %923
      %v925 = vadd.f32 %v801, %v803
      %926 = vadd.xlane.f32.xlu0 %v925
      %v927 = vpop.xlane.xlu0 %926
      %v928 = vadd.f32 %v805, %v807
      %929 = vadd.xlane.f32.xlu0 %v928
      %v930 = vpop.xlane.xlu0 %929
      %v931 = vadd.f32 %v809, %v811
      %932 = vadd.xlane.f32.xlu0 %v931
      %v933 = vpop.xlane.xlu0 %932
      %v934 = vadd.f32 %v813, %v815
      %935 = vadd.xlane.f32.xlu0 %v934
      %v936 = vpop.xlane.xlu0 %935
      %v937 = vadd.f32 %v817, %v819
      %938 = vadd.xlane.f32.xlu0 %v937
      %v939 = vpop.xlane.xlu0 %938
      %v940 = vadd.f32 %v821, %v823
      %941 = vadd.xlane.f32.xlu0 %v940
      %v942 = vpop.xlane.xlu0 %941
      %v943 = vadd.f32 %v825, %v827
      %944 = vadd.xlane.f32.xlu0 %v943
      %v945 = vpop.xlane.xlu0 %944
      %v946 = vadd.f32 %v829, %v831
      %947 = vadd.xlane.f32.xlu0 %v946
      %v948 = vpop.xlane.xlu0 %947
      %v949 = vadd.f32 %v833, %v835
      %950 = vadd.xlane.f32.xlu0 %v949
      %v951 = vpop.xlane.xlu0 %950
      %v952 = vadd.f32 %v837, %v839
      %953 = vadd.xlane.f32.xlu0 %v952
      %v954 = vpop.xlane.xlu0 %953
      %v955 = vadd.f32 %v841, %v843
      %956 = vadd.xlane.f32.xlu0 %v955
      %v957 = vpop.xlane.xlu0 %956
      %v958 = vadd.f32 %v845, %v847
      %959 = vadd.xlane.f32.xlu0 %v958
      %v960 = vpop.xlane.xlu0 %959
      %v961 = vadd.f32 %v849, %v851
      %962 = vadd.xlane.f32.xlu0 %v961
      %v963 = vpop.xlane.xlu0 %962
      %v964 = vadd.f32 %v853, %v855
      %965 = vadd.xlane.f32.xlu0 %v964
      %v966 = vpop.xlane.xlu0 %965
      %v967 = vadd.f32 %v857, %v859
      %968 = vadd.xlane.f32.xlu0 %v967
      %v969 = vpop.xlane.xlu0 %968
      %v970 = vadd.f32 %v861, %v863
      %971 = vadd.xlane.f32.xlu0 %v970
      %v972 = vpop.xlane.xlu0 %971
      %v973 = vadd.f32 %v865, %v867
      %974 = vadd.xlane.f32.xlu0 %v973
      %v975 = vpop.xlane.xlu0 %974
      %v976 = vadd.f32 %v869, %v871
      %977 = vadd.xlane.f32.xlu0 %v976
      %v978 = vpop.xlane.xlu0 %977
      %v979 = vadd.f32 %v873, %v875
      %980 = vadd.xlane.f32.xlu0 %v979
      %v981 = vpop.xlane.xlu0 %980
      %v982 = vadd.f32 %v877, %v879
      %983 = vadd.xlane.f32.xlu0 %v982
      %v984 = vpop.xlane.xlu0 %983
      %v985 = vadd.f32 %v881, %v883
      %986 = vadd.xlane.f32.xlu0 %v985
      %v987 = vpop.xlane.xlu0 %986
      %v988 = vadd.f32 %v885, %v887
      %989 = vadd.xlane.f32.xlu0 %v988
      %v990 = vpop.xlane.xlu0 %989
      %v991 = vadd.f32 %v889, %v891
      %992 = vadd.xlane.f32.xlu0 %v991
      %v993 = vpop.xlane.xlu0 %992
      %v994 = vadd.f32 %v893, %v895
      %995 = vadd.xlane.f32.xlu0 %v994
      %v996 = vpop.xlane.xlu0 %995
      %v997 = vadd.f32 %v897, %v899
      %998 = vadd.xlane.f32.xlu0 %v997
      %v999 = vpop.xlane.xlu0 %998
      %v1000 = vadd.f32 %v901, %v903
      %1001 = vadd.xlane.f32.xlu0 %v1000
      %v1002 = vpop.xlane.xlu0 %1001
      %v1003 = vadd.f32 %v905, %v907
      %1004 = vadd.xlane.f32.xlu0 %v1003
      %v1005 = vpop.xlane.xlu0 %1004
      %v1006 = vadd.f32 %v909, %v911
      %1007 = vadd.xlane.f32.xlu0 %v1006
      %v1008 = vpop.xlane.xlu0 %1007
      %v1009 = vadd.f32 %v913, %v915
      %1010 = vadd.xlane.f32.xlu0 %v1009
      %v1011 = vpop.xlane.xlu0 %1010
      %1012 = vmatprep.subr.mxu0 0.0
      %1013 = vmatpush1.msra.mxu0 %v290
      %1014 = vmatprep.subr.mxu0 0.0
      %1015 = vmatpush1.msra.mxu0 %v289
      %1016 = vmatprep.subr.mxu0 0.0
      %1017 = vmatpush1.msra.mxu0 %v288
      %1018 = vmatprep.subr.mxu0 0.0
      %1019 = vmatpush1.msra.mxu0 %v287
      %1020 = vmatprep.subr.mxu0 0.0
      %1021 = vmatpush1.msra.mxu0 %v286
      %1022 = vmatprep.subr.mxu0 0.0
      %1023 = vmatpush1.msra.mxu0 %v285
      %1024 = vmatprep.subr.mxu0 0.0
      %1025 = vmatpush1.msra.mxu0 %v284
      %1026 = vmatprep.subr.mxu0 0.0
      %1027 = vmatpush1.msra.mxu0 %v283
      %1028 = vmatprep.subr.mxu0 0.0
      %1029 = vmatpush1.msra.mxu0 %v282
      %1030 = vmatprep.subr.mxu0 0.0
      %1031 = vmatpush1.msra.mxu0 %v281
      %1032 = vmatprep.subr.mxu0 0.0
      %1033 = vmatpush1.msra.mxu0 %v280
      %1034 = vmatprep.subr.mxu0 0.0
      %1035 = vmatpush1.msra.mxu0 %v279
      %1036 = vmatprep.subr.mxu0 0.0
      %1037 = vmatpush1.msra.mxu0 %v278
      %1038 = vmatprep.subr.mxu0 0.0
      %1039 = vmatpush1.msra.mxu0 %v277
      %1040 = vmatprep.subr.mxu0 0.0
      %1041 = vmatpush1.msra.mxu0 %v276
      %1042 = vmatprep.subr.mxu0 0.0
      %1043 = vmatpush1.msra.mxu0 %v275
      %1044 = vmatprep.subr.mxu0 0.0
      %1045 = vmatpush2.msra.mxu0 %v306
      %1046 = vmatprep.subr.mxu0 0.0
      %1047 = vmatpush2.msra.mxu0 %v305
      %1048 = vmatprep.subr.mxu0 0.0
      %1049 = vmatpush2.msra.mxu0 %v304
      %1050 = vmatprep.subr.mxu0 0.0
      %1051 = vmatpush2.msra.mxu0 %v303
      %1052 = vmatprep.subr.mxu0 0.0
      %1053 = vmatpush2.msra.mxu0 %v302
      %1054 = vmatprep.subr.mxu0 0.0
      %1055 = vmatpush2.msra.mxu0 %v301
      %1056 = vmatprep.subr.mxu0 0.0
      %1057 = vmatpush2.msra.mxu0 %v300
      %1058 = vmatprep.subr.mxu0 0.0
      %1059 = vmatpush2.msra.mxu0 %v299
      %1060 = vmatprep.subr.mxu0 0.0
      %1061 = vmatpush2.msra.mxu0 %v298
      %1062 = vmatprep.subr.mxu0 0.0
      %1063 = vmatpush2.msra.mxu0 %v297
      %1064 = vmatprep.subr.mxu0 0.0
      %1065 = vmatpush2.msra.mxu0 %v296
      %1066 = vmatprep.subr.mxu0 0.0
      %1067 = vmatpush2.msra.mxu0 %v295
      %1068 = vmatprep.subr.mxu0 0.0
      %1069 = vmatpush2.msra.mxu0 %v294
      %1070 = vmatprep.subr.mxu0 0.0
      %1071 = vmatpush2.msra.mxu0 %v293
      %1072 = vmatprep.subr.mxu0 0.0
      %1073 = vmatpush2.msra.mxu0 %v292
      %1074 = vmatprep.subr.mxu0 0.0
      %1075 = vmatpush2.msra.mxu0 %v291
      %1076 = vmatprep.mubr.f32.mxu0 %v791
      %1077 = vmatmul.mubr.f32.gmra.mxu0 %v789
      %v1078 = vpop.f32.mrf.mxu0
      %v1079 = vadd.f32 0.0, %v1078
      %v1080 = vpop.f32.mrf.mxu0
      %1081 = vmatprep.mubr.f32.mxu0 %v795
      %1082 = vmatmul.mubr.f32.gmra.mxu0 %v793
      %v1083 = vpop.f32.mrf.mxu0
      %v1084 = vadd.f32 0.0, %v1083
      %v1085 = vpop.f32.mrf.mxu0
      %1086 = vmatprep.mubr.f32.mxu0 %v799
      %1087 = vmatmul.mubr.f32.gmra.mxu0 %v797
      %v1088 = vpop.f32.mrf.mxu0
      %v1089 = vadd.f32 0.0, %v1088
      %v1090 = vpop.f32.mrf.mxu0
      %1091 = vmatprep.mubr.f32.mxu0 %v803
      %1092 = vmatmul.mubr.f32.gmra.mxu0 %v801
      %v1093 = vpop.f32.mrf.mxu0
      %v1094 = vadd.f32 0.0, %v1093
      %v1095 = vpop.f32.mrf.mxu0
      %1096 = vmatprep.mubr.f32.mxu0 %v807
      %1097 = vmatmul.mubr.f32.gmra.mxu0 %v805
      %v1098 = vpop.f32.mrf.mxu0
      %v1099 = vadd.f32 0.0, %v1098
      %v1100 = vpop.f32.mrf.mxu0
      %1101 = vmatprep.mubr.f32.mxu0 %v811
      %1102 = vmatmul.mubr.f32.gmra.mxu0 %v809
      %v1103 = vpop.f32.mrf.mxu0
      %v1104 = vadd.f32 0.0, %v1103
      %v1105 = vpop.f32.mrf.mxu0
      %1106 = vmatprep.mubr.f32.mxu0 %v815
      %1107 = vmatmul.mubr.f32.gmra.mxu0 %v813
      %v1108 = vpop.f32.mrf.mxu0
      %v1109 = vadd.f32 0.0, %v1108
      %v1110 = vpop.f32.mrf.mxu0
      %1111 = vmatprep.mubr.f32.mxu0 %v819
      %1112 = vmatmul.mubr.f32.gmra.mxu0 %v817
      %v1113 = vpop.f32.mrf.mxu0
      %v1114 = vadd.f32 0.0, %v1113
      %v1115 = vpop.f32.mrf.mxu0
      %1116 = vmatprep.mubr.f32.mxu0 %v823
      %1117 = vmatmul.mubr.f32.gmra.mxu0 %v821
      %v1118 = vpop.f32.mrf.mxu0
      %v1119 = vadd.f32 0.0, %v1118
      %v1120 = vpop.f32.mrf.mxu0
      %1121 = vmatprep.mubr.f32.mxu0 %v827
      %1122 = vmatmul.mubr.f32.gmra.mxu0 %v825
      %v1123 = vpop.f32.mrf.mxu0
      %v1124 = vadd.f32 0.0, %v1123
      %v1125 = vpop.f32.mrf.mxu0
      %1126 = vmatprep.mubr.f32.mxu0 %v831
      %1127 = vmatmul.mubr.f32.gmra.mxu0 %v829
      %v1128 = vpop.f32.mrf.mxu0
      %v1129 = vadd.f32 0.0, %v1128
      %v1130 = vpop.f32.mrf.mxu0
      %1131 = vmatprep.mubr.f32.mxu0 %v835
      %1132 = vmatmul.mubr.f32.gmra.mxu0 %v833
      %v1133 = vpop.f32.mrf.mxu0
      %v1134 = vadd.f32 0.0, %v1133
      %v1135 = vpop.f32.mrf.mxu0
      %1136 = vmatprep.mubr.f32.mxu0 %v839
      %1137 = vmatmul.mubr.f32.gmra.mxu0 %v837
      %v1138 = vpop.f32.mrf.mxu0
      %v1139 = vadd.f32 0.0, %v1138
      %v1140 = vpop.f32.mrf.mxu0
      %1141 = vmatprep.mubr.f32.mxu0 %v843
      %1142 = vmatmul.mubr.f32.gmra.mxu0 %v841
      %v1143 = vpop.f32.mrf.mxu0
      %v1144 = vadd.f32 0.0, %v1143
      %v1145 = vpop.f32.mrf.mxu0
      %1146 = vmatprep.mubr.f32.mxu0 %v847
      %1147 = vmatmul.mubr.f32.gmra.mxu0 %v845
      %v1148 = vpop.f32.mrf.mxu0
      %v1149 = vadd.f32 0.0, %v1148
      %v1150 = vpop.f32.mrf.mxu0
      %1151 = vmatprep.mubr.f32.mxu0 %v851
      %1152 = vmatmul.mubr.f32.gmra.mxu0 %v849
      %v1153 = vpop.f32.mrf.mxu0
      %v1154 = vadd.f32 0.0, %v1153
      %v1155 = vpop.f32.mrf.mxu0
      %1156 = vmatprep.mubr.f32.mxu0 %v855
      %1157 = vmatmul.mubr.f32.gmra.mxu0 %v853
      %v1158 = vpop.f32.mrf.mxu0
      %v1159 = vadd.f32 0.0, %v1158
      %v1160 = vpop.f32.mrf.mxu0
      %1161 = vmatprep.mubr.f32.mxu0 %v859
      %1162 = vmatmul.mubr.f32.gmra.mxu0 %v857
      %v1163 = vpop.f32.mrf.mxu0
      %v1164 = vadd.f32 0.0, %v1163
      %v1165 = vpop.f32.mrf.mxu0
      %1166 = vmatprep.mubr.f32.mxu0 %v863
      %1167 = vmatmul.mubr.f32.gmra.mxu0 %v861
      %v1168 = vpop.f32.mrf.mxu0
      %v1169 = vadd.f32 0.0, %v1168
      %v1170 = vpop.f32.mrf.mxu0
      %1171 = vmatprep.mubr.f32.mxu0 %v867
      %1172 = vmatmul.mubr.f32.gmra.mxu0 %v865
      %v1173 = vpop.f32.mrf.mxu0
      %v1174 = vadd.f32 0.0, %v1173
      %v1175 = vpop.f32.mrf.mxu0
      %1176 = vmatprep.mubr.f32.mxu0 %v871
      %1177 = vmatmul.mubr.f32.gmra.mxu0 %v869
      %v1178 = vpop.f32.mrf.mxu0
      %v1179 = vadd.f32 0.0, %v1178
      %v1180 = vpop.f32.mrf.mxu0
      %1181 = vmatprep.mubr.f32.mxu0 %v875
      %1182 = vmatmul.mubr.f32.gmra.mxu0 %v873
      %v1183 = vpop.f32.mrf.mxu0
      %v1184 = vadd.f32 0.0, %v1183
      %v1185 = vpop.f32.mrf.mxu0
      %1186 = vmatprep.mubr.f32.mxu0 %v879
      %1187 = vmatmul.mubr.f32.gmra.mxu0 %v877
      %v1188 = vpop.f32.mrf.mxu0
      %v1189 = vadd.f32 0.0, %v1188
      %v1190 = vpop.f32.mrf.mxu0
      %1191 = vmatprep.mubr.f32.mxu0 %v883
      %1192 = vmatmul.mubr.f32.gmra.mxu0 %v881
      %v1193 = vpop.f32.mrf.mxu0
      %v1194 = vadd.f32 0.0, %v1193
      %v1195 = vpop.f32.mrf.mxu0
      %1196 = vmatprep.mubr.f32.mxu0 %v887
      %1197 = vmatmul.mubr.f32.gmra.mxu0 %v885
      %v1198 = vpop.f32.mrf.mxu0
      %v1199 = vadd.f32 0.0, %v1198
      %v1200 = vpop.f32.mrf.mxu0
      %1201 = vmatprep.mubr.f32.mxu0 %v891
      %1202 = vmatmul.mubr.f32.gmra.mxu0 %v889
      %v1203 = vpop.f32.mrf.mxu0
      %v1204 = vadd.f32 0.0, %v1203
      %v1205 = vpop.f32.mrf.mxu0
      %1206 = vmatprep.mubr.f32.mxu0 %v895
      %1207 = vmatmul.mubr.f32.gmra.mxu0 %v893
      %v1208 = vpop.f32.mrf.mxu0
      %v1209 = vadd.f32 0.0, %v1208
      %v1210 = vpop.f32.mrf.mxu0
      %1211 = vmatprep.mubr.f32.mxu0 %v899
      %1212 = vmatmul.mubr.f32.gmra.mxu0 %v897
      %v1213 = vpop.f32.mrf.mxu0
      %v1214 = vadd.f32 0.0, %v1213
      %v1215 = vpop.f32.mrf.mxu0
      %1216 = vmatprep.mubr.f32.mxu0 %v903
      %1217 = vmatmul.mubr.f32.gmra.mxu0 %v901
      %v1218 = vpop.f32.mrf.mxu0
      %v1219 = vadd.f32 0.0, %v1218
      %v1220 = vpop.f32.mrf.mxu0
      %1221 = vmatprep.mubr.f32.mxu0 %v907
      %1222 = vmatmul.mubr.f32.gmra.mxu0 %v905
      %v1223 = vpop.f32.mrf.mxu0
      %v1224 = vadd.f32 0.0, %v1223
      %v1225 = vpop.f32.mrf.mxu0
      %1226 = vmatprep.mubr.f32.mxu0 %v911
      %1227 = vmatmul.mubr.f32.gmra.mxu0 %v909
      %v1228 = vpop.f32.mrf.mxu0
      %v1229 = vadd.f32 0.0, %v1228
      %v1230 = vpop.f32.mrf.mxu0
      %1231 = vmatprep.mubr.f32.mxu0 %v915
      %1232 = vmatmul.mubr.f32.gmra.mxu0 %v913
      %v1233 = vpop.f32.mrf.mxu0
      %v1234 = vadd.f32 0.0, %v1233
      %v1235 = vpop.f32.mrf.mxu0
      %1236 = vdwg.mxu0
      %v1237 = vrcp.pop %v918
      %v1238 = vmul.f32 %v1079, %v1237
      %v1239 = vrcp.pop %v921
      %v1240 = vmul.f32 %v1084, %v1239
      %v1241 = vrcp.pop %v924
      %v1242 = vmul.f32 %v1089, %v1241
      %v1243 = vrcp.pop %v927
      %v1244 = vmul.f32 %v1094, %v1243
      %v1245 = vrcp.pop %v930
      %v1246 = vmul.f32 %v1099, %v1245
      %v1247 = vrcp.pop %v933
      %v1248 = vmul.f32 %v1104, %v1247
      %v1249 = vrcp.pop %v936
      %v1250 = vmul.f32 %v1109, %v1249
      %v1251 = vrcp.pop %v939
      %v1252 = vmul.f32 %v1114, %v1251
      %v1253 = vrcp.pop %v942
      %v1254 = vmul.f32 %v1119, %v1253
      %v1255 = vrcp.pop %v945
      %v1256 = vmul.f32 %v1124, %v1255
      %v1257 = vrcp.pop %v948
      %v1258 = vmul.f32 %v1129, %v1257
      %v1259 = vrcp.pop %v951
      %v1260 = vmul.f32 %v1134, %v1259
      %v1261 = vrcp.pop %v954
      %v1262 = vmul.f32 %v1139, %v1261
      %v1263 = vrcp.pop %v957
      %v1264 = vmul.f32 %v1144, %v1263
      %v1265 = vrcp.pop %v960
      %v1266 = vmul.f32 %v1149, %v1265
      %v1267 = vrcp.pop %v963
      %v1268 = vmul.f32 %v1154, %v1267
      %v1269 = vrcp.pop %v966
      %v1270 = vmul.f32 %v1159, %v1269
      %v1271 = vrcp.pop %v969
      %v1272 = vmul.f32 %v1164, %v1271
      %v1273 = vrcp.pop %v972
      %v1274 = vmul.f32 %v1169, %v1273
      %v1275 = vrcp.pop %v975
      %v1276 = vmul.f32 %v1174, %v1275
      %v1277 = vrcp.pop %v978
      %v1278 = vmul.f32 %v1179, %v1277
      %v1279 = vrcp.pop %v981
      %v1280 = vmul.f32 %v1184, %v1279
      %v1281 = vrcp.pop %v984
      %v1282 = vmul.f32 %v1189, %v1281
      %v1283 = vrcp.pop %v987
      %v1284 = vmul.f32 %v1194, %v1283
      %v1285 = vrcp.pop %v990
      %v1286 = vmul.f32 %v1199, %v1285
      %v1287 = vrcp.pop %v993
      %v1288 = vmul.f32 %v1204, %v1287
      %v1289 = vrcp.pop %v996
      %v1290 = vmul.f32 %v1209, %v1289
      %v1291 = vrcp.pop %v999
      %v1292 = vmul.f32 %v1214, %v1291
      %v1293 = vrcp.pop %v1002
      %v1294 = vmul.f32 %v1219, %v1293
      %v1295 = vrcp.pop %v1005
      %v1296 = vmul.f32 %v1224, %v1295
      %v1297 = vrcp.pop %v1008
      %v1298 = vmul.f32 %v1229, %v1297
      %v1299 = vrcp.pop %v1011
      %v1300 = vmul.f32 %v1234, %v1299
      %1301 = vst [vmem:[%s210] sm:$0xff] %v1238
      %1302 = vst [vmem:[%s210 + $0x8] sm:$0xff] %v1240
      %1303 = vst [vmem:[%s210 + $0x10] sm:$0xff] %v1242
      %1304 = vst [vmem:[%s210 + $0x18] sm:$0xff] %v1244
      %1305 = vst [vmem:[%s210 + $0x20] sm:$0xff] %v1246
      %1306 = vst [vmem:[%s210 + $0x28] sm:$0xff] %v1248
      %1307 = vst [vmem:[%s210 + $0x30] sm:$0xff] %v1250
      %1308 = vst [vmem:[%s210 + $0x38] sm:$0xff] %v1252
      %1309 = vst [vmem:[%s210 + $0x40] sm:$0xff] %v1254
      %1310 = vst [vmem:[%s210 + $0x48] sm:$0xff] %v1256
      %1311 = vst [vmem:[%s210 + $0x50] sm:$0xff] %v1258
      %1312 = vst [vmem:[%s210 + $0x58] sm:$0xff] %v1260
      %1313 = vst [vmem:[%s210 + $0x60] sm:$0xff] %v1262
      %1314 = vst [vmem:[%s210 + $0x68] sm:$0xff] %v1264
      %1315 = vst [vmem:[%s210 + $0x70] sm:$0xff] %v1266
      %1316 = vst [vmem:[%s210 + $0x78] sm:$0xff] %v1268
      %1317 = vst [vmem:[%s210 + $0x80] sm:$0xff] %v1270
      %1318 = vst [vmem:[%s210 + $0x88] sm:$0xff] %v1272
      %1319 = vst [vmem:[%s210 + $0x90] sm:$0xff] %v1274
      %1320 = vst [vmem:[%s210 + $0x98] sm:$0xff] %v1276
      %1321 = vst [vmem:[%s210 + $0xa0] sm:$0xff] %v1278
      %1322 = vst [vmem:[%s210 + $0xa8] sm:$0xff] %v1280
      %1323 = vst [vmem:[%s210 + $0xb0] sm:$0xff] %v1282
      %1324 = vst [vmem:[%s210 + $0xb8] sm:$0xff] %v1284
      %1325 = vst [vmem:[%s210 + $0xc0] sm:$0xff] %v1286
      %1326 = vst [vmem:[%s210 + $0xc8] sm:$0xff] %v1288
      %1327 = vst [vmem:[%s210 + $0xd0] sm:$0xff] %v1290
      %1328 = vst [vmem:[%s210 + $0xd8] sm:$0xff] %v1292
      %1329 = vst [vmem:[%s210 + $0xe0] sm:$0xff] %v1294
      %1330 = vst [vmem:[%s210 + $0xe8] sm:$0xff] %v1296
      %1331 = vst [vmem:[%s210 + $0xf0] sm:$0xff] %v1298
      %1332 = vst [vmem:[%s210 + $0xf8] sm:$0xff] %v1300
      %p1333 = scmp.lt.s32.totalorder %s14, 1
      %s1334 = scalar_select %p1333, %s14, 1
      %s1335 = smul.addr %s1334, 32
      %s1336 = smul.addr %s1335, 8
      %s1337 = scalar_lea.vmem %s3, %s1336
      // Predicated region
      $region33: #{object_context_block.9} parent=31 // pred_check
        %p1338 = pneg %p110
      $region34: #{object_context_block.9} parent=31 // pred_check_branch
        %1340 = sbr.rel (%p1338) target = $region36
      $region35: #{object_context_block.9} parent=31 // pred_region
        _
      $region36: #{object_context_block.9} parent=31 // pred_fallthru
        _
    $region32: #{object_context_block.9} parent=5 // pred_fallthru
      _
    %p1341 = scmp.le.s32.totalorder 2, %s9
    // Predicated region
    $region37: #{object_context_block.9} parent=5 // pred_check
      %p1342 = pneg %p1341
    $region38: #{object_context_block.9} parent=5 // pred_check_branch
      %1344 = sbr.rel (%p1342) target = $region40
    $region39: #{object_context_block.9} parent=5 // pred_region
      %s1345 = ssub.s32 %s9, 2
      // Predicated region
      $region41: #{object_context_block.9} parent=39 // pred_check
        %p1346 = pneg %p116
      $region42: #{object_context_block.9} parent=39 // pred_check_branch
        %1348 = sbr.rel (%p1346) target = $region44
      $region43: #{object_context_block.9} parent=39 // pred_region
        %p1349 = scmp.lt.s32.totalorder %s15, 1
        %s1350 = scalar_select %p1349, %s15, 1
        %s1351 = smul.addr %s1350, 32
        %s1352 = smul.addr %s1351, 8
        %s1353 = scalar_lea.vmem %s3, %s1352
      $region44: #{object_context_block.9} parent=39 // pred_fallthru
        _
    $region40: #{object_context_block.9} parent=5 // pred_fallthru
      _
  $region6: #{object_context_block.9} parent=0 // loop_footer
    %s13 = sadd.s32 1, %s9
  $region7: #{object_context_block.9} parent=0 // loop_footer_branch
    %8 = sbr.rel target = $region3
  $region8: #{object_context_block.9} parent=0 // loop_exit
    _

// kernel: object_context_block.7
$region0: #{object_context_block.7}
  #allocation0 [shape = 'u32[]', space=smem, size = 0x4, offset = 0x4, fixed_abs, tag = 'smem constant byte address 0x4 - core index']
  #allocation1 [shape = 'u32[144,128]{1,0:T(1,128)}', space=vmem, size = 0x12000, scoped, tag = 'internal scratch']
  %s0 = inlined_call_operand.hbm [shape: f32[512,128], index: 0, kind: input, shape index: {}]
  %s1 = inlined_call_operand.hbm [shape: f32[128,128], index: 1, kind: input, shape index: {}]
  %s2 = inlined_call_operand.vmem [shape: f32[1,128], index: 2, kind: input, shape index: {}]
  %s3 = inlined_call_operand.vmem [shape: f32[1,128], index: 3, kind: input, shape index: {}]
  %s4 = inlined_call_operand.hbm [shape: f32[128,128], index: 4, kind: input, shape index: {}]
  %s5 = inlined_call_operand.vmem [shape: f32[1,128], index: 5, kind: input, shape index: {}]
  %s6 = inlined_call_operand.vmem [shape: f32[1,128], index: 6, kind: input, shape index: {}]
  %s7 = inlined_call_operand.vmem [shape: f32[512,128], index: 7, kind: output, shape index: {}]
  %s8 = sld [smem:[#allocation0]]
  $region73: #{object_context_block.7} parent=0
    _
  %s10 = ssub.s32 1, %s8
  %s11 = scalar_select 0, %s10, %s8
  $region1: #{object_context_block.7} parent=0
    #allocation2 [shape = 'u8[262144]{0}', space=vmem, size = 0x40000, scoped, tag = 'input window, operand 0']
    #allocation3 [shape = 's32[2]{0}', space=sflag, size = 0x8, scoped, tag = 'scoped memory for object_context_block.7']
    #allocation4 [shape = 'u8[65536]{0}', space=vmem, size = 0x10000, scoped, tag = 'input window, operand 1, single buffered']
    #allocation5 [shape = 's32[1]{0}', space=sflag, size = 0x4, scoped, tag = 'scoped memory for object_context_block.7']
    #allocation6 [shape = 'u8[65536]{0}', space=vmem, size = 0x10000, scoped, tag = 'input window, operand 4, single buffered']
    %12 = vsyncpa [#allocation3], 0
    %s13 = scalar_lea.sflag [#allocation3], 1
    %14 = vsyncpa %s13, 0
    %15 = vsyncpa [#allocation5], 0
    loop: start=0, step=1, limit=4
    $region2: #{object_context_block.7} parent=1 // loop_pre_header
      _
    $region3: #{object_context_block.7} parent=1 // loop_header
      %s17 = sphi 0, %s21
      %p18 = scmp.ge.s32.totalorder %s17, 4
      %s27 = sphi 0, %s29
      %s30 = sphi 0, %s27
      %s31 = sphi 0, %s30
      %s47 = sphi 0, %s31
      %s51 = sphi 0, %s51
      %s53 = sphi 0, %s51
      %s54 = sphi 0, %s53
      %s68 = sphi 0, %s54
      %s72 = sphi 0, %s72
      %s74 = sphi 0, %s72
      %s75 = sphi 0, %s74
      %s89 = sphi 0, %s75
      %s93 = sphi 0, %s93
      %s95 = sphi 0, %s93
      %s96 = sphi 0, %s95
      %s110 = sphi 0, %s96
      %s114 = sphi 0, %s114
      %s116 = sphi 0, %s114
      %s117 = sphi 0, %s116
      %s131 = sphi 0, %s117
      %s135 = sphi 0, %s135
      %s137 = sphi 0, %s135
      %s138 = sphi 0, %s137
      %s152 = sphi 0, %s138
      %s156 = sphi 0, %s156
      %s158 = sphi 0, %s156
      %s159 = sphi 0, %s158
      %s173 = sphi 0, %s159
      %s179 = sphi 0, %s181
      %s182 = sphi 0, %s179
      %s183 = sphi 0, %s182
      %s199 = sphi 0, %s183
    $region4: #{object_context_block.7} parent=1 // loop_header_branch
      %20 = sbr.rel (%p18) target = $region8
    $region5: #{object_context_block.7} parent=1 // loop_body
      %s22 = ssub.s32 %s17, 1
      %s23 = ssub.s32 %s17, 2
      %s24 = sadd.s32 %s17, 1
      %s25 = ssub.s32 %s17, %s24
      %p26 = scmp.eq.s32.totalorder %s25, 0
      %s28 = sadd.s32 %s27, 1
      %s29 = scalar_select %p26, %s27, %s28
      %p32 = pneg %p26
      %p33 = scmp.eq.s32.totalorder %s17, 1
      %p34 = por %p32, %p33
      %p35 = scmp.ne.s32.totalorder %s27, %s30
      %p36 = scmp.eq.s32.totalorder %s17, 0
      %p37 = por %p35, %p36
      %p38 = scmp.ne.s32.totalorder %s27, %s30
      %p39 = scmp.eq.s32.totalorder %s22, 1
      %p40 = por %p38, %p39
      %p41 = scmp.ne.s32.totalorder %s30, %s31
      %p42 = scmp.eq.s32.totalorder %s22, 0
      %p43 = por %p41, %p42
      %p44 = scmp.ne.s32.totalorder %s30, %s31
      %p45 = scmp.eq.s32.totalorder %s23, 1
      %p46 = por %p44, %p45
      %p48 = scmp.ne.s32.totalorder %s31, %s47
      %p49 = scmp.eq.s32.totalorder %s23, 0
      %p50 = por %p48, %p49
      %s52 = sadd.s32 %s51, 1
      %p55 = scmp.eq.s32.totalorder %s17, 1
      %p56 = scmp.ne.s32.totalorder %s51, %s53
      %p57 = scmp.eq.s32.totalorder %s17, 0
      %p58 = por %p56, %p57
      %p59 = scmp.ne.s32.totalorder %s51, %s53
      %p60 = scmp.eq.s32.totalorder %s22, 1
      %p61 = por %p59, %p60
      %p62 = scmp.ne.s32.totalorder %s53, %s54
      %p63 = scmp.eq.s32.totalorder %s22, 0
      %p64 = por %p62, %p63
      %p65 = scmp.ne.s32.totalorder %s53, %s54
      %p66 = scmp.eq.s32.totalorder %s23, 1
      %p67 = por %p65, %p66
      %p69 = scmp.ne.s32.totalorder %s54, %s68
      %p70 = scmp.eq.s32.totalorder %s23, 0
      %p71 = por %p69, %p70
      %s73 = sadd.s32 %s72, 1
      %p76 = scmp.eq.s32.totalorder %s17, 1
      %p77 = scmp.ne.s32.totalorder %s72, %s74
      %p78 = scmp.eq.s32.totalorder %s17, 0
      %p79 = por %p77, %p78
      %p80 = scmp.ne.s32.totalorder %s72, %s74
      %p81 = scmp.eq.s32.totalorder %s22, 1
      %p82 = por %p80, %p81
      %p83 = scmp.ne.s32.totalorder %s74, %s75
      %p84 = scmp.eq.s32.totalorder %s22, 0
      %p85 = por %p83, %p84
      %p86 = scmp.ne.s32.totalorder %s74, %s75
      %p87 = scmp.eq.s32.totalorder %s23, 1
      %p88 = por %p86, %p87
      %p90 = scmp.ne.s32.totalorder %s75, %s89
      %p91 = scmp.eq.s32.totalorder %s23, 0
      %p92 = por %p90, %p91
      %s94 = sadd.s32 %s93, 1
      %p97 = scmp.eq.s32.totalorder %s17, 1
      %p98 = scmp.ne.s32.totalorder %s93, %s95
      %p99 = scmp.eq.s32.totalorder %s17, 0
      %p100 = por %p98, %p99
      %p101 = scmp.ne.s32.totalorder %s93, %s95
      %p102 = scmp.eq.s32.totalorder %s22, 1
      %p103 = por %p101, %p102
      %p104 = scmp.ne.s32.totalorder %s95, %s96
      %p105 = scmp.eq.s32.totalorder %s22, 0
      %p106 = por %p104, %p105
      %p107 = scmp.ne.s32.totalorder %s95, %s96
      %p108 = scmp.eq.s32.totalorder %s23, 1
      %p109 = por %p107, %p108
      %p111 = scmp.ne.s32.totalorder %s96, %s110
      %p112 = scmp.eq.s32.totalorder %s23, 0
      %p113 = por %p111, %p112
      %s115 = sadd.s32 %s114, 1
      %p118 = scmp.eq.s32.totalorder %s17, 1
      %p119 = scmp.ne.s32.totalorder %s114, %s116
      %p120 = scmp.eq.s32.totalorder %s17, 0
      %p121 = por %p119, %p120
      %p122 = scmp.ne.s32.totalorder %s114, %s116
      %p123 = scmp.eq.s32.totalorder %s22, 1
      %p124 = por %p122, %p123
      %p125 = scmp.ne.s32.totalorder %s116, %s117
      %p126 = scmp.eq.s32.totalorder %s22, 0
      %p127 = por %p125, %p126
      %p128 = scmp.ne.s32.totalorder %s116, %s117
      %p129 = scmp.eq.s32.totalorder %s23, 1
      %p130 = por %p128, %p129
      %p132 = scmp.ne.s32.totalorder %s117, %s131
      %p133 = scmp.eq.s32.totalorder %s23, 0
      %p134 = por %p132, %p133
      %s136 = sadd.s32 %s135, 1
      %p139 = scmp.eq.s32.totalorder %s17, 1
      %p140 = scmp.ne.s32.totalorder %s135, %s137
      %p141 = scmp.eq.s32.totalorder %s17, 0
      %p142 = por %p140, %p141
      %p143 = scmp.ne.s32.totalorder %s135, %s137
      %p144 = scmp.eq.s32.totalorder %s22, 1
      %p145 = por %p143, %p144
      %p146 = scmp.ne.s32.totalorder %s137, %s138
      %p147 = scmp.eq.s32.totalorder %s22, 0
      %p148 = por %p146, %p147
      %p149 = scmp.ne.s32.totalorder %s137, %s138
      %p150 = scmp.eq.s32.totalorder %s23, 1
      %p151 = por %p149, %p150
      %p153 = scmp.ne.s32.totalorder %s138, %s152
      %p154 = scmp.eq.s32.totalorder %s23, 0
      %p155 = por %p153, %p154
      %s157 = sadd.s32 %s156, 1
      %p160 = scmp.eq.s32.totalorder %s17, 1
      %p161 = scmp.ne.s32.totalorder %s156, %s158
      %p162 = scmp.eq.s32.totalorder %s17, 0
      %p163 = por %p161, %p162
      %p164 = scmp.ne.s32.totalorder %s156, %s158
      %p165 = scmp.eq.s32.totalorder %s22, 1
      %p166 = por %p164, %p165
      %p167 = scmp.ne.s32.totalorder %s158, %s159
      %p168 = scmp.eq.s32.totalorder %s22, 0
      %p169 = por %p167, %p168
      %p170 = scmp.ne.s32.totalorder %s158, %s159
      %p171 = scmp.eq.s32.totalorder %s23, 1
      %p172 = por %p170, %p171
      %p174 = scmp.ne.s32.totalorder %s159, %s173
      %p175 = scmp.eq.s32.totalorder %s23, 0
      %p176 = por %p174, %p175
      %s177 = ssub.s32 %s17, %s24
      %p178 = scmp.eq.s32.totalorder %s177, 0
      %s180 = sadd.s32 %s179, 1
      %s181 = scalar_select %p178, %s179, %s180
      %p184 = pneg %p178
      %p185 = scmp.eq.s32.totalorder %s17, 1
      %p186 = por %p184, %p185
      %p187 = scmp.ne.s32.totalorder %s179, %s182
      %p188 = scmp.eq.s32.totalorder %s17, 0
      %p189 = por %p187, %p188
      %p190 = scmp.ne.s32.totalorder %s179, %s182
      %p191 = scmp.eq.s32.totalorder %s22, 1
      %p192 = por %p190, %p191
      %p193 = scmp.ne.s32.totalorder %s182, %s183
      %p194 = scmp.eq.s32.totalorder %s22, 0
      %p195 = por %p193, %p194
      %p196 = scmp.ne.s32.totalorder %s182, %s183
      %p197 = scmp.eq.s32.totalorder %s23, 1
      %p198 = por %p196, %p197
      %p200 = scmp.ne.s32.totalorder %s183, %s199
      %p201 = scmp.eq.s32.totalorder %s23, 0
      %p202 = por %p200, %p201
      %p203 = scmp.le.s32.totalorder 1, %s17
      %p204 = scmp.lt.s32.totalorder %s17, 3
      %p205 = pnand %p203, %p204
      %p206 = pneg %p205
      // Predicated region
      $region9: #{object_context_block.7} parent=5 // pred_check
        _
      $region10: #{object_context_block.7} parent=5 // pred_check_branch
        %208 = sbr.rel (%p205) target = $region12
      $region11: #{object_context_block.7} parent=5 // pred_region
        %s209 = ssub.s32 %s17, 1
        // Predicated region
        $region13: #{object_context_block.7} parent=11 // pred_check
          %p210 = pneg %p64
        $region14: #{object_context_block.7} parent=11 // pred_check_branch
          %212 = sbr.rel (%p210) target = $region16
        $region15: #{object_context_block.7} parent=11 // pred_region
          %s214 = ssub.s32 2048, 2048
          %215 = vsyncadd [#allocation5], %s214
          %s216 = sshll.u32 [#allocation4], 4
          %s217 = int_to_ptr.vmem [resolvable:$true] %s216
          %222 = dma.hbm_to_vmem [thread:$0]  %s1, 2048, %s217, [#allocation5], 128, 128, 8
        $region16: #{object_context_block.7} parent=11 // pred_fallthru
          _
        // Predicated region
        $region17: #{object_context_block.7} parent=11 // pred_check
          %p223 = pneg %p85
        $region18: #{object_context_block.7} parent=11 // pred_check_branch
          %225 = sbr.rel (%p223) target = $region20
        $region19: #{object_context_block.7} parent=11 // pred_region
          _
        $region20: #{object_context_block.7} parent=11 // pred_fallthru
          _
        // Predicated region
        $region21: #{object_context_block.7} parent=11 // pred_check
          %p226 = pneg %p106
        $region22: #{object_context_block.7} parent=11 // pred_check_branch
          %228 = sbr.rel (%p226) target = $region24
        $region23: #{object_context_block.7} parent=11 // pred_region
          _
        $region24: #{object_context_block.7} parent=11 // pred_fallthru
          _
        // Predicated region
        $region25: #{object_context_block.7} parent=11 // pred_check
          %p229 = pneg %p127
        $region26: #{object_context_block.7} parent=11 // pred_check_branch
          %231 = sbr.rel (%p229) target = $region28
        $region27: #{object_context_block.7} parent=11 // pred_region
          %s233 = ssub.s32 2048, 2048
          %234 = vsyncadd [#allocation5], %s233
          %s235 = sshll.u32 [#allocation6], 4
          %s236 = int_to_ptr.vmem [resolvable:$true] %s235
          %241 = dma.hbm_to_vmem [thread:$0]  %s4, 2048, %s236, [#allocation5], 128, 128, 8
        $region28: #{object_context_block.7} parent=11 // pred_fallthru
          _
        // Predicated region
        $region29: #{object_context_block.7} parent=11 // pred_check
          %p242 = pneg %p148
        $region30: #{object_context_block.7} parent=11 // pred_check_branch
          %244 = sbr.rel (%p242) target = $region32
        $region31: #{object_context_block.7} parent=11 // pred_region
          _
        $region32: #{object_context_block.7} parent=11 // pred_fallthru
          _
        // Predicated region
        $region33: #{object_context_block.7} parent=11 // pred_check
          %p245 = pneg %p169
        $region34: #{object_context_block.7} parent=11 // pred_check_branch
          %247 = sbr.rel (%p245) target = $region36
        $region35: #{object_context_block.7} parent=11 // pred_region
          _
        $region36: #{object_context_block.7} parent=11 // pred_fallthru
          _
      $region12: #{object_context_block.7} parent=5 // pred_fallthru
        _
      %p248 = scmp.lt.s32.totalorder %s17, 2
      // Predicated region
      $region37: #{object_context_block.7} parent=5 // pred_check
        %p249 = pneg %p248
      $region38: #{object_context_block.7} parent=5 // pred_check_branch
        %251 = sbr.rel (%p249) target = $region40
      $region39: #{object_context_block.7} parent=5 // pred_region
        // Predicated region
        $region41: #{object_context_block.7} parent=39 // pred_check
          %p252 = pneg %p37
        $region42: #{object_context_block.7} parent=39 // pred_check_branch
          %254 = sbr.rel (%p252) target = $region44
        $region43: #{object_context_block.7} parent=39 // pred_region
          %s255 = sand.u32 %s27, 1
          %s256 = scalar_lea.sflag [#allocation3], %s255
          %s257 = sand.u32 %s27, 1
          %s258 = smul.addr %s257, 256
          %s259 = scalar_lea.vmem [#allocation2], %s258
          %s260 = smul.u32 32, %s17
          %s262 = ssub.s32 4096, 4096
          %263 = vsyncadd %s256, %s262
          %s264 = smul.addr %s260, 128
          %s265 = scalar_lea.hbm %s0, %s264
          %s266 = sshll.u32 %s259, 4
          %s267 = int_to_ptr.vmem [resolvable:$true] %s266
          %272 = dma.hbm_to_vmem [thread:$0]  %s265, 4096, %s267, %s256, 128, 128, 8
        $region44: #{object_context_block.7} parent=39 // pred_fallthru
          _
      $region40: #{object_context_block.7} parent=5 // pred_fallthru
        _
      %p273 = scmp.le.s32.totalorder 1, %s17
      %p274 = scmp.lt.s32.totalorder %s17, 3
      %p275 = pnand %p273, %p274
      %p276 = pneg %p275
      // Predicated region
      $region45: #{object_context_block.7} parent=5 // pred_check
        _
      $region46: #{object_context_block.7} parent=5 // pred_check_branch
        %278 = sbr.rel (%p275) target = $region48
      $region47: #{object_context_block.7} parent=5 // pred_region
        %s279 = ssub.s32 %s17, 1
        %s280 = sand.u32 %s30, 1
        %s281 = scalar_lea.sflag [#allocation3], %s280
        %s282 = sand.u32 %s30, 1
        %s283 = smul.addr %s282, 256
        %s284 = scalar_lea.vmem [#allocation2], %s283
        // Predicated region
        $region49: #{object_context_block.7} parent=47 // pred_check
          %p285 = pneg %p43
        $region50: #{object_context_block.7} parent=47 // pred_check_branch
          %287 = sbr.rel (%p285) target = $region52
        $region51: #{object_context_block.7} parent=47 // pred_region
          %288 = dma.done %s281, 4096
        $region52: #{object_context_block.7} parent=47 // pred_fallthru
          _
        // Predicated region
        $region53: #{object_context_block.7} parent=47 // pred_check
          %p289 = pneg %p64
        $region54: #{object_context_block.7} parent=47 // pred_check_branch
          %291 = sbr.rel (%p289) target = $region56
        $region55: #{object_context_block.7} parent=47 // pred_region
          %292 = dma.done [#allocation5], 2048
        $region56: #{object_context_block.7} parent=47 // pred_fallthru
          _
        // Predicated region
        $region57: #{object_context_block.7} parent=47 // pred_check
          %p293 = pneg %p127
        $region58: #{object_context_block.7} parent=47 // pred_check_branch
          %295 = sbr.rel (%p293) target = $region60
        $region59: #{object_context_block.7} parent=47 // pred_region
          %296 = dma.done [#allocation5], 2048
        $region60: #{object_context_block.7} parent=47 // pred_fallthru
          _
        %s297 = sand.u32 %s30, 1
        %s298 = scalar_lea.sflag [#allocation3], %s297
        %s299 = sand.u32 %s30, 1
        %s300 = smul.addr %s299, 256
        %s301 = scalar_lea.vmem [#allocation2], %s300
        %p302 = pneg %p43
        %p303 = pneg %p40
        %p304 = pneg %p64
        %p305 = pneg %p61
        %p306 = pneg %p85
        %p307 = pneg %p82
        %p308 = pneg %p106
        %p309 = pneg %p103
        %p310 = pneg %p127
        %p311 = pneg %p124
        %p312 = pneg %p148
        %p313 = pneg %p145
        %p314 = pneg %p169
        %p315 = pneg %p166
        %p316 = pneg %p195
        %p317 = pneg %p192
        %s318 = smul.u32 32, %s22
        %p319 = scmp.lt.s32.totalorder %s318, 63
        %s320 = scalar_select %p319, %s318, 63
        %s321 = smul.addr %s320, 8
        %s322 = scalar_lea.vmem %s7, %s321
        %s323 = smul.u32 32, %s22
        %s324 = smul.u32 32, %s22
        %p325 = scmp.lt.s32.totalorder %s324, 63
        %s326 = scalar_select %p325, %s324, 63
        %s327 = smul.addr %s326, 8
        %s328 = scalar_lea.vmem %s7, %s327
        %s329 = smul.u32 32, %s22
        %v330 = vld [vmem:[%s284] sm:$0xff]
        %v331 = vld [vmem:[%s284 + $0x8] sm:$0xff]
        %v332 = vld [vmem:[%s284 + $0x10] sm:$0xff]
        %v333 = vld [vmem:[%s284 + $0x18] sm:$0xff]
        %v334 = vld [vmem:[%s284 + $0x20] sm:$0xff]
        %v335 = vld [vmem:[%s284 + $0x28] sm:$0xff]
        %v336 = vld [vmem:[%s284 + $0x30] sm:$0xff]
        %v337 = vld [vmem:[%s284 + $0x38] sm:$0xff]
        %v338 = vld [vmem:[%s284 + $0x40] sm:$0xff]
        %v339 = vld [vmem:[%s284 + $0x48] sm:$0xff]
        %v340 = vld [vmem:[%s284 + $0x50] sm:$0xff]
        %v341 = vld [vmem:[%s284 + $0x58] sm:$0xff]
        %v342 = vld [vmem:[%s284 + $0x60] sm:$0xff]
        %v343 = vld [vmem:[%s284 + $0x68] sm:$0xff]
        %v344 = vld [vmem:[%s284 + $0x70] sm:$0xff]
        %v345 = vld [vmem:[%s284 + $0x78] sm:$0xff]
        %v346 = vld [vmem:[%s284 + $0x80] sm:$0xff]
        %v347 = vld [vmem:[%s284 + $0x88] sm:$0xff]
        %v348 = vld [vmem:[%s284 + $0x90] sm:$0xff]
        %v349 = vld [vmem:[%s284 + $0x98] sm:$0xff]
        %v350 = vld [vmem:[%s284 + $0xa0] sm:$0xff]
        %v351 = vld [vmem:[%s284 + $0xa8] sm:$0xff]
        %v352 = vld [vmem:[%s284 + $0xb0] sm:$0xff]
        %v353 = vld [vmem:[%s284 + $0xb8] sm:$0xff]
        %v354 = vld [vmem:[%s284 + $0xc0] sm:$0xff]
        %v355 = vld [vmem:[%s284 + $0xc8] sm:$0xff]
        %v356 = vld [vmem:[%s284 + $0xd0] sm:$0xff]
        %v357 = vld [vmem:[%s284 + $0xd8] sm:$0xff]
        %v358 = vld [vmem:[%s284 + $0xe0] sm:$0xff]
        %v359 = vld [vmem:[%s284 + $0xe8] sm:$0xff]
        %v360 = vld [vmem:[%s284 + $0xf0] sm:$0xff]
        %v361 = vld [vmem:[%s284 + $0xf8] sm:$0xff]
        %v362 = vld [vmem:[#allocation4] sm:$0xff]
        %v363 = vld [vmem:[#allocation4 + $0x8] sm:$0xff]
        %v364 = vld [vmem:[#allocation4 + $0x10] sm:$0xff]
        %v365 = vld [vmem:[#allocation4 + $0x18] sm:$0xff]
        %v366 = vld [vmem:[#allocation4 + $0x20] sm:$0xff]
        %v367 = vld [vmem:[#allocation4 + $0x28] sm:$0xff]
        %v368 = vld [vmem:[#allocation4 + $0x30] sm:$0xff]
        %v369 = vld [vmem:[#allocation4 + $0x38] sm:$0xff]
        %v370 = vld [vmem:[#allocation4 + $0x40] sm:$0xff]
        %v371 = vld [vmem:[#allocation4 + $0x48] sm:$0xff]
        %v372 = vld [vmem:[#allocation4 + $0x50] sm:$0xff]
        %v373 = vld [vmem:[#allocation4 + $0x58] sm:$0xff]
        %v374 = vld [vmem:[#allocation4 + $0x60] sm:$0xff]
        %v375 = vld [vmem:[#allocation4 + $0x68] sm:$0xff]
        %v376 = vld [vmem:[#allocation4 + $0x70] sm:$0xff]
        %v377 = vld [vmem:[#allocation4 + $0x78] sm:$0xff]
        %378 = vmatprep.subr.mxu0 0.0
        %379 = vmatpush1.msra.mxu0 %v377
        %380 = vmatprep.subr.mxu0 0.0
        %381 = vmatpush1.msra.mxu0 %v376
        %382 = vmatprep.subr.mxu0 0.0
        %383 = vmatpush1.msra.mxu0 %v375
        %384 = vmatprep.subr.mxu0 0.0
        %385 = vmatpush1.msra.mxu0 %v374
        %386 = vmatprep.subr.mxu0 0.0
        %387 = vmatpush1.msra.mxu0 %v373
        %388 = vmatprep.subr.mxu0 0.0
        %389 = vmatpush1.msra.mxu0 %v372
        %390 = vmatprep.subr.mxu0 0.0
        %391 = vmatpush1.msra.mxu0 %v371
        %392 = vmatprep.subr.mxu0 0.0
        %393 = vmatpush1.msra.mxu0 %v370
        %394 = vmatprep.subr.mxu0 0.0
        %395 = vmatpush1.msra.mxu0 %v369
        %396 = vmatprep.subr.mxu0 0.0
        %397 = vmatpush1.msra.mxu0 %v368
        %398 = vmatprep.subr.mxu0 0.0
        %399 = vmatpush1.msra.mxu0 %v367
        %400 = vmatprep.subr.mxu0 0.0
        %401 = vmatpush1.msra.mxu0 %v366
        %402 = vmatprep.subr.mxu0 0.0
        %403 = vmatpush1.msra.mxu0 %v365
        %404 = vmatprep.subr.mxu0 0.0
        %405 = vmatpush1.msra.mxu0 %v364
        %406 = vmatprep.subr.mxu0 0.0
        %407 = vmatpush1.msra.mxu0 %v363
        %408 = vmatprep.subr.mxu0 0.0
        %409 = vmatpush1.msra.mxu0 %v362
        %410 = vmatprep.subr.mxu0 0.0
        %411 = vmatpush2.msra.mxu0 0.0
        %412 = vmatprep.subr.mxu0 0.0
        %413 = vmatpush2.msra.mxu0 0.0
        %414 = vmatprep.subr.mxu0 0.0
        %415 = vmatpush2.msra.mxu0 0.0
        %416 = vmatprep.subr.mxu0 0.0
        %417 = vmatpush2.msra.mxu0 0.0
        %418 = vmatprep.subr.mxu0 0.0
        %419 = vmatpush2.msra.mxu0 0.0
        %420 = vmatprep.subr.mxu0 0.0
        %421 = vmatpush2.msra.mxu0 0.0
        %422 = vmatprep.subr.mxu0 0.0
        %423 = vmatpush2.msra.mxu0 0.0
        %424 = vmatprep.subr.mxu0 0.0
        %425 = vmatpush2.msra.mxu0 0.0
        %426 = vmatprep.subr.mxu0 0.0
        %427 = vmatpush2.msra.mxu0 0.0
        %428 = vmatprep.subr.mxu0 0.0
        %429 = vmatpush2.msra.mxu0 0.0
        %430 = vmatprep.subr.mxu0 0.0
        %431 = vmatpush2.msra.mxu0 0.0
        %432 = vmatprep.subr.mxu0 0.0
        %433 = vmatpush2.msra.mxu0 0.0
        %434 = vmatprep.subr.mxu0 0.0
        %435 = vmatpush2.msra.mxu0 0.0
        %436 = vmatprep.subr.mxu0 0.0
        %437 = vmatpush2.msra.mxu0 0.0
        %438 = vmatprep.subr.mxu0 0.0
        %439 = vmatpush2.msra.mxu0 0.0
        %440 = vmatprep.subr.mxu0 0.0
        %441 = vmatpush2.msra.mxu0 0.0
        %442 = vmatprep.mubr.f32.mxu0 0.0
        %443 = vmatmul.mubr.f32.gmra.mxu0 %v330
        %v444 = vpop.f32.mrf.mxu0
        %v445 = vadd.f32 0.0, %v444
        %v446 = vpop.f32.mrf.mxu0
        %447 = vmatprep.mubr.f32.mxu0 0.0
        %448 = vmatmul.mubr.f32.gmra.mxu0 %v331
        %v449 = vpop.f32.mrf.mxu0
        %v450 = vadd.f32 0.0, %v449
        %v451 = vpop.f32.mrf.mxu0
        %452 = vmatprep.mubr.f32.mxu0 0.0
        %453 = vmatmul.mubr.f32.gmra.mxu0 %v332
        %v454 = vpop.f32.mrf.mxu0
        %v455 = vadd.f32 0.0, %v454
        %v456 = vpop.f32.mrf.mxu0
        %457 = vmatprep.mubr.f32.mxu0 0.0
        %458 = vmatmul.mubr.f32.gmra.mxu0 %v333
        %v459 = vpop.f32.mrf.mxu0
        %v460 = vadd.f32 0.0, %v459
        %v461 = vpop.f32.mrf.mxu0
        %462 = vmatprep.mubr.f32.mxu0 0.0
        %463 = vmatmul.mubr.f32.gmra.mxu0 %v334
        %v464 = vpop.f32.mrf.mxu0
        %v465 = vadd.f32 0.0, %v464
        %v466 = vpop.f32.mrf.mxu0
        %467 = vmatprep.mubr.f32.mxu0 0.0
        %468 = vmatmul.mubr.f32.gmra.mxu0 %v335
        %v469 = vpop.f32.mrf.mxu0
        %v470 = vadd.f32 0.0, %v469
        %v471 = vpop.f32.mrf.mxu0
        %472 = vmatprep.mubr.f32.mxu0 0.0
        %473 = vmatmul.mubr.f32.gmra.mxu0 %v336
        %v474 = vpop.f32.mrf.mxu0
        %v475 = vadd.f32 0.0, %v474
        %v476 = vpop.f32.mrf.mxu0
        %477 = vmatprep.mubr.f32.mxu0 0.0
        %478 = vmatmul.mubr.f32.gmra.mxu0 %v337
        %v479 = vpop.f32.mrf.mxu0
        %v480 = vadd.f32 0.0, %v479
        %v481 = vpop.f32.mrf.mxu0
        %482 = vmatprep.mubr.f32.mxu0 0.0
        %483 = vmatmul.mubr.f32.gmra.mxu0 %v338
        %v484 = vpop.f32.mrf.mxu0
        %v485 = vadd.f32 0.0, %v484
        %v486 = vpop.f32.mrf.mxu0
        %487 = vmatprep.mubr.f32.mxu0 0.0
        %488 = vmatmul.mubr.f32.gmra.mxu0 %v339
        %v489 = vpop.f32.mrf.mxu0
        %v490 = vadd.f32 0.0, %v489
        %v491 = vpop.f32.mrf.mxu0
        %492 = vmatprep.mubr.f32.mxu0 0.0
        %493 = vmatmul.mubr.f32.gmra.mxu0 %v340
        %v494 = vpop.f32.mrf.mxu0
        %v495 = vadd.f32 0.0, %v494
        %v496 = vpop.f32.mrf.mxu0
        %497 = vmatprep.mubr.f32.mxu0 0.0
        %498 = vmatmul.mubr.f32.gmra.mxu0 %v341
        %v499 = vpop.f32.mrf.mxu0
        %v500 = vadd.f32 0.0, %v499
        %v501 = vpop.f32.mrf.mxu0
        %502 = vmatprep.mubr.f32.mxu0 0.0
        %503 = vmatmul.mubr.f32.gmra.mxu0 %v342
        %v504 = vpop.f32.mrf.mxu0
        %v505 = vadd.f32 0.0, %v504
        %v506 = vpop.f32.mrf.mxu0
        %507 = vmatprep.mubr.f32.mxu0 0.0
        %508 = vmatmul.mubr.f32.gmra.mxu0 %v343
        %v509 = vpop.f32.mrf.mxu0
        %v510 = vadd.f32 0.0, %v509
        %v511 = vpop.f32.mrf.mxu0
        %512 = vmatprep.mubr.f32.mxu0 0.0
        %513 = vmatmul.mubr.f32.gmra.mxu0 %v344
        %v514 = vpop.f32.mrf.mxu0
        %v515 = vadd.f32 0.0, %v514
        %v516 = vpop.f32.mrf.mxu0
        %517 = vmatprep.mubr.f32.mxu0 0.0
        %518 = vmatmul.mubr.f32.gmra.mxu0 %v345
        %v519 = vpop.f32.mrf.mxu0
        %v520 = vadd.f32 0.0, %v519
        %v521 = vpop.f32.mrf.mxu0
        %522 = vmatprep.mubr.f32.mxu0 0.0
        %523 = vmatmul.mubr.f32.gmra.mxu0 %v346
        %v524 = vpop.f32.mrf.mxu0
        %v525 = vadd.f32 0.0, %v524
        %v526 = vpop.f32.mrf.mxu0
        %527 = vmatprep.mubr.f32.mxu0 0.0
        %528 = vmatmul.mubr.f32.gmra.mxu0 %v347
        %v529 = vpop.f32.mrf.mxu0
        %v530 = vadd.f32 0.0, %v529
        %v531 = vpop.f32.mrf.mxu0
        %532 = vmatprep.mubr.f32.mxu0 0.0
        %533 = vmatmul.mubr.f32.gmra.mxu0 %v348
        %v534 = vpop.f32.mrf.mxu0
        %v535 = vadd.f32 0.0, %v534
        %v536 = vpop.f32.mrf.mxu0
        %537 = vmatprep.mubr.f32.mxu0 0.0
        %538 = vmatmul.mubr.f32.gmra.mxu0 %v349
        %v539 = vpop.f32.mrf.mxu0
        %v540 = vadd.f32 0.0, %v539
        %v541 = vpop.f32.mrf.mxu0
        %542 = vmatprep.mubr.f32.mxu0 0.0
        %543 = vmatmul.mubr.f32.gmra.mxu0 %v350
        %v544 = vpop.f32.mrf.mxu0
        %v545 = vadd.f32 0.0, %v544
        %v546 = vpop.f32.mrf.mxu0
        %547 = vmatprep.mubr.f32.mxu0 0.0
        %548 = vmatmul.mubr.f32.gmra.mxu0 %v351
        %v549 = vpop.f32.mrf.mxu0
        %v550 = vadd.f32 0.0, %v549
        %v551 = vpop.f32.mrf.mxu0
        %552 = vmatprep.mubr.f32.mxu0 0.0
        %553 = vmatmul.mubr.f32.gmra.mxu0 %v352
        %v554 = vpop.f32.mrf.mxu0
        %v555 = vadd.f32 0.0, %v554
        %v556 = vpop.f32.mrf.mxu0
        %557 = vmatprep.mubr.f32.mxu0 0.0
        %558 = vmatmul.mubr.f32.gmra.mxu0 %v353
        %v559 = vpop.f32.mrf.mxu0
        %v560 = vadd.f32 0.0, %v559
        %v561 = vpop.f32.mrf.mxu0
        %562 = vmatprep.mubr.f32.mxu0 0.0
        %563 = vmatmul.mubr.f32.gmra.mxu0 %v354
        %v564 = vpop.f32.mrf.mxu0
        %v565 = vadd.f32 0.0, %v564
        %v566 = vpop.f32.mrf.mxu0
        %567 = vmatprep.mubr.f32.mxu0 0.0
        %568 = vmatmul.mubr.f32.gmra.mxu0 %v355
        %v569 = vpop.f32.mrf.mxu0
        %v570 = vadd.f32 0.0, %v569
        %v571 = vpop.f32.mrf.mxu0
        %572 = vmatprep.mubr.f32.mxu0 0.0
        %573 = vmatmul.mubr.f32.gmra.mxu0 %v356
        %v574 = vpop.f32.mrf.mxu0
        %v575 = vadd.f32 0.0, %v574
        %v576 = vpop.f32.mrf.mxu0
        %577 = vmatprep.mubr.f32.mxu0 0.0
        %578 = vmatmul.mubr.f32.gmra.mxu0 %v357
        %v579 = vpop.f32.mrf.mxu0
        %v580 = vadd.f32 0.0, %v579
        %v581 = vpop.f32.mrf.mxu0
        %582 = vmatprep.mubr.f32.mxu0 0.0
        %583 = vmatmul.mubr.f32.gmra.mxu0 %v358
        %v584 = vpop.f32.mrf.mxu0
        %v585 = vadd.f32 0.0, %v584
        %v586 = vpop.f32.mrf.mxu0
        %587 = vmatprep.mubr.f32.mxu0 0.0
        %588 = vmatmul.mubr.f32.gmra.mxu0 %v359
        %v589 = vpop.f32.mrf.mxu0
        %v590 = vadd.f32 0.0, %v589
        %v591 = vpop.f32.mrf.mxu0
        %592 = vmatprep.mubr.f32.mxu0 0.0
        %593 = vmatmul.mubr.f32.gmra.mxu0 %v360
        %v594 = vpop.f32.mrf.mxu0
        %v595 = vadd.f32 0.0, %v594
        %v596 = vpop.f32.mrf.mxu0
        %597 = vmatprep.mubr.f32.mxu0 0.0
        %598 = vmatmul.mubr.f32.gmra.mxu0 %v361
        %v599 = vpop.f32.mrf.mxu0
        %v600 = vadd.f32 0.0, %v599
        %v601 = vpop.f32.mrf.mxu0
        %602 = vdwg.mxu0
        %v603 = vld [vmem:[%s2] sm:$0x1]
        %v605 = vlaneseq
        %v606 = vshrl.u32 %v605, 7
        %v607 = vsub.s32 0, %v606
        %v608 = vrot.slane %v603, %v607
        %v610 = vmul.f32 %v445, %v608
        %v611 = vmul.f32 %v450, %v608
        %v612 = vmul.f32 %v455, %v608
        %v613 = vmul.f32 %v460, %v608
        %v614 = vmul.f32 %v465, %v608
        %v615 = vmul.f32 %v470, %v608
        %v616 = vmul.f32 %v475, %v608
        %v617 = vmul.f32 %v480, %v608
        %v618 = vmul.f32 %v485, %v608
        %v619 = vmul.f32 %v490, %v608
        %v620 = vmul.f32 %v495, %v608
        %v621 = vmul.f32 %v500, %v608
        %v622 = vmul.f32 %v505, %v608
        %v623 = vmul.f32 %v510, %v608
        %v624 = vmul.f32 %v515, %v608
        %v625 = vmul.f32 %v520, %v608
        %v626 = vmul.f32 %v525, %v608
        %v627 = vmul.f32 %v530, %v608
        %v628 = vmul.f32 %v535, %v608
        %v629 = vmul.f32 %v540, %v608
        %v630 = vmul.f32 %v545, %v608
        %v631 = vmul.f32 %v550, %v608
        %v632 = vmul.f32 %v555, %v608
        %v633 = vmul.f32 %v560, %v608
        %v634 = vmul.f32 %v565, %v608
        %v635 = vmul.f32 %v570, %v608
        %v636 = vmul.f32 %v575, %v608
        %v637 = vmul.f32 %v580, %v608
        %v638 = vmul.f32 %v585, %v608
        %v639 = vmul.f32 %v590, %v608
        %v640 = vmul.f32 %v595, %v608
        %v641 = vmul.f32 %v600, %v608
        %v642 = vld [vmem:[%s3] sm:$0x1]
        %v644 = vlaneseq
        %v645 = vshrl.u32 %v644, 7
        %v646 = vsub.s32 0, %v645
        %v647 = vrot.slane %v642, %v646
        %v649 = vadd.f32 %v610, %v647
        %v650 = vadd.f32 %v611, %v647
        %v651 = vadd.f32 %v612, %v647
        %v652 = vadd.f32 %v613, %v647
        %v653 = vadd.f32 %v614, %v647
        %v654 = vadd.f32 %v615, %v647
        %v655 = vadd.f32 %v616, %v647
        %v656 = vadd.f32 %v617, %v647
        %v657 = vadd.f32 %v618, %v647
        %v658 = vadd.f32 %v619, %v647
        %v659 = vadd.f32 %v620, %v647
        %v660 = vadd.f32 %v621, %v647
        %v661 = vadd.f32 %v622, %v647
        %v662 = vadd.f32 %v623, %v647
        %v663 = vadd.f32 %v624, %v647
        %v664 = vadd.f32 %v625, %v647
        %v665 = vadd.f32 %v626, %v647
        %v666 = vadd.f32 %v627, %v647
        %v667 = vadd.f32 %v628, %v647
        %v668 = vadd.f32 %v629, %v647
        %v669 = vadd.f32 %v630, %v647
        %v670 = vadd.f32 %v631, %v647
        %v671 = vadd.f32 %v632, %v647
        %v672 = vadd.f32 %v633, %v647
        %v673 = vadd.f32 %v634, %v647
        %v674 = vadd.f32 %v635, %v647
        %v675 = vadd.f32 %v636, %v647
        %v676 = vadd.f32 %v637, %v647
        %v677 = vadd.f32 %v638, %v647
        %v678 = vadd.f32 %v639, %v647
        %v679 = vadd.f32 %v640, %v647
        %v680 = vadd.f32 %v641, %v647
        %v681 = vmax.f32 %v649, 0.0
        %v682 = vmax.f32 %v650, 0.0
        %v683 = vmax.f32 %v651, 0.0
        %v684 = vmax.f32 %v652, 0.0
        %v685 = vmax.f32 %v653, 0.0
        %v686 = vmax.f32 %v654, 0.0
        %v687 = vmax.f32 %v655, 0.0
        %v688 = vmax.f32 %v656, 0.0
        %v689 = vmax.f32 %v657, 0.0
        %v690 = vmax.f32 %v658, 0.0
        %v691 = vmax.f32 %v659, 0.0
        %v692 = vmax.f32 %v660, 0.0
        %v693 = vmax.f32 %v661, 0.0
        %v694 = vmax.f32 %v662, 0.0
        %v695 = vmax.f32 %v663, 0.0
        %v696 = vmax.f32 %v664, 0.0
        %v697 = vmax.f32 %v665, 0.0
        %v698 = vmax.f32 %v666, 0.0
        %v699 = vmax.f32 %v667, 0.0
        %v700 = vmax.f32 %v668, 0.0
        %v701 = vmax.f32 %v669, 0.0
        %v702 = vmax.f32 %v670, 0.0
        %v703 = vmax.f32 %v671, 0.0
        %v704 = vmax.f32 %v672, 0.0
        %v705 = vmax.f32 %v673, 0.0
        %v706 = vmax.f32 %v674, 0.0
        %v707 = vmax.f32 %v675, 0.0
        %v708 = vmax.f32 %v676, 0.0
        %v709 = vmax.f32 %v677, 0.0
        %v710 = vmax.f32 %v678, 0.0
        %v711 = vmax.f32 %v679, 0.0
        %v712 = vmax.f32 %v680, 0.0
        %v713 = vld [vmem:[#allocation6] sm:$0xff]
        %v714 = vld [vmem:[#allocation6 + $0x8] sm:$0xff]
        %v715 = vld [vmem:[#allocation6 + $0x10] sm:$0xff]
        %v716 = vld [vmem:[#allocation6 + $0x18] sm:$0xff]
        %v717 = vld [vmem:[#allocation6 + $0x20] sm:$0xff]
        %v718 = vld [vmem:[#allocation6 + $0x28] sm:$0xff]
        %v719 = vld [vmem:[#allocation6 + $0x30] sm:$0xff]
        %v720 = vld [vmem:[#allocation6 + $0x38] sm:$0xff]
        %v721 = vld [vmem:[#allocation6 + $0x40] sm:$0xff]
        %v722 = vld [vmem:[#allocation6 + $0x48] sm:$0xff]
        %v723 = vld [vmem:[#allocation6 + $0x50] sm:$0xff]
        %v724 = vld [vmem:[#allocation6 + $0x58] sm:$0xff]
        %v725 = vld [vmem:[#allocation6 + $0x60] sm:$0xff]
        %v726 = vld [vmem:[#allocation6 + $0x68] sm:$0xff]
        %v727 = vld [vmem:[#allocation6 + $0x70] sm:$0xff]
        %v728 = vld [vmem:[#allocation6 + $0x78] sm:$0xff]
        %729 = vmatprep.subr.mxu0 0.0
        %730 = vmatpush1.msra.mxu0 %v728
        %731 = vmatprep.subr.mxu0 0.0
        %732 = vmatpush1.msra.mxu0 %v727
        %733 = vmatprep.subr.mxu0 0.0
        %734 = vmatpush1.msra.mxu0 %v726
        %735 = vmatprep.subr.mxu0 0.0
        %736 = vmatpush1.msra.mxu0 %v725
        %737 = vmatprep.subr.mxu0 0.0
        %738 = vmatpush1.msra.mxu0 %v724
        %739 = vmatprep.subr.mxu0 0.0
        %740 = vmatpush1.msra.mxu0 %v723
        %741 = vmatprep.subr.mxu0 0.0
        %742 = vmatpush1.msra.mxu0 %v722
        %743 = vmatprep.subr.mxu0 0.0
        %744 = vmatpush1.msra.mxu0 %v721
        %745 = vmatprep.subr.mxu0 0.0
        %746 = vmatpush1.msra.mxu0 %v720
        %747 = vmatprep.subr.mxu0 0.0
        %748 = vmatpush1.msra.mxu0 %v719
        %749 = vmatprep.subr.mxu0 0.0
        %750 = vmatpush1.msra.mxu0 %v718
        %751 = vmatprep.subr.mxu0 0.0
        %752 = vmatpush1.msra.mxu0 %v717
        %753 = vmatprep.subr.mxu0 0.0
        %754 = vmatpush1.msra.mxu0 %v716
        %755 = vmatprep.subr.mxu0 0.0
        %756 = vmatpush1.msra.mxu0 %v715
        %757 = vmatprep.subr.mxu0 0.0
        %758 = vmatpush1.msra.mxu0 %v714
        %759 = vmatprep.subr.mxu0 0.0
        %760 = vmatpush1.msra.mxu0 %v713
        %761 = vmatprep.subr.mxu0 0.0
        %762 = vmatpush2.msra.mxu0 0.0
        %763 = vmatprep.subr.mxu0 0.0
        %764 = vmatpush2.msra.mxu0 0.0
        %765 = vmatprep.subr.mxu0 0.0
        %766 = vmatpush2.msra.mxu0 0.0
        %767 = vmatprep.subr.mxu0 0.0
        %768 = vmatpush2.msra.mxu0 0.0
        %769 = vmatprep.subr.mxu0 0.0
        %770 = vmatpush2.msra.mxu0 0.0
        %771 = vmatprep.subr.mxu0 0.0
        %772 = vmatpush2.msra.mxu0 0.0
        %773 = vmatprep.subr.mxu0 0.0
        %774 = vmatpush2.msra.mxu0 0.0
        %775 = vmatprep.subr.mxu0 0.0
        %776 = vmatpush2.msra.mxu0 0.0
        %777 = vmatprep.subr.mxu0 0.0
        %778 = vmatpush2.msra.mxu0 0.0
        %779 = vmatprep.subr.mxu0 0.0
        %780 = vmatpush2.msra.mxu0 0.0
        %781 = vmatprep.subr.mxu0 0.0
        %782 = vmatpush2.msra.mxu0 0.0
        %783 = vmatprep.subr.mxu0 0.0
        %784 = vmatpush2.msra.mxu0 0.0
        %785 = vmatprep.subr.mxu0 0.0
        %786 = vmatpush2.msra.mxu0 0.0
        %787 = vmatprep.subr.mxu0 0.0
        %788 = vmatpush2.msra.mxu0 0.0
        %789 = vmatprep.subr.mxu0 0.0
        %790 = vmatpush2.msra.mxu0 0.0
        %791 = vmatprep.subr.mxu0 0.0
        %792 = vmatpush2.msra.mxu0 0.0
        %793 = vmatprep.mubr.f32.mxu0 0.0
        %794 = vmatmul.mubr.f32.gmra.mxu0 %v681
        %v795 = vpop.f32.mrf.mxu0
        %v796 = vadd.f32 0.0, %v795
        %v797 = vpop.f32.mrf.mxu0
        %798 = vmatprep.mubr.f32.mxu0 0.0
        %799 = vmatmul.mubr.f32.gmra.mxu0 %v682
        %v800 = vpop.f32.mrf.mxu0
        %v801 = vadd.f32 0.0, %v800
        %v802 = vpop.f32.mrf.mxu0
        %803 = vmatprep.mubr.f32.mxu0 0.0
        %804 = vmatmul.mubr.f32.gmra.mxu0 %v683
        %v805 = vpop.f32.mrf.mxu0
        %v806 = vadd.f32 0.0, %v805
        %v807 = vpop.f32.mrf.mxu0
        %808 = vmatprep.mubr.f32.mxu0 0.0
        %809 = vmatmul.mubr.f32.gmra.mxu0 %v684
        %v810 = vpop.f32.mrf.mxu0
        %v811 = vadd.f32 0.0, %v810
        %v812 = vpop.f32.mrf.mxu0
        %813 = vmatprep.mubr.f32.mxu0 0.0
        %814 = vmatmul.mubr.f32.gmra.mxu0 %v685
        %v815 = vpop.f32.mrf.mxu0
        %v816 = vadd.f32 0.0, %v815
        %v817 = vpop.f32.mrf.mxu0
        %818 = vmatprep.mubr.f32.mxu0 0.0
        %819 = vmatmul.mubr.f32.gmra.mxu0 %v686
        %v820 = vpop.f32.mrf.mxu0
        %v821 = vadd.f32 0.0, %v820
        %v822 = vpop.f32.mrf.mxu0
        %823 = vmatprep.mubr.f32.mxu0 0.0
        %824 = vmatmul.mubr.f32.gmra.mxu0 %v687
        %v825 = vpop.f32.mrf.mxu0
        %v826 = vadd.f32 0.0, %v825
        %v827 = vpop.f32.mrf.mxu0
        %828 = vmatprep.mubr.f32.mxu0 0.0
        %829 = vmatmul.mubr.f32.gmra.mxu0 %v688
        %v830 = vpop.f32.mrf.mxu0
        %v831 = vadd.f32 0.0, %v830
        %v832 = vpop.f32.mrf.mxu0
        %833 = vmatprep.mubr.f32.mxu0 0.0
        %834 = vmatmul.mubr.f32.gmra.mxu0 %v689
        %v835 = vpop.f32.mrf.mxu0
        %v836 = vadd.f32 0.0, %v835
        %v837 = vpop.f32.mrf.mxu0
        %838 = vmatprep.mubr.f32.mxu0 0.0
        %839 = vmatmul.mubr.f32.gmra.mxu0 %v690
        %v840 = vpop.f32.mrf.mxu0
        %v841 = vadd.f32 0.0, %v840
        %v842 = vpop.f32.mrf.mxu0
        %843 = vmatprep.mubr.f32.mxu0 0.0
        %844 = vmatmul.mubr.f32.gmra.mxu0 %v691
        %v845 = vpop.f32.mrf.mxu0
        %v846 = vadd.f32 0.0, %v845
        %v847 = vpop.f32.mrf.mxu0
        %848 = vmatprep.mubr.f32.mxu0 0.0
        %849 = vmatmul.mubr.f32.gmra.mxu0 %v692
        %v850 = vpop.f32.mrf.mxu0
        %v851 = vadd.f32 0.0, %v850
        %v852 = vpop.f32.mrf.mxu0
        %853 = vmatprep.mubr.f32.mxu0 0.0
        %854 = vmatmul.mubr.f32.gmra.mxu0 %v693
        %v855 = vpop.f32.mrf.mxu0
        %v856 = vadd.f32 0.0, %v855
        %v857 = vpop.f32.mrf.mxu0
        %858 = vmatprep.mubr.f32.mxu0 0.0
        %859 = vmatmul.mubr.f32.gmra.mxu0 %v694
        %v860 = vpop.f32.mrf.mxu0
        %v861 = vadd.f32 0.0, %v860
        %v862 = vpop.f32.mrf.mxu0
        %863 = vmatprep.mubr.f32.mxu0 0.0
        %864 = vmatmul.mubr.f32.gmra.mxu0 %v695
        %v865 = vpop.f32.mrf.mxu0
        %v866 = vadd.f32 0.0, %v865
        %v867 = vpop.f32.mrf.mxu0
        %868 = vmatprep.mubr.f32.mxu0 0.0
        %869 = vmatmul.mubr.f32.gmra.mxu0 %v696
        %v870 = vpop.f32.mrf.mxu0
        %v871 = vadd.f32 0.0, %v870
        %v872 = vpop.f32.mrf.mxu0
        %873 = vmatprep.mubr.f32.mxu0 0.0
        %874 = vmatmul.mubr.f32.gmra.mxu0 %v697
        %v875 = vpop.f32.mrf.mxu0
        %v876 = vadd.f32 0.0, %v875
        %v877 = vpop.f32.mrf.mxu0
        %878 = vmatprep.mubr.f32.mxu0 0.0
        %879 = vmatmul.mubr.f32.gmra.mxu0 %v698
        %v880 = vpop.f32.mrf.mxu0
        %v881 = vadd.f32 0.0, %v880
        %v882 = vpop.f32.mrf.mxu0
        %883 = vmatprep.mubr.f32.mxu0 0.0
        %884 = vmatmul.mubr.f32.gmra.mxu0 %v699
        %v885 = vpop.f32.mrf.mxu0
        %v886 = vadd.f32 0.0, %v885
        %v887 = vpop.f32.mrf.mxu0
        %888 = vmatprep.mubr.f32.mxu0 0.0
        %889 = vmatmul.mubr.f32.gmra.mxu0 %v700
        %v890 = vpop.f32.mrf.mxu0
        %v891 = vadd.f32 0.0, %v890
        %v892 = vpop.f32.mrf.mxu0
        %893 = vmatprep.mubr.f32.mxu0 0.0
        %894 = vmatmul.mubr.f32.gmra.mxu0 %v701
        %v895 = vpop.f32.mrf.mxu0
        %v896 = vadd.f32 0.0, %v895
        %v897 = vpop.f32.mrf.mxu0
        %898 = vmatprep.mubr.f32.mxu0 0.0
        %899 = vmatmul.mubr.f32.gmra.mxu0 %v702
        %v900 = vpop.f32.mrf.mxu0
        %v901 = vadd.f32 0.0, %v900
        %v902 = vpop.f32.mrf.mxu0
        %903 = vmatprep.mubr.f32.mxu0 0.0
        %904 = vmatmul.mubr.f32.gmra.mxu0 %v703
        %v905 = vpop.f32.mrf.mxu0
        %v906 = vadd.f32 0.0, %v905
        %v907 = vpop.f32.mrf.mxu0
        %908 = vmatprep.mubr.f32.mxu0 0.0
        %909 = vmatmul.mubr.f32.gmra.mxu0 %v704
        %v910 = vpop.f32.mrf.mxu0
        %v911 = vadd.f32 0.0, %v910
        %v912 = vpop.f32.mrf.mxu0
        %913 = vmatprep.mubr.f32.mxu0 0.0
        %914 = vmatmul.mubr.f32.gmra.mxu0 %v705
        %v915 = vpop.f32.mrf.mxu0
        %v916 = vadd.f32 0.0, %v915
        %v917 = vpop.f32.mrf.mxu0
        %918 = vmatprep.mubr.f32.mxu0 0.0
        %919 = vmatmul.mubr.f32.gmra.mxu0 %v706
        %v920 = vpop.f32.mrf.mxu0
        %v921 = vadd.f32 0.0, %v920
        %v922 = vpop.f32.mrf.mxu0
        %923 = vmatprep.mubr.f32.mxu0 0.0
        %924 = vmatmul.mubr.f32.gmra.mxu0 %v707
        %v925 = vpop.f32.mrf.mxu0
        %v926 = vadd.f32 0.0, %v925
        %v927 = vpop.f32.mrf.mxu0
        %928 = vmatprep.mubr.f32.mxu0 0.0
        %929 = vmatmul.mubr.f32.gmra.mxu0 %v708
        %v930 = vpop.f32.mrf.mxu0
        %v931 = vadd.f32 0.0, %v930
        %v932 = vpop.f32.mrf.mxu0
        %933 = vmatprep.mubr.f32.mxu0 0.0
        %934 = vmatmul.mubr.f32.gmra.mxu0 %v709
        %v935 = vpop.f32.mrf.mxu0
        %v936 = vadd.f32 0.0, %v935
        %v937 = vpop.f32.mrf.mxu0
        %938 = vmatprep.mubr.f32.mxu0 0.0
        %939 = vmatmul.mubr.f32.gmra.mxu0 %v710
        %v940 = vpop.f32.mrf.mxu0
        %v941 = vadd.f32 0.0, %v940
        %v942 = vpop.f32.mrf.mxu0
        %943 = vmatprep.mubr.f32.mxu0 0.0
        %944 = vmatmul.mubr.f32.gmra.mxu0 %v711
        %v945 = vpop.f32.mrf.mxu0
        %v946 = vadd.f32 0.0, %v945
        %v947 = vpop.f32.mrf.mxu0
        %948 = vmatprep.mubr.f32.mxu0 0.0
        %949 = vmatmul.mubr.f32.gmra.mxu0 %v712
        %v950 = vpop.f32.mrf.mxu0
        %v951 = vadd.f32 0.0, %v950
        %v952 = vpop.f32.mrf.mxu0
        %953 = vdwg.mxu0
        %v954 = vld [vmem:[%s5] sm:$0x1]
        %v956 = vlaneseq
        %v957 = vshrl.u32 %v956, 7
        %v958 = vsub.s32 0, %v957
        %v959 = vrot.slane %v954, %v958
        %v961 = vmul.f32 %v796, %v959
        %v962 = vmul.f32 %v801, %v959
        %v963 = vmul.f32 %v806, %v959
        %v964 = vmul.f32 %v811, %v959
        %v965 = vmul.f32 %v816, %v959
        %v966 = vmul.f32 %v821, %v959
        %v967 = vmul.f32 %v826, %v959
        %v968 = vmul.f32 %v831, %v959
        %v969 = vmul.f32 %v836, %v959
        %v970 = vmul.f32 %v841, %v959
        %v971 = vmul.f32 %v846, %v959
        %v972 = vmul.f32 %v851, %v959
        %v973 = vmul.f32 %v856, %v959
        %v974 = vmul.f32 %v861, %v959
        %v975 = vmul.f32 %v866, %v959
        %v976 = vmul.f32 %v871, %v959
        %v977 = vmul.f32 %v876, %v959
        %v978 = vmul.f32 %v881, %v959
        %v979 = vmul.f32 %v886, %v959
        %v980 = vmul.f32 %v891, %v959
        %v981 = vmul.f32 %v896, %v959
        %v982 = vmul.f32 %v901, %v959
        %v983 = vmul.f32 %v906, %v959
        %v984 = vmul.f32 %v911, %v959
        %v985 = vmul.f32 %v916, %v959
        %v986 = vmul.f32 %v921, %v959
        %v987 = vmul.f32 %v926, %v959
        %v988 = vmul.f32 %v931, %v959
        %v989 = vmul.f32 %v936, %v959
        %v990 = vmul.f32 %v941, %v959
        %v991 = vmul.f32 %v946, %v959
        %v992 = vmul.f32 %v951, %v959
        %v993 = vld [vmem:[%s6] sm:$0x1]
        %v995 = vlaneseq
        %v996 = vshrl.u32 %v995, 7
        %v997 = vsub.s32 0, %v996
        %v998 = vrot.slane %v993, %v997
        %v1000 = vadd.f32 %v961, %v998
        %v1001 = vadd.f32 %v962, %v998
        %v1002 = vadd.f32 %v963, %v998
        %v1003 = vadd.f32 %v964, %v998
        %v1004 = vadd.f32 %v965, %v998
        %v1005 = vadd.f32 %v966, %v998
        %v1006 = vadd.f32 %v967, %v998
        %v1007 = vadd.f32 %v968, %v998
        %v1008 = vadd.f32 %v969, %v998
        %v1009 = vadd.f32 %v970, %v998
        %v1010 = vadd.f32 %v971, %v998
        %v1011 = vadd.f32 %v972, %v998
        %v1012 = vadd.f32 %v973, %v998
        %v1013 = vadd.f32 %v974, %v998
        %v1014 = vadd.f32 %v975, %v998
        %v1015 = vadd.f32 %v976, %v998
        %v1016 = vadd.f32 %v977, %v998
        %v1017 = vadd.f32 %v978, %v998
        %v1018 = vadd.f32 %v979, %v998
        %v1019 = vadd.f32 %v980, %v998
        %v1020 = vadd.f32 %v981, %v998
        %v1021 = vadd.f32 %v982, %v998
        %v1022 = vadd.f32 %v983, %v998
        %v1023 = vadd.f32 %v984, %v998
        %v1024 = vadd.f32 %v985, %v998
        %v1025 = vadd.f32 %v986, %v998
        %v1026 = vadd.f32 %v987, %v998
        %v1027 = vadd.f32 %v988, %v998
        %v1028 = vadd.f32 %v989, %v998
        %v1029 = vadd.f32 %v990, %v998
        %v1030 = vadd.f32 %v991, %v998
        %v1031 = vadd.f32 %v992, %v998
        %v1032 = vmax.f32 %v1000, 0.0
        %v1033 = vmax.f32 %v1001, 0.0
        %v1034 = vmax.f32 %v1002, 0.0
        %v1035 = vmax.f32 %v1003, 0.0
        %v1036 = vmax.f32 %v1004, 0.0
        %v1037 = vmax.f32 %v1005, 0.0
        %v1038 = vmax.f32 %v1006, 0.0
        %v1039 = vmax.f32 %v1007, 0.0
        %v1040 = vmax.f32 %v1008, 0.0
        %v1041 = vmax.f32 %v1009, 0.0
        %v1042 = vmax.f32 %v1010, 0.0
        %v1043 = vmax.f32 %v1011, 0.0
        %v1044 = vmax.f32 %v1012, 0.0
        %v1045 = vmax.f32 %v1013, 0.0
        %v1046 = vmax.f32 %v1014, 0.0
        %v1047 = vmax.f32 %v1015, 0.0
        %v1048 = vmax.f32 %v1016, 0.0
        %v1049 = vmax.f32 %v1017, 0.0
        %v1050 = vmax.f32 %v1018, 0.0
        %v1051 = vmax.f32 %v1019, 0.0
        %v1052 = vmax.f32 %v1020, 0.0
        %v1053 = vmax.f32 %v1021, 0.0
        %v1054 = vmax.f32 %v1022, 0.0
        %v1055 = vmax.f32 %v1023, 0.0
        %v1056 = vmax.f32 %v1024, 0.0
        %v1057 = vmax.f32 %v1025, 0.0
        %v1058 = vmax.f32 %v1026, 0.0
        %v1059 = vmax.f32 %v1027, 0.0
        %v1060 = vmax.f32 %v1028, 0.0
        %v1061 = vmax.f32 %v1029, 0.0
        %v1062 = vmax.f32 %v1030, 0.0
        %v1063 = vmax.f32 %v1031, 0.0
        %1064 = vst [vmem:[%s328] sm:$0xff] %v1032
        %1065 = vst [vmem:[%s328 + $0x8] sm:$0xff] %v1033
        %1066 = vst [vmem:[%s328 + $0x10] sm:$0xff] %v1034
        %1067 = vst [vmem:[%s328 + $0x18] sm:$0xff] %v1035
        %1068 = vst [vmem:[%s328 + $0x20] sm:$0xff] %v1036
        %1069 = vst [vmem:[%s328 + $0x28] sm:$0xff] %v1037
        %1070 = vst [vmem:[%s328 + $0x30] sm:$0xff] %v1038
        %1071 = vst [vmem:[%s328 + $0x38] sm:$0xff] %v1039
        %1072 = vst [vmem:[%s328 + $0x40] sm:$0xff] %v1040
        %1073 = vst [vmem:[%s328 + $0x48] sm:$0xff] %v1041
        %1074 = vst [vmem:[%s328 + $0x50] sm:$0xff] %v1042
        %1075 = vst [vmem:[%s328 + $0x58] sm:$0xff] %v1043
        %1076 = vst [vmem:[%s328 + $0x60] sm:$0xff] %v1044
        %1077 = vst [vmem:[%s328 + $0x68] sm:$0xff] %v1045
        %1078 = vst [vmem:[%s328 + $0x70] sm:$0xff] %v1046
        %1079 = vst [vmem:[%s328 + $0x78] sm:$0xff] %v1047
        %1080 = vst [vmem:[%s328 + $0x80] sm:$0xff] %v1048
        %1081 = vst [vmem:[%s328 + $0x88] sm:$0xff] %v1049
        %1082 = vst [vmem:[%s328 + $0x90] sm:$0xff] %v1050
        %1083 = vst [vmem:[%s328 + $0x98] sm:$0xff] %v1051
        %1084 = vst [vmem:[%s328 + $0xa0] sm:$0xff] %v1052
        %1085 = vst [vmem:[%s328 + $0xa8] sm:$0xff] %v1053
        %1086 = vst [vmem:[%s328 + $0xb0] sm:$0xff] %v1054
        %1087 = vst [vmem:[%s328 + $0xb8] sm:$0xff] %v1055
        %1088 = vst [vmem:[%s328 + $0xc0] sm:$0xff] %v1056
        %1089 = vst [vmem:[%s328 + $0xc8] sm:$0xff] %v1057
        %1090 = vst [vmem:[%s328 + $0xd0] sm:$0xff] %v1058
        %1091 = vst [vmem:[%s328 + $0xd8] sm:$0xff] %v1059
        %1092 = vst [vmem:[%s328 + $0xe0] sm:$0xff] %v1060
        %1093 = vst [vmem:[%s328 + $0xe8] sm:$0xff] %v1061
        %1094 = vst [vmem:[%s328 + $0xf0] sm:$0xff] %v1062
        %1095 = vst [vmem:[%s328 + $0xf8] sm:$0xff] %v1063
        %s1096 = smul.u32 32, %s22
        %p1097 = scmp.lt.s32.totalorder %s1096, 63
        %s1098 = scalar_select %p1097, %s1096, 63
        %s1099 = smul.addr %s1098, 8
        %s1100 = scalar_lea.vmem %s7, %s1099
        // Predicated region
        $region61: #{object_context_block.7} parent=47 // pred_check
          %p1101 = pneg %p192
        $region62: #{object_context_block.7} parent=47 // pred_check_branch
          %1103 = sbr.rel (%p1101) target = $region64
        $region63: #{object_context_block.7} parent=47 // pred_region
          %s1104 = smul.u32 32, %s22
        $region64: #{object_context_block.7} parent=47 // pred_fallthru
          _
      $region48: #{object_context_block.7} parent=5 // pred_fallthru
        _
      %p1105 = scmp.le.s32.totalorder 2, %s17
      // Predicated region
      $region65: #{object_context_block.7} parent=5 // pred_check
        %p1106 = pneg %p1105
      $region66: #{object_context_block.7} parent=5 // pred_check_branch
        %1108 = sbr.rel (%p1106) target = $region68
      $region67: #{object_context_block.7} parent=5 // pred_region
        %s1109 = ssub.s32 %s17, 2
        // Predicated region
        $region69: #{object_context_block.7} parent=67 // pred_check
          %p1110 = pneg %p198
        $region70: #{object_context_block.7} parent=67 // pred_check_branch
          %1112 = sbr.rel (%p1110) target = $region72
        $region71: #{object_context_block.7} parent=67 // pred_region
          %s1113 = smul.u32 32, %s23
          %p1114 = scmp.lt.s32.totalorder %s1113, 63
          %s1115 = scalar_select %p1114, %s1113, 63
          %s1116 = smul.addr %s1115, 8
          %s1117 = scalar_lea.vmem %s7, %s1116
        $region72: #{object_context_block.7} parent=67 // pred_fallthru
          _
      $region68: #{object_context_block.7} parent=5 // pred_fallthru
        _
    $region6: #{object_context_block.7} parent=1 // loop_footer
      %s21 = sadd.s32 1, %s17
    $region7: #{object_context_block.7} parent=1 // loop_footer_branch
      %16 = sbr.rel target = $region3
    $region8: #{object_context_block.7} parent=1 // loop_exit
      _
    %1118 = vsyncpa [#allocation3], 1
    %s1119 = scalar_lea.sflag [#allocation3], 1
    %1120 = vsyncpa %s1119, 1
    %1121 = vsyncpa [#allocation5], 1

// kernel: object_context_block.6
$region0: #{object_context_block.6}
  #allocation0 [shape = 'u32[]', space=smem, size = 0x4, offset = 0x4, fixed_abs, tag = 'smem constant byte address 0x4 - core index']
  #allocation1 [shape = 'u32[144,128]{1,0:T(1,128)}', space=vmem, size = 0x12000, scoped, tag = 'internal scratch']
  %s0 = inlined_call_operand.vmem [shape: f32[512,128], index: 0, kind: input, shape index: {}]
  %s1 = inlined_call_operand.vmem [shape: f32[128,128], index: 1, kind: input, shape index: {}]
  %s2 = inlined_call_operand.vmem [shape: f32[1,128], index: 2, kind: input, shape index: {}]
  %s3 = inlined_call_operand.vmem [shape: f32[1,128], index: 3, kind: input, shape index: {}]
  %s4 = inlined_call_operand.vmem [shape: f32[128,128], index: 4, kind: input, shape index: {}]
  %s5 = inlined_call_operand.vmem [shape: f32[1,128], index: 5, kind: input, shape index: {}]
  %s6 = inlined_call_operand.vmem [shape: f32[1,128], index: 6, kind: input, shape index: {}]
  %s7 = inlined_call_operand.vmem [shape: f32[512,128], index: 7, kind: output, shape index: {}]
  %s8 = sld [smem:[#allocation0]]
  $region61: #{object_context_block.6} parent=0
    _
  %s10 = ssub.s32 1, %s8
  %s11 = scalar_select 0, %s10, %s8
  loop: start=0, step=1, limit=4
  $region2: #{object_context_block.6} parent=0 // loop_pre_header
    _
  $region3: #{object_context_block.6} parent=0 // loop_header
    %s13 = sphi 0, %s17
    %p14 = scmp.ge.s32.totalorder %s13, 4
    %s23 = sphi 0, %s25
    %s26 = sphi 0, %s23
    %s27 = sphi 0, %s26
    %s43 = sphi 0, %s27
    %s47 = sphi 0, %s47
    %s49 = sphi 0, %s47
    %s50 = sphi 0, %s49
    %s64 = sphi 0, %s50
    %s68 = sphi 0, %s68
    %s70 = sphi 0, %s68
    %s71 = sphi 0, %s70
    %s85 = sphi 0, %s71
    %s89 = sphi 0, %s89
    %s91 = sphi 0, %s89
    %s92 = sphi 0, %s91
    %s106 = sphi 0, %s92
    %s110 = sphi 0, %s110
    %s112 = sphi 0, %s110
    %s113 = sphi 0, %s112
    %s127 = sphi 0, %s113
    %s131 = sphi 0, %s131
    %s133 = sphi 0, %s131
    %s134 = sphi 0, %s133
    %s148 = sphi 0, %s134
    %s152 = sphi 0, %s152
    %s154 = sphi 0, %s152
    %s155 = sphi 0, %s154
    %s169 = sphi 0, %s155
    %s175 = sphi 0, %s177
    %s178 = sphi 0, %s175
    %s179 = sphi 0, %s178
    %s195 = sphi 0, %s179
  $region4: #{object_context_block.6} parent=0 // loop_header_branch
    %16 = sbr.rel (%p14) target = $region8
  $region5: #{object_context_block.6} parent=0 // loop_body
    %s18 = ssub.s32 %s13, 1
    %s19 = ssub.s32 %s13, 2
    %s20 = sadd.s32 %s13, 1
    %s21 = ssub.s32 %s13, %s20
    %p22 = scmp.eq.s32.totalorder %s21, 0
    %s24 = sadd.s32 %s23, 1
    %s25 = scalar_select %p22, %s23, %s24
    %p28 = pneg %p22
    %p29 = scmp.eq.s32.totalorder %s13, 1
    %p30 = por %p28, %p29
    %p31 = scmp.ne.s32.totalorder %s23, %s26
    %p32 = scmp.eq.s32.totalorder %s13, 0
    %p33 = por %p31, %p32
    %p34 = scmp.ne.s32.totalorder %s23, %s26
    %p35 = scmp.eq.s32.totalorder %s18, 1
    %p36 = por %p34, %p35
    %p37 = scmp.ne.s32.totalorder %s26, %s27
    %p38 = scmp.eq.s32.totalorder %s18, 0
    %p39 = por %p37, %p38
    %p40 = scmp.ne.s32.totalorder %s26, %s27
    %p41 = scmp.eq.s32.totalorder %s19, 1
    %p42 = por %p40, %p41
    %p44 = scmp.ne.s32.totalorder %s27, %s43
    %p45 = scmp.eq.s32.totalorder %s19, 0
    %p46 = por %p44, %p45
    %s48 = sadd.s32 %s47, 1
    %p51 = scmp.eq.s32.totalorder %s13, 1
    %p52 = scmp.ne.s32.totalorder %s47, %s49
    %p53 = scmp.eq.s32.totalorder %s13, 0
    %p54 = por %p52, %p53
    %p55 = scmp.ne.s32.totalorder %s47, %s49
    %p56 = scmp.eq.s32.totalorder %s18, 1
    %p57 = por %p55, %p56
    %p58 = scmp.ne.s32.totalorder %s49, %s50
    %p59 = scmp.eq.s32.totalorder %s18, 0
    %p60 = por %p58, %p59
    %p61 = scmp.ne.s32.totalorder %s49, %s50
    %p62 = scmp.eq.s32.totalorder %s19, 1
    %p63 = por %p61, %p62
    %p65 = scmp.ne.s32.totalorder %s50, %s64
    %p66 = scmp.eq.s32.totalorder %s19, 0
    %p67 = por %p65, %p66
    %s69 = sadd.s32 %s68, 1
    %p72 = scmp.eq.s32.totalorder %s13, 1
    %p73 = scmp.ne.s32.totalorder %s68, %s70
    %p74 = scmp.eq.s32.totalorder %s13, 0
    %p75 = por %p73, %p74
    %p76 = scmp.ne.s32.totalorder %s68, %s70
    %p77 = scmp.eq.s32.totalorder %s18, 1
    %p78 = por %p76, %p77
    %p79 = scmp.ne.s32.totalorder %s70, %s71
    %p80 = scmp.eq.s32.totalorder %s18, 0
    %p81 = por %p79, %p80
    %p82 = scmp.ne.s32.totalorder %s70, %s71
    %p83 = scmp.eq.s32.totalorder %s19, 1
    %p84 = por %p82, %p83
    %p86 = scmp.ne.s32.totalorder %s71, %s85
    %p87 = scmp.eq.s32.totalorder %s19, 0
    %p88 = por %p86, %p87
    %s90 = sadd.s32 %s89, 1
    %p93 = scmp.eq.s32.totalorder %s13, 1
    %p94 = scmp.ne.s32.totalorder %s89, %s91
    %p95 = scmp.eq.s32.totalorder %s13, 0
    %p96 = por %p94, %p95
    %p97 = scmp.ne.s32.totalorder %s89, %s91
    %p98 = scmp.eq.s32.totalorder %s18, 1
    %p99 = por %p97, %p98
    %p100 = scmp.ne.s32.totalorder %s91, %s92
    %p101 = scmp.eq.s32.totalorder %s18, 0
    %p102 = por %p100, %p101
    %p103 = scmp.ne.s32.totalorder %s91, %s92
    %p104 = scmp.eq.s32.totalorder %s19, 1
    %p105 = por %p103, %p104
    %p107 = scmp.ne.s32.totalorder %s92, %s106
    %p108 = scmp.eq.s32.totalorder %s19, 0
    %p109 = por %p107, %p108
    %s111 = sadd.s32 %s110, 1
    %p114 = scmp.eq.s32.totalorder %s13, 1
    %p115 = scmp.ne.s32.totalorder %s110, %s112
    %p116 = scmp.eq.s32.totalorder %s13, 0
    %p117 = por %p115, %p116
    %p118 = scmp.ne.s32.totalorder %s110, %s112
    %p119 = scmp.eq.s32.totalorder %s18, 1
    %p120 = por %p118, %p119
    %p121 = scmp.ne.s32.totalorder %s112, %s113
    %p122 = scmp.eq.s32.totalorder %s18, 0
    %p123 = por %p121, %p122
    %p124 = scmp.ne.s32.totalorder %s112, %s113
    %p125 = scmp.eq.s32.totalorder %s19, 1
    %p126 = por %p124, %p125
    %p128 = scmp.ne.s32.totalorder %s113, %s127
    %p129 = scmp.eq.s32.totalorder %s19, 0
    %p130 = por %p128, %p129
    %s132 = sadd.s32 %s131, 1
    %p135 = scmp.eq.s32.totalorder %s13, 1
    %p136 = scmp.ne.s32.totalorder %s131, %s133
    %p137 = scmp.eq.s32.totalorder %s13, 0
    %p138 = por %p136, %p137
    %p139 = scmp.ne.s32.totalorder %s131, %s133
    %p140 = scmp.eq.s32.totalorder %s18, 1
    %p141 = por %p139, %p140
    %p142 = scmp.ne.s32.totalorder %s133, %s134
    %p143 = scmp.eq.s32.totalorder %s18, 0
    %p144 = por %p142, %p143
    %p145 = scmp.ne.s32.totalorder %s133, %s134
    %p146 = scmp.eq.s32.totalorder %s19, 1
    %p147 = por %p145, %p146
    %p149 = scmp.ne.s32.totalorder %s134, %s148
    %p150 = scmp.eq.s32.totalorder %s19, 0
    %p151 = por %p149, %p150
    %s153 = sadd.s32 %s152, 1
    %p156 = scmp.eq.s32.totalorder %s13, 1
    %p157 = scmp.ne.s32.totalorder %s152, %s154
    %p158 = scmp.eq.s32.totalorder %s13, 0
    %p159 = por %p157, %p158
    %p160 = scmp.ne.s32.totalorder %s152, %s154
    %p161 = scmp.eq.s32.totalorder %s18, 1
    %p162 = por %p160, %p161
    %p163 = scmp.ne.s32.totalorder %s154, %s155
    %p164 = scmp.eq.s32.totalorder %s18, 0
    %p165 = por %p163, %p164
    %p166 = scmp.ne.s32.totalorder %s154, %s155
    %p167 = scmp.eq.s32.totalorder %s19, 1
    %p168 = por %p166, %p167
    %p170 = scmp.ne.s32.totalorder %s155, %s169
    %p171 = scmp.eq.s32.totalorder %s19, 0
    %p172 = por %p170, %p171
    %s173 = ssub.s32 %s13, %s20
    %p174 = scmp.eq.s32.totalorder %s173, 0
    %s176 = sadd.s32 %s175, 1
    %s177 = scalar_select %p174, %s175, %s176
    %p180 = pneg %p174
    %p181 = scmp.eq.s32.totalorder %s13, 1
    %p182 = por %p180, %p181
    %p183 = scmp.ne.s32.totalorder %s175, %s178
    %p184 = scmp.eq.s32.totalorder %s13, 0
    %p185 = por %p183, %p184
    %p186 = scmp.ne.s32.totalorder %s175, %s178
    %p187 = scmp.eq.s32.totalorder %s18, 1
    %p188 = por %p186, %p187
    %p189 = scmp.ne.s32.totalorder %s178, %s179
    %p190 = scmp.eq.s32.totalorder %s18, 0
    %p191 = por %p189, %p190
    %p192 = scmp.ne.s32.totalorder %s178, %s179
    %p193 = scmp.eq.s32.totalorder %s19, 1
    %p194 = por %p192, %p193
    %p196 = scmp.ne.s32.totalorder %s179, %s195
    %p197 = scmp.eq.s32.totalorder %s19, 0
    %p198 = por %p196, %p197
    %p199 = scmp.le.s32.totalorder 1, %s13
    %p200 = scmp.lt.s32.totalorder %s13, 3
    %p201 = pnand %p199, %p200
    %p202 = pneg %p201
    // Predicated region
    $region9: #{object_context_block.6} parent=5 // pred_check
      _
    $region10: #{object_context_block.6} parent=5 // pred_check_branch
      %204 = sbr.rel (%p201) target = $region12
    $region11: #{object_context_block.6} parent=5 // pred_region
      %s205 = ssub.s32 %s13, 1
      // Predicated region
      $region13: #{object_context_block.6} parent=11 // pred_check
        %p206 = pneg %p60
      $region14: #{object_context_block.6} parent=11 // pred_check_branch
        %208 = sbr.rel (%p206) target = $region16
      $region15: #{object_context_block.6} parent=11 // pred_region
        _
      $region16: #{object_context_block.6} parent=11 // pred_fallthru
        _
      // Predicated region
      $region17: #{object_context_block.6} parent=11 // pred_check
        %p209 = pneg %p81
      $region18: #{object_context_block.6} parent=11 // pred_check_branch
        %211 = sbr.rel (%p209) target = $region20
      $region19: #{object_context_block.6} parent=11 // pred_region
        _
      $region20: #{object_context_block.6} parent=11 // pred_fallthru
        _
      // Predicated region
      $region21: #{object_context_block.6} parent=11 // pred_check
        %p212 = pneg %p102
      $region22: #{object_context_block.6} parent=11 // pred_check_branch
        %214 = sbr.rel (%p212) target = $region24
      $region23: #{object_context_block.6} parent=11 // pred_region
        _
      $region24: #{object_context_block.6} parent=11 // pred_fallthru
        _
      // Predicated region
      $region25: #{object_context_block.6} parent=11 // pred_check
        %p215 = pneg %p123
      $region26: #{object_context_block.6} parent=11 // pred_check_branch
        %217 = sbr.rel (%p215) target = $region28
      $region27: #{object_context_block.6} parent=11 // pred_region
        _
      $region28: #{object_context_block.6} parent=11 // pred_fallthru
        _
      // Predicated region
      $region29: #{object_context_block.6} parent=11 // pred_check
        %p218 = pneg %p144
      $region30: #{object_context_block.6} parent=11 // pred_check_branch
        %220 = sbr.rel (%p218) target = $region32
      $region31: #{object_context_block.6} parent=11 // pred_region
        _
      $region32: #{object_context_block.6} parent=11 // pred_fallthru
        _
      // Predicated region
      $region33: #{object_context_block.6} parent=11 // pred_check
        %p221 = pneg %p165
      $region34: #{object_context_block.6} parent=11 // pred_check_branch
        %223 = sbr.rel (%p221) target = $region36
      $region35: #{object_context_block.6} parent=11 // pred_region
        _
      $region36: #{object_context_block.6} parent=11 // pred_fallthru
        _
    $region12: #{object_context_block.6} parent=5 // pred_fallthru
      _
    %p224 = scmp.lt.s32.totalorder %s13, 2
    // Predicated region
    $region37: #{object_context_block.6} parent=5 // pred_check
      %p225 = pneg %p224
    $region38: #{object_context_block.6} parent=5 // pred_check_branch
      %227 = sbr.rel (%p225) target = $region40
    $region39: #{object_context_block.6} parent=5 // pred_region
      // Predicated region
      $region41: #{object_context_block.6} parent=39 // pred_check
        %p228 = pneg %p33
      $region42: #{object_context_block.6} parent=39 // pred_check_branch
        %230 = sbr.rel (%p228) target = $region44
      $region43: #{object_context_block.6} parent=39 // pred_region
        %s231 = smul.u32 32, %s13
        %p232 = scmp.lt.s32.totalorder %s231, 63
        %s233 = scalar_select %p232, %s231, 63
        %s234 = smul.addr %s233, 8
        %s235 = scalar_lea.vmem %s0, %s234
        %s236 = smul.u32 32, %s13
      $region44: #{object_context_block.6} parent=39 // pred_fallthru
        _
    $region40: #{object_context_block.6} parent=5 // pred_fallthru
      _
    %p237 = scmp.le.s32.totalorder 1, %s13
    %p238 = scmp.lt.s32.totalorder %s13, 3
    %p239 = pnand %p237, %p238
    %p240 = pneg %p239
    // Predicated region
    $region45: #{object_context_block.6} parent=5 // pred_check
      _
    $region46: #{object_context_block.6} parent=5 // pred_check_branch
      %242 = sbr.rel (%p239) target = $region48
    $region47: #{object_context_block.6} parent=5 // pred_region
      %s243 = ssub.s32 %s13, 1
      %s244 = smul.u32 32, %s18
      %p245 = scmp.lt.s32.totalorder %s244, 63
      %s246 = scalar_select %p245, %s244, 63
      %s247 = smul.addr %s246, 8
      %s248 = scalar_lea.vmem %s0, %s247
      %p249 = pneg %p39
      %p250 = pneg %p36
      %p251 = pneg %p60
      %p252 = pneg %p57
      %p253 = pneg %p81
      %p254 = pneg %p78
      %p255 = pneg %p102
      %p256 = pneg %p99
      %p257 = pneg %p123
      %p258 = pneg %p120
      %p259 = pneg %p144
      %p260 = pneg %p141
      %p261 = pneg %p165
      %p262 = pneg %p162
      %p263 = pneg %p191
      %p264 = pneg %p188
      %s265 = smul.u32 32, %s18
      %p266 = scmp.lt.s32.totalorder %s265, 63
      %s267 = scalar_select %p266, %s265, 63
      %s268 = smul.addr %s267, 8
      %s269 = scalar_lea.vmem %s7, %s268
      %s270 = smul.u32 32, %s18
      %p271 = scmp.lt.s32.totalorder %s270, 63
      %s272 = scalar_select %p271, %s270, 63
      %s273 = smul.addr %s272, 8
      %s274 = scalar_lea.vmem %s0, %s273
      %s275 = smul.u32 32, %s18
      %s276 = smul.u32 32, %s18
      %p277 = scmp.lt.s32.totalorder %s276, 63
      %s278 = scalar_select %p277, %s276, 63
      %s279 = smul.addr %s278, 8
      %s280 = scalar_lea.vmem %s7, %s279
      %s281 = smul.u32 32, %s18
      %v282 = vld [vmem:[%s274] sm:$0xff]
      %v283 = vld [vmem:[%s274 + $0x8] sm:$0xff]
      %v284 = vld [vmem:[%s274 + $0x10] sm:$0xff]
      %v285 = vld [vmem:[%s274 + $0x18] sm:$0xff]
      %v286 = vld [vmem:[%s274 + $0x20] sm:$0xff]
      %v287 = vld [vmem:[%s274 + $0x28] sm:$0xff]
      %v288 = vld [vmem:[%s274 + $0x30] sm:$0xff]
      %v289 = vld [vmem:[%s274 + $0x38] sm:$0xff]
      %v290 = vld [vmem:[%s274 + $0x40] sm:$0xff]
      %v291 = vld [vmem:[%s274 + $0x48] sm:$0xff]
      %v292 = vld [vmem:[%s274 + $0x50] sm:$0xff]
      %v293 = vld [vmem:[%s274 + $0x58] sm:$0xff]
      %v294 = vld [vmem:[%s274 + $0x60] sm:$0xff]
      %v295 = vld [vmem:[%s274 + $0x68] sm:$0xff]
      %v296 = vld [vmem:[%s274 + $0x70] sm:$0xff]
      %v297 = vld [vmem:[%s274 + $0x78] sm:$0xff]
      %v298 = vld [vmem:[%s274 + $0x80] sm:$0xff]
      %v299 = vld [vmem:[%s274 + $0x88] sm:$0xff]
      %v300 = vld [vmem:[%s274 + $0x90] sm:$0xff]
      %v301 = vld [vmem:[%s274 + $0x98] sm:$0xff]
      %v302 = vld [vmem:[%s274 + $0xa0] sm:$0xff]
      %v303 = vld [vmem:[%s274 + $0xa8] sm:$0xff]
      %v304 = vld [vmem:[%s274 + $0xb0] sm:$0xff]
      %v305 = vld [vmem:[%s274 + $0xb8] sm:$0xff]
      %v306 = vld [vmem:[%s274 + $0xc0] sm:$0xff]
      %v307 = vld [vmem:[%s274 + $0xc8] sm:$0xff]
      %v308 = vld [vmem:[%s274 + $0xd0] sm:$0xff]
      %v309 = vld [vmem:[%s274 + $0xd8] sm:$0xff]
      %v310 = vld [vmem:[%s274 + $0xe0] sm:$0xff]
      %v311 = vld [vmem:[%s274 + $0xe8] sm:$0xff]
      %v312 = vld [vmem:[%s274 + $0xf0] sm:$0xff]
      %v313 = vld [vmem:[%s274 + $0xf8] sm:$0xff]
      %v314 = vld [vmem:[%s1] sm:$0xff]
      %v315 = vld [vmem:[%s1 + $0x8] sm:$0xff]
      %v316 = vld [vmem:[%s1 + $0x10] sm:$0xff]
      %v317 = vld [vmem:[%s1 + $0x18] sm:$0xff]
      %v318 = vld [vmem:[%s1 + $0x20] sm:$0xff]
      %v319 = vld [vmem:[%s1 + $0x28] sm:$0xff]
      %v320 = vld [vmem:[%s1 + $0x30] sm:$0xff]
      %v321 = vld [vmem:[%s1 + $0x38] sm:$0xff]
      %v322 = vld [vmem:[%s1 + $0x40] sm:$0xff]
      %v323 = vld [vmem:[%s1 + $0x48] sm:$0xff]
      %v324 = vld [vmem:[%s1 + $0x50] sm:$0xff]
      %v325 = vld [vmem:[%s1 + $0x58] sm:$0xff]
      %v326 = vld [vmem:[%s1 + $0x60] sm:$0xff]
      %v327 = vld [vmem:[%s1 + $0x68] sm:$0xff]
      %v328 = vld [vmem:[%s1 + $0x70] sm:$0xff]
      %v329 = vld [vmem:[%s1 + $0x78] sm:$0xff]
      %330 = vmatprep.subr.mxu0 0.0
      %331 = vmatpush1.msra.mxu0 %v329
      %332 = vmatprep.subr.mxu0 0.0
      %333 = vmatpush1.msra.mxu0 %v328
      %334 = vmatprep.subr.mxu0 0.0
      %335 = vmatpush1.msra.mxu0 %v327
      %336 = vmatprep.subr.mxu0 0.0
      %337 = vmatpush1.msra.mxu0 %v326
      %338 = vmatprep.subr.mxu0 0.0
      %339 = vmatpush1.msra.mxu0 %v325
      %340 = vmatprep.subr.mxu0 0.0
      %341 = vmatpush1.msra.mxu0 %v324
      %342 = vmatprep.subr.mxu0 0.0
      %343 = vmatpush1.msra.mxu0 %v323
      %344 = vmatprep.subr.mxu0 0.0
      %345 = vmatpush1.msra.mxu0 %v322
      %346 = vmatprep.subr.mxu0 0.0
      %347 = vmatpush1.msra.mxu0 %v321
      %348 = vmatprep.subr.mxu0 0.0
      %349 = vmatpush1.msra.mxu0 %v320
      %350 = vmatprep.subr.mxu0 0.0
      %351 = vmatpush1.msra.mxu0 %v319
      %352 = vmatprep.subr.mxu0 0.0
      %353 = vmatpush1.msra.mxu0 %v318
      %354 = vmatprep.subr.mxu0 0.0
      %355 = vmatpush1.msra.mxu0 %v317
      %356 = vmatprep.subr.mxu0 0.0
      %357 = vmatpush1.msra.mxu0 %v316
      %358 = vmatprep.subr.mxu0 0.0
      %359 = vmatpush1.msra.mxu0 %v315
      %360 = vmatprep.subr.mxu0 0.0
      %361 = vmatpush1.msra.mxu0 %v314
      %362 = vmatprep.subr.mxu0 0.0
      %363 = vmatpush2.msra.mxu0 0.0
      %364 = vmatprep.subr.mxu0 0.0
      %365 = vmatpush2.msra.mxu0 0.0
      %366 = vmatprep.subr.mxu0 0.0
      %367 = vmatpush2.msra.mxu0 0.0
      %368 = vmatprep.subr.mxu0 0.0
      %369 = vmatpush2.msra.mxu0 0.0
      %370 = vmatprep.subr.mxu0 0.0
      %371 = vmatpush2.msra.mxu0 0.0
      %372 = vmatprep.subr.mxu0 0.0
      %373 = vmatpush2.msra.mxu0 0.0
      %374 = vmatprep.subr.mxu0 0.0
      %375 = vmatpush2.msra.mxu0 0.0
      %376 = vmatprep.subr.mxu0 0.0
      %377 = vmatpush2.msra.mxu0 0.0
      %378 = vmatprep.subr.mxu0 0.0
      %379 = vmatpush2.msra.mxu0 0.0
      %380 = vmatprep.subr.mxu0 0.0
      %381 = vmatpush2.msra.mxu0 0.0
      %382 = vmatprep.subr.mxu0 0.0
      %383 = vmatpush2.msra.mxu0 0.0
      %384 = vmatprep.subr.mxu0 0.0
      %385 = vmatpush2.msra.mxu0 0.0
      %386 = vmatprep.subr.mxu0 0.0
      %387 = vmatpush2.msra.mxu0 0.0
      %388 = vmatprep.subr.mxu0 0.0
      %389 = vmatpush2.msra.mxu0 0.0
      %390 = vmatprep.subr.mxu0 0.0
      %391 = vmatpush2.msra.mxu0 0.0
      %392 = vmatprep.subr.mxu0 0.0
      %393 = vmatpush2.msra.mxu0 0.0
      %394 = vmatprep.mubr.f32.mxu0 0.0
      %395 = vmatmul.mubr.f32.gmra.mxu0 %v282
      %v396 = vpop.f32.mrf.mxu0
      %v397 = vadd.f32 0.0, %v396
      %v398 = vpop.f32.mrf.mxu0
      %399 = vmatprep.mubr.f32.mxu0 0.0
      %400 = vmatmul.mubr.f32.gmra.mxu0 %v283
      %v401 = vpop.f32.mrf.mxu0
      %v402 = vadd.f32 0.0, %v401
      %v403 = vpop.f32.mrf.mxu0
      %404 = vmatprep.mubr.f32.mxu0 0.0
      %405 = vmatmul.mubr.f32.gmra.mxu0 %v284
      %v406 = vpop.f32.mrf.mxu0
      %v407 = vadd.f32 0.0, %v406
      %v408 = vpop.f32.mrf.mxu0
      %409 = vmatprep.mubr.f32.mxu0 0.0
      %410 = vmatmul.mubr.f32.gmra.mxu0 %v285
      %v411 = vpop.f32.mrf.mxu0
      %v412 = vadd.f32 0.0, %v411
      %v413 = vpop.f32.mrf.mxu0
      %414 = vmatprep.mubr.f32.mxu0 0.0
      %415 = vmatmul.mubr.f32.gmra.mxu0 %v286
      %v416 = vpop.f32.mrf.mxu0
      %v417 = vadd.f32 0.0, %v416
      %v418 = vpop.f32.mrf.mxu0
      %419 = vmatprep.mubr.f32.mxu0 0.0
      %420 = vmatmul.mubr.f32.gmra.mxu0 %v287
      %v421 = vpop.f32.mrf.mxu0
      %v422 = vadd.f32 0.0, %v421
      %v423 = vpop.f32.mrf.mxu0
      %424 = vmatprep.mubr.f32.mxu0 0.0
      %425 = vmatmul.mubr.f32.gmra.mxu0 %v288
      %v426 = vpop.f32.mrf.mxu0
      %v427 = vadd.f32 0.0, %v426
      %v428 = vpop.f32.mrf.mxu0
      %429 = vmatprep.mubr.f32.mxu0 0.0
      %430 = vmatmul.mubr.f32.gmra.mxu0 %v289
      %v431 = vpop.f32.mrf.mxu0
      %v432 = vadd.f32 0.0, %v431
      %v433 = vpop.f32.mrf.mxu0
      %434 = vmatprep.mubr.f32.mxu0 0.0
      %435 = vmatmul.mubr.f32.gmra.mxu0 %v290
      %v436 = vpop.f32.mrf.mxu0
      %v437 = vadd.f32 0.0, %v436
      %v438 = vpop.f32.mrf.mxu0
      %439 = vmatprep.mubr.f32.mxu0 0.0
      %440 = vmatmul.mubr.f32.gmra.mxu0 %v291
      %v441 = vpop.f32.mrf.mxu0
      %v442 = vadd.f32 0.0, %v441
      %v443 = vpop.f32.mrf.mxu0
      %444 = vmatprep.mubr.f32.mxu0 0.0
      %445 = vmatmul.mubr.f32.gmra.mxu0 %v292
      %v446 = vpop.f32.mrf.mxu0
      %v447 = vadd.f32 0.0, %v446
      %v448 = vpop.f32.mrf.mxu0
      %449 = vmatprep.mubr.f32.mxu0 0.0
      %450 = vmatmul.mubr.f32.gmra.mxu0 %v293
      %v451 = vpop.f32.mrf.mxu0
      %v452 = vadd.f32 0.0, %v451
      %v453 = vpop.f32.mrf.mxu0
      %454 = vmatprep.mubr.f32.mxu0 0.0
      %455 = vmatmul.mubr.f32.gmra.mxu0 %v294
      %v456 = vpop.f32.mrf.mxu0
      %v457 = vadd.f32 0.0, %v456
      %v458 = vpop.f32.mrf.mxu0
      %459 = vmatprep.mubr.f32.mxu0 0.0
      %460 = vmatmul.mubr.f32.gmra.mxu0 %v295
      %v461 = vpop.f32.mrf.mxu0
      %v462 = vadd.f32 0.0, %v461
      %v463 = vpop.f32.mrf.mxu0
      %464 = vmatprep.mubr.f32.mxu0 0.0
      %465 = vmatmul.mubr.f32.gmra.mxu0 %v296
      %v466 = vpop.f32.mrf.mxu0
      %v467 = vadd.f32 0.0, %v466
      %v468 = vpop.f32.mrf.mxu0
      %469 = vmatprep.mubr.f32.mxu0 0.0
      %470 = vmatmul.mubr.f32.gmra.mxu0 %v297
      %v471 = vpop.f32.mrf.mxu0
      %v472 = vadd.f32 0.0, %v471
      %v473 = vpop.f32.mrf.mxu0
      %474 = vmatprep.mubr.f32.mxu0 0.0
      %475 = vmatmul.mubr.f32.gmra.mxu0 %v298
      %v476 = vpop.f32.mrf.mxu0
      %v477 = vadd.f32 0.0, %v476
      %v478 = vpop.f32.mrf.mxu0
      %479 = vmatprep.mubr.f32.mxu0 0.0
      %480 = vmatmul.mubr.f32.gmra.mxu0 %v299
      %v481 = vpop.f32.mrf.mxu0
      %v482 = vadd.f32 0.0, %v481
      %v483 = vpop.f32.mrf.mxu0
      %484 = vmatprep.mubr.f32.mxu0 0.0
      %485 = vmatmul.mubr.f32.gmra.mxu0 %v300
      %v486 = vpop.f32.mrf.mxu0
      %v487 = vadd.f32 0.0, %v486
      %v488 = vpop.f32.mrf.mxu0
      %489 = vmatprep.mubr.f32.mxu0 0.0
      %490 = vmatmul.mubr.f32.gmra.mxu0 %v301
      %v491 = vpop.f32.mrf.mxu0
      %v492 = vadd.f32 0.0, %v491
      %v493 = vpop.f32.mrf.mxu0
      %494 = vmatprep.mubr.f32.mxu0 0.0
      %495 = vmatmul.mubr.f32.gmra.mxu0 %v302
      %v496 = vpop.f32.mrf.mxu0
      %v497 = vadd.f32 0.0, %v496
      %v498 = vpop.f32.mrf.mxu0
      %499 = vmatprep.mubr.f32.mxu0 0.0
      %500 = vmatmul.mubr.f32.gmra.mxu0 %v303
      %v501 = vpop.f32.mrf.mxu0
      %v502 = vadd.f32 0.0, %v501
      %v503 = vpop.f32.mrf.mxu0
      %504 = vmatprep.mubr.f32.mxu0 0.0
      %505 = vmatmul.mubr.f32.gmra.mxu0 %v304
      %v506 = vpop.f32.mrf.mxu0
      %v507 = vadd.f32 0.0, %v506
      %v508 = vpop.f32.mrf.mxu0
      %509 = vmatprep.mubr.f32.mxu0 0.0
      %510 = vmatmul.mubr.f32.gmra.mxu0 %v305
      %v511 = vpop.f32.mrf.mxu0
      %v512 = vadd.f32 0.0, %v511
      %v513 = vpop.f32.mrf.mxu0
      %514 = vmatprep.mubr.f32.mxu0 0.0
      %515 = vmatmul.mubr.f32.gmra.mxu0 %v306
      %v516 = vpop.f32.mrf.mxu0
      %v517 = vadd.f32 0.0, %v516
      %v518 = vpop.f32.mrf.mxu0
      %519 = vmatprep.mubr.f32.mxu0 0.0
      %520 = vmatmul.mubr.f32.gmra.mxu0 %v307
      %v521 = vpop.f32.mrf.mxu0
      %v522 = vadd.f32 0.0, %v521
      %v523 = vpop.f32.mrf.mxu0
      %524 = vmatprep.mubr.f32.mxu0 0.0
      %525 = vmatmul.mubr.f32.gmra.mxu0 %v308
      %v526 = vpop.f32.mrf.mxu0
      %v527 = vadd.f32 0.0, %v526
      %v528 = vpop.f32.mrf.mxu0
      %529 = vmatprep.mubr.f32.mxu0 0.0
      %530 = vmatmul.mubr.f32.gmra.mxu0 %v309
      %v531 = vpop.f32.mrf.mxu0
      %v532 = vadd.f32 0.0, %v531
      %v533 = vpop.f32.mrf.mxu0
      %534 = vmatprep.mubr.f32.mxu0 0.0
      %535 = vmatmul.mubr.f32.gmra.mxu0 %v310
      %v536 = vpop.f32.mrf.mxu0
      %v537 = vadd.f32 0.0, %v536
      %v538 = vpop.f32.mrf.mxu0
      %539 = vmatprep.mubr.f32.mxu0 0.0
      %540 = vmatmul.mubr.f32.gmra.mxu0 %v311
      %v541 = vpop.f32.mrf.mxu0
      %v542 = vadd.f32 0.0, %v541
      %v543 = vpop.f32.mrf.mxu0
      %544 = vmatprep.mubr.f32.mxu0 0.0
      %545 = vmatmul.mubr.f32.gmra.mxu0 %v312
      %v546 = vpop.f32.mrf.mxu0
      %v547 = vadd.f32 0.0, %v546
      %v548 = vpop.f32.mrf.mxu0
      %549 = vmatprep.mubr.f32.mxu0 0.0
      %550 = vmatmul.mubr.f32.gmra.mxu0 %v313
      %v551 = vpop.f32.mrf.mxu0
      %v552 = vadd.f32 0.0, %v551
      %v553 = vpop.f32.mrf.mxu0
      %554 = vdwg.mxu0
      %v555 = vld [vmem:[%s2] sm:$0x1]
      %v557 = vlaneseq
      %v558 = vshrl.u32 %v557, 7
      %v559 = vsub.s32 0, %v558
      %v560 = vrot.slane %v555, %v559
      %v562 = vmul.f32 %v397, %v560
      %v563 = vmul.f32 %v402, %v560
      %v564 = vmul.f32 %v407, %v560
      %v565 = vmul.f32 %v412, %v560
      %v566 = vmul.f32 %v417, %v560
      %v567 = vmul.f32 %v422, %v560
      %v568 = vmul.f32 %v427, %v560
      %v569 = vmul.f32 %v432, %v560
      %v570 = vmul.f32 %v437, %v560
      %v571 = vmul.f32 %v442, %v560
      %v572 = vmul.f32 %v447, %v560
      %v573 = vmul.f32 %v452, %v560
      %v574 = vmul.f32 %v457, %v560
      %v575 = vmul.f32 %v462, %v560
      %v576 = vmul.f32 %v467, %v560
      %v577 = vmul.f32 %v472, %v560
      %v578 = vmul.f32 %v477, %v560
      %v579 = vmul.f32 %v482, %v560
      %v580 = vmul.f32 %v487, %v560
      %v581 = vmul.f32 %v492, %v560
      %v582 = vmul.f32 %v497, %v560
      %v583 = vmul.f32 %v502, %v560
      %v584 = vmul.f32 %v507, %v560
      %v585 = vmul.f32 %v512, %v560
      %v586 = vmul.f32 %v517, %v560
      %v587 = vmul.f32 %v522, %v560
      %v588 = vmul.f32 %v527, %v560
      %v589 = vmul.f32 %v532, %v560
      %v590 = vmul.f32 %v537, %v560
      %v591 = vmul.f32 %v542, %v560
      %v592 = vmul.f32 %v547, %v560
      %v593 = vmul.f32 %v552, %v560
      %v594 = vld [vmem:[%s3] sm:$0x1]
      %v596 = vlaneseq
      %v597 = vshrl.u32 %v596, 7
      %v598 = vsub.s32 0, %v597
      %v599 = vrot.slane %v594, %v598
      %v601 = vadd.f32 %v562, %v599
      %v602 = vadd.f32 %v563, %v599
      %v603 = vadd.f32 %v564, %v599
      %v604 = vadd.f32 %v565, %v599
      %v605 = vadd.f32 %v566, %v599
      %v606 = vadd.f32 %v567, %v599
      %v607 = vadd.f32 %v568, %v599
      %v608 = vadd.f32 %v569, %v599
      %v609 = vadd.f32 %v570, %v599
      %v610 = vadd.f32 %v571, %v599
      %v611 = vadd.f32 %v572, %v599
      %v612 = vadd.f32 %v573, %v599
      %v613 = vadd.f32 %v574, %v599
      %v614 = vadd.f32 %v575, %v599
      %v615 = vadd.f32 %v576, %v599
      %v616 = vadd.f32 %v577, %v599
      %v617 = vadd.f32 %v578, %v599
      %v618 = vadd.f32 %v579, %v599
      %v619 = vadd.f32 %v580, %v599
      %v620 = vadd.f32 %v581, %v599
      %v621 = vadd.f32 %v582, %v599
      %v622 = vadd.f32 %v583, %v599
      %v623 = vadd.f32 %v584, %v599
      %v624 = vadd.f32 %v585, %v599
      %v625 = vadd.f32 %v586, %v599
      %v626 = vadd.f32 %v587, %v599
      %v627 = vadd.f32 %v588, %v599
      %v628 = vadd.f32 %v589, %v599
      %v629 = vadd.f32 %v590, %v599
      %v630 = vadd.f32 %v591, %v599
      %v631 = vadd.f32 %v592, %v599
      %v632 = vadd.f32 %v593, %v599
      %v633 = vmax.f32 %v601, 0.0
      %v634 = vmax.f32 %v602, 0.0
      %v635 = vmax.f32 %v603, 0.0
      %v636 = vmax.f32 %v604, 0.0
      %v637 = vmax.f32 %v605, 0.0
      %v638 = vmax.f32 %v606, 0.0
      %v639 = vmax.f32 %v607, 0.0
      %v640 = vmax.f32 %v608, 0.0
      %v641 = vmax.f32 %v609, 0.0
      %v642 = vmax.f32 %v610, 0.0
      %v643 = vmax.f32 %v611, 0.0
      %v644 = vmax.f32 %v612, 0.0
      %v645 = vmax.f32 %v613, 0.0
      %v646 = vmax.f32 %v614, 0.0
      %v647 = vmax.f32 %v615, 0.0
      %v648 = vmax.f32 %v616, 0.0
      %v649 = vmax.f32 %v617, 0.0
      %v650 = vmax.f32 %v618, 0.0
      %v651 = vmax.f32 %v619, 0.0
      %v652 = vmax.f32 %v620, 0.0
      %v653 = vmax.f32 %v621, 0.0
      %v654 = vmax.f32 %v622, 0.0
      %v655 = vmax.f32 %v623, 0.0
      %v656 = vmax.f32 %v624, 0.0
      %v657 = vmax.f32 %v625, 0.0
      %v658 = vmax.f32 %v626, 0.0
      %v659 = vmax.f32 %v627, 0.0
      %v660 = vmax.f32 %v628, 0.0
      %v661 = vmax.f32 %v629, 0.0
      %v662 = vmax.f32 %v630, 0.0
      %v663 = vmax.f32 %v631, 0.0
      %v664 = vmax.f32 %v632, 0.0
      %v665 = vld [vmem:[%s4] sm:$0xff]
      %v666 = vld [vmem:[%s4 + $0x8] sm:$0xff]
      %v667 = vld [vmem:[%s4 + $0x10] sm:$0xff]
      %v668 = vld [vmem:[%s4 + $0x18] sm:$0xff]
      %v669 = vld [vmem:[%s4 + $0x20] sm:$0xff]
      %v670 = vld [vmem:[%s4 + $0x28] sm:$0xff]
      %v671 = vld [vmem:[%s4 + $0x30] sm:$0xff]
      %v672 = vld [vmem:[%s4 + $0x38] sm:$0xff]
      %v673 = vld [vmem:[%s4 + $0x40] sm:$0xff]
      %v674 = vld [vmem:[%s4 + $0x48] sm:$0xff]
      %v675 = vld [vmem:[%s4 + $0x50] sm:$0xff]
      %v676 = vld [vmem:[%s4 + $0x58] sm:$0xff]
      %v677 = vld [vmem:[%s4 + $0x60] sm:$0xff]
      %v678 = vld [vmem:[%s4 + $0x68] sm:$0xff]
      %v679 = vld [vmem:[%s4 + $0x70] sm:$0xff]
      %v680 = vld [vmem:[%s4 + $0x78] sm:$0xff]
      %681 = vmatprep.subr.mxu0 0.0
      %682 = vmatpush1.msra.mxu0 %v680
      %683 = vmatprep.subr.mxu0 0.0
      %684 = vmatpush1.msra.mxu0 %v679
      %685 = vmatprep.subr.mxu0 0.0
      %686 = vmatpush1.msra.mxu0 %v678
      %687 = vmatprep.subr.mxu0 0.0
      %688 = vmatpush1.msra.mxu0 %v677
      %689 = vmatprep.subr.mxu0 0.0
      %690 = vmatpush1.msra.mxu0 %v676
      %691 = vmatprep.subr.mxu0 0.0
      %692 = vmatpush1.msra.mxu0 %v675
      %693 = vmatprep.subr.mxu0 0.0
      %694 = vmatpush1.msra.mxu0 %v674
      %695 = vmatprep.subr.mxu0 0.0
      %696 = vmatpush1.msra.mxu0 %v673
      %697 = vmatprep.subr.mxu0 0.0
      %698 = vmatpush1.msra.mxu0 %v672
      %699 = vmatprep.subr.mxu0 0.0
      %700 = vmatpush1.msra.mxu0 %v671
      %701 = vmatprep.subr.mxu0 0.0
      %702 = vmatpush1.msra.mxu0 %v670
      %703 = vmatprep.subr.mxu0 0.0
      %704 = vmatpush1.msra.mxu0 %v669
      %705 = vmatprep.subr.mxu0 0.0
      %706 = vmatpush1.msra.mxu0 %v668
      %707 = vmatprep.subr.mxu0 0.0
      %708 = vmatpush1.msra.mxu0 %v667
      %709 = vmatprep.subr.mxu0 0.0
      %710 = vmatpush1.msra.mxu0 %v666
      %711 = vmatprep.subr.mxu0 0.0
      %712 = vmatpush1.msra.mxu0 %v665
      %713 = vmatprep.subr.mxu0 0.0
      %714 = vmatpush2.msra.mxu0 0.0
      %715 = vmatprep.subr.mxu0 0.0
      %716 = vmatpush2.msra.mxu0 0.0
      %717 = vmatprep.subr.mxu0 0.0
      %718 = vmatpush2.msra.mxu0 0.0
      %719 = vmatprep.subr.mxu0 0.0
      %720 = vmatpush2.msra.mxu0 0.0
      %721 = vmatprep.subr.mxu0 0.0
      %722 = vmatpush2.msra.mxu0 0.0
      %723 = vmatprep.subr.mxu0 0.0
      %724 = vmatpush2.msra.mxu0 0.0
      %725 = vmatprep.subr.mxu0 0.0
      %726 = vmatpush2.msra.mxu0 0.0
      %727 = vmatprep.subr.mxu0 0.0
      %728 = vmatpush2.msra.mxu0 0.0
      %729 = vmatprep.subr.mxu0 0.0
      %730 = vmatpush2.msra.mxu0 0.0
      %731 = vmatprep.subr.mxu0 0.0
      %732 = vmatpush2.msra.mxu0 0.0
      %733 = vmatprep.subr.mxu0 0.0
      %734 = vmatpush2.msra.mxu0 0.0
      %735 = vmatprep.subr.mxu0 0.0
      %736 = vmatpush2.msra.mxu0 0.0
      %737 = vmatprep.subr.mxu0 0.0
      %738 = vmatpush2.msra.mxu0 0.0
      %739 = vmatprep.subr.mxu0 0.0
      %740 = vmatpush2.msra.mxu0 0.0
      %741 = vmatprep.subr.mxu0 0.0
      %742 = vmatpush2.msra.mxu0 0.0
      %743 = vmatprep.subr.mxu0 0.0
      %744 = vmatpush2.msra.mxu0 0.0
      %745 = vmatprep.mubr.f32.mxu0 0.0
      %746 = vmatmul.mubr.f32.gmra.mxu0 %v633
      %v747 = vpop.f32.mrf.mxu0
      %v748 = vadd.f32 0.0, %v747
      %v749 = vpop.f32.mrf.mxu0
      %750 = vmatprep.mubr.f32.mxu0 0.0
      %751 = vmatmul.mubr.f32.gmra.mxu0 %v634
      %v752 = vpop.f32.mrf.mxu0
      %v753 = vadd.f32 0.0, %v752
      %v754 = vpop.f32.mrf.mxu0
      %755 = vmatprep.mubr.f32.mxu0 0.0
      %756 = vmatmul.mubr.f32.gmra.mxu0 %v635
      %v757 = vpop.f32.mrf.mxu0
      %v758 = vadd.f32 0.0, %v757
      %v759 = vpop.f32.mrf.mxu0
      %760 = vmatprep.mubr.f32.mxu0 0.0
      %761 = vmatmul.mubr.f32.gmra.mxu0 %v636
      %v762 = vpop.f32.mrf.mxu0
      %v763 = vadd.f32 0.0, %v762
      %v764 = vpop.f32.mrf.mxu0
      %765 = vmatprep.mubr.f32.mxu0 0.0
      %766 = vmatmul.mubr.f32.gmra.mxu0 %v637
      %v767 = vpop.f32.mrf.mxu0
      %v768 = vadd.f32 0.0, %v767
      %v769 = vpop.f32.mrf.mxu0
      %770 = vmatprep.mubr.f32.mxu0 0.0
      %771 = vmatmul.mubr.f32.gmra.mxu0 %v638
      %v772 = vpop.f32.mrf.mxu0
      %v773 = vadd.f32 0.0, %v772
      %v774 = vpop.f32.mrf.mxu0
      %775 = vmatprep.mubr.f32.mxu0 0.0
      %776 = vmatmul.mubr.f32.gmra.mxu0 %v639
      %v777 = vpop.f32.mrf.mxu0
      %v778 = vadd.f32 0.0, %v777
      %v779 = vpop.f32.mrf.mxu0
      %780 = vmatprep.mubr.f32.mxu0 0.0
      %781 = vmatmul.mubr.f32.gmra.mxu0 %v640
      %v782 = vpop.f32.mrf.mxu0
      %v783 = vadd.f32 0.0, %v782
      %v784 = vpop.f32.mrf.mxu0
      %785 = vmatprep.mubr.f32.mxu0 0.0
      %786 = vmatmul.mubr.f32.gmra.mxu0 %v641
      %v787 = vpop.f32.mrf.mxu0
      %v788 = vadd.f32 0.0, %v787
      %v789 = vpop.f32.mrf.mxu0
      %790 = vmatprep.mubr.f32.mxu0 0.0
      %791 = vmatmul.mubr.f32.gmra.mxu0 %v642
      %v792 = vpop.f32.mrf.mxu0
      %v793 = vadd.f32 0.0, %v792
      %v794 = vpop.f32.mrf.mxu0
      %795 = vmatprep.mubr.f32.mxu0 0.0
      %796 = vmatmul.mubr.f32.gmra.mxu0 %v643
      %v797 = vpop.f32.mrf.mxu0
      %v798 = vadd.f32 0.0, %v797
      %v799 = vpop.f32.mrf.mxu0
      %800 = vmatprep.mubr.f32.mxu0 0.0
      %801 = vmatmul.mubr.f32.gmra.mxu0 %v644
      %v802 = vpop.f32.mrf.mxu0
      %v803 = vadd.f32 0.0, %v802
      %v804 = vpop.f32.mrf.mxu0
      %805 = vmatprep.mubr.f32.mxu0 0.0
      %806 = vmatmul.mubr.f32.gmra.mxu0 %v645
      %v807 = vpop.f32.mrf.mxu0
      %v808 = vadd.f32 0.0, %v807
      %v809 = vpop.f32.mrf.mxu0
      %810 = vmatprep.mubr.f32.mxu0 0.0
      %811 = vmatmul.mubr.f32.gmra.mxu0 %v646
      %v812 = vpop.f32.mrf.mxu0
      %v813 = vadd.f32 0.0, %v812
      %v814 = vpop.f32.mrf.mxu0
      %815 = vmatprep.mubr.f32.mxu0 0.0
      %816 = vmatmul.mubr.f32.gmra.mxu0 %v647
      %v817 = vpop.f32.mrf.mxu0
      %v818 = vadd.f32 0.0, %v817
      %v819 = vpop.f32.mrf.mxu0
      %820 = vmatprep.mubr.f32.mxu0 0.0
      %821 = vmatmul.mubr.f32.gmra.mxu0 %v648
      %v822 = vpop.f32.mrf.mxu0
      %v823 = vadd.f32 0.0, %v822
      %v824 = vpop.f32.mrf.mxu0
      %825 = vmatprep.mubr.f32.mxu0 0.0
      %826 = vmatmul.mubr.f32.gmra.mxu0 %v649
      %v827 = vpop.f32.mrf.mxu0
      %v828 = vadd.f32 0.0, %v827
      %v829 = vpop.f32.mrf.mxu0
      %830 = vmatprep.mubr.f32.mxu0 0.0
      %831 = vmatmul.mubr.f32.gmra.mxu0 %v650
      %v832 = vpop.f32.mrf.mxu0
      %v833 = vadd.f32 0.0, %v832
      %v834 = vpop.f32.mrf.mxu0
      %835 = vmatprep.mubr.f32.mxu0 0.0
      %836 = vmatmul.mubr.f32.gmra.mxu0 %v651
      %v837 = vpop.f32.mrf.mxu0
      %v838 = vadd.f32 0.0, %v837
      %v839 = vpop.f32.mrf.mxu0
      %840 = vmatprep.mubr.f32.mxu0 0.0
      %841 = vmatmul.mubr.f32.gmra.mxu0 %v652
      %v842 = vpop.f32.mrf.mxu0
      %v843 = vadd.f32 0.0, %v842
      %v844 = vpop.f32.mrf.mxu0
      %845 = vmatprep.mubr.f32.mxu0 0.0
      %846 = vmatmul.mubr.f32.gmra.mxu0 %v653
      %v847 = vpop.f32.mrf.mxu0
      %v848 = vadd.f32 0.0, %v847
      %v849 = vpop.f32.mrf.mxu0
      %850 = vmatprep.mubr.f32.mxu0 0.0
      %851 = vmatmul.mubr.f32.gmra.mxu0 %v654
      %v852 = vpop.f32.mrf.mxu0
      %v853 = vadd.f32 0.0, %v852
      %v854 = vpop.f32.mrf.mxu0
      %855 = vmatprep.mubr.f32.mxu0 0.0
      %856 = vmatmul.mubr.f32.gmra.mxu0 %v655
      %v857 = vpop.f32.mrf.mxu0
      %v858 = vadd.f32 0.0, %v857
      %v859 = vpop.f32.mrf.mxu0
      %860 = vmatprep.mubr.f32.mxu0 0.0
      %861 = vmatmul.mubr.f32.gmra.mxu0 %v656
      %v862 = vpop.f32.mrf.mxu0
      %v863 = vadd.f32 0.0, %v862
      %v864 = vpop.f32.mrf.mxu0
      %865 = vmatprep.mubr.f32.mxu0 0.0
      %866 = vmatmul.mubr.f32.gmra.mxu0 %v657
      %v867 = vpop.f32.mrf.mxu0
      %v868 = vadd.f32 0.0, %v867
      %v869 = vpop.f32.mrf.mxu0
      %870 = vmatprep.mubr.f32.mxu0 0.0
      %871 = vmatmul.mubr.f32.gmra.mxu0 %v658
      %v872 = vpop.f32.mrf.mxu0
      %v873 = vadd.f32 0.0, %v872
      %v874 = vpop.f32.mrf.mxu0
      %875 = vmatprep.mubr.f32.mxu0 0.0
      %876 = vmatmul.mubr.f32.gmra.mxu0 %v659
      %v877 = vpop.f32.mrf.mxu0
      %v878 = vadd.f32 0.0, %v877
      %v879 = vpop.f32.mrf.mxu0
      %880 = vmatprep.mubr.f32.mxu0 0.0
      %881 = vmatmul.mubr.f32.gmra.mxu0 %v660
      %v882 = vpop.f32.mrf.mxu0
      %v883 = vadd.f32 0.0, %v882
      %v884 = vpop.f32.mrf.mxu0
      %885 = vmatprep.mubr.f32.mxu0 0.0
      %886 = vmatmul.mubr.f32.gmra.mxu0 %v661
      %v887 = vpop.f32.mrf.mxu0
      %v888 = vadd.f32 0.0, %v887
      %v889 = vpop.f32.mrf.mxu0
      %890 = vmatprep.mubr.f32.mxu0 0.0
      %891 = vmatmul.mubr.f32.gmra.mxu0 %v662
      %v892 = vpop.f32.mrf.mxu0
      %v893 = vadd.f32 0.0, %v892
      %v894 = vpop.f32.mrf.mxu0
      %895 = vmatprep.mubr.f32.mxu0 0.0
      %896 = vmatmul.mubr.f32.gmra.mxu0 %v663
      %v897 = vpop.f32.mrf.mxu0
      %v898 = vadd.f32 0.0, %v897
      %v899 = vpop.f32.mrf.mxu0
      %900 = vmatprep.mubr.f32.mxu0 0.0
      %901 = vmatmul.mubr.f32.gmra.mxu0 %v664
      %v902 = vpop.f32.mrf.mxu0
      %v903 = vadd.f32 0.0, %v902
      %v904 = vpop.f32.mrf.mxu0
      %905 = vdwg.mxu0
      %v906 = vld [vmem:[%s5] sm:$0x1]
      %v908 = vlaneseq
      %v909 = vshrl.u32 %v908, 7
      %v910 = vsub.s32 0, %v909
      %v911 = vrot.slane %v906, %v910
      %v913 = vmul.f32 %v748, %v911
      %v914 = vmul.f32 %v753, %v911
      %v915 = vmul.f32 %v758, %v911
      %v916 = vmul.f32 %v763, %v911
      %v917 = vmul.f32 %v768, %v911
      %v918 = vmul.f32 %v773, %v911
      %v919 = vmul.f32 %v778, %v911
      %v920 = vmul.f32 %v783, %v911
      %v921 = vmul.f32 %v788, %v911
      %v922 = vmul.f32 %v793, %v911
      %v923 = vmul.f32 %v798, %v911
      %v924 = vmul.f32 %v803, %v911
      %v925 = vmul.f32 %v808, %v911
      %v926 = vmul.f32 %v813, %v911
      %v927 = vmul.f32 %v818, %v911
      %v928 = vmul.f32 %v823, %v911
      %v929 = vmul.f32 %v828, %v911
      %v930 = vmul.f32 %v833, %v911
      %v931 = vmul.f32 %v838, %v911
      %v932 = vmul.f32 %v843, %v911
      %v933 = vmul.f32 %v848, %v911
      %v934 = vmul.f32 %v853, %v911
      %v935 = vmul.f32 %v858, %v911
      %v936 = vmul.f32 %v863, %v911
      %v937 = vmul.f32 %v868, %v911
      %v938 = vmul.f32 %v873, %v911
      %v939 = vmul.f32 %v878, %v911
      %v940 = vmul.f32 %v883, %v911
      %v941 = vmul.f32 %v888, %v911
      %v942 = vmul.f32 %v893, %v911
      %v943 = vmul.f32 %v898, %v911
      %v944 = vmul.f32 %v903, %v911
      %v945 = vld [vmem:[%s6] sm:$0x1]
      %v947 = vlaneseq
      %v948 = vshrl.u32 %v947, 7
      %v949 = vsub.s32 0, %v948
      %v950 = vrot.slane %v945, %v949
      %v952 = vadd.f32 %v913, %v950
      %v953 = vadd.f32 %v914, %v950
      %v954 = vadd.f32 %v915, %v950
      %v955 = vadd.f32 %v916, %v950
      %v956 = vadd.f32 %v917, %v950
      %v957 = vadd.f32 %v918, %v950
      %v958 = vadd.f32 %v919, %v950
      %v959 = vadd.f32 %v920, %v950
      %v960 = vadd.f32 %v921, %v950
      %v961 = vadd.f32 %v922, %v950
      %v962 = vadd.f32 %v923, %v950
      %v963 = vadd.f32 %v924, %v950
      %v964 = vadd.f32 %v925, %v950
      %v965 = vadd.f32 %v926, %v950
      %v966 = vadd.f32 %v927, %v950
      %v967 = vadd.f32 %v928, %v950
      %v968 = vadd.f32 %v929, %v950
      %v969 = vadd.f32 %v930, %v950
      %v970 = vadd.f32 %v931, %v950
      %v971 = vadd.f32 %v932, %v950
      %v972 = vadd.f32 %v933, %v950
      %v973 = vadd.f32 %v934, %v950
      %v974 = vadd.f32 %v935, %v950
      %v975 = vadd.f32 %v936, %v950
      %v976 = vadd.f32 %v937, %v950
      %v977 = vadd.f32 %v938, %v950
      %v978 = vadd.f32 %v939, %v950
      %v979 = vadd.f32 %v940, %v950
      %v980 = vadd.f32 %v941, %v950
      %v981 = vadd.f32 %v942, %v950
      %v982 = vadd.f32 %v943, %v950
      %v983 = vadd.f32 %v944, %v950
      %v984 = vmax.f32 %v952, 0.0
      %v985 = vmax.f32 %v953, 0.0
      %v986 = vmax.f32 %v954, 0.0
      %v987 = vmax.f32 %v955, 0.0
      %v988 = vmax.f32 %v956, 0.0
      %v989 = vmax.f32 %v957, 0.0
      %v990 = vmax.f32 %v958, 0.0
      %v991 = vmax.f32 %v959, 0.0
      %v992 = vmax.f32 %v960, 0.0
      %v993 = vmax.f32 %v961, 0.0
      %v994 = vmax.f32 %v962, 0.0
      %v995 = vmax.f32 %v963, 0.0
      %v996 = vmax.f32 %v964, 0.0
      %v997 = vmax.f32 %v965, 0.0
      %v998 = vmax.f32 %v966, 0.0
      %v999 = vmax.f32 %v967, 0.0
      %v1000 = vmax.f32 %v968, 0.0
      %v1001 = vmax.f32 %v969, 0.0
      %v1002 = vmax.f32 %v970, 0.0
      %v1003 = vmax.f32 %v971, 0.0
      %v1004 = vmax.f32 %v972, 0.0
      %v1005 = vmax.f32 %v973, 0.0
      %v1006 = vmax.f32 %v974, 0.0
      %v1007 = vmax.f32 %v975, 0.0
      %v1008 = vmax.f32 %v976, 0.0
      %v1009 = vmax.f32 %v977, 0.0
      %v1010 = vmax.f32 %v978, 0.0
      %v1011 = vmax.f32 %v979, 0.0
      %v1012 = vmax.f32 %v980, 0.0
      %v1013 = vmax.f32 %v981, 0.0
      %v1014 = vmax.f32 %v982, 0.0
      %v1015 = vmax.f32 %v983, 0.0
      %1016 = vst [vmem:[%s280] sm:$0xff] %v984
      %1017 = vst [vmem:[%s280 + $0x8] sm:$0xff] %v985
      %1018 = vst [vmem:[%s280 + $0x10] sm:$0xff] %v986
      %1019 = vst [vmem:[%s280 + $0x18] sm:$0xff] %v987
      %1020 = vst [vmem:[%s280 + $0x20] sm:$0xff] %v988
      %1021 = vst [vmem:[%s280 + $0x28] sm:$0xff] %v989
      %1022 = vst [vmem:[%s280 + $0x30] sm:$0xff] %v990
      %1023 = vst [vmem:[%s280 + $0x38] sm:$0xff] %v991
      %1024 = vst [vmem:[%s280 + $0x40] sm:$0xff] %v992
      %1025 = vst [vmem:[%s280 + $0x48] sm:$0xff] %v993
      %1026 = vst [vmem:[%s280 + $0x50] sm:$0xff] %v994
      %1027 = vst [vmem:[%s280 + $0x58] sm:$0xff] %v995
      %1028 = vst [vmem:[%s280 + $0x60] sm:$0xff] %v996
      %1029 = vst [vmem:[%s280 + $0x68] sm:$0xff] %v997
      %1030 = vst [vmem:[%s280 + $0x70] sm:$0xff] %v998
      %1031 = vst [vmem:[%s280 + $0x78] sm:$0xff] %v999
      %1032 = vst [vmem:[%s280 + $0x80] sm:$0xff] %v1000
      %1033 = vst [vmem:[%s280 + $0x88] sm:$0xff] %v1001
      %1034 = vst [vmem:[%s280 + $0x90] sm:$0xff] %v1002
      %1035 = vst [vmem:[%s280 + $0x98] sm:$0xff] %v1003
      %1036 = vst [vmem:[%s280 + $0xa0] sm:$0xff] %v1004
      %1037 = vst [vmem:[%s280 + $0xa8] sm:$0xff] %v1005
      %1038 = vst [vmem:[%s280 + $0xb0] sm:$0xff] %v1006
      %1039 = vst [vmem:[%s280 + $0xb8] sm:$0xff] %v1007
      %1040 = vst [vmem:[%s280 + $0xc0] sm:$0xff] %v1008
      %1041 = vst [vmem:[%s280 + $0xc8] sm:$0xff] %v1009
      %1042 = vst [vmem:[%s280 + $0xd0] sm:$0xff] %v1010
      %1043 = vst [vmem:[%s280 + $0xd8] sm:$0xff] %v1011
      %1044 = vst [vmem:[%s280 + $0xe0] sm:$0xff] %v1012
      %1045 = vst [vmem:[%s280 + $0xe8] sm:$0xff] %v1013
      %1046 = vst [vmem:[%s280 + $0xf0] sm:$0xff] %v1014
      %1047 = vst [vmem:[%s280 + $0xf8] sm:$0xff] %v1015
      %s1048 = smul.u32 32, %s18
      %p1049 = scmp.lt.s32.totalorder %s1048, 63
      %s1050 = scalar_select %p1049, %s1048, 63
      %s1051 = smul.addr %s1050, 8
      %s1052 = scalar_lea.vmem %s7, %s1051
      // Predicated region
      $region49: #{object_context_block.6} parent=47 // pred_check
        %p1053 = pneg %p188
      $region50: #{object_context_block.6} parent=47 // pred_check_branch
        %1055 = sbr.rel (%p1053) target = $region52
      $region51: #{object_context_block.6} parent=47 // pred_region
        %s1056 = smul.u32 32, %s18
      $region52: #{object_context_block.6} parent=47 // pred_fallthru
        _
    $region48: #{object_context_block.6} parent=5 // pred_fallthru
      _
    %p1057 = scmp.le.s32.totalorder 2, %s13
    // Predicated region
    $region53: #{object_context_block.6} parent=5 // pred_check
      %p1058 = pneg %p1057
    $region54: #{object_context_block.6} parent=5 // pred_check_branch
      %1060 = sbr.rel (%p1058) target = $region56
    $region55: #{object_context_block.6} parent=5 // pred_region
      %s1061 = ssub.s32 %s13, 2
      // Predicated region
      $region57: #{object_context_block.6} parent=55 // pred_check
        %p1062 = pneg %p194
      $region58: #{object_context_block.6} parent=55 // pred_check_branch
        %1064 = sbr.rel (%p1062) target = $region60
      $region59: #{object_context_block.6} parent=55 // pred_region
        %s1065 = smul.u32 32, %s19
        %p1066 = scmp.lt.s32.totalorder %s1065, 63
        %s1067 = scalar_select %p1066, %s1065, 63
        %s1068 = smul.addr %s1067, 8
        %s1069 = scalar_lea.vmem %s7, %s1068
      $region60: #{object_context_block.6} parent=55 // pred_fallthru
        _
    $region56: #{object_context_block.6} parent=5 // pred_fallthru
      _
  $region6: #{object_context_block.6} parent=0 // loop_footer
    %s17 = sadd.s32 1, %s13
  $region7: #{object_context_block.6} parent=0 // loop_footer_branch
    %12 = sbr.rel target = $region3
  $region8: #{object_context_block.6} parent=0 // loop_exit
    _

// kernel: object_context_block.10
$region0: #{object_context_block.10}
  #allocation0 [shape = 'u32[]', space=smem, size = 0x4, offset = 0x4, fixed_abs, tag = 'smem constant byte address 0x4 - core index']
  #allocation1 [shape = 'u32[144,128]{1,0:T(1,128)}', space=vmem, size = 0x12000, scoped, tag = 'internal scratch']
  %s0 = inlined_call_operand.vmem [shape: f32[512,128], index: 0, kind: input, shape index: {}]
  %s1 = inlined_call_operand.vmem [shape: f32[128,128], index: 1, kind: input, shape index: {}]
  %s2 = inlined_call_operand.vmem [shape: f32[1,128], index: 2, kind: input, shape index: {}]
  %s3 = inlined_call_operand.vmem [shape: f32[1,128], index: 3, kind: input, shape index: {}]
  %s4 = inlined_call_operand.vmem [shape: bf16[512,128], index: 4, kind: output, shape index: {}]
  %s5 = sld [smem:[#allocation0]]
  $region49: #{object_context_block.10} parent=0
    _
  %s7 = ssub.s32 1, %s5
  %s8 = scalar_select 0, %s7, %s5
  loop: start=0, step=1, limit=4
  $region2: #{object_context_block.10} parent=0 // loop_pre_header
    _
  $region3: #{object_context_block.10} parent=0 // loop_header
    %s10 = sphi 0, %s14
    %p11 = scmp.ge.s32.totalorder %s10, 4
    %s20 = sphi 0, %s22
    %s23 = sphi 0, %s20
    %s24 = sphi 0, %s23
    %s40 = sphi 0, %s24
    %s44 = sphi 0, %s44
    %s46 = sphi 0, %s44
    %s47 = sphi 0, %s46
    %s61 = sphi 0, %s47
    %s65 = sphi 0, %s65
    %s67 = sphi 0, %s65
    %s68 = sphi 0, %s67
    %s82 = sphi 0, %s68
    %s86 = sphi 0, %s86
    %s88 = sphi 0, %s86
    %s89 = sphi 0, %s88
    %s103 = sphi 0, %s89
    %s109 = sphi 0, %s111
    %s112 = sphi 0, %s109
    %s113 = sphi 0, %s112
    %s129 = sphi 0, %s113
  $region4: #{object_context_block.10} parent=0 // loop_header_branch
    %13 = sbr.rel (%p11) target = $region8
  $region5: #{object_context_block.10} parent=0 // loop_body
    %s15 = ssub.s32 %s10, 1
    %s16 = ssub.s32 %s10, 2
    %s17 = sadd.s32 %s10, 1
    %s18 = ssub.s32 %s10, %s17
    %p19 = scmp.eq.s32.totalorder %s18, 0
    %s21 = sadd.s32 %s20, 1
    %s22 = scalar_select %p19, %s20, %s21
    %p25 = pneg %p19
    %p26 = scmp.eq.s32.totalorder %s10, 1
    %p27 = por %p25, %p26
    %p28 = scmp.ne.s32.totalorder %s20, %s23
    %p29 = scmp.eq.s32.totalorder %s10, 0
    %p30 = por %p28, %p29
    %p31 = scmp.ne.s32.totalorder %s20, %s23
    %p32 = scmp.eq.s32.totalorder %s15, 1
    %p33 = por %p31, %p32
    %p34 = scmp.ne.s32.totalorder %s23, %s24
    %p35 = scmp.eq.s32.totalorder %s15, 0
    %p36 = por %p34, %p35
    %p37 = scmp.ne.s32.totalorder %s23, %s24
    %p38 = scmp.eq.s32.totalorder %s16, 1
    %p39 = por %p37, %p38
    %p41 = scmp.ne.s32.totalorder %s24, %s40
    %p42 = scmp.eq.s32.totalorder %s16, 0
    %p43 = por %p41, %p42
    %s45 = sadd.s32 %s44, 1
    %p48 = scmp.eq.s32.totalorder %s10, 1
    %p49 = scmp.ne.s32.totalorder %s44, %s46
    %p50 = scmp.eq.s32.totalorder %s10, 0
    %p51 = por %p49, %p50
    %p52 = scmp.ne.s32.totalorder %s44, %s46
    %p53 = scmp.eq.s32.totalorder %s15, 1
    %p54 = por %p52, %p53
    %p55 = scmp.ne.s32.totalorder %s46, %s47
    %p56 = scmp.eq.s32.totalorder %s15, 0
    %p57 = por %p55, %p56
    %p58 = scmp.ne.s32.totalorder %s46, %s47
    %p59 = scmp.eq.s32.totalorder %s16, 1
    %p60 = por %p58, %p59
    %p62 = scmp.ne.s32.totalorder %s47, %s61
    %p63 = scmp.eq.s32.totalorder %s16, 0
    %p64 = por %p62, %p63
    %s66 = sadd.s32 %s65, 1
    %p69 = scmp.eq.s32.totalorder %s10, 1
    %p70 = scmp.ne.s32.totalorder %s65, %s67
    %p71 = scmp.eq.s32.totalorder %s10, 0
    %p72 = por %p70, %p71
    %p73 = scmp.ne.s32.totalorder %s65, %s67
    %p74 = scmp.eq.s32.totalorder %s15, 1
    %p75 = por %p73, %p74
    %p76 = scmp.ne.s32.totalorder %s67, %s68
    %p77 = scmp.eq.s32.totalorder %s15, 0
    %p78 = por %p76, %p77
    %p79 = scmp.ne.s32.totalorder %s67, %s68
    %p80 = scmp.eq.s32.totalorder %s16, 1
    %p81 = por %p79, %p80
    %p83 = scmp.ne.s32.totalorder %s68, %s82
    %p84 = scmp.eq.s32.totalorder %s16, 0
    %p85 = por %p83, %p84
    %s87 = sadd.s32 %s86, 1
    %p90 = scmp.eq.s32.totalorder %s10, 1
    %p91 = scmp.ne.s32.totalorder %s86, %s88
    %p92 = scmp.eq.s32.totalorder %s10, 0
    %p93 = por %p91, %p92
    %p94 = scmp.ne.s32.totalorder %s86, %s88
    %p95 = scmp.eq.s32.totalorder %s15, 1
    %p96 = por %p94, %p95
    %p97 = scmp.ne.s32.totalorder %s88, %s89
    %p98 = scmp.eq.s32.totalorder %s15, 0
    %p99 = por %p97, %p98
    %p100 = scmp.ne.s32.totalorder %s88, %s89
    %p101 = scmp.eq.s32.totalorder %s16, 1
    %p102 = por %p100, %p101
    %p104 = scmp.ne.s32.totalorder %s89, %s103
    %p105 = scmp.eq.s32.totalorder %s16, 0
    %p106 = por %p104, %p105
    %s107 = ssub.s32 %s10, %s17
    %p108 = scmp.eq.s32.totalorder %s107, 0
    %s110 = sadd.s32 %s109, 1
    %s111 = scalar_select %p108, %s109, %s110
    %p114 = pneg %p108
    %p115 = scmp.eq.s32.totalorder %s10, 1
    %p116 = por %p114, %p115
    %p117 = scmp.ne.s32.totalorder %s109, %s112
    %p118 = scmp.eq.s32.totalorder %s10, 0
    %p119 = por %p117, %p118
    %p120 = scmp.ne.s32.totalorder %s109, %s112
    %p121 = scmp.eq.s32.totalorder %s15, 1
    %p122 = por %p120, %p121
    %p123 = scmp.ne.s32.totalorder %s112, %s113
    %p124 = scmp.eq.s32.totalorder %s15, 0
    %p125 = por %p123, %p124
    %p126 = scmp.ne.s32.totalorder %s112, %s113
    %p127 = scmp.eq.s32.totalorder %s16, 1
    %p128 = por %p126, %p127
    %p130 = scmp.ne.s32.totalorder %s113, %s129
    %p131 = scmp.eq.s32.totalorder %s16, 0
    %p132 = por %p130, %p131
    %p133 = scmp.le.s32.totalorder 1, %s10
    %p134 = scmp.lt.s32.totalorder %s10, 3
    %p135 = pnand %p133, %p134
    %p136 = pneg %p135
    // Predicated region
    $region9: #{object_context_block.10} parent=5 // pred_check
      _
    $region10: #{object_context_block.10} parent=5 // pred_check_branch
      %138 = sbr.rel (%p135) target = $region12
    $region11: #{object_context_block.10} parent=5 // pred_region
      %s139 = ssub.s32 %s10, 1
      // Predicated region
      $region13: #{object_context_block.10} parent=11 // pred_check
        %p140 = pneg %p57
      $region14: #{object_context_block.10} parent=11 // pred_check_branch
        %142 = sbr.rel (%p140) target = $region16
      $region15: #{object_context_block.10} parent=11 // pred_region
        _
      $region16: #{object_context_block.10} parent=11 // pred_fallthru
        _
      // Predicated region
      $region17: #{object_context_block.10} parent=11 // pred_check
        %p143 = pneg %p78
      $region18: #{object_context_block.10} parent=11 // pred_check_branch
        %145 = sbr.rel (%p143) target = $region20
      $region19: #{object_context_block.10} parent=11 // pred_region
        _
      $region20: #{object_context_block.10} parent=11 // pred_fallthru
        _
      // Predicated region
      $region21: #{object_context_block.10} parent=11 // pred_check
        %p146 = pneg %p99
      $region22: #{object_context_block.10} parent=11 // pred_check_branch
        %148 = sbr.rel (%p146) target = $region24
      $region23: #{object_context_block.10} parent=11 // pred_region
        _
      $region24: #{object_context_block.10} parent=11 // pred_fallthru
        _
    $region12: #{object_context_block.10} parent=5 // pred_fallthru
      _
    %p149 = scmp.lt.s32.totalorder %s10, 2
    // Predicated region
    $region25: #{object_context_block.10} parent=5 // pred_check
      %p150 = pneg %p149
    $region26: #{object_context_block.10} parent=5 // pred_check_branch
      %152 = sbr.rel (%p150) target = $region28
    $region27: #{object_context_block.10} parent=5 // pred_region
      // Predicated region
      $region29: #{object_context_block.10} parent=27 // pred_check
        %p153 = pneg %p30
      $region30: #{object_context_block.10} parent=27 // pred_check_branch
        %155 = sbr.rel (%p153) target = $region32
      $region31: #{object_context_block.10} parent=27 // pred_region
        %s156 = smul.u32 32, %s10
        %p157 = scmp.lt.s32.totalorder %s156, 63
        %s158 = scalar_select %p157, %s156, 63
        %s159 = smul.addr %s158, 8
        %s160 = scalar_lea.vmem %s0, %s159
        %s161 = smul.u32 32, %s10
      $region32: #{object_context_block.10} parent=27 // pred_fallthru
        _
    $region28: #{object_context_block.10} parent=5 // pred_fallthru
      _
    %p162 = scmp.le.s32.totalorder 1, %s10
    %p163 = scmp.lt.s32.totalorder %s10, 3
    %p164 = pnand %p162, %p163
    %p165 = pneg %p164
    // Predicated region
    $region33: #{object_context_block.10} parent=5 // pred_check
      _
    $region34: #{object_context_block.10} parent=5 // pred_check_branch
      %167 = sbr.rel (%p164) target = $region36
    $region35: #{object_context_block.10} parent=5 // pred_region
      %s168 = ssub.s32 %s10, 1
      %s169 = smul.u32 32, %s15
      %p170 = scmp.lt.s32.totalorder %s169, 63
      %s171 = scalar_select %p170, %s169, 63
      %s172 = smul.addr %s171, 8
      %s173 = scalar_lea.vmem %s0, %s172
      %p174 = pneg %p36
      %p175 = pneg %p33
      %p176 = pneg %p57
      %p177 = pneg %p54
      %p178 = pneg %p78
      %p179 = pneg %p75
      %p180 = pneg %p99
      %p181 = pneg %p96
      %p182 = pneg %p125
      %p183 = pneg %p122
      %s184 = smul.u32 32, %s15
      %p185 = scmp.lt.s32.totalorder %s184, 63
      %s186 = scalar_select %p185, %s184, 63
      %s187 = smul.addr %s186, 4
      %s188 = scalar_lea.vmem %s4, %s187
      %s189 = smul.u32 32, %s15
      %p190 = scmp.lt.s32.totalorder %s189, 63
      %s191 = scalar_select %p190, %s189, 63
      %s192 = smul.addr %s191, 8
      %s193 = scalar_lea.vmem %s0, %s192
      %s194 = smul.u32 32, %s15
      %s195 = smul.u32 32, %s15
      %p196 = scmp.lt.s32.totalorder %s195, 63
      %s197 = scalar_select %p196, %s195, 63
      %s198 = smul.addr %s197, 4
      %s199 = scalar_lea.vmem %s4, %s198
      %s200 = smul.u32 32, %s15
      %v201 = vld [vmem:[%s193] sm:$0xff]
      %v202 = vld [vmem:[%s193 + $0x8] sm:$0xff]
      %v203 = vld [vmem:[%s193 + $0x10] sm:$0xff]
      %v204 = vld [vmem:[%s193 + $0x18] sm:$0xff]
      %v205 = vld [vmem:[%s193 + $0x20] sm:$0xff]
      %v206 = vld [vmem:[%s193 + $0x28] sm:$0xff]
      %v207 = vld [vmem:[%s193 + $0x30] sm:$0xff]
      %v208 = vld [vmem:[%s193 + $0x38] sm:$0xff]
      %v209 = vld [vmem:[%s193 + $0x40] sm:$0xff]
      %v210 = vld [vmem:[%s193 + $0x48] sm:$0xff]
      %v211 = vld [vmem:[%s193 + $0x50] sm:$0xff]
      %v212 = vld [vmem:[%s193 + $0x58] sm:$0xff]
      %v213 = vld [vmem:[%s193 + $0x60] sm:$0xff]
      %v214 = vld [vmem:[%s193 + $0x68] sm:$0xff]
      %v215 = vld [vmem:[%s193 + $0x70] sm:$0xff]
      %v216 = vld [vmem:[%s193 + $0x78] sm:$0xff]
      %v217 = vld [vmem:[%s193 + $0x80] sm:$0xff]
      %v218 = vld [vmem:[%s193 + $0x88] sm:$0xff]
      %v219 = vld [vmem:[%s193 + $0x90] sm:$0xff]
      %v220 = vld [vmem:[%s193 + $0x98] sm:$0xff]
      %v221 = vld [vmem:[%s193 + $0xa0] sm:$0xff]
      %v222 = vld [vmem:[%s193 + $0xa8] sm:$0xff]
      %v223 = vld [vmem:[%s193 + $0xb0] sm:$0xff]
      %v224 = vld [vmem:[%s193 + $0xb8] sm:$0xff]
      %v225 = vld [vmem:[%s193 + $0xc0] sm:$0xff]
      %v226 = vld [vmem:[%s193 + $0xc8] sm:$0xff]
      %v227 = vld [vmem:[%s193 + $0xd0] sm:$0xff]
      %v228 = vld [vmem:[%s193 + $0xd8] sm:$0xff]
      %v229 = vld [vmem:[%s193 + $0xe0] sm:$0xff]
      %v230 = vld [vmem:[%s193 + $0xe8] sm:$0xff]
      %v231 = vld [vmem:[%s193 + $0xf0] sm:$0xff]
      %v232 = vld [vmem:[%s193 + $0xf8] sm:$0xff]
      %v233 = vld [vmem:[%s1] sm:$0xff]
      %v234 = vld [vmem:[%s1 + $0x8] sm:$0xff]
      %v235 = vld [vmem:[%s1 + $0x10] sm:$0xff]
      %v236 = vld [vmem:[%s1 + $0x18] sm:$0xff]
      %v237 = vld [vmem:[%s1 + $0x20] sm:$0xff]
      %v238 = vld [vmem:[%s1 + $0x28] sm:$0xff]
      %v239 = vld [vmem:[%s1 + $0x30] sm:$0xff]
      %v240 = vld [vmem:[%s1 + $0x38] sm:$0xff]
      %v241 = vld [vmem:[%s1 + $0x40] sm:$0xff]
      %v242 = vld [vmem:[%s1 + $0x48] sm:$0xff]
      %v243 = vld [vmem:[%s1 + $0x50] sm:$0xff]
      %v244 = vld [vmem:[%s1 + $0x58] sm:$0xff]
      %v245 = vld [vmem:[%s1 + $0x60] sm:$0xff]
      %v246 = vld [vmem:[%s1 + $0x68] sm:$0xff]
      %v247 = vld [vmem:[%s1 + $0x70] sm:$0xff]
      %v248 = vld [vmem:[%s1 + $0x78] sm:$0xff]
      %249 = vmatprep.subr.mxu0 0.0
      %250 = vmatpush1.msra.mxu0 %v248
      %251 = vmatprep.subr.mxu0 0.0
      %252 = vmatpush1.msra.mxu0 %v247
      %253 = vmatprep.subr.mxu0 0.0
      %254 = vmatpush1.msra.mxu0 %v246
      %255 = vmatprep.subr.mxu0 0.0
      %256 = vmatpush1.msra.mxu0 %v245
      %257 = vmatprep.subr.mxu0 0.0
      %258 = vmatpush1.msra.mxu0 %v244
      %259 = vmatprep.subr.mxu0 0.0
      %260 = vmatpush1.msra.mxu0 %v243
      %261 = vmatprep.subr.mxu0 0.0
      %262 = vmatpush1.msra.mxu0 %v242
      %263 = vmatprep.subr.mxu0 0.0
      %264 = vmatpush1.msra.mxu0 %v241
      %265 = vmatprep.subr.mxu0 0.0
      %266 = vmatpush1.msra.mxu0 %v240
      %267 = vmatprep.subr.mxu0 0.0
      %268 = vmatpush1.msra.mxu0 %v239
      %269 = vmatprep.subr.mxu0 0.0
      %270 = vmatpush1.msra.mxu0 %v238
      %271 = vmatprep.subr.mxu0 0.0
      %272 = vmatpush1.msra.mxu0 %v237
      %273 = vmatprep.subr.mxu0 0.0
      %274 = vmatpush1.msra.mxu0 %v236
      %275 = vmatprep.subr.mxu0 0.0
      %276 = vmatpush1.msra.mxu0 %v235
      %277 = vmatprep.subr.mxu0 0.0
      %278 = vmatpush1.msra.mxu0 %v234
      %279 = vmatprep.subr.mxu0 0.0
      %280 = vmatpush1.msra.mxu0 %v233
      %281 = vmatprep.subr.mxu0 0.0
      %282 = vmatpush2.msra.mxu0 0.0
      %283 = vmatprep.subr.mxu0 0.0
      %284 = vmatpush2.msra.mxu0 0.0
      %285 = vmatprep.subr.mxu0 0.0
      %286 = vmatpush2.msra.mxu0 0.0
      %287 = vmatprep.subr.mxu0 0.0
      %288 = vmatpush2.msra.mxu0 0.0
      %289 = vmatprep.subr.mxu0 0.0
      %290 = vmatpush2.msra.mxu0 0.0
      %291 = vmatprep.subr.mxu0 0.0
      %292 = vmatpush2.msra.mxu0 0.0
      %293 = vmatprep.subr.mxu0 0.0
      %294 = vmatpush2.msra.mxu0 0.0
      %295 = vmatprep.subr.mxu0 0.0
      %296 = vmatpush2.msra.mxu0 0.0
      %297 = vmatprep.subr.mxu0 0.0
      %298 = vmatpush2.msra.mxu0 0.0
      %299 = vmatprep.subr.mxu0 0.0
      %300 = vmatpush2.msra.mxu0 0.0
      %301 = vmatprep.subr.mxu0 0.0
      %302 = vmatpush2.msra.mxu0 0.0
      %303 = vmatprep.subr.mxu0 0.0
      %304 = vmatpush2.msra.mxu0 0.0
      %305 = vmatprep.subr.mxu0 0.0
      %306 = vmatpush2.msra.mxu0 0.0
      %307 = vmatprep.subr.mxu0 0.0
      %308 = vmatpush2.msra.mxu0 0.0
      %309 = vmatprep.subr.mxu0 0.0
      %310 = vmatpush2.msra.mxu0 0.0
      %311 = vmatprep.subr.mxu0 0.0
      %312 = vmatpush2.msra.mxu0 0.0
      %313 = vmatprep.mubr.f32.mxu0 0.0
      %314 = vmatmul.mubr.f32.gmra.mxu0 %v201
      %v315 = vpop.f32.mrf.mxu0
      %v316 = vadd.f32 0.0, %v315
      %v317 = vpop.f32.mrf.mxu0
      %318 = vmatprep.mubr.f32.mxu0 0.0
      %319 = vmatmul.mubr.f32.gmra.mxu0 %v202
      %v320 = vpop.f32.mrf.mxu0
      %v321 = vadd.f32 0.0, %v320
      %v322 = vpop.f32.mrf.mxu0
      %323 = vmatprep.mubr.f32.mxu0 0.0
      %324 = vmatmul.mubr.f32.gmra.mxu0 %v203
      %v325 = vpop.f32.mrf.mxu0
      %v326 = vadd.f32 0.0, %v325
      %v327 = vpop.f32.mrf.mxu0
      %328 = vmatprep.mubr.f32.mxu0 0.0
      %329 = vmatmul.mubr.f32.gmra.mxu0 %v204
      %v330 = vpop.f32.mrf.mxu0
      %v331 = vadd.f32 0.0, %v330
      %v332 = vpop.f32.mrf.mxu0
      %333 = vmatprep.mubr.f32.mxu0 0.0
      %334 = vmatmul.mubr.f32.gmra.mxu0 %v205
      %v335 = vpop.f32.mrf.mxu0
      %v336 = vadd.f32 0.0, %v335
      %v337 = vpop.f32.mrf.mxu0
      %338 = vmatprep.mubr.f32.mxu0 0.0
      %339 = vmatmul.mubr.f32.gmra.mxu0 %v206
      %v340 = vpop.f32.mrf.mxu0
      %v341 = vadd.f32 0.0, %v340
      %v342 = vpop.f32.mrf.mxu0
      %343 = vmatprep.mubr.f32.mxu0 0.0
      %344 = vmatmul.mubr.f32.gmra.mxu0 %v207
      %v345 = vpop.f32.mrf.mxu0
      %v346 = vadd.f32 0.0, %v345
      %v347 = vpop.f32.mrf.mxu0
      %348 = vmatprep.mubr.f32.mxu0 0.0
      %349 = vmatmul.mubr.f32.gmra.mxu0 %v208
      %v350 = vpop.f32.mrf.mxu0
      %v351 = vadd.f32 0.0, %v350
      %v352 = vpop.f32.mrf.mxu0
      %353 = vmatprep.mubr.f32.mxu0 0.0
      %354 = vmatmul.mubr.f32.gmra.mxu0 %v209
      %v355 = vpop.f32.mrf.mxu0
      %v356 = vadd.f32 0.0, %v355
      %v357 = vpop.f32.mrf.mxu0
      %358 = vmatprep.mubr.f32.mxu0 0.0
      %359 = vmatmul.mubr.f32.gmra.mxu0 %v210
      %v360 = vpop.f32.mrf.mxu0
      %v361 = vadd.f32 0.0, %v360
      %v362 = vpop.f32.mrf.mxu0
      %363 = vmatprep.mubr.f32.mxu0 0.0
      %364 = vmatmul.mubr.f32.gmra.mxu0 %v211
      %v365 = vpop.f32.mrf.mxu0
      %v366 = vadd.f32 0.0, %v365
      %v367 = vpop.f32.mrf.mxu0
      %368 = vmatprep.mubr.f32.mxu0 0.0
      %369 = vmatmul.mubr.f32.gmra.mxu0 %v212
      %v370 = vpop.f32.mrf.mxu0
      %v371 = vadd.f32 0.0, %v370
      %v372 = vpop.f32.mrf.mxu0
      %373 = vmatprep.mubr.f32.mxu0 0.0
      %374 = vmatmul.mubr.f32.gmra.mxu0 %v213
      %v375 = vpop.f32.mrf.mxu0
      %v376 = vadd.f32 0.0, %v375
      %v377 = vpop.f32.mrf.mxu0
      %378 = vmatprep.mubr.f32.mxu0 0.0
      %379 = vmatmul.mubr.f32.gmra.mxu0 %v214
      %v380 = vpop.f32.mrf.mxu0
      %v381 = vadd.f32 0.0, %v380
      %v382 = vpop.f32.mrf.mxu0
      %383 = vmatprep.mubr.f32.mxu0 0.0
      %384 = vmatmul.mubr.f32.gmra.mxu0 %v215
      %v385 = vpop.f32.mrf.mxu0
      %v386 = vadd.f32 0.0, %v385
      %v387 = vpop.f32.mrf.mxu0
      %388 = vmatprep.mubr.f32.mxu0 0.0
      %389 = vmatmul.mubr.f32.gmra.mxu0 %v216
      %v390 = vpop.f32.mrf.mxu0
      %v391 = vadd.f32 0.0, %v390
      %v392 = vpop.f32.mrf.mxu0
      %393 = vmatprep.mubr.f32.mxu0 0.0
      %394 = vmatmul.mubr.f32.gmra.mxu0 %v217
      %v395 = vpop.f32.mrf.mxu0
      %v396 = vadd.f32 0.0, %v395
      %v397 = vpop.f32.mrf.mxu0
      %398 = vmatprep.mubr.f32.mxu0 0.0
      %399 = vmatmul.mubr.f32.gmra.mxu0 %v218
      %v400 = vpop.f32.mrf.mxu0
      %v401 = vadd.f32 0.0, %v400
      %v402 = vpop.f32.mrf.mxu0
      %403 = vmatprep.mubr.f32.mxu0 0.0
      %404 = vmatmul.mubr.f32.gmra.mxu0 %v219
      %v405 = vpop.f32.mrf.mxu0
      %v406 = vadd.f32 0.0, %v405
      %v407 = vpop.f32.mrf.mxu0
      %408 = vmatprep.mubr.f32.mxu0 0.0
      %409 = vmatmul.mubr.f32.gmra.mxu0 %v220
      %v410 = vpop.f32.mrf.mxu0
      %v411 = vadd.f32 0.0, %v410
      %v412 = vpop.f32.mrf.mxu0
      %413 = vmatprep.mubr.f32.mxu0 0.0
      %414 = vmatmul.mubr.f32.gmra.mxu0 %v221
      %v415 = vpop.f32.mrf.mxu0
      %v416 = vadd.f32 0.0, %v415
      %v417 = vpop.f32.mrf.mxu0
      %418 = vmatprep.mubr.f32.mxu0 0.0
      %419 = vmatmul.mubr.f32.gmra.mxu0 %v222
      %v420 = vpop.f32.mrf.mxu0
      %v421 = vadd.f32 0.0, %v420
      %v422 = vpop.f32.mrf.mxu0
      %423 = vmatprep.mubr.f32.mxu0 0.0
      %424 = vmatmul.mubr.f32.gmra.mxu0 %v223
      %v425 = vpop.f32.mrf.mxu0
      %v426 = vadd.f32 0.0, %v425
      %v427 = vpop.f32.mrf.mxu0
      %428 = vmatprep.mubr.f32.mxu0 0.0
      %429 = vmatmul.mubr.f32.gmra.mxu0 %v224
      %v430 = vpop.f32.mrf.mxu0
      %v431 = vadd.f32 0.0, %v430
      %v432 = vpop.f32.mrf.mxu0
      %433 = vmatprep.mubr.f32.mxu0 0.0
      %434 = vmatmul.mubr.f32.gmra.mxu0 %v225
      %v435 = vpop.f32.mrf.mxu0
      %v436 = vadd.f32 0.0, %v435
      %v437 = vpop.f32.mrf.mxu0
      %438 = vmatprep.mubr.f32.mxu0 0.0
      %439 = vmatmul.mubr.f32.gmra.mxu0 %v226
      %v440 = vpop.f32.mrf.mxu0
      %v441 = vadd.f32 0.0, %v440
      %v442 = vpop.f32.mrf.mxu0
      %443 = vmatprep.mubr.f32.mxu0 0.0
      %444 = vmatmul.mubr.f32.gmra.mxu0 %v227
      %v445 = vpop.f32.mrf.mxu0
      %v446 = vadd.f32 0.0, %v445
      %v447 = vpop.f32.mrf.mxu0
      %448 = vmatprep.mubr.f32.mxu0 0.0
      %449 = vmatmul.mubr.f32.gmra.mxu0 %v228
      %v450 = vpop.f32.mrf.mxu0
      %v451 = vadd.f32 0.0, %v450
      %v452 = vpop.f32.mrf.mxu0
      %453 = vmatprep.mubr.f32.mxu0 0.0
      %454 = vmatmul.mubr.f32.gmra.mxu0 %v229
      %v455 = vpop.f32.mrf.mxu0
      %v456 = vadd.f32 0.0, %v455
      %v457 = vpop.f32.mrf.mxu0
      %458 = vmatprep.mubr.f32.mxu0 0.0
      %459 = vmatmul.mubr.f32.gmra.mxu0 %v230
      %v460 = vpop.f32.mrf.mxu0
      %v461 = vadd.f32 0.0, %v460
      %v462 = vpop.f32.mrf.mxu0
      %463 = vmatprep.mubr.f32.mxu0 0.0
      %464 = vmatmul.mubr.f32.gmra.mxu0 %v231
      %v465 = vpop.f32.mrf.mxu0
      %v466 = vadd.f32 0.0, %v465
      %v467 = vpop.f32.mrf.mxu0
      %468 = vmatprep.mubr.f32.mxu0 0.0
      %469 = vmatmul.mubr.f32.gmra.mxu0 %v232
      %v470 = vpop.f32.mrf.mxu0
      %v471 = vadd.f32 0.0, %v470
      %v472 = vpop.f32.mrf.mxu0
      %473 = vdwg.mxu0
      %v474 = vld [vmem:[%s2] sm:$0x1]
      %v476 = vlaneseq
      %v477 = vshrl.u32 %v476, 7
      %v478 = vsub.s32 0, %v477
      %v479 = vrot.slane %v474, %v478
      %v481 = vmul.f32 %v316, %v479
      %v482 = vmul.f32 %v321, %v479
      %v483 = vmul.f32 %v326, %v479
      %v484 = vmul.f32 %v331, %v479
      %v485 = vmul.f32 %v336, %v479
      %v486 = vmul.f32 %v341, %v479
      %v487 = vmul.f32 %v346, %v479
      %v488 = vmul.f32 %v351, %v479
      %v489 = vmul.f32 %v356, %v479
      %v490 = vmul.f32 %v361, %v479
      %v491 = vmul.f32 %v366, %v479
      %v492 = vmul.f32 %v371, %v479
      %v493 = vmul.f32 %v376, %v479
      %v494 = vmul.f32 %v381, %v479
      %v495 = vmul.f32 %v386, %v479
      %v496 = vmul.f32 %v391, %v479
      %v497 = vmul.f32 %v396, %v479
      %v498 = vmul.f32 %v401, %v479
      %v499 = vmul.f32 %v406, %v479
      %v500 = vmul.f32 %v411, %v479
      %v501 = vmul.f32 %v416, %v479
      %v502 = vmul.f32 %v421, %v479
      %v503 = vmul.f32 %v426, %v479
      %v504 = vmul.f32 %v431, %v479
      %v505 = vmul.f32 %v436, %v479
      %v506 = vmul.f32 %v441, %v479
      %v507 = vmul.f32 %v446, %v479
      %v508 = vmul.f32 %v451, %v479
      %v509 = vmul.f32 %v456, %v479
      %v510 = vmul.f32 %v461, %v479
      %v511 = vmul.f32 %v466, %v479
      %v512 = vmul.f32 %v471, %v479
      %v513 = vld [vmem:[%s3] sm:$0x1]
      %v515 = vlaneseq
      %v516 = vshrl.u32 %v515, 7
      %v517 = vsub.s32 0, %v516
      %v518 = vrot.slane %v513, %v517
      %v520 = vadd.f32 %v481, %v518
      %v521 = vadd.f32 %v482, %v518
      %v522 = vadd.f32 %v483, %v518
      %v523 = vadd.f32 %v484, %v518
      %v524 = vadd.f32 %v485, %v518
      %v525 = vadd.f32 %v486, %v518
      %v526 = vadd.f32 %v487, %v518
      %v527 = vadd.f32 %v488, %v518
      %v528 = vadd.f32 %v489, %v518
      %v529 = vadd.f32 %v490, %v518
      %v530 = vadd.f32 %v491, %v518
      %v531 = vadd.f32 %v492, %v518
      %v532 = vadd.f32 %v493, %v518
      %v533 = vadd.f32 %v494, %v518
      %v534 = vadd.f32 %v495, %v518
      %v535 = vadd.f32 %v496, %v518
      %v536 = vadd.f32 %v497, %v518
      %v537 = vadd.f32 %v498, %v518
      %v538 = vadd.f32 %v499, %v518
      %v539 = vadd.f32 %v500, %v518
      %v540 = vadd.f32 %v501, %v518
      %v541 = vadd.f32 %v502, %v518
      %v542 = vadd.f32 %v503, %v518
      %v543 = vadd.f32 %v504, %v518
      %v544 = vadd.f32 %v505, %v518
      %v545 = vadd.f32 %v506, %v518
      %v546 = vadd.f32 %v507, %v518
      %v547 = vadd.f32 %v508, %v518
      %v548 = vadd.f32 %v509, %v518
      %v549 = vadd.f32 %v510, %v518
      %v550 = vadd.f32 %v511, %v518
      %v551 = vadd.f32 %v512, %v518
      %v552 = vmax.f32 %v520, 0.0
      %v553 = vmax.f32 %v521, 0.0
      %v554 = vmax.f32 %v522, 0.0
      %v555 = vmax.f32 %v523, 0.0
      %v556 = vmax.f32 %v524, 0.0
      %v557 = vmax.f32 %v525, 0.0
      %v558 = vmax.f32 %v526, 0.0
      %v559 = vmax.f32 %v527, 0.0
      %v560 = vmax.f32 %v528, 0.0
      %v561 = vmax.f32 %v529, 0.0
      %v562 = vmax.f32 %v530, 0.0
      %v563 = vmax.f32 %v531, 0.0
      %v564 = vmax.f32 %v532, 0.0
      %v565 = vmax.f32 %v533, 0.0
      %v566 = vmax.f32 %v534, 0.0
      %v567 = vmax.f32 %v535, 0.0
      %v568 = vmax.f32 %v536, 0.0
      %v569 = vmax.f32 %v537, 0.0
      %v570 = vmax.f32 %v538, 0.0
      %v571 = vmax.f32 %v539, 0.0
      %v572 = vmax.f32 %v540, 0.0
      %v573 = vmax.f32 %v541, 0.0
      %v574 = vmax.f32 %v542, 0.0
      %v575 = vmax.f32 %v543, 0.0
      %v576 = vmax.f32 %v544, 0.0
      %v577 = vmax.f32 %v545, 0.0
      %v578 = vmax.f32 %v546, 0.0
      %v579 = vmax.f32 %v547, 0.0
      %v580 = vmax.f32 %v548, 0.0
      %v581 = vmax.f32 %v549, 0.0
      %v582 = vmax.f32 %v550, 0.0
      %v583 = vmax.f32 %v551, 0.0
      %v584 = vpack.c.bf16 %v553, %v552
      %v585 = vpack.c.bf16 %v555, %v554
      %v586 = vpack.c.bf16 %v557, %v556
      %v587 = vpack.c.bf16 %v559, %v558
      %v588 = vpack.c.bf16 %v561, %v560
      %v589 = vpack.c.bf16 %v563, %v562
      %v590 = vpack.c.bf16 %v565, %v564
      %v591 = vpack.c.bf16 %v567, %v566
      %v592 = vpack.c.bf16 %v569, %v568
      %v593 = vpack.c.bf16 %v571, %v570
      %v594 = vpack.c.bf16 %v573, %v572
      %v595 = vpack.c.bf16 %v575, %v574
      %v596 = vpack.c.bf16 %v577, %v576
      %v597 = vpack.c.bf16 %v579, %v578
      %v598 = vpack.c.bf16 %v581, %v580
      %v599 = vpack.c.bf16 %v583, %v582
      %v616 = vunpack.c.l.b16 %v584
      %v617 = vunpack.c.h.b16 %v584
      %v618 = vunpack.c.l.b16 %v585
      %v619 = vunpack.c.h.b16 %v585
      %v620 = vunpack.c.l.b16 %v586
      %v621 = vunpack.c.h.b16 %v586
      %v622 = vunpack.c.l.b16 %v587
      %v623 = vunpack.c.h.b16 %v587
      %v624 = vunpack.c.l.b16 %v588
      %v625 = vunpack.c.h.b16 %v588
      %v626 = vunpack.c.l.b16 %v589
      %v627 = vunpack.c.h.b16 %v589
      %v628 = vunpack.c.l.b16 %v590
      %v629 = vunpack.c.h.b16 %v590
      %v630 = vunpack.c.l.b16 %v591
      %v631 = vunpack.c.h.b16 %v591
      %v632 = vunpack.c.l.b16 %v592
      %v633 = vunpack.c.h.b16 %v592
      %v634 = vunpack.c.l.b16 %v593
      %v635 = vunpack.c.h.b16 %v593
      %v636 = vunpack.c.l.b16 %v594
      %v637 = vunpack.c.h.b16 %v594
      %v638 = vunpack.c.l.b16 %v595
      %v639 = vunpack.c.h.b16 %v595
      %v640 = vunpack.c.l.b16 %v596
      %v641 = vunpack.c.h.b16 %v596
      %v642 = vunpack.c.l.b16 %v597
      %v643 = vunpack.c.h.b16 %v597
      %v644 = vunpack.c.l.b16 %v598
      %v645 = vunpack.c.h.b16 %v598
      %v646 = vunpack.c.l.b16 %v599
      %v647 = vunpack.c.h.b16 %v599
      %v648 = vpack.c.b16 %v616, %v616
      %v649 = vpack.c.b16 %v617, %v617
      %v650 = vpack.c.b16 %v618, %v618
      %v651 = vpack.c.b16 %v619, %v619
      %v652 = vpack.c.b16 %v620, %v620
      %v653 = vpack.c.b16 %v621, %v621
      %v654 = vpack.c.b16 %v622, %v622
      %v655 = vpack.c.b16 %v623, %v623
      %v656 = vpack.c.b16 %v624, %v624
      %v657 = vpack.c.b16 %v625, %v625
      %v658 = vpack.c.b16 %v626, %v626
      %v659 = vpack.c.b16 %v627, %v627
      %v660 = vpack.c.b16 %v628, %v628
      %v661 = vpack.c.b16 %v629, %v629
      %v662 = vpack.c.b16 %v630, %v630
      %v663 = vpack.c.b16 %v631, %v631
      %v664 = vpack.c.b16 %v632, %v632
      %v665 = vpack.c.b16 %v633, %v633
      %v666 = vpack.c.b16 %v634, %v634
      %v667 = vpack.c.b16 %v635, %v635
      %v668 = vpack.c.b16 %v636, %v636
      %v669 = vpack.c.b16 %v637, %v637
      %v670 = vpack.c.b16 %v638, %v638
      %v671 = vpack.c.b16 %v639, %v639
      %v672 = vpack.c.b16 %v640, %v640
      %v673 = vpack.c.b16 %v641, %v641
      %v674 = vpack.c.b16 %v642, %v642
      %v675 = vpack.c.b16 %v643, %v643
      %v676 = vpack.c.b16 %v644, %v644
      %v677 = vpack.c.b16 %v645, %v645
      %v678 = vpack.c.b16 %v646, %v646
      %v679 = vpack.c.b16 %v647, %v647
      %712 = vst [vmem:[%s199] sm:$0xf] %v648
      %713 = vst [vmem:[%s199 + $0x4] sm:$0xf] %v649
      %714 = vst [vmem:[%s199 + $0x8] sm:$0xf] %v650
      %715 = vst [vmem:[%s199 + $0xc] sm:$0xf] %v651
      %716 = vst [vmem:[%s199 + $0x10] sm:$0xf] %v652
      %717 = vst [vmem:[%s199 + $0x14] sm:$0xf] %v653
      %718 = vst [vmem:[%s199 + $0x18] sm:$0xf] %v654
      %719 = vst [vmem:[%s199 + $0x1c] sm:$0xf] %v655
      %720 = vst [vmem:[%s199 + $0x20] sm:$0xf] %v656
      %721 = vst [vmem:[%s199 + $0x24] sm:$0xf] %v657
      %722 = vst [vmem:[%s199 + $0x28] sm:$0xf] %v658
      %723 = vst [vmem:[%s199 + $0x2c] sm:$0xf] %v659
      %724 = vst [vmem:[%s199 + $0x30] sm:$0xf] %v660
      %725 = vst [vmem:[%s199 + $0x34] sm:$0xf] %v661
      %726 = vst [vmem:[%s199 + $0x38] sm:$0xf] %v662
      %727 = vst [vmem:[%s199 + $0x3c] sm:$0xf] %v663
      %728 = vst [vmem:[%s199 + $0x40] sm:$0xf] %v664
      %729 = vst [vmem:[%s199 + $0x44] sm:$0xf] %v665
      %730 = vst [vmem:[%s199 + $0x48] sm:$0xf] %v666
      %731 = vst [vmem:[%s199 + $0x4c] sm:$0xf] %v667
      %732 = vst [vmem:[%s199 + $0x50] sm:$0xf] %v668
      %733 = vst [vmem:[%s199 + $0x54] sm:$0xf] %v669
      %734 = vst [vmem:[%s199 + $0x58] sm:$0xf] %v670
      %735 = vst [vmem:[%s199 + $0x5c] sm:$0xf] %v671
      %736 = vst [vmem:[%s199 + $0x60] sm:$0xf] %v672
      %737 = vst [vmem:[%s199 + $0x64] sm:$0xf] %v673
      %738 = vst [vmem:[%s199 + $0x68] sm:$0xf] %v674
      %739 = vst [vmem:[%s199 + $0x6c] sm:$0xf] %v675
      %740 = vst [vmem:[%s199 + $0x70] sm:$0xf] %v676
      %741 = vst [vmem:[%s199 + $0x74] sm:$0xf] %v677
      %742 = vst [vmem:[%s199 + $0x78] sm:$0xf] %v678
      %743 = vst [vmem:[%s199 + $0x7c] sm:$0xf] %v679
      %s744 = smul.u32 32, %s15
      %p745 = scmp.lt.s32.totalorder %s744, 63
      %s746 = scalar_select %p745, %s744, 63
      %s747 = smul.addr %s746, 4
      %s748 = scalar_lea.vmem %s4, %s747
      // Predicated region
      $region37: #{object_context_block.10} parent=35 // pred_check
        %p749 = pneg %p122
      $region38: #{object_context_block.10} parent=35 // pred_check_branch
        %751 = sbr.rel (%p749) target = $region40
      $region39: #{object_context_block.10} parent=35 // pred_region
        %s752 = smul.u32 32, %s15
      $region40: #{object_context_block.10} parent=35 // pred_fallthru
        _
    $region36: #{object_context_block.10} parent=5 // pred_fallthru
      _
    %p753 = scmp.le.s32.totalorder 2, %s10
    // Predicated region
    $region41: #{object_context_block.10} parent=5 // pred_check
      %p754 = pneg %p753
    $region42: #{object_context_block.10} parent=5 // pred_check_branch
      %756 = sbr.rel (%p754) target = $region44
    $region43: #{object_context_block.10} parent=5 // pred_region
      %s757 = ssub.s32 %s10, 2
      // Predicated region
      $region45: #{object_context_block.10} parent=43 // pred_check
        %p758 = pneg %p128
      $region46: #{object_context_block.10} parent=43 // pred_check_branch
        %760 = sbr.rel (%p758) target = $region48
      $region47: #{object_context_block.10} parent=43 // pred_region
        %s761 = smul.u32 32, %s16
        %p762 = scmp.lt.s32.totalorder %s761, 63
        %s763 = scalar_select %p762, %s761, 63
        %s764 = smul.addr %s763, 4
        %s765 = scalar_lea.vmem %s4, %s764
      $region48: #{object_context_block.10} parent=43 // pred_fallthru
        _
    $region44: #{object_context_block.10} parent=5 // pred_fallthru
      _
  $region6: #{object_context_block.10} parent=0 // loop_footer
    %s14 = sadd.s32 1, %s10
  $region7: #{object_context_block.10} parent=0 // loop_footer_branch
    %9 = sbr.rel target = $region3
  $region8: #{object_context_block.10} parent=0 // loop_exit
    _

// kernel: object_context_block.11
$region0: #{object_context_block.11}
  #allocation0 [shape = 'u32[]', space=smem, size = 0x4, offset = 0x4, fixed_abs, tag = 'smem constant byte address 0x4 - core index']
  #allocation1 [shape = 'u32[144,128]{1,0:T(1,128)}', space=vmem, size = 0x12000, scoped, tag = 'internal scratch']
  #allocation2 [shape = 'f32[18,18,256]{2,1,0:T(8,128)}', space=vmem, size = 0x6c000, scoped, tag = 'scratch operand']
  %s0 = inlined_call_operand.vmem [shape: bf16[2,16,16,128], index: 0, kind: input, shape index: {}]
  %s1 = inlined_call_operand.vmem [shape: bf16[2,16,16,128], index: 1, kind: input, shape index: {}]
  %s2 = inlined_call_operand.vmem [shape: bf16[3,3,256,128], index: 2, kind: input, shape index: {}]
  %s3 = inlined_call_operand.vmem [shape: f32[1,128], index: 3, kind: input, shape index: {}]
  %s4 = inlined_call_operand.vmem [shape: f32[1,128], index: 4, kind: input, shape index: {}]
  %s5 = inlined_call_operand.hbm [shape: f32[2,16,16,128], index: 5, kind: output, shape index: {}]
  %s6 = sld [smem:[#allocation0]]
  $region53: #{object_context_block.11} parent=0
    _
  %s8 = ssub.s32 1, %s6
  %s9 = scalar_select 0, %s8, %s6
  $region1: #{object_context_block.11} parent=0
    #allocation3 [shape = 'u8[262144]{0}', space=vmem, size = 0x40000, scoped, tag = 'output window, operand 0']
    #allocation4 [shape = 's32[2]{0}', space=sflag, size = 0x8, scoped, tag = 'scoped memory for object_context_block.11']
    %10 = vsyncpa [#allocation4], 0
    %s11 = scalar_lea.sflag [#allocation4], 1
    %12 = vsyncpa %s11, 0
    loop: start=0, step=1, limit=4
    $region2: #{object_context_block.11} parent=1 // loop_pre_header
      _
    $region3: #{object_context_block.11} parent=1 // loop_header
      %s14 = sphi 0, %s18
      %p15 = scmp.ge.s32.totalorder %s14, 4
      %s24 = sphi 0, %s26
      %s27 = sphi 0, %s24
      %s28 = sphi 0, %s27
      %s44 = sphi 0, %s28
      %s50 = sphi 0, %s52
      %s53 = sphi 0, %s50
      %s54 = sphi 0, %s53
      %s70 = sphi 0, %s54
      %s74 = sphi 0, %s74
      %s76 = sphi 0, %s74
      %s77 = sphi 0, %s76
      %s91 = sphi 0, %s77
      %s95 = sphi 0, %s95
      %s97 = sphi 0, %s95
      %s98 = sphi 0, %s97
      %s112 = sphi 0, %s98
      %s116 = sphi 0, %s116
      %s118 = sphi 0, %s116
      %s119 = sphi 0, %s118
      %s133 = sphi 0, %s119
      %s139 = sphi 0, %s141
      %s142 = sphi 0, %s139
      %s143 = sphi 0, %s142
      %s159 = sphi 0, %s143
    $region4: #{object_context_block.11} parent=1 // loop_header_branch
      %17 = sbr.rel (%p15) target = $region8
    $region5: #{object_context_block.11} parent=1 // loop_body
      %s19 = ssub.s32 %s14, 1
      %s20 = ssub.s32 %s14, 2
      %s21 = sadd.s32 %s14, 1
      %s22 = ssub.s32 %s14, %s21
      %p23 = scmp.eq.s32.totalorder %s22, 0
      %s25 = sadd.s32 %s24, 1
      %s26 = scalar_select %p23, %s24, %s25
      %p29 = pneg %p23
      %p30 = scmp.eq.s32.totalorder %s14, 1
      %p31 = por %p29, %p30
      %p32 = scmp.ne.s32.totalorder %s24, %s27
      %p33 = scmp.eq.s32.totalorder %s14, 0
      %p34 = por %p32, %p33
      %p35 = scmp.ne.s32.totalorder %s24, %s27
      %p36 = scmp.eq.s32.totalorder %s19, 1
      %p37 = por %p35, %p36
      %p38 = scmp.ne.s32.totalorder %s27, %s28
      %p39 = scmp.eq.s32.totalorder %s19, 0
      %p40 = por %p38, %p39
      %p41 = scmp.ne.s32.totalorder %s27, %s28
      %p42 = scmp.eq.s32.totalorder %s20, 1
      %p43 = por %p41, %p42
      %p45 = scmp.ne.s32.totalorder %s28, %s44
      %p46 = scmp.eq.s32.totalorder %s20, 0
      %p47 = por %p45, %p46
      %s48 = ssub.s32 %s14, %s21
      %p49 = scmp.eq.s32.totalorder %s48, 0
      %s51 = sadd.s32 %s50, 1
      %s52 = scalar_select %p49, %s50, %s51
      %p55 = pneg %p49
      %p56 = scmp.eq.s32.totalorder %s14, 1
      %p57 = por %p55, %p56
      %p58 = scmp.ne.s32.totalorder %s50, %s53
      %p59 = scmp.eq.s32.totalorder %s14, 0
      %p60 = por %p58, %p59
      %p61 = scmp.ne.s32.totalorder %s50, %s53
      %p62 = scmp.eq.s32.totalorder %s19, 1
      %p63 = por %p61, %p62
      %p64 = scmp.ne.s32.totalorder %s53, %s54
      %p65 = scmp.eq.s32.totalorder %s19, 0
      %p66 = por %p64, %p65
      %p67 = scmp.ne.s32.totalorder %s53, %s54
      %p68 = scmp.eq.s32.totalorder %s20, 1
      %p69 = por %p67, %p68
      %p71 = scmp.ne.s32.totalorder %s54, %s70
      %p72 = scmp.eq.s32.totalorder %s20, 0
      %p73 = por %p71, %p72
      %s75 = sadd.s32 %s74, 1
      %p78 = scmp.eq.s32.totalorder %s14, 1
      %p79 = scmp.ne.s32.totalorder %s74, %s76
      %p80 = scmp.eq.s32.totalorder %s14, 0
      %p81 = por %p79, %p80
      %p82 = scmp.ne.s32.totalorder %s74, %s76
      %p83 = scmp.eq.s32.totalorder %s19, 1
      %p84 = por %p82, %p83
      %p85 = scmp.ne.s32.totalorder %s76, %s77
      %p86 = scmp.eq.s32.totalorder %s19, 0
      %p87 = por %p85, %p86
      %p88 = scmp.ne.s32.totalorder %s76, %s77
      %p89 = scmp.eq.s32.totalorder %s20, 1
      %p90 = por %p88, %p89
      %p92 = scmp.ne.s32.totalorder %s77, %s91
      %p93 = scmp.eq.s32.totalorder %s20, 0
      %p94 = por %p92, %p93
      %s96 = sadd.s32 %s95, 1
      %p99 = scmp.eq.s32.totalorder %s14, 1
      %p100 = scmp.ne.s32.totalorder %s95, %s97
      %p101 = scmp.eq.s32.totalorder %s14, 0
      %p102 = por %p100, %p101
      %p103 = scmp.ne.s32.totalorder %s95, %s97
      %p104 = scmp.eq.s32.totalorder %s19, 1
      %p105 = por %p103, %p104
      %p106 = scmp.ne.s32.totalorder %s97, %s98
      %p107 = scmp.eq.s32.totalorder %s19, 0
      %p108 = por %p106, %p107
      %p109 = scmp.ne.s32.totalorder %s97, %s98
      %p110 = scmp.eq.s32.totalorder %s20, 1
      %p111 = por %p109, %p110
      %p113 = scmp.ne.s32.totalorder %s98, %s112
      %p114 = scmp.eq.s32.totalorder %s20, 0
      %p115 = por %p113, %p114
      %s117 = sadd.s32 %s116, 1
      %p120 = scmp.eq.s32.totalorder %s14, 1
      %p121 = scmp.ne.s32.totalorder %s116, %s118
      %p122 = scmp.eq.s32.totalorder %s14, 0
      %p123 = por %p121, %p122
      %p124 = scmp.ne.s32.totalorder %s116, %s118
      %p125 = scmp.eq.s32.totalorder %s19, 1
      %p126 = por %p124, %p125
      %p127 = scmp.ne.s32.totalorder %s118, %s119
      %p128 = scmp.eq.s32.totalorder %s19, 0
      %p129 = por %p127, %p128
      %p130 = scmp.ne.s32.totalorder %s118, %s119
      %p131 = scmp.eq.s32.totalorder %s20, 1
      %p132 = por %p130, %p131
      %p134 = scmp.ne.s32.totalorder %s119, %s133
      %p135 = scmp.eq.s32.totalorder %s20, 0
      %p136 = por %p134, %p135
      %s137 = ssub.s32 %s14, %s21
      %p138 = scmp.eq.s32.totalorder %s137, 0
      %s140 = sadd.s32 %s139, 1
      %s141 = scalar_select %p138, %s139, %s140
      %p144 = pneg %p138
      %p145 = scmp.eq.s32.totalorder %s14, 1
      %p146 = por %p144, %p145
      %p147 = scmp.ne.s32.totalorder %s139, %s142
      %p148 = scmp.eq.s32.totalorder %s14, 0
      %p149 = por %p147, %p148
      %p150 = scmp.ne.s32.totalorder %s139, %s142
      %p151 = scmp.eq.s32.totalorder %s19, 1
      %p152 = por %p150, %p151
      %p153 = scmp.ne.s32.totalorder %s142, %s143
      %p154 = scmp.eq.s32.totalorder %s19, 0
      %p155 = por %p153, %p154
      %p156 = scmp.ne.s32.totalorder %s142, %s143
      %p157 = scmp.eq.s32.totalorder %s20, 1
      %p158 = por %p156, %p157
      %p160 = scmp.ne.s32.totalorder %s143, %s159
      %p161 = scmp.eq.s32.totalorder %s20, 0
      %p162 = por %p160, %p161
      %p163 = scmp.le.s32.totalorder 1, %s14
      %p164 = scmp.lt.s32.totalorder %s14, 3
      %p165 = pnand %p163, %p164
      %p166 = pneg %p165
      // Predicated region
      $region9: #{object_context_block.11} parent=5 // pred_check
        _
      $region10: #{object_context_block.11} parent=5 // pred_check_branch
        %168 = sbr.rel (%p165) target = $region12
      $region11: #{object_context_block.11} parent=5 // pred_region
        %s169 = ssub.s32 %s14, 1
        // Predicated region
        $region13: #{object_context_block.11} parent=11 // pred_check
          %p170 = pneg %p87
        $region14: #{object_context_block.11} parent=11 // pred_check_branch
          %172 = sbr.rel (%p170) target = $region16
        $region15: #{object_context_block.11} parent=11 // pred_region
          _
        $region16: #{object_context_block.11} parent=11 // pred_fallthru
          _
        // Predicated region
        $region17: #{object_context_block.11} parent=11 // pred_check
          %p173 = pneg %p108
        $region18: #{object_context_block.11} parent=11 // pred_check_branch
          %175 = sbr.rel (%p173) target = $region20
        $region19: #{object_context_block.11} parent=11 // pred_region
          _
        $region20: #{object_context_block.11} parent=11 // pred_fallthru
          _
        // Predicated region
        $region21: #{object_context_block.11} parent=11 // pred_check
          %p176 = pneg %p129
        $region22: #{object_context_block.11} parent=11 // pred_check_branch
          %178 = sbr.rel (%p176) target = $region24
        $region23: #{object_context_block.11} parent=11 // pred_region
          _
        $region24: #{object_context_block.11} parent=11 // pred_fallthru
          _
      $region12: #{object_context_block.11} parent=5 // pred_fallthru
        _
      %p179 = scmp.lt.s32.totalorder %s14, 2
      // Predicated region
      $region25: #{object_context_block.11} parent=5 // pred_check
        %p180 = pneg %p179
      $region26: #{object_context_block.11} parent=5 // pred_check_branch
        %182 = sbr.rel (%p180) target = $region28
      $region27: #{object_context_block.11} parent=5 // pred_region
        // Predicated region
        $region29: #{object_context_block.11} parent=27 // pred_check
          %p183 = pneg %p34
        $region30: #{object_context_block.11} parent=27 // pred_check_branch
          %185 = sbr.rel (%p183) target = $region32
        $region31: #{object_context_block.11} parent=27 // pred_region
          %p186 = scmp.lt.s32.totalorder %s14, 1
          %s187 = scalar_select %p186, %s14, 1
          %s188 = smul.addr %s187, 32
          %s189 = smul.addr %s188, 4
          %s190 = scalar_lea.vmem %s0, %s189
        $region32: #{object_context_block.11} parent=27 // pred_fallthru
          _
        // Predicated region
        $region33: #{object_context_block.11} parent=27 // pred_check
          %p191 = pneg %p60
        $region34: #{object_context_block.11} parent=27 // pred_check_branch
          %193 = sbr.rel (%p191) target = $region36
        $region35: #{object_context_block.11} parent=27 // pred_region
          %p194 = scmp.lt.s32.totalorder %s14, 1
          %s195 = scalar_select %p194, %s14, 1
          %s196 = smul.addr %s195, 32
          %s197 = smul.addr %s196, 4
          %s198 = scalar_lea.vmem %s1, %s197
        $region36: #{object_context_block.11} parent=27 // pred_fallthru
          _
      $region28: #{object_context_block.11} parent=5 // pred_fallthru
        _
      %p199 = scmp.le.s32.totalorder 1, %s14
      %p200 = scmp.lt.s32.totalorder %s14, 3
      %p201 = pnand %p199, %p200
      %p202 = pneg %p201
      // Predicated region
      $region37: #{object_context_block.11} parent=5 // pred_check
        _
      $region38: #{object_context_block.11} parent=5 // pred_check_branch
        %204 = sbr.rel (%p201) target = $region40
      $region39: #{object_context_block.11} parent=5 // pred_region
        %s205 = ssub.s32 %s14, 1
        %p206 = scmp.lt.s32.totalorder %s19, 1
        %s207 = scalar_select %p206, %s19, 1
        %s208 = smul.addr %s207, 32
        %s209 = smul.addr %s208, 4
        %s210 = scalar_lea.vmem %s0, %s209
        %p211 = pneg %p40
        %p212 = pneg %p37
        %p213 = scmp.lt.s32.totalorder %s19, 1
        %s214 = scalar_select %p213, %s19, 1
        %s215 = smul.addr %s214, 32
        %s216 = smul.addr %s215, 4
        %s217 = scalar_lea.vmem %s1, %s216
        %p218 = pneg %p66
        %p219 = pneg %p63
        %p220 = pneg %p87
        %p221 = pneg %p84
        %p222 = pneg %p108
        %p223 = pneg %p105
        %p224 = pneg %p129
        %p225 = pneg %p126
        %p226 = pneg %p155
        %p227 = pneg %p152
        %s228 = sand.u32 %s142, 1
        %s229 = scalar_lea.sflag [#allocation4], %s228
        %s230 = sand.u32 %s142, 1
        %s231 = smul.addr %s230, 256
        %s232 = scalar_lea.vmem [#allocation3], %s231
        %p233 = scmp.lt.s32.totalorder %s19, 1
        %s234 = scalar_select %p233, %s19, 1
        %s235 = smul.addr %s234, 32
        %s236 = smul.addr %s235, 4
        %s237 = scalar_lea.vmem %s0, %s236
        %p238 = scmp.lt.s32.totalorder %s19, 1
        %s239 = scalar_select %p238, %s19, 1
        %s240 = smul.addr %s239, 32
        %s241 = smul.addr %s240, 4
        %s242 = scalar_lea.vmem %s1, %s241
        %244 = vst [vmem:[#allocation2] sm:$0xff] 0.0
        %245 = vst [vmem:[#allocation2 + $0x8] sm:$0xff] 0.0
        %246 = vst [vmem:[#allocation2 + $0x10] sm:$0xff] 0.0
        %247 = vst [vmem:[#allocation2 + $0x18] sm:$0xff] 0.0
        %248 = vst [vmem:[#allocation2 + $0x20] sm:$0x3] 0.0
        %249 = vst [vmem:[#allocation2 + $0x28] sm:$0x3] 0.0
        %250 = vst [vmem:[#allocation2 + $0x30] sm:$0xff] 0.0
        %251 = vst [vmem:[#allocation2 + $0x38] sm:$0xff] 0.0
        %252 = vst [vmem:[#allocation2 + $0x40] sm:$0xff] 0.0
        %253 = vst [vmem:[#allocation2 + $0x48] sm:$0xff] 0.0
        %254 = vst [vmem:[#allocation2 + $0x50] sm:$0x3] 0.0
        %255 = vst [vmem:[#allocation2 + $0x58] sm:$0x3] 0.0
        %256 = vst [vmem:[#allocation2 + $0x60] sm:$0xff] 0.0
        %257 = vst [vmem:[#allocation2 + $0x68] sm:$0xff] 0.0
        %258 = vst [vmem:[#allocation2 + $0x70] sm:$0xff] 0.0
        %259 = vst [vmem:[#allocation2 + $0x78] sm:$0xff] 0.0
        %260 = vst [vmem:[#allocation2 + $0x80] sm:$0x3] 0.0
        %261 = vst [vmem:[#allocation2 + $0x88] sm:$0x3] 0.0
        %262 = vst [vmem:[#allocation2 + $0x90] sm:$0xff] 0.0
        %263 = vst [vmem:[#allocation2 + $0x98] sm:$0xff] 0.0
        %264 = vst [vmem:[#allocation2 + $0xa0] sm:$0xff] 0.0
        %265 = vst [vmem:[#allocation2 + $0xa8] sm:$0xff] 0.0
        %266 = vst [vmem:[#allocation2 + $0xb0] sm:$0x3] 0.0
        %267 = vst [vmem:[#allocation2 + $0xb8] sm:$0x3] 0.0
        %268 = vst [vmem:[#allocation2 + $0xc0] sm:$0xff] 0.0
        %269 = vst [vmem:[#allocation2 + $0xc8] sm:$0xff] 0.0
        %270 = vst [vmem:[#allocation2 + $0xd0] sm:$0xff] 0.0
        %271 = vst [vmem:[#allocation2 + $0xd8] sm:$0xff] 0.0
        %272 = vst [vmem:[#allocation2 + $0xe0] sm:$0x3] 0.0
        %273 = vst [vmem:[#allocation2 + $0xe8] sm:$0x3] 0.0
        %274 = vst [vmem:[#allocation2 + $0xf0] sm:$0xff] 0.0
        %275 = vst [vmem:[#allocation2 + $0xf8] sm:$0xff] 0.0
        %276 = vst [vmem:[#allocation2 + $0x100] sm:$0xff] 0.0
        %277 = vst [vmem:[#allocation2 + $0x108] sm:$0xff] 0.0
        %278 = vst [vmem:[#allocation2 + $0x110] sm:$0x3] 0.0
        %279 = vst [vmem:[#allocation2 + $0x118] sm:$0x3] 0.0
        %280 = vst [vmem:[#allocation2 + $0x120] sm:$0xff] 0.0
        %281 = vst [vmem:[#allocation2 + $0x128] sm:$0xff] 0.0
        %282 = vst [vmem:[#allocation2 + $0x130] sm:$0xff] 0.0
        %283 = vst [vmem:[#allocation2 + $0x138] sm:$0xff] 0.0
        %284 = vst [vmem:[#allocation2 + $0x140] sm:$0x3] 0.0
        %285 = vst [vmem:[#allocation2 + $0x148] sm:$0x3] 0.0
        %286 = vst [vmem:[#allocation2 + $0x150] sm:$0xff] 0.0
        %287 = vst [vmem:[#allocation2 + $0x158] sm:$0xff] 0.0
        %288 = vst [vmem:[#allocation2 + $0x160] sm:$0xff] 0.0
        %289 = vst [vmem:[#allocation2 + $0x168] sm:$0xff] 0.0
        %290 = vst [vmem:[#allocation2 + $0x170] sm:$0x3] 0.0
        %291 = vst [vmem:[#allocation2 + $0x178] sm:$0x3] 0.0
        %292 = vst [vmem:[#allocation2 + $0x180] sm:$0xff] 0.0
        %293 = vst [vmem:[#allocation2 + $0x188] sm:$0xff] 0.0
        %294 = vst [vmem:[#allocation2 + $0x190] sm:$0xff] 0.0
        %295 = vst [vmem:[#allocation2 + $0x198] sm:$0xff] 0.0
        %296 = vst [vmem:[#allocation2 + $0x1a0] sm:$0x3] 0.0
        %297 = vst [vmem:[#allocation2 + $0x1a8] sm:$0x3] 0.0
        %298 = vst [vmem:[#allocation2 + $0x1b0] sm:$0xff] 0.0
        %299 = vst [vmem:[#allocation2 + $0x1b8] sm:$0xff] 0.0
        %300 = vst [vmem:[#allocation2 + $0x1c0] sm:$0xff] 0.0
        %301 = vst [vmem:[#allocation2 + $0x1c8] sm:$0xff] 0.0
        %302 = vst [vmem:[#allocation2 + $0x1d0] sm:$0x3] 0.0
        %303 = vst [vmem:[#allocation2 + $0x1d8] sm:$0x3] 0.0
        %304 = vst [vmem:[#allocation2 + $0x1e0] sm:$0xff] 0.0
        %305 = vst [vmem:[#allocation2 + $0x1e8] sm:$0xff] 0.0
        %306 = vst [vmem:[#allocation2 + $0x1f0] sm:$0xff] 0.0
        %307 = vst [vmem:[#allocation2 + $0x1f8] sm:$0xff] 0.0
        %308 = vst [vmem:[#allocation2 + $0x200] sm:$0x3] 0.0
        %309 = vst [vmem:[#allocation2 + $0x208] sm:$0x3] 0.0
        %310 = vst [vmem:[#allocation2 + $0x210] sm:$0xff] 0.0
        %311 = vst [vmem:[#allocation2 + $0x218] sm:$0xff] 0.0
        %312 = vst [vmem:[#allocation2 + $0x220] sm:$0xff] 0.0
        %313 = vst [vmem:[#allocation2 + $0x228] sm:$0xff] 0.0
        %314 = vst [vmem:[#allocation2 + $0x230] sm:$0x3] 0.0
        %315 = vst [vmem:[#allocation2 + $0x238] sm:$0x3] 0.0
        %316 = vst [vmem:[#allocation2 + $0x240] sm:$0xff] 0.0
        %317 = vst [vmem:[#allocation2 + $0x248] sm:$0xff] 0.0
        %318 = vst [vmem:[#allocation2 + $0x250] sm:$0xff] 0.0
        %319 = vst [vmem:[#allocation2 + $0x258] sm:$0xff] 0.0
        %320 = vst [vmem:[#allocation2 + $0x260] sm:$0x3] 0.0
        %321 = vst [vmem:[#allocation2 + $0x268] sm:$0x3] 0.0
        %322 = vst [vmem:[#allocation2 + $0x270] sm:$0xff] 0.0
        %323 = vst [vmem:[#allocation2 + $0x278] sm:$0xff] 0.0
        %324 = vst [vmem:[#allocation2 + $0x280] sm:$0xff] 0.0
        %325 = vst [vmem:[#allocation2 + $0x288] sm:$0xff] 0.0
        %326 = vst [vmem:[#allocation2 + $0x290] sm:$0x3] 0.0
        %327 = vst [vmem:[#allocation2 + $0x298] sm:$0x3] 0.0
        %328 = vst [vmem:[#allocation2 + $0x2a0] sm:$0xff] 0.0
        %329 = vst [vmem:[#allocation2 + $0x2a8] sm:$0xff] 0.0
        %330 = vst [vmem:[#allocation2 + $0x2b0] sm:$0xff] 0.0
        %331 = vst [vmem:[#allocation2 + $0x2b8] sm:$0xff] 0.0
        %332 = vst [vmem:[#allocation2 + $0x2c0] sm:$0x3] 0.0
        %333 = vst [vmem:[#allocation2 + $0x2c8] sm:$0x3] 0.0
        %334 = vst [vmem:[#allocation2 + $0x2d0] sm:$0xff] 0.0
        %335 = vst [vmem:[#allocation2 + $0x2d8] sm:$0xff] 0.0
        %336 = vst [vmem:[#allocation2 + $0x2e0] sm:$0xff] 0.0
        %337 = vst [vmem:[#allocation2 + $0x2e8] sm:$0xff] 0.0
        %338 = vst [vmem:[#allocation2 + $0x2f0] sm:$0x3] 0.0
        %339 = vst [vmem:[#allocation2 + $0x2f8] sm:$0x3] 0.0
        %340 = vst [vmem:[#allocation2 + $0x300] sm:$0xff] 0.0
        %341 = vst [vmem:[#allocation2 + $0x308] sm:$0xff] 0.0
        %342 = vst [vmem:[#allocation2 + $0x310] sm:$0xff] 0.0
        %343 = vst [vmem:[#allocation2 + $0x318] sm:$0xff] 0.0
        %344 = vst [vmem:[#allocation2 + $0x320] sm:$0x3] 0.0
        %345 = vst [vmem:[#allocation2 + $0x328] sm:$0x3] 0.0
        %346 = vst [vmem:[#allocation2 + $0x330] sm:$0xff] 0.0
        %347 = vst [vmem:[#allocation2 + $0x338] sm:$0xff] 0.0
        %348 = vst [vmem:[#allocation2 + $0x340] sm:$0xff] 0.0
        %349 = vst [vmem:[#allocation2 + $0x348] sm:$0xff] 0.0
        %350 = vst [vmem:[#allocation2 + $0x350] sm:$0x3] 0.0
        %351 = vst [vmem:[#allocation2 + $0x358] sm:$0x3] 0.0
        %v352 = vld [vmem:[%s237] sm:$0xf]
        %v353 = vld [vmem:[%s237 + $0x4] sm:$0xf]
        %v354 = vld [vmem:[%s237 + $0x8] sm:$0xf]
        %v355 = vld [vmem:[%s237 + $0xc] sm:$0xf]
        %v356 = vld [vmem:[%s237 + $0x10] sm:$0xf]
        %v357 = vld [vmem:[%s237 + $0x14] sm:$0xf]
        %v358 = vld [vmem:[%s237 + $0x18] sm:$0xf]
        %v359 = vld [vmem:[%s237 + $0x1c] sm:$0xf]
        %v360 = vld [vmem:[%s237 + $0x20] sm:$0xf]
        %v361 = vld [vmem:[%s237 + $0x24] sm:$0xf]
        %v362 = vld [vmem:[%s237 + $0x28] sm:$0xf]
        %v363 = vld [vmem:[%s237 + $0x2c] sm:$0xf]
        %v364 = vld [vmem:[%s237 + $0x30] sm:$0xf]
        %v365 = vld [vmem:[%s237 + $0x34] sm:$0xf]
        %v366 = vld [vmem:[%s237 + $0x38] sm:$0xf]
        %v367 = vld [vmem:[%s237 + $0x3c] sm:$0xf]
        %v368 = vld [vmem:[%s237 + $0x40] sm:$0xf]
        %v369 = vld [vmem:[%s237 + $0x44] sm:$0xf]
        %v370 = vld [vmem:[%s237 + $0x48] sm:$0xf]
        %v371 = vld [vmem:[%s237 + $0x4c] sm:$0xf]
        %v372 = vld [vmem:[%s237 + $0x50] sm:$0xf]
        %v373 = vld [vmem:[%s237 + $0x54] sm:$0xf]
        %v374 = vld [vmem:[%s237 + $0x58] sm:$0xf]
        %v375 = vld [vmem:[%s237 + $0x5c] sm:$0xf]
        %v376 = vld [vmem:[%s237 + $0x60] sm:$0xf]
        %v377 = vld [vmem:[%s237 + $0x64] sm:$0xf]
        %v378 = vld [vmem:[%s237 + $0x68] sm:$0xf]
        %v379 = vld [vmem:[%s237 + $0x6c] sm:$0xf]
        %v380 = vld [vmem:[%s237 + $0x70] sm:$0xf]
        %v381 = vld [vmem:[%s237 + $0x74] sm:$0xf]
        %v382 = vld [vmem:[%s237 + $0x78] sm:$0xf]
        %v383 = vld [vmem:[%s237 + $0x7c] sm:$0xf]
        %v384 = vunpack.c.l.bf16 %v352
        %v385 = vunpack.c.l.bf16 %v353
        %v386 = vunpack.c.l.bf16 %v354
        %v387 = vunpack.c.l.bf16 %v355
        %v388 = vunpack.c.l.bf16 %v356
        %v389 = vunpack.c.l.bf16 %v357
        %v390 = vunpack.c.l.bf16 %v358
        %v391 = vunpack.c.l.bf16 %v359
        %v392 = vunpack.c.l.bf16 %v360
        %v393 = vunpack.c.l.bf16 %v361
        %v394 = vunpack.c.l.bf16 %v362
        %v395 = vunpack.c.l.bf16 %v363
        %v396 = vunpack.c.l.bf16 %v364
        %v397 = vunpack.c.l.bf16 %v365
        %v398 = vunpack.c.l.bf16 %v366
        %v399 = vunpack.c.l.bf16 %v367
        %v400 = vunpack.c.l.bf16 %v368
        %v401 = vunpack.c.l.bf16 %v369
        %v402 = vunpack.c.l.bf16 %v370
        %v403 = vunpack.c.l.bf16 %v371
        %v404 = vunpack.c.l.bf16 %v372
        %v405 = vunpack.c.l.bf16 %v373
        %v406 = vunpack.c.l.bf16 %v374
        %v407 = vunpack.c.l.bf16 %v375
        %v408 = vunpack.c.l.bf16 %v376
        %v409 = vunpack.c.l.bf16 %v377
        %v410 = vunpack.c.l.bf16 %v378
        %v411 = vunpack.c.l.bf16 %v379
        %v412 = vunpack.c.l.bf16 %v380
        %v413 = vunpack.c.l.bf16 %v381
        %v414 = vunpack.c.l.bf16 %v382
        %v415 = vunpack.c.l.bf16 %v383
        %vm448 = vcmask 1040384
        %v449 = vrot.slane %v384, 7
        %v450 = vrot.slane %v385, 7
        %v451 = vsel %vm448, %v449, %v450
        %v452 = vrot.slane %v386, 7
        %v453 = vrot.slane %v387, 7
        %v454 = vsel %vm448, %v452, %v453
        %v455 = vrot.slane %v388, 7
        %v456 = vrot.slane %v389, 7
        %v457 = vsel %vm448, %v455, %v456
        %v458 = vrot.slane %v390, 7
        %v459 = vrot.slane %v391, 7
        %v460 = vsel %vm448, %v458, %v459
        %v461 = vrot.slane %v392, 7
        %v462 = vrot.slane %v393, 7
        %v463 = vsel %vm448, %v461, %v462
        %v464 = vrot.slane %v394, 7
        %v465 = vrot.slane %v395, 7
        %v466 = vsel %vm448, %v464, %v465
        %v467 = vrot.slane %v396, 7
        %v468 = vrot.slane %v397, 7
        %v469 = vsel %vm448, %v467, %v468
        %v470 = vrot.slane %v398, 7
        %v471 = vrot.slane %v399, 7
        %v472 = vsel %vm448, %v470, %v471
        %v473 = vrot.slane %v400, 7
        %v474 = vrot.slane %v401, 7
        %v475 = vsel %vm448, %v473, %v474
        %v476 = vrot.slane %v402, 7
        %v477 = vrot.slane %v403, 7
        %v478 = vsel %vm448, %v476, %v477
        %v479 = vrot.slane %v404, 7
        %v480 = vrot.slane %v405, 7
        %v481 = vsel %vm448, %v479, %v480
        %v482 = vrot.slane %v406, 7
        %v483 = vrot.slane %v407, 7
        %v484 = vsel %vm448, %v482, %v483
        %v485 = vrot.slane %v408, 7
        %v486 = vrot.slane %v409, 7
        %v487 = vsel %vm448, %v485, %v486
        %v488 = vrot.slane %v410, 7
        %v489 = vrot.slane %v411, 7
        %v490 = vsel %vm448, %v488, %v489
        %v491 = vrot.slane %v412, 7
        %v492 = vrot.slane %v413, 7
        %v493 = vsel %vm448, %v491, %v492
        %v494 = vrot.slane %v414, 7
        %v495 = vrot.slane %v415, 7
        %v496 = vsel %vm448, %v494, %v495
        %s545 = scalar_lea.vmem [#allocation2], 48
        %546 = vst [vmem:[%s545] sm:$0xfe] %v449
        %547 = vst [vmem:[%s545 + $0x10] sm:$0xff] %v451
        %548 = vst [vmem:[%s545 + $0x20] sm:$0x1] %v450
        %549 = vst [vmem:[%s545 + $0x30] sm:$0xfe] %v452
        %550 = vst [vmem:[%s545 + $0x40] sm:$0xff] %v454
        %551 = vst [vmem:[%s545 + $0x50] sm:$0x1] %v453
        %552 = vst [vmem:[%s545 + $0x60] sm:$0xfe] %v455
        %553 = vst [vmem:[%s545 + $0x70] sm:$0xff] %v457
        %554 = vst [vmem:[%s545 + $0x80] sm:$0x1] %v456
        %555 = vst [vmem:[%s545 + $0x90] sm:$0xfe] %v458
        %556 = vst [vmem:[%s545 + $0xa0] sm:$0xff] %v460
        %557 = vst [vmem:[%s545 + $0xb0] sm:$0x1] %v459
        %558 = vst [vmem:[%s545 + $0xc0] sm:$0xfe] %v461
        %559 = vst [vmem:[%s545 + $0xd0] sm:$0xff] %v463
        %560 = vst [vmem:[%s545 + $0xe0] sm:$0x1] %v462
        %561 = vst [vmem:[%s545 + $0xf0] sm:$0xfe] %v464
        %562 = vst [vmem:[%s545 + $0x100] sm:$0xff] %v466
        %563 = vst [vmem:[%s545 + $0x110] sm:$0x1] %v465
        %564 = vst [vmem:[%s545 + $0x120] sm:$0xfe] %v467
        %565 = vst [vmem:[%s545 + $0x130] sm:$0xff] %v469
        %566 = vst [vmem:[%s545 + $0x140] sm:$0x1] %v468
        %567 = vst [vmem:[%s545 + $0x150] sm:$0xfe] %v470
        %568 = vst [vmem:[%s545 + $0x160] sm:$0xff] %v472
        %569 = vst [vmem:[%s545 + $0x170] sm:$0x1] %v471
        %570 = vst [vmem:[%s545 + $0x180] sm:$0xfe] %v473
        %571 = vst [vmem:[%s545 + $0x190] sm:$0xff] %v475
        %572 = vst [vmem:[%s545 + $0x1a0] sm:$0x1] %v474
        %573 = vst [vmem:[%s545 + $0x1b0] sm:$0xfe] %v476
        %574 = vst [vmem:[%s545 + $0x1c0] sm:$0xff] %v478
        %575 = vst [vmem:[%s545 + $0x1d0] sm:$0x1] %v477
        %576 = vst [vmem:[%s545 + $0x1e0] sm:$0xfe] %v479
        %577 = vst [vmem:[%s545 + $0x1f0] sm:$0xff] %v481
        %578 = vst [vmem:[%s545 + $0x200] sm:$0x1] %v480
        %579 = vst [vmem:[%s545 + $0x210] sm:$0xfe] %v482
        %580 = vst [vmem:[%s545 + $0x220] sm:$0xff] %v484
        %581 = vst [vmem:[%s545 + $0x230] sm:$0x1] %v483
        %582 = vst [vmem:[%s545 + $0x240] sm:$0xfe] %v485
        %583 = vst [vmem:[%s545 + $0x250] sm:$0xff] %v487
        %584 = vst [vmem:[%s545 + $0x260] sm:$0x1] %v486
        %585 = vst [vmem:[%s545 + $0x270] sm:$0xfe] %v488
        %586 = vst [vmem:[%s545 + $0x280] sm:$0xff] %v490
        %587 = vst [vmem:[%s545 + $0x290] sm:$0x1] %v489
        %588 = vst [vmem:[%s545 + $0x2a0] sm:$0xfe] %v491
        %589 = vst [vmem:[%s545 + $0x2b0] sm:$0xff] %v493
        %590 = vst [vmem:[%s545 + $0x2c0] sm:$0x1] %v492
        %591 = vst [vmem:[%s545 + $0x2d0] sm:$0xfe] %v494
        %592 = vst [vmem:[%s545 + $0x2e0] sm:$0xff] %v496
        %593 = vst [vmem:[%s545 + $0x2f0] sm:$0x1] %v495
        %v594 = vld [vmem:[%s242] sm:$0xf]
        %v595 = vld [vmem:[%s242 + $0x4] sm:$0xf]
        %v596 = vld [vmem:[%s242 + $0x8] sm:$0xf]
        %v597 = vld [vmem:[%s242 + $0xc] sm:$0xf]
        %v598 = vld [vmem:[%s242 + $0x10] sm:$0xf]
        %v599 = vld [vmem:[%s242 + $0x14] sm:$0xf]
        %v600 = vld [vmem:[%s242 + $0x18] sm:$0xf]
        %v601 = vld [vmem:[%s242 + $0x1c] sm:$0xf]
        %v602 = vld [vmem:[%s242 + $0x20] sm:$0xf]
        %v603 = vld [vmem:[%s242 + $0x24] sm:$0xf]
        %v604 = vld [vmem:[%s242 + $0x28] sm:$0xf]
        %v605 = vld [vmem:[%s242 + $0x2c] sm:$0xf]
        %v606 = vld [vmem:[%s242 + $0x30] sm:$0xf]
        %v607 = vld [vmem:[%s242 + $0x34] sm:$0xf]
        %v608 = vld [vmem:[%s242 + $0x38] sm:$0xf]
        %v609 = vld [vmem:[%s242 + $0x3c] sm:$0xf]
        %v610 = vld [vmem:[%s242 + $0x40] sm:$0xf]
        %v611 = vld [vmem:[%s242 + $0x44] sm:$0xf]
        %v612 = vld [vmem:[%s242 + $0x48] sm:$0xf]
        %v613 = vld [vmem:[%s242 + $0x4c] sm:$0xf]
        %v614 = vld [vmem:[%s242 + $0x50] sm:$0xf]
        %v615 = vld [vmem:[%s242 + $0x54] sm:$0xf]
        %v616 = vld [vmem:[%s242 + $0x58] sm:$0xf]
        %v617 = vld [vmem:[%s242 + $0x5c] sm:$0xf]
        %v618 = vld [vmem:[%s242 + $0x60] sm:$0xf]
        %v619 = vld [vmem:[%s242 + $0x64] sm:$0xf]
        %v620 = vld [vmem:[%s242 + $0x68] sm:$0xf]
        %v621 = vld [vmem:[%s242 + $0x6c] sm:$0xf]
        %v622 = vld [vmem:[%s242 + $0x70] sm:$0xf]
        %v623 = vld [vmem:[%s242 + $0x74] sm:$0xf]
        %v624 = vld [vmem:[%s242 + $0x78] sm:$0xf]
        %v625 = vld [vmem:[%s242 + $0x7c] sm:$0xf]
        %v626 = vunpack.c.l.bf16 %v594
        %v627 = vunpack.c.l.bf16 %v595
        %v628 = vunpack.c.l.bf16 %v596
        %v629 = vunpack.c.l.bf16 %v597
        %v630 = vunpack.c.l.bf16 %v598
        %v631 = vunpack.c.l.bf16 %v599
        %v632 = vunpack.c.l.bf16 %v600
        %v633 = vunpack.c.l.bf16 %v601
        %v634 = vunpack.c.l.bf16 %v602
        %v635 = vunpack.c.l.bf16 %v603
        %v636 = vunpack.c.l.bf16 %v604
        %v637 = vunpack.c.l.bf16 %v605
        %v638 = vunpack.c.l.bf16 %v606
        %v639 = vunpack.c.l.bf16 %v607
        %v640 = vunpack.c.l.bf16 %v608
        %v641 = vunpack.c.l.bf16 %v609
        %v642 = vunpack.c.l.bf16 %v610
        %v643 = vunpack.c.l.bf16 %v611
        %v644 = vunpack.c.l.bf16 %v612
        %v645 = vunpack.c.l.bf16 %v613
        %v646 = vunpack.c.l.bf16 %v614
        %v647 = vunpack.c.l.bf16 %v615
        %v648 = vunpack.c.l.bf16 %v616
        %v649 = vunpack.c.l.bf16 %v617
        %v650 = vunpack.c.l.bf16 %v618
        %v651 = vunpack.c.l.bf16 %v619
        %v652 = vunpack.c.l.bf16 %v620
        %v653 = vunpack.c.l.bf16 %v621
        %v654 = vunpack.c.l.bf16 %v622
        %v655 = vunpack.c.l.bf16 %v623
        %v656 = vunpack.c.l.bf16 %v624
        %v657 = vunpack.c.l.bf16 %v625
        %v690 = vrot.slane %v626, 7
        %v691 = vrot.slane %v627, 7
        %v692 = vsel %vm448, %v690, %v691
        %v693 = vrot.slane %v628, 7
        %v694 = vrot.slane %v629, 7
        %v695 = vsel %vm448, %v693, %v694
        %v696 = vrot.slane %v630, 7
        %v697 = vrot.slane %v631, 7
        %v698 = vsel %vm448, %v696, %v697
        %v699 = vrot.slane %v632, 7
        %v700 = vrot.slane %v633, 7
        %v701 = vsel %vm448, %v699, %v700
        %v702 = vrot.slane %v634, 7
        %v703 = vrot.slane %v635, 7
        %v704 = vsel %vm448, %v702, %v703
        %v705 = vrot.slane %v636, 7
        %v706 = vrot.slane %v637, 7
        %v707 = vsel %vm448, %v705, %v706
        %v708 = vrot.slane %v638, 7
        %v709 = vrot.slane %v639, 7
        %v710 = vsel %vm448, %v708, %v709
        %v711 = vrot.slane %v640, 7
        %v712 = vrot.slane %v641, 7
        %v713 = vsel %vm448, %v711, %v712
        %v714 = vrot.slane %v642, 7
        %v715 = vrot.slane %v643, 7
        %v716 = vsel %vm448, %v714, %v715
        %v717 = vrot.slane %v644, 7
        %v718 = vrot.slane %v645, 7
        %v719 = vsel %vm448, %v717, %v718
        %v720 = vrot.slane %v646, 7
        %v721 = vrot.slane %v647, 7
        %v722 = vsel %vm448, %v720, %v721
        %v723 = vrot.slane %v648, 7
        %v724 = vrot.slane %v649, 7
        %v725 = vsel %vm448, %v723, %v724
        %v726 = vrot.slane %v650, 7
        %v727 = vrot.slane %v651, 7
        %v728 = vsel %vm448, %v726, %v727
        %v729 = vrot.slane %v652, 7
        %v730 = vrot.slane %v653, 7
        %v731 = vsel %vm448, %v729, %v730
        %v732 = vrot.slane %v654, 7
        %v733 = vrot.slane %v655, 7
        %v734 = vsel %vm448, %v732, %v733
        %v735 = vrot.slane %v656, 7
        %v736 = vrot.slane %v657, 7
        %v737 = vsel %vm448, %v735, %v736
        %786 = vst [vmem:[%s545 + $0x8] sm:$0xfe] %v690
        %787 = vst [vmem:[%s545 + $0x18] sm:$0xff] %v692
        %788 = vst [vmem:[%s545 + $0x28] sm:$0x1] %v691
        %789 = vst [vmem:[%s545 + $0x38] sm:$0xfe] %v693
        %790 = vst [vmem:[%s545 + $0x48] sm:$0xff] %v695
        %791 = vst [vmem:[%s545 + $0x58] sm:$0x1] %v694
        %792 = vst [vmem:[%s545 + $0x68] sm:$0xfe] %v696
        %793 = vst [vmem:[%s545 + $0x78] sm:$0xff] %v698
        %794 = vst [vmem:[%s545 + $0x88] sm:$0x1] %v697
        %795 = vst [vmem:[%s545 + $0x98] sm:$0xfe] %v699
        %796 = vst [vmem:[%s545 + $0xa8] sm:$0xff] %v701
        %797 = vst [vmem:[%s545 + $0xb8] sm:$0x1] %v700
        %798 = vst [vmem:[%s545 + $0xc8] sm:$0xfe] %v702
        %799 = vst [vmem:[%s545 + $0xd8] sm:$0xff] %v704
        %800 = vst [vmem:[%s545 + $0xe8] sm:$0x1] %v703
        %801 = vst [vmem:[%s545 + $0xf8] sm:$0xfe] %v705
        %802 = vst [vmem:[%s545 + $0x108] sm:$0xff] %v707
        %803 = vst [vmem:[%s545 + $0x118] sm:$0x1] %v706
        %804 = vst [vmem:[%s545 + $0x128] sm:$0xfe] %v708
        %805 = vst [vmem:[%s545 + $0x138] sm:$0xff] %v710
        %806 = vst [vmem:[%s545 + $0x148] sm:$0x1] %v709
        %807 = vst [vmem:[%s545 + $0x158] sm:$0xfe] %v711
        %808 = vst [vmem:[%s545 + $0x168] sm:$0xff] %v713
        %809 = vst [vmem:[%s545 + $0x178] sm:$0x1] %v712
        %810 = vst [vmem:[%s545 + $0x188] sm:$0xfe] %v714
        %811 = vst [vmem:[%s545 + $0x198] sm:$0xff] %v716
        %812 = vst [vmem:[%s545 + $0x1a8] sm:$0x1] %v715
        %813 = vst [vmem:[%s545 + $0x1b8] sm:$0xfe] %v717
        %814 = vst [vmem:[%s545 + $0x1c8] sm:$0xff] %v719
        %815 = vst [vmem:[%s545 + $0x1d8] sm:$0x1] %v718
        %816 = vst [vmem:[%s545 + $0x1e8] sm:$0xfe] %v720
        %817 = vst [vmem:[%s545 + $0x1f8] sm:$0xff] %v722
        %818 = vst [vmem:[%s545 + $0x208] sm:$0x1] %v721
        %819 = vst [vmem:[%s545 + $0x218] sm:$0xfe] %v723
        %820 = vst [vmem:[%s545 + $0x228] sm:$0xff] %v725
        %821 = vst [vmem:[%s545 + $0x238] sm:$0x1] %v724
        %822 = vst [vmem:[%s545 + $0x248] sm:$0xfe] %v726
        %823 = vst [vmem:[%s545 + $0x258] sm:$0xff] %v728
        %824 = vst [vmem:[%s545 + $0x268] sm:$0x1] %v727
        %825 = vst [vmem:[%s545 + $0x278] sm:$0xfe] %v729
        %826 = vst [vmem:[%s545 + $0x288] sm:$0xff] %v731
        %827 = vst [vmem:[%s545 + $0x298] sm:$0x1] %v730
        %828 = vst [vmem:[%s545 + $0x2a8] sm:$0xfe] %v732
        %829 = vst [vmem:[%s545 + $0x2b8] sm:$0xff] %v734
        %830 = vst [vmem:[%s545 + $0x2c8] sm:$0x1] %v733
        %831 = vst [vmem:[%s545 + $0x2d8] sm:$0xfe] %v735
        %832 = vst [vmem:[%s545 + $0x2e8] sm:$0xff] %v737
        %833 = vst [vmem:[%s545 + $0x2f8] sm:$0x1] %v736
        %v834 = vld [vmem:[#allocation2] sm:$0xff]
        %v835 = vld [vmem:[#allocation2 + $0x8] sm:$0xff]
        %v836 = vld [vmem:[#allocation2 + $0x10] sm:$0xff]
        %v837 = vld [vmem:[#allocation2 + $0x18] sm:$0xff]
        %v838 = vld [vmem:[#allocation2 + $0x30] sm:$0xff]
        %v839 = vld [vmem:[#allocation2 + $0x38] sm:$0xff]
        %v840 = vld [vmem:[#allocation2 + $0x40] sm:$0xff]
        %v841 = vld [vmem:[#allocation2 + $0x48] sm:$0xff]
        %v842 = vld [vmem:[#allocation2 + $0x60] sm:$0xff]
        %v843 = vld [vmem:[#allocation2 + $0x68] sm:$0xff]
        %v844 = vld [vmem:[#allocation2 + $0x70] sm:$0xff]
        %v845 = vld [vmem:[#allocation2 + $0x78] sm:$0xff]
        %v846 = vld [vmem:[#allocation2 + $0x90] sm:$0xff]
        %v847 = vld [vmem:[#allocation2 + $0x98] sm:$0xff]
        %v848 = vld [vmem:[#allocation2 + $0xa0] sm:$0xff]
        %v849 = vld [vmem:[#allocation2 + $0xa8] sm:$0xff]
        %v850 = vld [vmem:[#allocation2 + $0xc0] sm:$0xff]
        %v851 = vld [vmem:[#allocation2 + $0xc8] sm:$0xff]
        %v852 = vld [vmem:[#allocation2 + $0xd0] sm:$0xff]
        %v853 = vld [vmem:[#allocation2 + $0xd8] sm:$0xff]
        %v854 = vld [vmem:[#allocation2 + $0xf0] sm:$0xff]
        %v855 = vld [vmem:[#allocation2 + $0xf8] sm:$0xff]
        %v856 = vld [vmem:[#allocation2 + $0x100] sm:$0xff]
        %v857 = vld [vmem:[#allocation2 + $0x108] sm:$0xff]
        %v858 = vld [vmem:[#allocation2 + $0x120] sm:$0xff]
        %v859 = vld [vmem:[#allocation2 + $0x128] sm:$0xff]
        %v860 = vld [vmem:[#allocation2 + $0x130] sm:$0xff]
        %v861 = vld [vmem:[#allocation2 + $0x138] sm:$0xff]
        %v862 = vld [vmem:[#allocation2 + $0x150] sm:$0xff]
        %v863 = vld [vmem:[#allocation2 + $0x158] sm:$0xff]
        %v864 = vld [vmem:[#allocation2 + $0x160] sm:$0xff]
        %v865 = vld [vmem:[#allocation2 + $0x168] sm:$0xff]
        %v866 = vld [vmem:[#allocation2 + $0x180] sm:$0xff]
        %v867 = vld [vmem:[#allocation2 + $0x188] sm:$0xff]
        %v868 = vld [vmem:[#allocation2 + $0x190] sm:$0xff]
        %v869 = vld [vmem:[#allocation2 + $0x198] sm:$0xff]
        %v870 = vld [vmem:[#allocation2 + $0x1b0] sm:$0xff]
        %v871 = vld [vmem:[#allocation2 + $0x1b8] sm:$0xff]
        %v872 = vld [vmem:[#allocation2 + $0x1c0] sm:$0xff]
        %v873 = vld [vmem:[#allocation2 + $0x1c8] sm:$0xff]
        %v874 = vld [vmem:[#allocation2 + $0x1e0] sm:$0xff]
        %v875 = vld [vmem:[#allocation2 + $0x1e8] sm:$0xff]
        %v876 = vld [vmem:[#allocation2 + $0x1f0] sm:$0xff]
        %v877 = vld [vmem:[#allocation2 + $0x1f8] sm:$0xff]
        %v878 = vld [vmem:[#allocation2 + $0x210] sm:$0xff]
        %v879 = vld [vmem:[#allocation2 + $0x218] sm:$0xff]
        %v880 = vld [vmem:[#allocation2 + $0x220] sm:$0xff]
        %v881 = vld [vmem:[#allocation2 + $0x228] sm:$0xff]
        %v882 = vld [vmem:[#allocation2 + $0x240] sm:$0xff]
        %v883 = vld [vmem:[#allocation2 + $0x248] sm:$0xff]
        %v884 = vld [vmem:[#allocation2 + $0x250] sm:$0xff]
        %v885 = vld [vmem:[#allocation2 + $0x258] sm:$0xff]
        %v886 = vld [vmem:[#allocation2 + $0x270] sm:$0xff]
        %v887 = vld [vmem:[#allocation2 + $0x278] sm:$0xff]
        %v888 = vld [vmem:[#allocation2 + $0x280] sm:$0xff]
        %v889 = vld [vmem:[#allocation2 + $0x288] sm:$0xff]
        %v890 = vld [vmem:[#allocation2 + $0x2a0] sm:$0xff]
        %v891 = vld [vmem:[#allocation2 + $0x2a8] sm:$0xff]
        %v892 = vld [vmem:[#allocation2 + $0x2b0] sm:$0xff]
        %v893 = vld [vmem:[#allocation2 + $0x2b8] sm:$0xff]
        %v894 = vld [vmem:[#allocation2 + $0x2d0] sm:$0xff]
        %v895 = vld [vmem:[#allocation2 + $0x2d8] sm:$0xff]
        %v896 = vld [vmem:[#allocation2 + $0x2e0] sm:$0xff]
        %v897 = vld [vmem:[#allocation2 + $0x2e8] sm:$0xff]
        %v898 = vpack.c.bf16 %v836, %v834
        %v899 = vpack.c.bf16 %v837, %v835
        %v900 = vpack.c.bf16 %v840, %v838
        %v901 = vpack.c.bf16 %v841, %v839
        %v902 = vpack.c.bf16 %v844, %v842
        %v903 = vpack.c.bf16 %v845, %v843
        %v904 = vpack.c.bf16 %v848, %v846
        %v905 = vpack.c.bf16 %v849, %v847
        %v906 = vpack.c.bf16 %v852, %v850
        %v907 = vpack.c.bf16 %v853, %v851
        %v908 = vpack.c.bf16 %v856, %v854
        %v909 = vpack.c.bf16 %v857, %v855
        %v910 = vpack.c.bf16 %v860, %v858
        %v911 = vpack.c.bf16 %v861, %v859
        %v912 = vpack.c.bf16 %v864, %v862
        %v913 = vpack.c.bf16 %v865, %v863
        %v914 = vpack.c.bf16 %v868, %v866
        %v915 = vpack.c.bf16 %v869, %v867
        %v916 = vpack.c.bf16 %v872, %v870
        %v917 = vpack.c.bf16 %v873, %v871
        %v918 = vpack.c.bf16 %v876, %v874
        %v919 = vpack.c.bf16 %v877, %v875
        %v920 = vpack.c.bf16 %v880, %v878
        %v921 = vpack.c.bf16 %v881, %v879
        %v922 = vpack.c.bf16 %v884, %v882
        %v923 = vpack.c.bf16 %v885, %v883
        %v924 = vpack.c.bf16 %v888, %v886
        %v925 = vpack.c.bf16 %v889, %v887
        %v926 = vpack.c.bf16 %v892, %v890
        %v927 = vpack.c.bf16 %v893, %v891
        %v928 = vpack.c.bf16 %v896, %v894
        %v929 = vpack.c.bf16 %v897, %v895
        %v930 = vld [vmem:[%s2] sm:$0xf]
        %v931 = vld [vmem:[%s2 + $0x4] sm:$0xf]
        %v932 = vld [vmem:[%s2 + $0x8] sm:$0xf]
        %v933 = vld [vmem:[%s2 + $0xc] sm:$0xf]
        %v934 = vld [vmem:[%s2 + $0x10] sm:$0xf]
        %v935 = vld [vmem:[%s2 + $0x14] sm:$0xf]
        %v936 = vld [vmem:[%s2 + $0x18] sm:$0xf]
        %v937 = vld [vmem:[%s2 + $0x1c] sm:$0xf]
        %v938 = vld [vmem:[%s2 + $0x20] sm:$0xf]
        %v939 = vld [vmem:[%s2 + $0x24] sm:$0xf]
        %v940 = vld [vmem:[%s2 + $0x28] sm:$0xf]
        %v941 = vld [vmem:[%s2 + $0x2c] sm:$0xf]
        %v942 = vld [vmem:[%s2 + $0x30] sm:$0xf]
        %v943 = vld [vmem:[%s2 + $0x34] sm:$0xf]
        %v944 = vld [vmem:[%s2 + $0x38] sm:$0xf]
        %v945 = vld [vmem:[%s2 + $0x3c] sm:$0xf]
        %v946 = vld [vmem:[%s2 + $0x40] sm:$0xf]
        %v947 = vld [vmem:[%s2 + $0x44] sm:$0xf]
        %v948 = vld [vmem:[%s2 + $0x48] sm:$0xf]
        %v949 = vld [vmem:[%s2 + $0x4c] sm:$0xf]
        %v950 = vld [vmem:[%s2 + $0x50] sm:$0xf]
        %v951 = vld [vmem:[%s2 + $0x54] sm:$0xf]
        %v952 = vld [vmem:[%s2 + $0x58] sm:$0xf]
        %v953 = vld [vmem:[%s2 + $0x5c] sm:$0xf]
        %v954 = vld [vmem:[%s2 + $0x60] sm:$0xf]
        %v955 = vld [vmem:[%s2 + $0x64] sm:$0xf]
        %v956 = vld [vmem:[%s2 + $0x68] sm:$0xf]
        %v957 = vld [vmem:[%s2 + $0x6c] sm:$0xf]
        %v958 = vld [vmem:[%s2 + $0x70] sm:$0xf]
        %v959 = vld [vmem:[%s2 + $0x74] sm:$0xf]
        %v960 = vld [vmem:[%s2 + $0x78] sm:$0xf]
        %v961 = vld [vmem:[%s2 + $0x7c] sm:$0xf]
        %v962 = vld [vmem:[#allocation2] sm:$0xfe]
        %v963 = vld [vmem:[#allocation2 + $0x8] sm:$0xfe]
        %v964 = vld [vmem:[#allocation2 + $0x20] sm:$0x1]
        %v965 = vld [vmem:[#allocation2 + $0x28] sm:$0x1]
        %v966 = vld [vmem:[#allocation2 + $0x30] sm:$0xfe]
        %v967 = vld [vmem:[#allocation2 + $0x38] sm:$0xfe]
        %v968 = vld [vmem:[#allocation2 + $0x50] sm:$0x1]
        %v969 = vld [vmem:[#allocation2 + $0x58] sm:$0x1]
        %v970 = vld [vmem:[#allocation2 + $0x60] sm:$0xfe]
        %v971 = vld [vmem:[#allocation2 + $0x68] sm:$0xfe]
        %v972 = vld [vmem:[#allocation2 + $0x80] sm:$0x1]
        %v973 = vld [vmem:[#allocation2 + $0x88] sm:$0x1]
        %v974 = vld [vmem:[#allocation2 + $0x90] sm:$0xfe]
        %v975 = vld [vmem:[#allocation2 + $0x98] sm:$0xfe]
        %v976 = vld [vmem:[#allocation2 + $0xb0] sm:$0x1]
        %v977 = vld [vmem:[#allocation2 + $0xb8] sm:$0x1]
        %v978 = vld [vmem:[#allocation2 + $0xc0] sm:$0xfe]
        %v979 = vld [vmem:[#allocation2 + $0xc8] sm:$0xfe]
        %v980 = vld [vmem:[#allocation2 + $0xe0] sm:$0x1]
        %v981 = vld [vmem:[#allocation2 + $0xe8] sm:$0x1]
        %v982 = vld [vmem:[#allocation2 + $0xf0] sm:$0xfe]
        %v983 = vld [vmem:[#allocation2 + $0xf8] sm:$0xfe]
        %v984 = vld [vmem:[#allocation2 + $0x110] sm:$0x1]
        %v985 = vld [vmem:[#allocation2 + $0x118] sm:$0x1]
        %v986 = vld [vmem:[#allocation2 + $0x120] sm:$0xfe]
        %v987 = vld [vmem:[#allocation2 + $0x128] sm:$0xfe]
        %v988 = vld [vmem:[#allocation2 + $0x140] sm:$0x1]
        %v989 = vld [vmem:[#allocation2 + $0x148] sm:$0x1]
        %v990 = vld [vmem:[#allocation2 + $0x150] sm:$0xfe]
        %v991 = vld [vmem:[#allocation2 + $0x158] sm:$0xfe]
        %v992 = vld [vmem:[#allocation2 + $0x170] sm:$0x1]
        %v993 = vld [vmem:[#allocation2 + $0x178] sm:$0x1]
        %v994 = vld [vmem:[#allocation2 + $0x180] sm:$0xfe]
        %v995 = vld [vmem:[#allocation2 + $0x188] sm:$0xfe]
        %v996 = vld [vmem:[#allocation2 + $0x1a0] sm:$0x1]
        %v997 = vld [vmem:[#allocation2 + $0x1a8] sm:$0x1]
        %v998 = vld [vmem:[#allocation2 + $0x1b0] sm:$0xfe]
        %v999 = vld [vmem:[#allocation2 + $0x1b8] sm:$0xfe]
        %v1000 = vld [vmem:[#allocation2 + $0x1d0] sm:$0x1]
        %v1001 = vld [vmem:[#allocation2 + $0x1d8] sm:$0x1]
        %v1002 = vld [vmem:[#allocation2 + $0x1e0] sm:$0xfe]
        %v1003 = vld [vmem:[#allocation2 + $0x1e8] sm:$0xfe]
        %v1004 = vld [vmem:[#allocation2 + $0x200] sm:$0x1]
        %v1005 = vld [vmem:[#allocation2 + $0x208] sm:$0x1]
        %v1006 = vld [vmem:[#allocation2 + $0x210] sm:$0xfe]
        %v1007 = vld [vmem:[#allocation2 + $0x218] sm:$0xfe]
        %v1008 = vld [vmem:[#allocation2 + $0x230] sm:$0x1]
        %v1009 = vld [vmem:[#allocation2 + $0x238] sm:$0x1]
        %v1010 = vld [vmem:[#allocation2 + $0x240] sm:$0xfe]
        %v1011 = vld [vmem:[#allocation2 + $0x248] sm:$0xfe]
        %v1012 = vld [vmem:[#allocation2 + $0x260] sm:$0x1]
        %v1013 = vld [vmem:[#allocation2 + $0x268] sm:$0x1]
        %v1014 = vld [vmem:[#allocation2 + $0x270] sm:$0xfe]
        %v1015 = vld [vmem:[#allocation2 + $0x278] sm:$0xfe]
        %v1016 = vld [vmem:[#allocation2 + $0x290] sm:$0x1]
        %v1017 = vld [vmem:[#allocation2 + $0x298] sm:$0x1]
        %v1018 = vld [vmem:[#allocation2 + $0x2a0] sm:$0xfe]
        %v1019 = vld [vmem:[#allocation2 + $0x2a8] sm:$0xfe]
        %v1020 = vld [vmem:[#allocation2 + $0x2c0] sm:$0x1]
        %v1021 = vld [vmem:[#allocation2 + $0x2c8] sm:$0x1]
        %v1022 = vld [vmem:[#allocation2 + $0x2d0] sm:$0xfe]
        %v1023 = vld [vmem:[#allocation2 + $0x2d8] sm:$0xfe]
        %v1024 = vld [vmem:[#allocation2 + $0x2f0] sm:$0x1]
        %v1025 = vld [vmem:[#allocation2 + $0x2f8] sm:$0x1]
        %vm1122 = vcmask 1046528
        %v1123 = vrot.slane %v962, 1
        %v1124 = vrot.slane %v836, 1
        %v1125 = vsel %vm1122, %v1123, %v1124
        %v1126 = vrot.slane %v963, 1
        %v1127 = vrot.slane %v837, 1
        %v1128 = vsel %vm1122, %v1126, %v1127
        %v1129 = vrot.slane %v964, 1
        %v1130 = vsel %vm1122, %v1124, %v1129
        %v1131 = vrot.slane %v965, 1
        %v1132 = vsel %vm1122, %v1127, %v1131
        %v1133 = vrot.slane %v966, 1
        %v1134 = vrot.slane %v840, 1
        %v1135 = vsel %vm1122, %v1133, %v1134
        %v1136 = vrot.slane %v967, 1
        %v1137 = vrot.slane %v841, 1
        %v1138 = vsel %vm1122, %v1136, %v1137
        %v1139 = vrot.slane %v968, 1
        %v1140 = vsel %vm1122, %v1134, %v1139
        %v1141 = vrot.slane %v969, 1
        %v1142 = vsel %vm1122, %v1137, %v1141
        %v1143 = vrot.slane %v970, 1
        %v1144 = vrot.slane %v844, 1
        %v1145 = vsel %vm1122, %v1143, %v1144
        %v1146 = vrot.slane %v971, 1
        %v1147 = vrot.slane %v845, 1
        %v1148 = vsel %vm1122, %v1146, %v1147
        %v1149 = vrot.slane %v972, 1
        %v1150 = vsel %vm1122, %v1144, %v1149
        %v1151 = vrot.slane %v973, 1
        %v1152 = vsel %vm1122, %v1147, %v1151
        %v1153 = vrot.slane %v974, 1
        %v1154 = vrot.slane %v848, 1
        %v1155 = vsel %vm1122, %v1153, %v1154
        %v1156 = vrot.slane %v975, 1
        %v1157 = vrot.slane %v849, 1
        %v1158 = vsel %vm1122, %v1156, %v1157
        %v1159 = vrot.slane %v976, 1
        %v1160 = vsel %vm1122, %v1154, %v1159
        %v1161 = vrot.slane %v977, 1
        %v1162 = vsel %vm1122, %v1157, %v1161
        %v1163 = vrot.slane %v978, 1
        %v1164 = vrot.slane %v852, 1
        %v1165 = vsel %vm1122, %v1163, %v1164
        %v1166 = vrot.slane %v979, 1
        %v1167 = vrot.slane %v853, 1
        %v1168 = vsel %vm1122, %v1166, %v1167
        %v1169 = vrot.slane %v980, 1
        %v1170 = vsel %vm1122, %v1164, %v1169
        %v1171 = vrot.slane %v981, 1
        %v1172 = vsel %vm1122, %v1167, %v1171
        %v1173 = vrot.slane %v982, 1
        %v1174 = vrot.slane %v856, 1
        %v1175 = vsel %vm1122, %v1173, %v1174
        %v1176 = vrot.slane %v983, 1
        %v1177 = vrot.slane %v857, 1
        %v1178 = vsel %vm1122, %v1176, %v1177
        %v1179 = vrot.slane %v984, 1
        %v1180 = vsel %vm1122, %v1174, %v1179
        %v1181 = vrot.slane %v985, 1
        %v1182 = vsel %vm1122, %v1177, %v1181
        %v1183 = vrot.slane %v986, 1
        %v1184 = vrot.slane %v860, 1
        %v1185 = vsel %vm1122, %v1183, %v1184
        %v1186 = vrot.slane %v987, 1
        %v1187 = vrot.slane %v861, 1
        %v1188 = vsel %vm1122, %v1186, %v1187
        %v1189 = vrot.slane %v988, 1
        %v1190 = vsel %vm1122, %v1184, %v1189
        %v1191 = vrot.slane %v989, 1
        %v1192 = vsel %vm1122, %v1187, %v1191
        %v1193 = vrot.slane %v990, 1
        %v1194 = vrot.slane %v864, 1
        %v1195 = vsel %vm1122, %v1193, %v1194
        %v1196 = vrot.slane %v991, 1
        %v1197 = vrot.slane %v865, 1
        %v1198 = vsel %vm1122, %v1196, %v1197
        %v1199 = vrot.slane %v992, 1
        %v1200 = vsel %vm1122, %v1194, %v1199
        %v1201 = vrot.slane %v993, 1
        %v1202 = vsel %vm1122, %v1197, %v1201
        %v1203 = vrot.slane %v994, 1
        %v1204 = vrot.slane %v868, 1
        %v1205 = vsel %vm1122, %v1203, %v1204
        %v1206 = vrot.slane %v995, 1
        %v1207 = vrot.slane %v869, 1
        %v1208 = vsel %vm1122, %v1206, %v1207
        %v1209 = vrot.slane %v996, 1
        %v1210 = vsel %vm1122, %v1204, %v1209
        %v1211 = vrot.slane %v997, 1
        %v1212 = vsel %vm1122, %v1207, %v1211
        %v1213 = vrot.slane %v998, 1
        %v1214 = vrot.slane %v872, 1
        %v1215 = vsel %vm1122, %v1213, %v1214
        %v1216 = vrot.slane %v999, 1
        %v1217 = vrot.slane %v873, 1
        %v1218 = vsel %vm1122, %v1216, %v1217
        %v1219 = vrot.slane %v1000, 1
        %v1220 = vsel %vm1122, %v1214, %v1219
        %v1221 = vrot.slane %v1001, 1
        %v1222 = vsel %vm1122, %v1217, %v1221
        %v1223 = vrot.slane %v1002, 1
        %v1224 = vrot.slane %v876, 1
        %v1225 = vsel %vm1122, %v1223, %v1224
        %v1226 = vrot.slane %v1003, 1
        %v1227 = vrot.slane %v877, 1
        %v1228 = vsel %vm1122, %v1226, %v1227
        %v1229 = vrot.slane %v1004, 1
        %v1230 = vsel %vm1122, %v1224, %v1229
        %v1231 = vrot.slane %v1005, 1
        %v1232 = vsel %vm1122, %v1227, %v1231
        %v1233 = vrot.slane %v1006, 1
        %v1234 = vrot.slane %v880, 1
        %v1235 = vsel %vm1122, %v1233, %v1234
        %v1236 = vrot.slane %v1007, 1
        %v1237 = vrot.slane %v881, 1
        %v1238 = vsel %vm1122, %v1236, %v1237
        %v1239 = vrot.slane %v1008, 1
        %v1240 = vsel %vm1122, %v1234, %v1239
        %v1241 = vrot.slane %v1009, 1
        %v1242 = vsel %vm1122, %v1237, %v1241
        %v1243 = vrot.slane %v1010, 1
        %v1244 = vrot.slane %v884, 1
        %v1245 = vsel %vm1122, %v1243, %v1244
        %v1246 = vrot.slane %v1011, 1
        %v1247 = vrot.slane %v885, 1
        %v1248 = vsel %vm1122, %v1246, %v1247
        %v1249 = vrot.slane %v1012, 1
        %v1250 = vsel %vm1122, %v1244, %v1249
        %v1251 = vrot.slane %v1013, 1
        %v1252 = vsel %vm1122, %v1247, %v1251
        %v1253 = vrot.slane %v1014, 1
        %v1254 = vrot.slane %v888, 1
        %v1255 = vsel %vm1122, %v1253, %v1254
        %v1256 = vrot.slane %v1015, 1
        %v1257 = vrot.slane %v889, 1
        %v1258 = vsel %vm1122, %v1256, %v1257
        %v1259 = vrot.slane %v1016, 1
        %v1260 = vsel %vm1122, %v1254, %v1259
        %v1261 = vrot.slane %v1017, 1
        %v1262 = vsel %vm1122, %v1257, %v1261
        %v1263 = vrot.slane %v1018, 1
        %v1264 = vrot.slane %v892, 1
        %v1265 = vsel %vm1122, %v1263, %v1264
        %v1266 = vrot.slane %v1019, 1
        %v1267 = vrot.slane %v893, 1
        %v1268 = vsel %vm1122, %v1266, %v1267
        %v1269 = vrot.slane %v1020, 1
        %v1270 = vsel %vm1122, %v1264, %v1269
        %v1271 = vrot.slane %v1021, 1
        %v1272 = vsel %vm1122, %v1267, %v1271
        %v1273 = vrot.slane %v1022, 1
        %v1274 = vrot.slane %v896, 1
        %v1275 = vsel %vm1122, %v1273, %v1274
        %v1276 = vrot.slane %v1023, 1
        %v1277 = vrot.slane %v897, 1
        %v1278 = vsel %vm1122, %v1276, %v1277
        %v1279 = vrot.slane %v1024, 1
        %v1280 = vsel %vm1122, %v1274, %v1279
        %v1281 = vrot.slane %v1025, 1
        %v1282 = vsel %vm1122, %v1277, %v1281
        %v1347 = vpack.c.bf16 %v1130, %v1125
        %v1348 = vpack.c.bf16 %v1132, %v1128
        %v1349 = vpack.c.bf16 %v1140, %v1135
        %v1350 = vpack.c.bf16 %v1142, %v1138
        %v1351 = vpack.c.bf16 %v1150, %v1145
        %v1352 = vpack.c.bf16 %v1152, %v1148
        %v1353 = vpack.c.bf16 %v1160, %v1155
        %v1354 = vpack.c.bf16 %v1162, %v1158
        %v1355 = vpack.c.bf16 %v1170, %v1165
        %v1356 = vpack.c.bf16 %v1172, %v1168
        %v1357 = vpack.c.bf16 %v1180, %v1175
        %v1358 = vpack.c.bf16 %v1182, %v1178
        %v1359 = vpack.c.bf16 %v1190, %v1185
        %v1360 = vpack.c.bf16 %v1192, %v1188
        %v1361 = vpack.c.bf16 %v1200, %v1195
        %v1362 = vpack.c.bf16 %v1202, %v1198
        %v1363 = vpack.c.bf16 %v1210, %v1205
        %v1364 = vpack.c.bf16 %v1212, %v1208
        %v1365 = vpack.c.bf16 %v1220, %v1215
        %v1366 = vpack.c.bf16 %v1222, %v1218
        %v1367 = vpack.c.bf16 %v1230, %v1225
        %v1368 = vpack.c.bf16 %v1232, %v1228
        %v1369 = vpack.c.bf16 %v1240, %v1235
        %v1370 = vpack.c.bf16 %v1242, %v1238
        %v1371 = vpack.c.bf16 %v1250, %v1245
        %v1372 = vpack.c.bf16 %v1252, %v1248
        %v1373 = vpack.c.bf16 %v1260, %v1255
        %v1374 = vpack.c.bf16 %v1262, %v1258
        %v1375 = vpack.c.bf16 %v1270, %v1265
        %v1376 = vpack.c.bf16 %v1272, %v1268
        %v1377 = vpack.c.bf16 %v1280, %v1275
        %v1378 = vpack.c.bf16 %v1282, %v1278
        %s1379 = scalar_lea.vmem %s2, 128
        %v1380 = vld [vmem:[%s1379] sm:$0xf]
        %v1381 = vld [vmem:[%s1379 + $0x4] sm:$0xf]
        %v1382 = vld [vmem:[%s1379 + $0x8] sm:$0xf]
        %v1383 = vld [vmem:[%s1379 + $0xc] sm:$0xf]
        %v1384 = vld [vmem:[%s1379 + $0x10] sm:$0xf]
        %v1385 = vld [vmem:[%s1379 + $0x14] sm:$0xf]
        %v1386 = vld [vmem:[%s1379 + $0x18] sm:$0xf]
        %v1387 = vld [vmem:[%s1379 + $0x1c] sm:$0xf]
        %v1388 = vld [vmem:[%s1379 + $0x20] sm:$0xf]
        %v1389 = vld [vmem:[%s1379 + $0x24] sm:$0xf]
        %v1390 = vld [vmem:[%s1379 + $0x28] sm:$0xf]
        %v1391 = vld [vmem:[%s1379 + $0x2c] sm:$0xf]
        %v1392 = vld [vmem:[%s1379 + $0x30] sm:$0xf]
        %v1393 = vld [vmem:[%s1379 + $0x34] sm:$0xf]
        %v1394 = vld [vmem:[%s1379 + $0x38] sm:$0xf]
        %v1395 = vld [vmem:[%s1379 + $0x3c] sm:$0xf]
        %v1396 = vld [vmem:[%s1379 + $0x40] sm:$0xf]
        %v1397 = vld [vmem:[%s1379 + $0x44] sm:$0xf]
        %v1398 = vld [vmem:[%s1379 + $0x48] sm:$0xf]
        %v1399 = vld [vmem:[%s1379 + $0x4c] sm:$0xf]
        %v1400 = vld [vmem:[%s1379 + $0x50] sm:$0xf]
        %v1401 = vld [vmem:[%s1379 + $0x54] sm:$0xf]
        %v1402 = vld [vmem:[%s1379 + $0x58] sm:$0xf]
        %v1403 = vld [vmem:[%s1379 + $0x5c] sm:$0xf]
        %v1404 = vld [vmem:[%s1379 + $0x60] sm:$0xf]
        %v1405 = vld [vmem:[%s1379 + $0x64] sm:$0xf]
        %v1406 = vld [vmem:[%s1379 + $0x68] sm:$0xf]
        %v1407 = vld [vmem:[%s1379 + $0x6c] sm:$0xf]
        %v1408 = vld [vmem:[%s1379 + $0x70] sm:$0xf]
        %v1409 = vld [vmem:[%s1379 + $0x74] sm:$0xf]
        %v1410 = vld [vmem:[%s1379 + $0x78] sm:$0xf]
        %v1411 = vld [vmem:[%s1379 + $0x7c] sm:$0xf]
        %v1444 = vunpack.c.l.b16 %v1380
        %v1445 = vunpack.c.l.b16 %v1381
        %v1446 = vunpack.c.l.b16 %v1382
        %v1447 = vunpack.c.l.b16 %v1383
        %v1448 = vunpack.c.l.b16 %v1384
        %v1449 = vunpack.c.l.b16 %v1385
        %v1450 = vunpack.c.l.b16 %v1386
        %v1451 = vunpack.c.l.b16 %v1387
        %v1452 = vunpack.c.l.b16 %v1388
        %v1453 = vunpack.c.l.b16 %v1389
        %v1454 = vunpack.c.l.b16 %v1390
        %v1455 = vunpack.c.l.b16 %v1391
        %v1456 = vunpack.c.l.b16 %v1392
        %v1457 = vunpack.c.l.b16 %v1393
        %v1458 = vunpack.c.l.b16 %v1394
        %v1459 = vunpack.c.l.b16 %v1395
        %v1460 = vunpack.c.l.b16 %v1396
        %v1461 = vunpack.c.l.b16 %v1397
        %v1462 = vunpack.c.l.b16 %v1398
        %v1463 = vunpack.c.l.b16 %v1399
        %v1464 = vunpack.c.l.b16 %v1400
        %v1465 = vunpack.c.l.b16 %v1401
        %v1466 = vunpack.c.l.b16 %v1402
        %v1467 = vunpack.c.l.b16 %v1403
        %v1468 = vunpack.c.l.b16 %v1404
        %v1469 = vunpack.c.l.b16 %v1405
        %v1470 = vunpack.c.l.b16 %v1406
        %v1471 = vunpack.c.l.b16 %v1407
        %v1472 = vunpack.c.l.b16 %v1408
        %v1473 = vunpack.c.l.b16 %v1409
        %v1474 = vunpack.c.l.b16 %v1410
        %v1475 = vunpack.c.l.b16 %v1411
        %v1476 = vpack.c.b16 %v1445, %v1444
        %v1477 = vpack.c.b16 %v1447, %v1446
        %v1478 = vpack.c.b16 %v1449, %v1448
        %v1479 = vpack.c.b16 %v1451, %v1450
        %v1480 = vpack.c.b16 %v1453, %v1452
        %v1481 = vpack.c.b16 %v1455, %v1454
        %v1482 = vpack.c.b16 %v1457, %v1456
        %v1483 = vpack.c.b16 %v1459, %v1458
        %v1484 = vpack.c.b16 %v1461, %v1460
        %v1485 = vpack.c.b16 %v1463, %v1462
        %v1486 = vpack.c.b16 %v1465, %v1464
        %v1487 = vpack.c.b16 %v1467, %v1466
        %v1488 = vpack.c.b16 %v1469, %v1468
        %v1489 = vpack.c.b16 %v1471, %v1470
        %v1490 = vpack.c.b16 %v1473, %v1472
        %v1491 = vpack.c.b16 %v1475, %v1474
        %1508 = vmatprep.subr.bf16.mxu0 0
        %1509 = vmatpush1.bf16.msra.mxu0 %v1483
        %1510 = vmatprep.subr.bf16.mxu0 0
        %1511 = vmatpush1.bf16.msra.mxu0 %v1482
        %1512 = vmatprep.subr.bf16.mxu0 0
        %1513 = vmatpush1.bf16.msra.mxu0 %v1481
        %1514 = vmatprep.subr.bf16.mxu0 0
        %1515 = vmatpush1.bf16.msra.mxu0 %v1480
        %1516 = vmatprep.subr.bf16.mxu0 0
        %1517 = vmatpush1.bf16.msra.mxu0 %v1479
        %1518 = vmatprep.subr.bf16.mxu0 0
        %1519 = vmatpush1.bf16.msra.mxu0 %v1478
        %1520 = vmatprep.subr.bf16.mxu0 0
        %1521 = vmatpush1.bf16.msra.mxu0 %v1477
        %1522 = vmatprep.subr.bf16.mxu0 0
        %1523 = vmatpush1.bf16.msra.mxu0 %v1476
        %1524 = vmatprep.subr.bf16.mxu0 0
        %1525 = vmatpush2.bf16.msra.mxu0 %v1491
        %1526 = vmatprep.subr.bf16.mxu0 0
        %1527 = vmatpush2.bf16.msra.mxu0 %v1490
        %1528 = vmatprep.subr.bf16.mxu0 0
        %1529 = vmatpush2.bf16.msra.mxu0 %v1489
        %1530 = vmatprep.subr.bf16.mxu0 0
        %1531 = vmatpush2.bf16.msra.mxu0 %v1488
        %1532 = vmatprep.subr.bf16.mxu0 0
        %1533 = vmatpush2.bf16.msra.mxu0 %v1487
        %1534 = vmatprep.subr.bf16.mxu0 0
        %1535 = vmatpush2.bf16.msra.mxu0 %v1486
        %1536 = vmatprep.subr.bf16.mxu0 0
        %1537 = vmatpush2.bf16.msra.mxu0 %v1485
        %1538 = vmatprep.subr.bf16.mxu0 0
        %1539 = vmatpush2.bf16.msra.mxu0 %v1484
        %1540 = vmatprep.mubr.bf16.mxu0 %v1348
        %1541 = vmatmul.mubr.bf16.gmra.mxu0 %v1347
        %v1542 = vpop.f32.mrf.mxu0
        %v1543 = vadd.f32 0.0, %v1542
        %v1544 = vpop.f32.mrf.mxu0
        %v1545 = vpop.f32.mrf.mxu0
        %v1546 = vadd.f32 0.0, %v1545
        %v1547 = vpop.f32.mrf.mxu0
        %1548 = vmatprep.mubr.bf16.mxu0 %v1350
        %1549 = vmatmul.mubr.bf16.gmra.mxu0 %v1349
        %v1550 = vpop.f32.mrf.mxu0
        %v1551 = vadd.f32 0.0, %v1550
        %v1552 = vpop.f32.mrf.mxu0
        %v1553 = vpop.f32.mrf.mxu0
        %v1554 = vadd.f32 0.0, %v1553
        %v1555 = vpop.f32.mrf.mxu0
        %1556 = vmatprep.mubr.bf16.mxu0 %v1352
        %1557 = vmatmul.mubr.bf16.gmra.mxu0 %v1351
        %v1558 = vpop.f32.mrf.mxu0
        %v1559 = vadd.f32 0.0, %v1558
        %v1560 = vpop.f32.mrf.mxu0
        %v1561 = vpop.f32.mrf.mxu0
        %v1562 = vadd.f32 0.0, %v1561
        %v1563 = vpop.f32.mrf.mxu0
        %1564 = vmatprep.mubr.bf16.mxu0 %v1354
        %1565 = vmatmul.mubr.bf16.gmra.mxu0 %v1353
        %v1566 = vpop.f32.mrf.mxu0
        %v1567 = vadd.f32 0.0, %v1566
        %v1568 = vpop.f32.mrf.mxu0
        %v1569 = vpop.f32.mrf.mxu0
        %v1570 = vadd.f32 0.0, %v1569
        %v1571 = vpop.f32.mrf.mxu0
        %1572 = vmatprep.mubr.bf16.mxu0 %v1356
        %1573 = vmatmul.mubr.bf16.gmra.mxu0 %v1355
        %v1574 = vpop.f32.mrf.mxu0
        %v1575 = vadd.f32 0.0, %v1574
        %v1576 = vpop.f32.mrf.mxu0
        %v1577 = vpop.f32.mrf.mxu0
        %v1578 = vadd.f32 0.0, %v1577
        %v1579 = vpop.f32.mrf.mxu0
        %1580 = vmatprep.mubr.bf16.mxu0 %v1358
        %1581 = vmatmul.mubr.bf16.gmra.mxu0 %v1357
        %v1582 = vpop.f32.mrf.mxu0
        %v1583 = vadd.f32 0.0, %v1582
        %v1584 = vpop.f32.mrf.mxu0
        %v1585 = vpop.f32.mrf.mxu0
        %v1586 = vadd.f32 0.0, %v1585
        %v1587 = vpop.f32.mrf.mxu0
        %1588 = vmatprep.mubr.bf16.mxu0 %v1360
        %1589 = vmatmul.mubr.bf16.gmra.mxu0 %v1359
        %v1590 = vpop.f32.mrf.mxu0
        %v1591 = vadd.f32 0.0, %v1590
        %v1592 = vpop.f32.mrf.mxu0
        %v1593 = vpop.f32.mrf.mxu0
        %v1594 = vadd.f32 0.0, %v1593
        %v1595 = vpop.f32.mrf.mxu0
        %1596 = vmatprep.mubr.bf16.mxu0 %v1362
        %1597 = vmatmul.mubr.bf16.gmra.mxu0 %v1361
        %v1598 = vpop.f32.mrf.mxu0
        %v1599 = vadd.f32 0.0, %v1598
        %v1600 = vpop.f32.mrf.mxu0
        %v1601 = vpop.f32.mrf.mxu0
        %v1602 = vadd.f32 0.0, %v1601
        %v1603 = vpop.f32.mrf.mxu0
        %1604 = vmatprep.mubr.bf16.mxu0 %v1364
        %1605 = vmatmul.mubr.bf16.gmra.mxu0 %v1363
        %v1606 = vpop.f32.mrf.mxu0
        %v1607 = vadd.f32 0.0, %v1606
        %v1608 = vpop.f32.mrf.mxu0
        %v1609 = vpop.f32.mrf.mxu0
        %v1610 = vadd.f32 0.0, %v1609
        %v1611 = vpop.f32.mrf.mxu0
        %1612 = vmatprep.mubr.bf16.mxu0 %v1366
        %1613 = vmatmul.mubr.bf16.gmra.mxu0 %v1365
        %v1614 = vpop.f32.mrf.mxu0
        %v1615 = vadd.f32 0.0, %v1614
        %v1616 = vpop.f32.mrf.mxu0
        %v1617 = vpop.f32.mrf.mxu0
        %v1618 = vadd.f32 0.0, %v1617
        %v1619 = vpop.f32.mrf.mxu0
        %1620 = vmatprep.mubr.bf16.mxu0 %v1368
        %1621 = vmatmul.mubr.bf16.gmra.mxu0 %v1367
        %v1622 = vpop.f32.mrf.mxu0
        %v1623 = vadd.f32 0.0, %v1622
        %v1624 = vpop.f32.mrf.mxu0
        %v1625 = vpop.f32.mrf.mxu0
        %v1626 = vadd.f32 0.0, %v1625
        %v1627 = vpop.f32.mrf.mxu0
        %1628 = vmatprep.mubr.bf16.mxu0 %v1370
        %1629 = vmatmul.mubr.bf16.gmra.mxu0 %v1369
        %v1630 = vpop.f32.mrf.mxu0
        %v1631 = vadd.f32 0.0, %v1630
        %v1632 = vpop.f32.mrf.mxu0
        %v1633 = vpop.f32.mrf.mxu0
        %v1634 = vadd.f32 0.0, %v1633
        %v1635 = vpop.f32.mrf.mxu0
        %1636 = vmatprep.mubr.bf16.mxu0 %v1372
        %1637 = vmatmul.mubr.bf16.gmra.mxu0 %v1371
        %v1638 = vpop.f32.mrf.mxu0
        %v1639 = vadd.f32 0.0, %v1638
        %v1640 = vpop.f32.mrf.mxu0
        %v1641 = vpop.f32.mrf.mxu0
        %v1642 = vadd.f32 0.0, %v1641
        %v1643 = vpop.f32.mrf.mxu0
        %1644 = vmatprep.mubr.bf16.mxu0 %v1374
        %1645 = vmatmul.mubr.bf16.gmra.mxu0 %v1373
        %v1646 = vpop.f32.mrf.mxu0
        %v1647 = vadd.f32 0.0, %v1646
        %v1648 = vpop.f32.mrf.mxu0
        %v1649 = vpop.f32.mrf.mxu0
        %v1650 = vadd.f32 0.0, %v1649
        %v1651 = vpop.f32.mrf.mxu0
        %1652 = vmatprep.mubr.bf16.mxu0 %v1376
        %1653 = vmatmul.mubr.bf16.gmra.mxu0 %v1375
        %v1654 = vpop.f32.mrf.mxu0
        %v1655 = vadd.f32 0.0, %v1654
        %v1656 = vpop.f32.mrf.mxu0
        %v1657 = vpop.f32.mrf.mxu0
        %v1658 = vadd.f32 0.0, %v1657
        %v1659 = vpop.f32.mrf.mxu0
        %1660 = vmatprep.mubr.bf16.mxu0 %v1378
        %1661 = vmatmul.mubr.bf16.gmra.mxu0 %v1377
        %v1662 = vpop.f32.mrf.mxu0
        %v1663 = vadd.f32 0.0, %v1662
        %v1664 = vpop.f32.mrf.mxu0
        %v1665 = vpop.f32.mrf.mxu0
        %v1666 = vadd.f32 0.0, %v1665
        %v1667 = vpop.f32.mrf.mxu0
        %1668 = vdwg.mxu0
        %v1701 = vunpack.c.l.b16 %v930
        %v1702 = vunpack.c.l.b16 %v931
        %v1703 = vunpack.c.l.b16 %v932
        %v1704 = vunpack.c.l.b16 %v933
        %v1705 = vunpack.c.l.b16 %v934
        %v1706 = vunpack.c.l.b16 %v935
        %v1707 = vunpack.c.l.b16 %v936
        %v1708 = vunpack.c.l.b16 %v937
        %v1709 = vunpack.c.l.b16 %v938
        %v1710 = vunpack.c.l.b16 %v939
        %v1711 = vunpack.c.l.b16 %v940
        %v1712 = vunpack.c.l.b16 %v941
        %v1713 = vunpack.c.l.b16 %v942
        %v1714 = vunpack.c.l.b16 %v943
        %v1715 = vunpack.c.l.b16 %v944
        %v1716 = vunpack.c.l.b16 %v945
        %v1717 = vunpack.c.l.b16 %v946
        %v1718 = vunpack.c.l.b16 %v947
        %v1719 = vunpack.c.l.b16 %v948
        %v1720 = vunpack.c.l.b16 %v949
        %v1721 = vunpack.c.l.b16 %v950
        %v1722 = vunpack.c.l.b16 %v951
        %v1723 = vunpack.c.l.b16 %v952
        %v1724 = vunpack.c.l.b16 %v953
        %v1725 = vunpack.c.l.b16 %v954
        %v1726 = vunpack.c.l.b16 %v955
        %v1727 = vunpack.c.l.b16 %v956
        %v1728 = vunpack.c.l.b16 %v957
        %v1729 = vunpack.c.l.b16 %v958
        %v1730 = vunpack.c.l.b16 %v959
        %v1731 = vunpack.c.l.b16 %v960
        %v1732 = vunpack.c.l.b16 %v961
        %v1733 = vpack.c.b16 %v1702, %v1701
        %v1734 = vpack.c.b16 %v1704, %v1703
        %v1735 = vpack.c.b16 %v1706, %v1705
        %v1736 = vpack.c.b16 %v1708, %v1707
        %v1737 = vpack.c.b16 %v1710, %v1709
        %v1738 = vpack.c.b16 %v1712, %v1711
        %v1739 = vpack.c.b16 %v1714, %v1713
        %v1740 = vpack.c.b16 %v1716, %v1715
        %v1741 = vpack.c.b16 %v1718, %v1717
        %v1742 = vpack.c.b16 %v1720, %v1719
        %v1743 = vpack.c.b16 %v1722, %v1721
        %v1744 = vpack.c.b16 %v1724, %v1723
        %v1745 = vpack.c.b16 %v1726, %v1725
        %v1746 = vpack.c.b16 %v1728, %v1727
        %v1747 = vpack.c.b16 %v1730, %v1729
        %v1748 = vpack.c.b16 %v1732, %v1731
        %1765 = vmatprep.subr.bf16.mxu0 0
        %1766 = vmatpush1.bf16.msra.mxu0 %v1740
        %1767 = vmatprep.subr.bf16.mxu0 0
        %1768 = vmatpush1.bf16.msra.mxu0 %v1739
        %1769 = vmatprep.subr.bf16.mxu0 0
        %1770 = vmatpush1.bf16.msra.mxu0 %v1738
        %1771 = vmatprep.subr.bf16.mxu0 0
        %1772 = vmatpush1.bf16.msra.mxu0 %v1737
        %1773 = vmatprep.subr.bf16.mxu0 0
        %1774 = vmatpush1.bf16.msra.mxu0 %v1736
        %1775 = vmatprep.subr.bf16.mxu0 0
        %1776 = vmatpush1.bf16.msra.mxu0 %v1735
        %1777 = vmatprep.subr.bf16.mxu0 0
        %1778 = vmatpush1.bf16.msra.mxu0 %v1734
        %1779 = vmatprep.subr.bf16.mxu0 0
        %1780 = vmatpush1.bf16.msra.mxu0 %v1733
        %1781 = vmatprep.subr.bf16.mxu0 0
        %1782 = vmatpush2.bf16.msra.mxu0 %v1748
        %1783 = vmatprep.subr.bf16.mxu0 0
        %1784 = vmatpush2.bf16.msra.mxu0 %v1747
        %1785 = vmatprep.subr.bf16.mxu0 0
        %1786 = vmatpush2.bf16.msra.mxu0 %v1746
        %1787 = vmatprep.subr.bf16.mxu0 0
        %1788 = vmatpush2.bf16.msra.mxu0 %v1745
        %1789 = vmatprep.subr.bf16.mxu0 0
        %1790 = vmatpush2.bf16.msra.mxu0 %v1744
        %1791 = vmatprep.subr.bf16.mxu0 0
        %1792 = vmatpush2.bf16.msra.mxu0 %v1743
        %1793 = vmatprep.subr.bf16.mxu0 0
        %1794 = vmatpush2.bf16.msra.mxu0 %v1742
        %1795 = vmatprep.subr.bf16.mxu0 0
        %1796 = vmatpush2.bf16.msra.mxu0 %v1741
        %1797 = vmatprep.mubr.bf16.mxu0 %v899
        %1798 = vmatmul.mubr.bf16.gmra.mxu0 %v898
        %v1799 = vpop.f32.mrf.mxu0
        %v1800 = vadd.f32 %v1543, %v1799
        %v1801 = vpop.f32.mrf.mxu0
        %v1802 = vpop.f32.mrf.mxu0
        %v1803 = vadd.f32 %v1546, %v1802
        %v1804 = vpop.f32.mrf.mxu0
        %1805 = vmatprep.mubr.bf16.mxu0 %v901
        %1806 = vmatmul.mubr.bf16.gmra.mxu0 %v900
        %v1807 = vpop.f32.mrf.mxu0
        %v1808 = vadd.f32 %v1551, %v1807
        %v1809 = vpop.f32.mrf.mxu0
        %v1810 = vpop.f32.mrf.mxu0
        %v1811 = vadd.f32 %v1554, %v1810
        %v1812 = vpop.f32.mrf.mxu0
        %1813 = vmatprep.mubr.bf16.mxu0 %v903
        %1814 = vmatmul.mubr.bf16.gmra.mxu0 %v902
        %v1815 = vpop.f32.mrf.mxu0
        %v1816 = vadd.f32 %v1559, %v1815
        %v1817 = vpop.f32.mrf.mxu0
        %v1818 = vpop.f32.mrf.mxu0
        %v1819 = vadd.f32 %v1562, %v1818
        %v1820 = vpop.f32.mrf.mxu0
        %1821 = vmatprep.mubr.bf16.mxu0 %v905
        %1822 = vmatmul.mubr.bf16.gmra.mxu0 %v904
        %v1823 = vpop.f32.mrf.mxu0
        %v1824 = vadd.f32 %v1567, %v1823
        %v1825 = vpop.f32.mrf.mxu0
        %v1826 = vpop.f32.mrf.mxu0
        %v1827 = vadd.f32 %v1570, %v1826
        %v1828 = vpop.f32.mrf.mxu0
        %1829 = vmatprep.mubr.bf16.mxu0 %v907
        %1830 = vmatmul.mubr.bf16.gmra.mxu0 %v906
        %v1831 = vpop.f32.mrf.mxu0
        %v1832 = vadd.f32 %v1575, %v1831
        %v1833 = vpop.f32.mrf.mxu0
        %v1834 = vpop.f32.mrf.mxu0
        %v1835 = vadd.f32 %v1578, %v1834
        %v1836 = vpop.f32.mrf.mxu0
        %1837 = vmatprep.mubr.bf16.mxu0 %v909
        %1838 = vmatmul.mubr.bf16.gmra.mxu0 %v908
        %v1839 = vpop.f32.mrf.mxu0
        %v1840 = vadd.f32 %v1583, %v1839
        %v1841 = vpop.f32.mrf.mxu0
        %v1842 = vpop.f32.mrf.mxu0
        %v1843 = vadd.f32 %v1586, %v1842
        %v1844 = vpop.f32.mrf.mxu0
        %1845 = vmatprep.mubr.bf16.mxu0 %v911
        %1846 = vmatmul.mubr.bf16.gmra.mxu0 %v910
        %v1847 = vpop.f32.mrf.mxu0
        %v1848 = vadd.f32 %v1591, %v1847
        %v1849 = vpop.f32.mrf.mxu0
        %v1850 = vpop.f32.mrf.mxu0
        %v1851 = vadd.f32 %v1594, %v1850
        %v1852 = vpop.f32.mrf.mxu0
        %1853 = vmatprep.mubr.bf16.mxu0 %v913
        %1854 = vmatmul.mubr.bf16.gmra.mxu0 %v912
        %v1855 = vpop.f32.mrf.mxu0
        %v1856 = vadd.f32 %v1599, %v1855
        %v1857 = vpop.f32.mrf.mxu0
        %v1858 = vpop.f32.mrf.mxu0
        %v1859 = vadd.f32 %v1602, %v1858
        %v1860 = vpop.f32.mrf.mxu0
        %1861 = vmatprep.mubr.bf16.mxu0 %v915
        %1862 = vmatmul.mubr.bf16.gmra.mxu0 %v914
        %v1863 = vpop.f32.mrf.mxu0
        %v1864 = vadd.f32 %v1607, %v1863
        %v1865 = vpop.f32.mrf.mxu0
        %v1866 = vpop.f32.mrf.mxu0
        %v1867 = vadd.f32 %v1610, %v1866
        %v1868 = vpop.f32.mrf.mxu0
        %1869 = vmatprep.mubr.bf16.mxu0 %v917
        %1870 = vmatmul.mubr.bf16.gmra.mxu0 %v916
        %v1871 = vpop.f32.mrf.mxu0
        %v1872 = vadd.f32 %v1615, %v1871
        %v1873 = vpop.f32.mrf.mxu0
        %v1874 = vpop.f32.mrf.mxu0
        %v1875 = vadd.f32 %v1618, %v1874
        %v1876 = vpop.f32.mrf.mxu0
        %1877 = vmatprep.mubr.bf16.mxu0 %v919
        %1878 = vmatmul.mubr.bf16.gmra.mxu0 %v918
        %v1879 = vpop.f32.mrf.mxu0
        %v1880 = vadd.f32 %v1623, %v1879
        %v1881 = vpop.f32.mrf.mxu0
        %v1882 = vpop.f32.mrf.mxu0
        %v1883 = vadd.f32 %v1626, %v1882
        %v1884 = vpop.f32.mrf.mxu0
        %1885 = vmatprep.mubr.bf16.mxu0 %v921
        %1886 = vmatmul.mubr.bf16.gmra.mxu0 %v920
        %v1887 = vpop.f32.mrf.mxu0
        %v1888 = vadd.f32 %v1631, %v1887
        %v1889 = vpop.f32.mrf.mxu0
        %v1890 = vpop.f32.mrf.mxu0
        %v1891 = vadd.f32 %v1634, %v1890
        %v1892 = vpop.f32.mrf.mxu0
        %1893 = vmatprep.mubr.bf16.mxu0 %v923
        %1894 = vmatmul.mubr.bf16.gmra.mxu0 %v922
        %v1895 = vpop.f32.mrf.mxu0
        %v1896 = vadd.f32 %v1639, %v1895
        %v1897 = vpop.f32.mrf.mxu0
        %v1898 = vpop.f32.mrf.mxu0
        %v1899 = vadd.f32 %v1642, %v1898
        %v1900 = vpop.f32.mrf.mxu0
        %1901 = vmatprep.mubr.bf16.mxu0 %v925
        %1902 = vmatmul.mubr.bf16.gmra.mxu0 %v924
        %v1903 = vpop.f32.mrf.mxu0
        %v1904 = vadd.f32 %v1647, %v1903
        %v1905 = vpop.f32.mrf.mxu0
        %v1906 = vpop.f32.mrf.mxu0
        %v1907 = vadd.f32 %v1650, %v1906
        %v1908 = vpop.f32.mrf.mxu0
        %1909 = vmatprep.mubr.bf16.mxu0 %v927
        %1910 = vmatmul.mubr.bf16.gmra.mxu0 %v926
        %v1911 = vpop.f32.mrf.mxu0
        %v1912 = vadd.f32 %v1655, %v1911
        %v1913 = vpop.f32.mrf.mxu0
        %v1914 = vpop.f32.mrf.mxu0
        %v1915 = vadd.f32 %v1658, %v1914
        %v1916 = vpop.f32.mrf.mxu0
        %1917 = vmatprep.mubr.bf16.mxu0 %v929
        %1918 = vmatmul.mubr.bf16.gmra.mxu0 %v928
        %v1919 = vpop.f32.mrf.mxu0
        %v1920 = vadd.f32 %v1663, %v1919
        %v1921 = vpop.f32.mrf.mxu0
        %v1922 = vpop.f32.mrf.mxu0
        %v1923 = vadd.f32 %v1666, %v1922
        %v1924 = vpop.f32.mrf.mxu0
        %1925 = vdwg.mxu0
        %v1926 = vld [vmem:[#allocation2] sm:$0xfc]
        %v1927 = vld [vmem:[#allocation2 + $0x8] sm:$0xfc]
        %v1928 = vld [vmem:[#allocation2 + $0x20] sm:$0x3]
        %v1929 = vld [vmem:[#allocation2 + $0x28] sm:$0x3]
        %v1930 = vld [vmem:[#allocation2 + $0x30] sm:$0xfc]
        %v1931 = vld [vmem:[#allocation2 + $0x38] sm:$0xfc]
        %v1932 = vld [vmem:[#allocation2 + $0x50] sm:$0x3]
        %v1933 = vld [vmem:[#allocation2 + $0x58] sm:$0x3]
        %v1934 = vld [vmem:[#allocation2 + $0x60] sm:$0xfc]
        %v1935 = vld [vmem:[#allocation2 + $0x68] sm:$0xfc]
        %v1936 = vld [vmem:[#allocation2 + $0x80] sm:$0x3]
        %v1937 = vld [vmem:[#allocation2 + $0x88] sm:$0x3]
        %v1938 = vld [vmem:[#allocation2 + $0x90] sm:$0xfc]
        %v1939 = vld [vmem:[#allocation2 + $0x98] sm:$0xfc]
        %v1940 = vld [vmem:[#allocation2 + $0xb0] sm:$0x3]
        %v1941 = vld [vmem:[#allocation2 + $0xb8] sm:$0x3]
        %v1942 = vld [vmem:[#allocation2 + $0xc0] sm:$0xfc]
        %v1943 = vld [vmem:[#allocation2 + $0xc8] sm:$0xfc]
        %v1944 = vld [vmem:[#allocation2 + $0xe0] sm:$0x3]
        %v1945 = vld [vmem:[#allocation2 + $0xe8] sm:$0x3]
        %v1946 = vld [vmem:[#allocation2 + $0xf0] sm:$0xfc]
        %v1947 = vld [vmem:[#allocation2 + $0xf8] sm:$0xfc]
        %v1948 = vld [vmem:[#allocation2 + $0x110] sm:$0x3]
        %v1949 = vld [vmem:[#allocation2 + $0x118] sm:$0x3]
        %v1950 = vld [vmem:[#allocation2 + $0x120] sm:$0xfc]
        %v1951 = vld [vmem:[#allocation2 + $0x128] sm:$0xfc]
        %v1952 = vld [vmem:[#allocation2 + $0x140] sm:$0x3]
        %v1953 = vld [vmem:[#allocation2 + $0x148] sm:$0x3]
        %v1954 = vld [vmem:[#allocation2 + $0x150] sm:$0xfc]
        %v1955 = vld [vmem:[#allocation2 + $0x158] sm:$0xfc]
        %v1956 = vld [vmem:[#allocation2 + $0x170] sm:$0x3]
        %v1957 = vld [vmem:[#allocation2 + $0x178] sm:$0x3]
        %v1958 = vld [vmem:[#allocation2 + $0x180] sm:$0xfc]
        %v1959 = vld [vmem:[#allocation2 + $0x188] sm:$0xfc]
        %v1960 = vld [vmem:[#allocation2 + $0x1a0] sm:$0x3]
        %v1961 = vld [vmem:[#allocation2 + $0x1a8] sm:$0x3]
        %v1962 = vld [vmem:[#allocation2 + $0x1b0] sm:$0xfc]
        %v1963 = vld [vmem:[#allocation2 + $0x1b8] sm:$0xfc]
        %v1964 = vld [vmem:[#allocation2 + $0x1d0] sm:$0x3]
        %v1965 = vld [vmem:[#allocation2 + $0x1d8] sm:$0x3]
        %v1966 = vld [vmem:[#allocation2 + $0x1e0] sm:$0xfc]
        %v1967 = vld [vmem:[#allocation2 + $0x1e8] sm:$0xfc]
        %v1968 = vld [vmem:[#allocation2 + $0x200] sm:$0x3]
        %v1969 = vld [vmem:[#allocation2 + $0x208] sm:$0x3]
        %v1970 = vld [vmem:[#allocation2 + $0x210] sm:$0xfc]
        %v1971 = vld [vmem:[#allocation2 + $0x218] sm:$0xfc]
        %v1972 = vld [vmem:[#allocation2 + $0x230] sm:$0x3]
        %v1973 = vld [vmem:[#allocation2 + $0x238] sm:$0x3]
        %v1974 = vld [vmem:[#allocation2 + $0x240] sm:$0xfc]
        %v1975 = vld [vmem:[#allocation2 + $0x248] sm:$0xfc]
        %v1976 = vld [vmem:[#allocation2 + $0x260] sm:$0x3]
        %v1977 = vld [vmem:[#allocation2 + $0x268] sm:$0x3]
        %v1978 = vld [vmem:[#allocation2 + $0x270] sm:$0xfc]
        %v1979 = vld [vmem:[#allocation2 + $0x278] sm:$0xfc]
        %v1980 = vld [vmem:[#allocation2 + $0x290] sm:$0x3]
        %v1981 = vld [vmem:[#allocation2 + $0x298] sm:$0x3]
        %v1982 = vld [vmem:[#allocation2 + $0x2a0] sm:$0xfc]
        %v1983 = vld [vmem:[#allocation2 + $0x2a8] sm:$0xfc]
        %v1984 = vld [vmem:[#allocation2 + $0x2c0] sm:$0x3]
        %v1985 = vld [vmem:[#allocation2 + $0x2c8] sm:$0x3]
        %v1986 = vld [vmem:[#allocation2 + $0x2d0] sm:$0xfc]
        %v1987 = vld [vmem:[#allocation2 + $0x2d8] sm:$0xfc]
        %v1988 = vld [vmem:[#allocation2 + $0x2f0] sm:$0x3]
        %v1989 = vld [vmem:[#allocation2 + $0x2f8] sm:$0x3]
        %vm2054 = vcmask 1045504
        %v2055 = vrot.slane %v1926, 2
        %v2056 = vrot.slane %v836, 2
        %v2057 = vsel %vm2054, %v2055, %v2056
        %v2058 = vrot.slane %v1927, 2
        %v2059 = vrot.slane %v837, 2
        %v2060 = vsel %vm2054, %v2058, %v2059
        %v2061 = vrot.slane %v1928, 2
        %v2062 = vsel %vm2054, %v2056, %v2061
        %v2063 = vrot.slane %v1929, 2
        %v2064 = vsel %vm2054, %v2059, %v2063
        %v2065 = vrot.slane %v1930, 2
        %v2066 = vrot.slane %v840, 2
        %v2067 = vsel %vm2054, %v2065, %v2066
        %v2068 = vrot.slane %v1931, 2
        %v2069 = vrot.slane %v841, 2
        %v2070 = vsel %vm2054, %v2068, %v2069
        %v2071 = vrot.slane %v1932, 2
        %v2072 = vsel %vm2054, %v2066, %v2071
        %v2073 = vrot.slane %v1933, 2
        %v2074 = vsel %vm2054, %v2069, %v2073
        %v2075 = vrot.slane %v1934, 2
        %v2076 = vrot.slane %v844, 2
        %v2077 = vsel %vm2054, %v2075, %v2076
        %v2078 = vrot.slane %v1935, 2
        %v2079 = vrot.slane %v845, 2
        %v2080 = vsel %vm2054, %v2078, %v2079
        %v2081 = vrot.slane %v1936, 2
        %v2082 = vsel %vm2054, %v2076, %v2081
        %v2083 = vrot.slane %v1937, 2
        %v2084 = vsel %vm2054, %v2079, %v2083
        %v2085 = vrot.slane %v1938, 2
        %v2086 = vrot.slane %v848, 2
        %v2087 = vsel %vm2054, %v2085, %v2086
        %v2088 = vrot.slane %v1939, 2
        %v2089 = vrot.slane %v849, 2
        %v2090 = vsel %vm2054, %v2088, %v2089
        %v2091 = vrot.slane %v1940, 2
        %v2092 = vsel %vm2054, %v2086, %v2091
        %v2093 = vrot.slane %v1941, 2
        %v2094 = vsel %vm2054, %v2089, %v2093
        %v2095 = vrot.slane %v1942, 2
        %v2096 = vrot.slane %v852, 2
        %v2097 = vsel %vm2054, %v2095, %v2096
        %v2098 = vrot.slane %v1943, 2
        %v2099 = vrot.slane %v853, 2
        %v2100 = vsel %vm2054, %v2098, %v2099
        %v2101 = vrot.slane %v1944, 2
        %v2102 = vsel %vm2054, %v2096, %v2101
        %v2103 = vrot.slane %v1945, 2
        %v2104 = vsel %vm2054, %v2099, %v2103
        %v2105 = vrot.slane %v1946, 2
        %v2106 = vrot.slane %v856, 2
        %v2107 = vsel %vm2054, %v2105, %v2106
        %v2108 = vrot.slane %v1947, 2
        %v2109 = vrot.slane %v857, 2
        %v2110 = vsel %vm2054, %v2108, %v2109
        %v2111 = vrot.slane %v1948, 2
        %v2112 = vsel %vm2054, %v2106, %v2111
        %v2113 = vrot.slane %v1949, 2
        %v2114 = vsel %vm2054, %v2109, %v2113
        %v2115 = vrot.slane %v1950, 2
        %v2116 = vrot.slane %v860, 2
        %v2117 = vsel %vm2054, %v2115, %v2116
        %v2118 = vrot.slane %v1951, 2
        %v2119 = vrot.slane %v861, 2
        %v2120 = vsel %vm2054, %v2118, %v2119
        %v2121 = vrot.slane %v1952, 2
        %v2122 = vsel %vm2054, %v2116, %v2121
        %v2123 = vrot.slane %v1953, 2
        %v2124 = vsel %vm2054, %v2119, %v2123
        %v2125 = vrot.slane %v1954, 2
        %v2126 = vrot.slane %v864, 2
        %v2127 = vsel %vm2054, %v2125, %v2126
        %v2128 = vrot.slane %v1955, 2
        %v2129 = vrot.slane %v865, 2
        %v2130 = vsel %vm2054, %v2128, %v2129
        %v2131 = vrot.slane %v1956, 2
        %v2132 = vsel %vm2054, %v2126, %v2131
        %v2133 = vrot.slane %v1957, 2
        %v2134 = vsel %vm2054, %v2129, %v2133
        %v2135 = vrot.slane %v1958, 2
        %v2136 = vrot.slane %v868, 2
        %v2137 = vsel %vm2054, %v2135, %v2136
        %v2138 = vrot.slane %v1959, 2
        %v2139 = vrot.slane %v869, 2
        %v2140 = vsel %vm2054, %v2138, %v2139
        %v2141 = vrot.slane %v1960, 2
        %v2142 = vsel %vm2054, %v2136, %v2141
        %v2143 = vrot.slane %v1961, 2
        %v2144 = vsel %vm2054, %v2139, %v2143
        %v2145 = vrot.slane %v1962, 2
        %v2146 = vrot.slane %v872, 2
        %v2147 = vsel %vm2054, %v2145, %v2146
        %v2148 = vrot.slane %v1963, 2
        %v2149 = vrot.slane %v873, 2
        %v2150 = vsel %vm2054, %v2148, %v2149
        %v2151 = vrot.slane %v1964, 2
        %v2152 = vsel %vm2054, %v2146, %v2151
        %v2153 = vrot.slane %v1965, 2
        %v2154 = vsel %vm2054, %v2149, %v2153
        %v2155 = vrot.slane %v1966, 2
        %v2156 = vrot.slane %v876, 2
        %v2157 = vsel %vm2054, %v2155, %v2156
        %v2158 = vrot.slane %v1967, 2
        %v2159 = vrot.slane %v877, 2
        %v2160 = vsel %vm2054, %v2158, %v2159
        %v2161 = vrot.slane %v1968, 2
        %v2162 = vsel %vm2054, %v2156, %v2161
        %v2163 = vrot.slane %v1969, 2
        %v2164 = vsel %vm2054, %v2159, %v2163
        %v2165 = vrot.slane %v1970, 2
        %v2166 = vrot.slane %v880, 2
        %v2167 = vsel %vm2054, %v2165, %v2166
        %v2168 = vrot.slane %v1971, 2
        %v2169 = vrot.slane %v881, 2
        %v2170 = vsel %vm2054, %v2168, %v2169
        %v2171 = vrot.slane %v1972, 2
        %v2172 = vsel %vm2054, %v2166, %v2171
        %v2173 = vrot.slane %v1973, 2
        %v2174 = vsel %vm2054, %v2169, %v2173
        %v2175 = vrot.slane %v1974, 2
        %v2176 = vrot.slane %v884, 2
        %v2177 = vsel %vm2054, %v2175, %v2176
        %v2178 = vrot.slane %v1975, 2
        %v2179 = vrot.slane %v885, 2
        %v2180 = vsel %vm2054, %v2178, %v2179
        %v2181 = vrot.slane %v1976, 2
        %v2182 = vsel %vm2054, %v2176, %v2181
        %v2183 = vrot.slane %v1977, 2
        %v2184 = vsel %vm2054, %v2179, %v2183
        %v2185 = vrot.slane %v1978, 2
        %v2186 = vrot.slane %v888, 2
        %v2187 = vsel %vm2054, %v2185, %v2186
        %v2188 = vrot.slane %v1979, 2
        %v2189 = vrot.slane %v889, 2
        %v2190 = vsel %vm2054, %v2188, %v2189
        %v2191 = vrot.slane %v1980, 2
        %v2192 = vsel %vm2054, %v2186, %v2191
        %v2193 = vrot.slane %v1981, 2
        %v2194 = vsel %vm2054, %v2189, %v2193
        %v2195 = vrot.slane %v1982, 2
        %v2196 = vrot.slane %v892, 2
        %v2197 = vsel %vm2054, %v2195, %v2196
        %v2198 = vrot.slane %v1983, 2
        %v2199 = vrot.slane %v893, 2
        %v2200 = vsel %vm2054, %v2198, %v2199
        %v2201 = vrot.slane %v1984, 2
        %v2202 = vsel %vm2054, %v2196, %v2201
        %v2203 = vrot.slane %v1985, 2
        %v2204 = vsel %vm2054, %v2199, %v2203
        %v2205 = vrot.slane %v1986, 2
        %v2206 = vrot.slane %v896, 2
        %v2207 = vsel %vm2054, %v2205, %v2206
        %v2208 = vrot.slane %v1987, 2
        %v2209 = vrot.slane %v897, 2
        %v2210 = vsel %vm2054, %v2208, %v2209
        %v2211 = vrot.slane %v1988, 2
        %v2212 = vsel %vm2054, %v2206, %v2211
        %v2213 = vrot.slane %v1989, 2
        %v2214 = vsel %vm2054, %v2209, %v2213
        %v2279 = vpack.c.bf16 %v2062, %v2057
        %v2280 = vpack.c.bf16 %v2064, %v2060
        %v2281 = vpack.c.bf16 %v2072, %v2067
        %v2282 = vpack.c.bf16 %v2074, %v2070
        %v2283 = vpack.c.bf16 %v2082, %v2077
        %v2284 = vpack.c.bf16 %v2084, %v2080
        %v2285 = vpack.c.bf16 %v2092, %v2087
        %v2286 = vpack.c.bf16 %v2094, %v2090
        %v2287 = vpack.c.bf16 %v2102, %v2097
        %v2288 = vpack.c.bf16 %v2104, %v2100
        %v2289 = vpack.c.bf16 %v2112, %v2107
        %v2290 = vpack.c.bf16 %v2114, %v2110
        %v2291 = vpack.c.bf16 %v2122, %v2117
        %v2292 = vpack.c.bf16 %v2124, %v2120
        %v2293 = vpack.c.bf16 %v2132, %v2127
        %v2294 = vpack.c.bf16 %v2134, %v2130
        %v2295 = vpack.c.bf16 %v2142, %v2137
        %v2296 = vpack.c.bf16 %v2144, %v2140
        %v2297 = vpack.c.bf16 %v2152, %v2147
        %v2298 = vpack.c.bf16 %v2154, %v2150
        %v2299 = vpack.c.bf16 %v2162, %v2157
        %v2300 = vpack.c.bf16 %v2164, %v2160
        %v2301 = vpack.c.bf16 %v2172, %v2167
        %v2302 = vpack.c.bf16 %v2174, %v2170
        %v2303 = vpack.c.bf16 %v2182, %v2177
        %v2304 = vpack.c.bf16 %v2184, %v2180
        %v2305 = vpack.c.bf16 %v2192, %v2187
        %v2306 = vpack.c.bf16 %v2194, %v2190
        %v2307 = vpack.c.bf16 %v2202, %v2197
        %v2308 = vpack.c.bf16 %v2204, %v2200
        %v2309 = vpack.c.bf16 %v2212, %v2207
        %v2310 = vpack.c.bf16 %v2214, %v2210
        %s2311 = scalar_lea.vmem %s2, 256
        %v2312 = vld [vmem:[%s2311] sm:$0xf]
        %v2313 = vld [vmem:[%s2311 + $0x4] sm:$0xf]
        %v2314 = vld [vmem:[%s2311 + $0x8] sm:$0xf]
        %v2315 = vld [vmem:[%s2311 + $0xc] sm:$0xf]
        %v2316 = vld [vmem:[%s2311 + $0x10] sm:$0xf]
        %v2317 = vld [vmem:[%s2311 + $0x14] sm:$0xf]
        %v2318 = vld [vmem:[%s2311 + $0x18] sm:$0xf]
        %v2319 = vld [vmem:[%s2311 + $0x1c] sm:$0xf]
        %v2320 = vld [vmem:[%s2311 + $0x20] sm:$0xf]
        %v2321 = vld [vmem:[%s2311 + $0x24] sm:$0xf]
        %v2322 = vld [vmem:[%s2311 + $0x28] sm:$0xf]
        %v2323 = vld [vmem:[%s2311 + $0x2c] sm:$0xf]
        %v2324 = vld [vmem:[%s2311 + $0x30] sm:$0xf]
        %v2325 = vld [vmem:[%s2311 + $0x34] sm:$0xf]
        %v2326 = vld [vmem:[%s2311 + $0x38] sm:$0xf]
        %v2327 = vld [vmem:[%s2311 + $0x3c] sm:$0xf]
        %v2328 = vld [vmem:[%s2311 + $0x40] sm:$0xf]
        %v2329 = vld [vmem:[%s2311 + $0x44] sm:$0xf]
        %v2330 = vld [vmem:[%s2311 + $0x48] sm:$0xf]
        %v2331 = vld [vmem:[%s2311 + $0x4c] sm:$0xf]
        %v2332 = vld [vmem:[%s2311 + $0x50] sm:$0xf]
        %v2333 = vld [vmem:[%s2311 + $0x54] sm:$0xf]
        %v2334 = vld [vmem:[%s2311 + $0x58] sm:$0xf]
        %v2335 = vld [vmem:[%s2311 + $0x5c] sm:$0xf]
        %v2336 = vld [vmem:[%s2311 + $0x60] sm:$0xf]
        %v2337 = vld [vmem:[%s2311 + $0x64] sm:$0xf]
        %v2338 = vld [vmem:[%s2311 + $0x68] sm:$0xf]
        %v2339 = vld [vmem:[%s2311 + $0x6c] sm:$0xf]
        %v2340 = vld [vmem:[%s2311 + $0x70] sm:$0xf]
        %v2341 = vld [vmem:[%s2311 + $0x74] sm:$0xf]
        %v2342 = vld [vmem:[%s2311 + $0x78] sm:$0xf]
        %v2343 = vld [vmem:[%s2311 + $0x7c] sm:$0xf]
        %v2376 = vunpack.c.l.b16 %v2312
        %v2377 = vunpack.c.l.b16 %v2313
        %v2378 = vunpack.c.l.b16 %v2314
        %v2379 = vunpack.c.l.b16 %v2315
        %v2380 = vunpack.c.l.b16 %v2316
        %v2381 = vunpack.c.l.b16 %v2317
        %v2382 = vunpack.c.l.b16 %v2318
        %v2383 = vunpack.c.l.b16 %v2319
        %v2384 = vunpack.c.l.b16 %v2320
        %v2385 = vunpack.c.l.b16 %v2321
        %v2386 = vunpack.c.l.b16 %v2322
        %v2387 = vunpack.c.l.b16 %v2323
        %v2388 = vunpack.c.l.b16 %v2324
        %v2389 = vunpack.c.l.b16 %v2325
        %v2390 = vunpack.c.l.b16 %v2326
        %v2391 = vunpack.c.l.b16 %v2327
        %v2392 = vunpack.c.l.b16 %v2328
        %v2393 = vunpack.c.l.b16 %v2329
        %v2394 = vunpack.c.l.b16 %v2330
        %v2395 = vunpack.c.l.b16 %v2331
        %v2396 = vunpack.c.l.b16 %v2332
        %v2397 = vunpack.c.l.b16 %v2333
        %v2398 = vunpack.c.l.b16 %v2334
        %v2399 = vunpack.c.l.b16 %v2335
        %v2400 = vunpack.c.l.b16 %v2336
        %v2401 = vunpack.c.l.b16 %v2337
        %v2402 = vunpack.c.l.b16 %v2338
        %v2403 = vunpack.c.l.b16 %v2339
        %v2404 = vunpack.c.l.b16 %v2340
        %v2405 = vunpack.c.l.b16 %v2341
        %v2406 = vunpack.c.l.b16 %v2342
        %v2407 = vunpack.c.l.b16 %v2343
        %v2408 = vpack.c.b16 %v2377, %v2376
        %v2409 = vpack.c.b16 %v2379, %v2378
        %v2410 = vpack.c.b16 %v2381, %v2380
        %v2411 = vpack.c.b16 %v2383, %v2382
        %v2412 = vpack.c.b16 %v2385, %v2384
        %v2413 = vpack.c.b16 %v2387, %v2386
        %v2414 = vpack.c.b16 %v2389, %v2388
        %v2415 = vpack.c.b16 %v2391, %v2390
        %v2416 = vpack.c.b16 %v2393, %v2392
        %v2417 = vpack.c.b16 %v2395, %v2394
        %v2418 = vpack.c.b16 %v2397, %v2396
        %v2419 = vpack.c.b16 %v2399, %v2398
        %v2420 = vpack.c.b16 %v2401, %v2400
        %v2421 = vpack.c.b16 %v2403, %v2402
        %v2422 = vpack.c.b16 %v2405, %v2404
        %v2423 = vpack.c.b16 %v2407, %v2406
        %2440 = vmatprep.subr.bf16.mxu0 0
        %2441 = vmatpush1.bf16.msra.mxu0 %v2415
        %2442 = vmatprep.subr.bf16.mxu0 0
        %2443 = vmatpush1.bf16.msra.mxu0 %v2414
        %2444 = vmatprep.subr.bf16.mxu0 0
        %2445 = vmatpush1.bf16.msra.mxu0 %v2413
        %2446 = vmatprep.subr.bf16.mxu0 0
        %2447 = vmatpush1.bf16.msra.mxu0 %v2412
        %2448 = vmatprep.subr.bf16.mxu0 0
        %2449 = vmatpush1.bf16.msra.mxu0 %v2411
        %2450 = vmatprep.subr.bf16.mxu0 0
        %2451 = vmatpush1.bf16.msra.mxu0 %v2410
        %2452 = vmatprep.subr.bf16.mxu0 0
        %2453 = vmatpush1.bf16.msra.mxu0 %v2409
        %2454 = vmatprep.subr.bf16.mxu0 0
        %2455 = vmatpush1.bf16.msra.mxu0 %v2408
        %2456 = vmatprep.subr.bf16.mxu0 0
        %2457 = vmatpush2.bf16.msra.mxu0 %v2423
        %2458 = vmatprep.subr.bf16.mxu0 0
        %2459 = vmatpush2.bf16.msra.mxu0 %v2422
        %2460 = vmatprep.subr.bf16.mxu0 0
        %2461 = vmatpush2.bf16.msra.mxu0 %v2421
        %2462 = vmatprep.subr.bf16.mxu0 0
        %2463 = vmatpush2.bf16.msra.mxu0 %v2420
        %2464 = vmatprep.subr.bf16.mxu0 0
        %2465 = vmatpush2.bf16.msra.mxu0 %v2419
        %2466 = vmatprep.subr.bf16.mxu0 0
        %2467 = vmatpush2.bf16.msra.mxu0 %v2418
        %2468 = vmatprep.subr.bf16.mxu0 0
        %2469 = vmatpush2.bf16.msra.mxu0 %v2417
        %2470 = vmatprep.subr.bf16.mxu0 0
        %2471 = vmatpush2.bf16.msra.mxu0 %v2416
        %2472 = vmatprep.mubr.bf16.mxu0 %v2280
        %2473 = vmatmul.mubr.bf16.gmra.mxu0 %v2279
        %v2474 = vpop.f32.mrf.mxu0
        %v2475 = vadd.f32 0.0, %v2474
        %v2476 = vpop.f32.mrf.mxu0
        %v2477 = vpop.f32.mrf.mxu0
        %v2478 = vadd.f32 0.0, %v2477
        %v2479 = vpop.f32.mrf.mxu0
        %2480 = vmatprep.mubr.bf16.mxu0 %v2282
        %2481 = vmatmul.mubr.bf16.gmra.mxu0 %v2281
        %v2482 = vpop.f32.mrf.mxu0
        %v2483 = vadd.f32 0.0, %v2482
        %v2484 = vpop.f32.mrf.mxu0
        %v2485 = vpop.f32.mrf.mxu0
        %v2486 = vadd.f32 0.0, %v2485
        %v2487 = vpop.f32.mrf.mxu0
        %2488 = vmatprep.mubr.bf16.mxu0 %v2284
        %2489 = vmatmul.mubr.bf16.gmra.mxu0 %v2283
        %v2490 = vpop.f32.mrf.mxu0
        %v2491 = vadd.f32 0.0, %v2490
        %v2492 = vpop.f32.mrf.mxu0
        %v2493 = vpop.f32.mrf.mxu0
        %v2494 = vadd.f32 0.0, %v2493
        %v2495 = vpop.f32.mrf.mxu0
        %2496 = vmatprep.mubr.bf16.mxu0 %v2286
        %2497 = vmatmul.mubr.bf16.gmra.mxu0 %v2285
        %v2498 = vpop.f32.mrf.mxu0
        %v2499 = vadd.f32 0.0, %v2498
        %v2500 = vpop.f32.mrf.mxu0
        %v2501 = vpop.f32.mrf.mxu0
        %v2502 = vadd.f32 0.0, %v2501
        %v2503 = vpop.f32.mrf.mxu0
        %2504 = vmatprep.mubr.bf16.mxu0 %v2288
        %2505 = vmatmul.mubr.bf16.gmra.mxu0 %v2287
        %v2506 = vpop.f32.mrf.mxu0
        %v2507 = vadd.f32 0.0, %v2506
        %v2508 = vpop.f32.mrf.mxu0
        %v2509 = vpop.f32.mrf.mxu0
        %v2510 = vadd.f32 0.0, %v2509
        %v2511 = vpop.f32.mrf.mxu0
        %2512 = vmatprep.mubr.bf16.mxu0 %v2290
        %2513 = vmatmul.mubr.bf16.gmra.mxu0 %v2289
        %v2514 = vpop.f32.mrf.mxu0
        %v2515 = vadd.f32 0.0, %v2514
        %v2516 = vpop.f32.mrf.mxu0
        %v2517 = vpop.f32.mrf.mxu0
        %v2518 = vadd.f32 0.0, %v2517
        %v2519 = vpop.f32.mrf.mxu0
        %2520 = vmatprep.mubr.bf16.mxu0 %v2292
        %2521 = vmatmul.mubr.bf16.gmra.mxu0 %v2291
        %v2522 = vpop.f32.mrf.mxu0
        %v2523 = vadd.f32 0.0, %v2522
        %v2524 = vpop.f32.mrf.mxu0
        %v2525 = vpop.f32.mrf.mxu0
        %v2526 = vadd.f32 0.0, %v2525
        %v2527 = vpop.f32.mrf.mxu0
        %2528 = vmatprep.mubr.bf16.mxu0 %v2294
        %2529 = vmatmul.mubr.bf16.gmra.mxu0 %v2293
        %v2530 = vpop.f32.mrf.mxu0
        %v2531 = vadd.f32 0.0, %v2530
        %v2532 = vpop.f32.mrf.mxu0
        %v2533 = vpop.f32.mrf.mxu0
        %v2534 = vadd.f32 0.0, %v2533
        %v2535 = vpop.f32.mrf.mxu0
        %2536 = vmatprep.mubr.bf16.mxu0 %v2296
        %2537 = vmatmul.mubr.bf16.gmra.mxu0 %v2295
        %v2538 = vpop.f32.mrf.mxu0
        %v2539 = vadd.f32 0.0, %v2538
        %v2540 = vpop.f32.mrf.mxu0
        %v2541 = vpop.f32.mrf.mxu0
        %v2542 = vadd.f32 0.0, %v2541
        %v2543 = vpop.f32.mrf.mxu0
        %2544 = vmatprep.mubr.bf16.mxu0 %v2298
        %2545 = vmatmul.mubr.bf16.gmra.mxu0 %v2297
        %v2546 = vpop.f32.mrf.mxu0
        %v2547 = vadd.f32 0.0, %v2546
        %v2548 = vpop.f32.mrf.mxu0
        %v2549 = vpop.f32.mrf.mxu0
        %v2550 = vadd.f32 0.0, %v2549
        %v2551 = vpop.f32.mrf.mxu0
        %2552 = vmatprep.mubr.bf16.mxu0 %v2300
        %2553 = vmatmul.mubr.bf16.gmra.mxu0 %v2299
        %v2554 = vpop.f32.mrf.mxu0
        %v2555 = vadd.f32 0.0, %v2554
        %v2556 = vpop.f32.mrf.mxu0
        %v2557 = vpop.f32.mrf.mxu0
        %v2558 = vadd.f32 0.0, %v2557
        %v2559 = vpop.f32.mrf.mxu0
        %2560 = vmatprep.mubr.bf16.mxu0 %v2302
        %2561 = vmatmul.mubr.bf16.gmra.mxu0 %v2301
        %v2562 = vpop.f32.mrf.mxu0
        %v2563 = vadd.f32 0.0, %v2562
        %v2564 = vpop.f32.mrf.mxu0
        %v2565 = vpop.f32.mrf.mxu0
        %v2566 = vadd.f32 0.0, %v2565
        %v2567 = vpop.f32.mrf.mxu0
        %2568 = vmatprep.mubr.bf16.mxu0 %v2304
        %2569 = vmatmul.mubr.bf16.gmra.mxu0 %v2303
        %v2570 = vpop.f32.mrf.mxu0
        %v2571 = vadd.f32 0.0, %v2570
        %v2572 = vpop.f32.mrf.mxu0
        %v2573 = vpop.f32.mrf.mxu0
        %v2574 = vadd.f32 0.0, %v2573
        %v2575 = vpop.f32.mrf.mxu0
        %2576 = vmatprep.mubr.bf16.mxu0 %v2306
        %2577 = vmatmul.mubr.bf16.gmra.mxu0 %v2305
        %v2578 = vpop.f32.mrf.mxu0
        %v2579 = vadd.f32 0.0, %v2578
        %v2580 = vpop.f32.mrf.mxu0
        %v2581 = vpop.f32.mrf.mxu0
        %v2582 = vadd.f32 0.0, %v2581
        %v2583 = vpop.f32.mrf.mxu0
        %2584 = vmatprep.mubr.bf16.mxu0 %v2308
        %2585 = vmatmul.mubr.bf16.gmra.mxu0 %v2307
        %v2586 = vpop.f32.mrf.mxu0
        %v2587 = vadd.f32 0.0, %v2586
        %v2588 = vpop.f32.mrf.mxu0
        %v2589 = vpop.f32.mrf.mxu0
        %v2590 = vadd.f32 0.0, %v2589
        %v2591 = vpop.f32.mrf.mxu0
        %2592 = vmatprep.mubr.bf16.mxu0 %v2310
        %2593 = vmatmul.mubr.bf16.gmra.mxu0 %v2309
        %v2594 = vpop.f32.mrf.mxu0
        %v2595 = vadd.f32 0.0, %v2594
        %v2596 = vpop.f32.mrf.mxu0
        %v2597 = vpop.f32.mrf.mxu0
        %v2598 = vadd.f32 0.0, %v2597
        %v2599 = vpop.f32.mrf.mxu0
        %2600 = vdwg.mxu0
        %v2601 = vadd.f32 %v1800, %v2475
        %v2602 = vadd.f32 %v1803, %v2478
        %v2603 = vadd.f32 %v1808, %v2483
        %v2604 = vadd.f32 %v1811, %v2486
        %v2605 = vadd.f32 %v1816, %v2491
        %v2606 = vadd.f32 %v1819, %v2494
        %v2607 = vadd.f32 %v1824, %v2499
        %v2608 = vadd.f32 %v1827, %v2502
        %v2609 = vadd.f32 %v1832, %v2507
        %v2610 = vadd.f32 %v1835, %v2510
        %v2611 = vadd.f32 %v1840, %v2515
        %v2612 = vadd.f32 %v1843, %v2518
        %v2613 = vadd.f32 %v1848, %v2523
        %v2614 = vadd.f32 %v1851, %v2526
        %v2615 = vadd.f32 %v1856, %v2531
        %v2616 = vadd.f32 %v1859, %v2534
        %v2617 = vadd.f32 %v1864, %v2539
        %v2618 = vadd.f32 %v1867, %v2542
        %v2619 = vadd.f32 %v1872, %v2547
        %v2620 = vadd.f32 %v1875, %v2550
        %v2621 = vadd.f32 %v1880, %v2555
        %v2622 = vadd.f32 %v1883, %v2558
        %v2623 = vadd.f32 %v1888, %v2563
        %v2624 = vadd.f32 %v1891, %v2566
        %v2625 = vadd.f32 %v1896, %v2571
        %v2626 = vadd.f32 %v1899, %v2574
        %v2627 = vadd.f32 %v1904, %v2579
        %v2628 = vadd.f32 %v1907, %v2582
        %v2629 = vadd.f32 %v1912, %v2587
        %v2630 = vadd.f32 %v1915, %v2590
        %v2631 = vadd.f32 %v1920, %v2595
        %v2632 = vadd.f32 %v1923, %v2598
        %v2633 = vld [vmem:[%s545] sm:$0xff]
        %v2634 = vld [vmem:[%s545 + $0x8] sm:$0xff]
        %v2635 = vld [vmem:[%s545 + $0x10] sm:$0xff]
        %v2636 = vld [vmem:[%s545 + $0x18] sm:$0xff]
        %v2637 = vld [vmem:[%s545 + $0x30] sm:$0xff]
        %v2638 = vld [vmem:[%s545 + $0x38] sm:$0xff]
        %v2639 = vld [vmem:[%s545 + $0x40] sm:$0xff]
        %v2640 = vld [vmem:[%s545 + $0x48] sm:$0xff]
        %v2641 = vld [vmem:[%s545 + $0x60] sm:$0xff]
        %v2642 = vld [vmem:[%s545 + $0x68] sm:$0xff]
        %v2643 = vld [vmem:[%s545 + $0x70] sm:$0xff]
        %v2644 = vld [vmem:[%s545 + $0x78] sm:$0xff]
        %v2645 = vld [vmem:[%s545 + $0x90] sm:$0xff]
        %v2646 = vld [vmem:[%s545 + $0x98] sm:$0xff]
        %v2647 = vld [vmem:[%s545 + $0xa0] sm:$0xff]
        %v2648 = vld [vmem:[%s545 + $0xa8] sm:$0xff]
        %v2649 = vld [vmem:[%s545 + $0xc0] sm:$0xff]
        %v2650 = vld [vmem:[%s545 + $0xc8] sm:$0xff]
        %v2651 = vld [vmem:[%s545 + $0xd0] sm:$0xff]
        %v2652 = vld [vmem:[%s545 + $0xd8] sm:$0xff]
        %v2653 = vld [vmem:[%s545 + $0xf0] sm:$0xff]
        %v2654 = vld [vmem:[%s545 + $0xf8] sm:$0xff]
        %v2655 = vld [vmem:[%s545 + $0x100] sm:$0xff]
        %v2656 = vld [vmem:[%s545 + $0x108] sm:$0xff]
        %v2657 = vld [vmem:[%s545 + $0x120] sm:$0xff]
        %v2658 = vld [vmem:[%s545 + $0x128] sm:$0xff]
        %v2659 = vld [vmem:[%s545 + $0x130] sm:$0xff]
        %v2660 = vld [vmem:[%s545 + $0x138] sm:$0xff]
        %v2661 = vld [vmem:[%s545 + $0x150] sm:$0xff]
        %v2662 = vld [vmem:[%s545 + $0x158] sm:$0xff]
        %v2663 = vld [vmem:[%s545 + $0x160] sm:$0xff]
        %v2664 = vld [vmem:[%s545 + $0x168] sm:$0xff]
        %v2665 = vld [vmem:[%s545 + $0x180] sm:$0xff]
        %v2666 = vld [vmem:[%s545 + $0x188] sm:$0xff]
        %v2667 = vld [vmem:[%s545 + $0x190] sm:$0xff]
        %v2668 = vld [vmem:[%s545 + $0x198] sm:$0xff]
        %v2669 = vld [vmem:[%s545 + $0x1b0] sm:$0xff]
        %v2670 = vld [vmem:[%s545 + $0x1b8] sm:$0xff]
        %v2671 = vld [vmem:[%s545 + $0x1c0] sm:$0xff]
        %v2672 = vld [vmem:[%s545 + $0x1c8] sm:$0xff]
        %v2673 = vld [vmem:[%s545 + $0x1e0] sm:$0xff]
        %v2674 = vld [vmem:[%s545 + $0x1e8] sm:$0xff]
        %v2675 = vld [vmem:[%s545 + $0x1f0] sm:$0xff]
        %v2676 = vld [vmem:[%s545 + $0x1f8] sm:$0xff]
        %v2677 = vld [vmem:[%s545 + $0x210] sm:$0xff]
        %v2678 = vld [vmem:[%s545 + $0x218] sm:$0xff]
        %v2679 = vld [vmem:[%s545 + $0x220] sm:$0xff]
        %v2680 = vld [vmem:[%s545 + $0x228] sm:$0xff]
        %v2681 = vld [vmem:[%s545 + $0x240] sm:$0xff]
        %v2682 = vld [vmem:[%s545 + $0x248] sm:$0xff]
        %v2683 = vld [vmem:[%s545 + $0x250] sm:$0xff]
        %v2684 = vld [vmem:[%s545 + $0x258] sm:$0xff]
        %v2685 = vld [vmem:[%s545 + $0x270] sm:$0xff]
        %v2686 = vld [vmem:[%s545 + $0x278] sm:$0xff]
        %v2687 = vld [vmem:[%s545 + $0x280] sm:$0xff]
        %v2688 = vld [vmem:[%s545 + $0x288] sm:$0xff]
        %v2689 = vld [vmem:[%s545 + $0x2a0] sm:$0xff]
        %v2690 = vld [vmem:[%s545 + $0x2a8] sm:$0xff]
        %v2691 = vld [vmem:[%s545 + $0x2b0] sm:$0xff]
        %v2692 = vld [vmem:[%s545 + $0x2b8] sm:$0xff]
        %v2693 = vld [vmem:[%s545 + $0x2d0] sm:$0xff]
        %v2694 = vld [vmem:[%s545 + $0x2d8] sm:$0xff]
        %v2695 = vld [vmem:[%s545 + $0x2e0] sm:$0xff]
        %v2696 = vld [vmem:[%s545 + $0x2e8] sm:$0xff]
        %v2697 = vpack.c.bf16 %v2635, %v2633
        %v2698 = vpack.c.bf16 %v2636, %v2634
        %v2699 = vpack.c.bf16 %v2639, %v2637
        %v2700 = vpack.c.bf16 %v2640, %v2638
        %v2701 = vpack.c.bf16 %v2643, %v2641
        %v2702 = vpack.c.bf16 %v2644, %v2642
        %v2703 = vpack.c.bf16 %v2647, %v2645
        %v2704 = vpack.c.bf16 %v2648, %v2646
        %v2705 = vpack.c.bf16 %v2651, %v2649
        %v2706 = vpack.c.bf16 %v2652, %v2650
        %v2707 = vpack.c.bf16 %v2655, %v2653
        %v2708 = vpack.c.bf16 %v2656, %v2654
        %v2709 = vpack.c.bf16 %v2659, %v2657
        %v2710 = vpack.c.bf16 %v2660, %v2658
        %v2711 = vpack.c.bf16 %v2663, %v2661
        %v2712 = vpack.c.bf16 %v2664, %v2662
        %v2713 = vpack.c.bf16 %v2667, %v2665
        %v2714 = vpack.c.bf16 %v2668, %v2666
        %v2715 = vpack.c.bf16 %v2671, %v2669
        %v2716 = vpack.c.bf16 %v2672, %v2670
        %v2717 = vpack.c.bf16 %v2675, %v2673
        %v2718 = vpack.c.bf16 %v2676, %v2674
        %v2719 = vpack.c.bf16 %v2679, %v2677
        %v2720 = vpack.c.bf16 %v2680, %v2678
        %v2721 = vpack.c.bf16 %v2683, %v2681
        %v2722 = vpack.c.bf16 %v2684, %v2682
        %v2723 = vpack.c.bf16 %v2687, %v2685
        %v2724 = vpack.c.bf16 %v2688, %v2686
        %v2725 = vpack.c.bf16 %v2691, %v2689
        %v2726 = vpack.c.bf16 %v2692, %v2690
        %v2727 = vpack.c.bf16 %v2695, %v2693
        %v2728 = vpack.c.bf16 %v2696, %v2694
        %s2729 = scalar_lea.vmem %s2, 384
        %v2730 = vld [vmem:[%s2729] sm:$0xf]
        %v2731 = vld [vmem:[%s2729 + $0x4] sm:$0xf]
        %v2732 = vld [vmem:[%s2729 + $0x8] sm:$0xf]
        %v2733 = vld [vmem:[%s2729 + $0xc] sm:$0xf]
        %v2734 = vld [vmem:[%s2729 + $0x10] sm:$0xf]
        %v2735 = vld [vmem:[%s2729 + $0x14] sm:$0xf]
        %v2736 = vld [vmem:[%s2729 + $0x18] sm:$0xf]
        %v2737 = vld [vmem:[%s2729 + $0x1c] sm:$0xf]
        %v2738 = vld [vmem:[%s2729 + $0x20] sm:$0xf]
        %v2739 = vld [vmem:[%s2729 + $0x24] sm:$0xf]
        %v2740 = vld [vmem:[%s2729 + $0x28] sm:$0xf]
        %v2741 = vld [vmem:[%s2729 + $0x2c] sm:$0xf]
        %v2742 = vld [vmem:[%s2729 + $0x30] sm:$0xf]
        %v2743 = vld [vmem:[%s2729 + $0x34] sm:$0xf]
        %v2744 = vld [vmem:[%s2729 + $0x38] sm:$0xf]
        %v2745 = vld [vmem:[%s2729 + $0x3c] sm:$0xf]
        %v2746 = vld [vmem:[%s2729 + $0x40] sm:$0xf]
        %v2747 = vld [vmem:[%s2729 + $0x44] sm:$0xf]
        %v2748 = vld [vmem:[%s2729 + $0x48] sm:$0xf]
        %v2749 = vld [vmem:[%s2729 + $0x4c] sm:$0xf]
        %v2750 = vld [vmem:[%s2729 + $0x50] sm:$0xf]
        %v2751 = vld [vmem:[%s2729 + $0x54] sm:$0xf]
        %v2752 = vld [vmem:[%s2729 + $0x58] sm:$0xf]
        %v2753 = vld [vmem:[%s2729 + $0x5c] sm:$0xf]
        %v2754 = vld [vmem:[%s2729 + $0x60] sm:$0xf]
        %v2755 = vld [vmem:[%s2729 + $0x64] sm:$0xf]
        %v2756 = vld [vmem:[%s2729 + $0x68] sm:$0xf]
        %v2757 = vld [vmem:[%s2729 + $0x6c] sm:$0xf]
        %v2758 = vld [vmem:[%s2729 + $0x70] sm:$0xf]
        %v2759 = vld [vmem:[%s2729 + $0x74] sm:$0xf]
        %v2760 = vld [vmem:[%s2729 + $0x78] sm:$0xf]
        %v2761 = vld [vmem:[%s2729 + $0x7c] sm:$0xf]
        %v2794 = vunpack.c.l.b16 %v2730
        %v2795 = vunpack.c.l.b16 %v2731
        %v2796 = vunpack.c.l.b16 %v2732
        %v2797 = vunpack.c.l.b16 %v2733
        %v2798 = vunpack.c.l.b16 %v2734
        %v2799 = vunpack.c.l.b16 %v2735
        %v2800 = vunpack.c.l.b16 %v2736
        %v2801 = vunpack.c.l.b16 %v2737
        %v2802 = vunpack.c.l.b16 %v2738
        %v2803 = vunpack.c.l.b16 %v2739
        %v2804 = vunpack.c.l.b16 %v2740
        %v2805 = vunpack.c.l.b16 %v2741
        %v2806 = vunpack.c.l.b16 %v2742
        %v2807 = vunpack.c.l.b16 %v2743
        %v2808 = vunpack.c.l.b16 %v2744
        %v2809 = vunpack.c.l.b16 %v2745
        %v2810 = vunpack.c.l.b16 %v2746
        %v2811 = vunpack.c.l.b16 %v2747
        %v2812 = vunpack.c.l.b16 %v2748
        %v2813 = vunpack.c.l.b16 %v2749
        %v2814 = vunpack.c.l.b16 %v2750
        %v2815 = vunpack.c.l.b16 %v2751
        %v2816 = vunpack.c.l.b16 %v2752
        %v2817 = vunpack.c.l.b16 %v2753
        %v2818 = vunpack.c.l.b16 %v2754
        %v2819 = vunpack.c.l.b16 %v2755
        %v2820 = vunpack.c.l.b16 %v2756
        %v2821 = vunpack.c.l.b16 %v2757
        %v2822 = vunpack.c.l.b16 %v2758
        %v2823 = vunpack.c.l.b16 %v2759
        %v2824 = vunpack.c.l.b16 %v2760
        %v2825 = vunpack.c.l.b16 %v2761
        %v2826 = vpack.c.b16 %v2795, %v2794
        %v2827 = vpack.c.b16 %v2797, %v2796
        %v2828 = vpack.c.b16 %v2799, %v2798
        %v2829 = vpack.c.b16 %v2801, %v2800
        %v2830 = vpack.c.b16 %v2803, %v2802
        %v2831 = vpack.c.b16 %v2805, %v2804
        %v2832 = vpack.c.b16 %v2807, %v2806
        %v2833 = vpack.c.b16 %v2809, %v2808
        %v2834 = vpack.c.b16 %v2811, %v2810
        %v2835 = vpack.c.b16 %v2813, %v2812
        %v2836 = vpack.c.b16 %v2815, %v2814
        %v2837 = vpack.c.b16 %v2817, %v2816
        %v2838 = vpack.c.b16 %v2819, %v2818
        %v2839 = vpack.c.b16 %v2821, %v2820
        %v2840 = vpack.c.b16 %v2823, %v2822
        %v2841 = vpack.c.b16 %v2825, %v2824
        %2858 = vmatprep.subr.bf16.mxu0 0
        %2859 = vmatpush1.bf16.msra.mxu0 %v2833
        %2860 = vmatprep.subr.bf16.mxu0 0
        %2861 = vmatpush1.bf16.msra.mxu0 %v2832
        %2862 = vmatprep.subr.bf16.mxu0 0
        %2863 = vmatpush1.bf16.msra.mxu0 %v2831
        %2864 = vmatprep.subr.bf16.mxu0 0
        %2865 = vmatpush1.bf16.msra.mxu0 %v2830
        %2866 = vmatprep.subr.bf16.mxu0 0
        %2867 = vmatpush1.bf16.msra.mxu0 %v2829
        %2868 = vmatprep.subr.bf16.mxu0 0
        %2869 = vmatpush1.bf16.msra.mxu0 %v2828
        %2870 = vmatprep.subr.bf16.mxu0 0
        %2871 = vmatpush1.bf16.msra.mxu0 %v2827
        %2872 = vmatprep.subr.bf16.mxu0 0
        %2873 = vmatpush1.bf16.msra.mxu0 %v2826
        %2874 = vmatprep.subr.bf16.mxu0 0
        %2875 = vmatpush2.bf16.msra.mxu0 %v2841
        %2876 = vmatprep.subr.bf16.mxu0 0
        %2877 = vmatpush2.bf16.msra.mxu0 %v2840
        %2878 = vmatprep.subr.bf16.mxu0 0
        %2879 = vmatpush2.bf16.msra.mxu0 %v2839
        %2880 = vmatprep.subr.bf16.mxu0 0
        %2881 = vmatpush2.bf16.msra.mxu0 %v2838
        %2882 = vmatprep.subr.bf16.mxu0 0
        %2883 = vmatpush2.bf16.msra.mxu0 %v2837
        %2884 = vmatprep.subr.bf16.mxu0 0
        %2885 = vmatpush2.bf16.msra.mxu0 %v2836
        %2886 = vmatprep.subr.bf16.mxu0 0
        %2887 = vmatpush2.bf16.msra.mxu0 %v2835
        %2888 = vmatprep.subr.bf16.mxu0 0
        %2889 = vmatpush2.bf16.msra.mxu0 %v2834
        %2890 = vmatprep.mubr.bf16.mxu0 %v2698
        %2891 = vmatmul.mubr.bf16.gmra.mxu0 %v2697
        %v2892 = vpop.f32.mrf.mxu0
        %v2893 = vadd.f32 0.0, %v2892
        %v2894 = vpop.f32.mrf.mxu0
        %v2895 = vpop.f32.mrf.mxu0
        %v2896 = vadd.f32 0.0, %v2895
        %v2897 = vpop.f32.mrf.mxu0
        %2898 = vmatprep.mubr.bf16.mxu0 %v2700
        %2899 = vmatmul.mubr.bf16.gmra.mxu0 %v2699
        %v2900 = vpop.f32.mrf.mxu0
        %v2901 = vadd.f32 0.0, %v2900
        %v2902 = vpop.f32.mrf.mxu0
        %v2903 = vpop.f32.mrf.mxu0
        %v2904 = vadd.f32 0.0, %v2903
        %v2905 = vpop.f32.mrf.mxu0
        %2906 = vmatprep.mubr.bf16.mxu0 %v2702
        %2907 = vmatmul.mubr.bf16.gmra.mxu0 %v2701
        %v2908 = vpop.f32.mrf.mxu0
        %v2909 = vadd.f32 0.0, %v2908
        %v2910 = vpop.f32.mrf.mxu0
        %v2911 = vpop.f32.mrf.mxu0
        %v2912 = vadd.f32 0.0, %v2911
        %v2913 = vpop.f32.mrf.mxu0
        %2914 = vmatprep.mubr.bf16.mxu0 %v2704
        %2915 = vmatmul.mubr.bf16.gmra.mxu0 %v2703
        %v2916 = vpop.f32.mrf.mxu0
        %v2917 = vadd.f32 0.0, %v2916
        %v2918 = vpop.f32.mrf.mxu0
        %v2919 = vpop.f32.mrf.mxu0
        %v2920 = vadd.f32 0.0, %v2919
        %v2921 = vpop.f32.mrf.mxu0
        %2922 = vmatprep.mubr.bf16.mxu0 %v2706
        %2923 = vmatmul.mubr.bf16.gmra.mxu0 %v2705
        %v2924 = vpop.f32.mrf.mxu0
        %v2925 = vadd.f32 0.0, %v2924
        %v2926 = vpop.f32.mrf.mxu0
        %v2927 = vpop.f32.mrf.mxu0
        %v2928 = vadd.f32 0.0, %v2927
        %v2929 = vpop.f32.mrf.mxu0
        %2930 = vmatprep.mubr.bf16.mxu0 %v2708
        %2931 = vmatmul.mubr.bf16.gmra.mxu0 %v2707
        %v2932 = vpop.f32.mrf.mxu0
        %v2933 = vadd.f32 0.0, %v2932
        %v2934 = vpop.f32.mrf.mxu0
        %v2935 = vpop.f32.mrf.mxu0
        %v2936 = vadd.f32 0.0, %v2935
        %v2937 = vpop.f32.mrf.mxu0
        %2938 = vmatprep.mubr.bf16.mxu0 %v2710
        %2939 = vmatmul.mubr.bf16.gmra.mxu0 %v2709
        %v2940 = vpop.f32.mrf.mxu0
        %v2941 = vadd.f32 0.0, %v2940
        %v2942 = vpop.f32.mrf.mxu0
        %v2943 = vpop.f32.mrf.mxu0
        %v2944 = vadd.f32 0.0, %v2943
        %v2945 = vpop.f32.mrf.mxu0
        %2946 = vmatprep.mubr.bf16.mxu0 %v2712
        %2947 = vmatmul.mubr.bf16.gmra.mxu0 %v2711
        %v2948 = vpop.f32.mrf.mxu0
        %v2949 = vadd.f32 0.0, %v2948
        %v2950 = vpop.f32.mrf.mxu0
        %v2951 = vpop.f32.mrf.mxu0
        %v2952 = vadd.f32 0.0, %v2951
        %v2953 = vpop.f32.mrf.mxu0
        %2954 = vmatprep.mubr.bf16.mxu0 %v2714
        %2955 = vmatmul.mubr.bf16.gmra.mxu0 %v2713
        %v2956 = vpop.f32.mrf.mxu0
        %v2957 = vadd.f32 0.0, %v2956
        %v2958 = vpop.f32.mrf.mxu0
        %v2959 = vpop.f32.mrf.mxu0
        %v2960 = vadd.f32 0.0, %v2959
        %v2961 = vpop.f32.mrf.mxu0
        %2962 = vmatprep.mubr.bf16.mxu0 %v2716
        %2963 = vmatmul.mubr.bf16.gmra.mxu0 %v2715
        %v2964 = vpop.f32.mrf.mxu0
        %v2965 = vadd.f32 0.0, %v2964
        %v2966 = vpop.f32.mrf.mxu0
        %v2967 = vpop.f32.mrf.mxu0
        %v2968 = vadd.f32 0.0, %v2967
        %v2969 = vpop.f32.mrf.mxu0
        %2970 = vmatprep.mubr.bf16.mxu0 %v2718
        %2971 = vmatmul.mubr.bf16.gmra.mxu0 %v2717
        %v2972 = vpop.f32.mrf.mxu0
        %v2973 = vadd.f32 0.0, %v2972
        %v2974 = vpop.f32.mrf.mxu0
        %v2975 = vpop.f32.mrf.mxu0
        %v2976 = vadd.f32 0.0, %v2975
        %v2977 = vpop.f32.mrf.mxu0
        %2978 = vmatprep.mubr.bf16.mxu0 %v2720
        %2979 = vmatmul.mubr.bf16.gmra.mxu0 %v2719
        %v2980 = vpop.f32.mrf.mxu0
        %v2981 = vadd.f32 0.0, %v2980
        %v2982 = vpop.f32.mrf.mxu0
        %v2983 = vpop.f32.mrf.mxu0
        %v2984 = vadd.f32 0.0, %v2983
        %v2985 = vpop.f32.mrf.mxu0
        %2986 = vmatprep.mubr.bf16.mxu0 %v2722
        %2987 = vmatmul.mubr.bf16.gmra.mxu0 %v2721
        %v2988 = vpop.f32.mrf.mxu0
        %v2989 = vadd.f32 0.0, %v2988
        %v2990 = vpop.f32.mrf.mxu0
        %v2991 = vpop.f32.mrf.mxu0
        %v2992 = vadd.f32 0.0, %v2991
        %v2993 = vpop.f32.mrf.mxu0
        %2994 = vmatprep.mubr.bf16.mxu0 %v2724
        %2995 = vmatmul.mubr.bf16.gmra.mxu0 %v2723
        %v2996 = vpop.f32.mrf.mxu0
        %v2997 = vadd.f32 0.0, %v2996
        %v2998 = vpop.f32.mrf.mxu0
        %v2999 = vpop.f32.mrf.mxu0
        %v3000 = vadd.f32 0.0, %v2999
        %v3001 = vpop.f32.mrf.mxu0
        %3002 = vmatprep.mubr.bf16.mxu0 %v2726
        %3003 = vmatmul.mubr.bf16.gmra.mxu0 %v2725
        %v3004 = vpop.f32.mrf.mxu0
        %v3005 = vadd.f32 0.0, %v3004
        %v3006 = vpop.f32.mrf.mxu0
        %v3007 = vpop.f32.mrf.mxu0
        %v3008 = vadd.f32 0.0, %v3007
        %v3009 = vpop.f32.mrf.mxu0
        %3010 = vmatprep.mubr.bf16.mxu0 %v2728
        %3011 = vmatmul.mubr.bf16.gmra.mxu0 %v2727
        %v3012 = vpop.f32.mrf.mxu0
        %v3013 = vadd.f32 0.0, %v3012
        %v3014 = vpop.f32.mrf.mxu0
        %v3015 = vpop.f32.mrf.mxu0
        %v3016 = vadd.f32 0.0, %v3015
        %v3017 = vpop.f32.mrf.mxu0
        %3018 = vdwg.mxu0
        %v3019 = vadd.f32 %v2601, %v2893
        %v3020 = vadd.f32 %v2602, %v2896
        %v3021 = vadd.f32 %v2603, %v2901
        %v3022 = vadd.f32 %v2604, %v2904
        %v3023 = vadd.f32 %v2605, %v2909
        %v3024 = vadd.f32 %v2606, %v2912
        %v3025 = vadd.f32 %v2607, %v2917
        %v3026 = vadd.f32 %v2608, %v2920
        %v3027 = vadd.f32 %v2609, %v2925
        %v3028 = vadd.f32 %v2610, %v2928
        %v3029 = vadd.f32 %v2611, %v2933
        %v3030 = vadd.f32 %v2612, %v2936
        %v3031 = vadd.f32 %v2613, %v2941
        %v3032 = vadd.f32 %v2614, %v2944
        %v3033 = vadd.f32 %v2615, %v2949
        %v3034 = vadd.f32 %v2616, %v2952
        %v3035 = vadd.f32 %v2617, %v2957
        %v3036 = vadd.f32 %v2618, %v2960
        %v3037 = vadd.f32 %v2619, %v2965
        %v3038 = vadd.f32 %v2620, %v2968
        %v3039 = vadd.f32 %v2621, %v2973
        %v3040 = vadd.f32 %v2622, %v2976
        %v3041 = vadd.f32 %v2623, %v2981
        %v3042 = vadd.f32 %v2624, %v2984
        %v3043 = vadd.f32 %v2625, %v2989
        %v3044 = vadd.f32 %v2626, %v2992
        %v3045 = vadd.f32 %v2627, %v2997
        %v3046 = vadd.f32 %v2628, %v3000
        %v3047 = vadd.f32 %v2629, %v3005
        %v3048 = vadd.f32 %v2630, %v3008
        %v3049 = vadd.f32 %v2631, %v3013
        %v3050 = vadd.f32 %v2632, %v3016
        %v3051 = vld [vmem:[%s545] sm:$0xfe]
        %v3052 = vld [vmem:[%s545 + $0x8] sm:$0xfe]
        %v3053 = vld [vmem:[%s545 + $0x10] sm:$0xff]
        %v3054 = vld [vmem:[%s545 + $0x18] sm:$0xff]
        %v3055 = vld [vmem:[%s545 + $0x20] sm:$0x1]
        %v3056 = vld [vmem:[%s545 + $0x28] sm:$0x1]
        %v3057 = vld [vmem:[%s545 + $0x30] sm:$0xfe]
        %v3058 = vld [vmem:[%s545 + $0x38] sm:$0xfe]
        %v3059 = vld [vmem:[%s545 + $0x40] sm:$0xff]
        %v3060 = vld [vmem:[%s545 + $0x48] sm:$0xff]
        %v3061 = vld [vmem:[%s545 + $0x50] sm:$0x1]
        %v3062 = vld [vmem:[%s545 + $0x58] sm:$0x1]
        %v3063 = vld [vmem:[%s545 + $0x60] sm:$0xfe]
        %v3064 = vld [vmem:[%s545 + $0x68] sm:$0xfe]
        %v3065 = vld [vmem:[%s545 + $0x70] sm:$0xff]
        %v3066 = vld [vmem:[%s545 + $0x78] sm:$0xff]
        %v3067 = vld [vmem:[%s545 + $0x80] sm:$0x1]
        %v3068 = vld [vmem:[%s545 + $0x88] sm:$0x1]
        %v3069 = vld [vmem:[%s545 + $0x90] sm:$0xfe]
        %v3070 = vld [vmem:[%s545 + $0x98] sm:$0xfe]
        %v3071 = vld [vmem:[%s545 + $0xa0] sm:$0xff]
        %v3072 = vld [vmem:[%s545 + $0xa8] sm:$0xff]
        %v3073 = vld [vmem:[%s545 + $0xb0] sm:$0x1]
        %v3074 = vld [vmem:[%s545 + $0xb8] sm:$0x1]
        %v3075 = vld [vmem:[%s545 + $0xc0] sm:$0xfe]
        %v3076 = vld [vmem:[%s545 + $0xc8] sm:$0xfe]
        %v3077 = vld [vmem:[%s545 + $0xd0] sm:$0xff]
        %v3078 = vld [vmem:[%s545 + $0xd8] sm:$0xff]
        %v3079 = vld [vmem:[%s545 + $0xe0] sm:$0x1]
        %v3080 = vld [vmem:[%s545 + $0xe8] sm:$0x1]
        %v3081 = vld [vmem:[%s545 + $0xf0] sm:$0xfe]
        %v3082 = vld [vmem:[%s545 + $0xf8] sm:$0xfe]
        %v3083 = vld [vmem:[%s545 + $0x100] sm:$0xff]
        %v3084 = vld [vmem:[%s545 + $0x108] sm:$0xff]
        %v3085 = vld [vmem:[%s545 + $0x110] sm:$0x1]
        %v3086 = vld [vmem:[%s545 + $0x118] sm:$0x1]
        %v3087 = vld [vmem:[%s545 + $0x120] sm:$0xfe]
        %v3088 = vld [vmem:[%s545 + $0x128] sm:$0xfe]
        %v3089 = vld [vmem:[%s545 + $0x130] sm:$0xff]
        %v3090 = vld [vmem:[%s545 + $0x138] sm:$0xff]
        %v3091 = vld [vmem:[%s545 + $0x140] sm:$0x1]
        %v3092 = vld [vmem:[%s545 + $0x148] sm:$0x1]
        %v3093 = vld [vmem:[%s545 + $0x150] sm:$0xfe]
        %v3094 = vld [vmem:[%s545 + $0x158] sm:$0xfe]
        %v3095 = vld [vmem:[%s545 + $0x160] sm:$0xff]
        %v3096 = vld [vmem:[%s545 + $0x168] sm:$0xff]
        %v3097 = vld [vmem:[%s545 + $0x170] sm:$0x1]
        %v3098 = vld [vmem:[%s545 + $0x178] sm:$0x1]
        %v3099 = vld [vmem:[%s545 + $0x180] sm:$0xfe]
        %v3100 = vld [vmem:[%s545 + $0x188] sm:$0xfe]
        %v3101 = vld [vmem:[%s545 + $0x190] sm:$0xff]
        %v3102 = vld [vmem:[%s545 + $0x198] sm:$0xff]
        %v3103 = vld [vmem:[%s545 + $0x1a0] sm:$0x1]
        %v3104 = vld [vmem:[%s545 + $0x1a8] sm:$0x1]
        %v3105 = vld [vmem:[%s545 + $0x1b0] sm:$0xfe]
        %v3106 = vld [vmem:[%s545 + $0x1b8] sm:$0xfe]
        %v3107 = vld [vmem:[%s545 + $0x1c0] sm:$0xff]
        %v3108 = vld [vmem:[%s545 + $0x1c8] sm:$0xff]
        %v3109 = vld [vmem:[%s545 + $0x1d0] sm:$0x1]
        %v3110 = vld [vmem:[%s545 + $0x1d8] sm:$0x1]
        %v3111 = vld [vmem:[%s545 + $0x1e0] sm:$0xfe]
        %v3112 = vld [vmem:[%s545 + $0x1e8] sm:$0xfe]
        %v3113 = vld [vmem:[%s545 + $0x1f0] sm:$0xff]
        %v3114 = vld [vmem:[%s545 + $0x1f8] sm:$0xff]
        %v3115 = vld [vmem:[%s545 + $0x200] sm:$0x1]
        %v3116 = vld [vmem:[%s545 + $0x208] sm:$0x1]
        %v3117 = vld [vmem:[%s545 + $0x210] sm:$0xfe]
        %v3118 = vld [vmem:[%s545 + $0x218] sm:$0xfe]
        %v3119 = vld [vmem:[%s545 + $0x220] sm:$0xff]
        %v3120 = vld [vmem:[%s545 + $0x228] sm:$0xff]
        %v3121 = vld [vmem:[%s545 + $0x230] sm:$0x1]
        %v3122 = vld [vmem:[%s545 + $0x238] sm:$0x1]
        %v3123 = vld [vmem:[%s545 + $0x240] sm:$0xfe]
        %v3124 = vld [vmem:[%s545 + $0x248] sm:$0xfe]
        %v3125 = vld [vmem:[%s545 + $0x250] sm:$0xff]
        %v3126 = vld [vmem:[%s545 + $0x258] sm:$0xff]
        %v3127 = vld [vmem:[%s545 + $0x260] sm:$0x1]
        %v3128 = vld [vmem:[%s545 + $0x268] sm:$0x1]
        %v3129 = vld [vmem:[%s545 + $0x270] sm:$0xfe]
        %v3130 = vld [vmem:[%s545 + $0x278] sm:$0xfe]
        %v3131 = vld [vmem:[%s545 + $0x280] sm:$0xff]
        %v3132 = vld [vmem:[%s545 + $0x288] sm:$0xff]
        %v3133 = vld [vmem:[%s545 + $0x290] sm:$0x1]
        %v3134 = vld [vmem:[%s545 + $0x298] sm:$0x1]
        %v3135 = vld [vmem:[%s545 + $0x2a0] sm:$0xfe]
        %v3136 = vld [vmem:[%s545 + $0x2a8] sm:$0xfe]
        %v3137 = vld [vmem:[%s545 + $0x2b0] sm:$0xff]
        %v3138 = vld [vmem:[%s545 + $0x2b8] sm:$0xff]
        %v3139 = vld [vmem:[%s545 + $0x2c0] sm:$0x1]
        %v3140 = vld [vmem:[%s545 + $0x2c8] sm:$0x1]
        %v3141 = vld [vmem:[%s545 + $0x2d0] sm:$0xfe]
        %v3142 = vld [vmem:[%s545 + $0x2d8] sm:$0xfe]
        %v3143 = vld [vmem:[%s545 + $0x2e0] sm:$0xff]
        %v3144 = vld [vmem:[%s545 + $0x2e8] sm:$0xff]
        %v3145 = vld [vmem:[%s545 + $0x2f0] sm:$0x1]
        %v3146 = vld [vmem:[%s545 + $0x2f8] sm:$0x1]
        %v3243 = vrot.slane %v3051, 1
        %v3244 = vrot.slane %v3053, 1
        %v3245 = vsel %vm1122, %v3243, %v3244
        %v3246 = vrot.slane %v3052, 1
        %v3247 = vrot.slane %v3054, 1
        %v3248 = vsel %vm1122, %v3246, %v3247
        %v3249 = vrot.slane %v3055, 1
        %v3250 = vsel %vm1122, %v3244, %v3249
        %v3251 = vrot.slane %v3056, 1
        %v3252 = vsel %vm1122, %v3247, %v3251
        %v3253 = vrot.slane %v3057, 1
        %v3254 = vrot.slane %v3059, 1
        %v3255 = vsel %vm1122, %v3253, %v3254
        %v3256 = vrot.slane %v3058, 1
        %v3257 = vrot.slane %v3060, 1
        %v3258 = vsel %vm1122, %v3256, %v3257
        %v3259 = vrot.slane %v3061, 1
        %v3260 = vsel %vm1122, %v3254, %v3259
        %v3261 = vrot.slane %v3062, 1
        %v3262 = vsel %vm1122, %v3257, %v3261
        %v3263 = vrot.slane %v3063, 1
        %v3264 = vrot.slane %v3065, 1
        %v3265 = vsel %vm1122, %v3263, %v3264
        %v3266 = vrot.slane %v3064, 1
        %v3267 = vrot.slane %v3066, 1
        %v3268 = vsel %vm1122, %v3266, %v3267
        %v3269 = vrot.slane %v3067, 1
        %v3270 = vsel %vm1122, %v3264, %v3269
        %v3271 = vrot.slane %v3068, 1
        %v3272 = vsel %vm1122, %v3267, %v3271
        %v3273 = vrot.slane %v3069, 1
        %v3274 = vrot.slane %v3071, 1
        %v3275 = vsel %vm1122, %v3273, %v3274
        %v3276 = vrot.slane %v3070, 1
        %v3277 = vrot.slane %v3072, 1
        %v3278 = vsel %vm1122, %v3276, %v3277
        %v3279 = vrot.slane %v3073, 1
        %v3280 = vsel %vm1122, %v3274, %v3279
        %v3281 = vrot.slane %v3074, 1
        %v3282 = vsel %vm1122, %v3277, %v3281
        %v3283 = vrot.slane %v3075, 1
        %v3284 = vrot.slane %v3077, 1
        %v3285 = vsel %vm1122, %v3283, %v3284
        %v3286 = vrot.slane %v3076, 1
        %v3287 = vrot.slane %v3078, 1
        %v3288 = vsel %vm1122, %v3286, %v3287
        %v3289 = vrot.slane %v3079, 1
        %v3290 = vsel %vm1122, %v3284, %v3289
        %v3291 = vrot.slane %v3080, 1
        %v3292 = vsel %vm1122, %v3287, %v3291
        %v3293 = vrot.slane %v3081, 1
        %v3294 = vrot.slane %v3083, 1
        %v3295 = vsel %vm1122, %v3293, %v3294
        %v3296 = vrot.slane %v3082, 1
        %v3297 = vrot.slane %v3084, 1
        %v3298 = vsel %vm1122, %v3296, %v3297
        %v3299 = vrot.slane %v3085, 1
        %v3300 = vsel %vm1122, %v3294, %v3299
        %v3301 = vrot.slane %v3086, 1
        %v3302 = vsel %vm1122, %v3297, %v3301
        %v3303 = vrot.slane %v3087, 1
        %v3304 = vrot.slane %v3089, 1
        %v3305 = vsel %vm1122, %v3303, %v3304
        %v3306 = vrot.slane %v3088, 1
        %v3307 = vrot.slane %v3090, 1
        %v3308 = vsel %vm1122, %v3306, %v3307
        %v3309 = vrot.slane %v3091, 1
        %v3310 = vsel %vm1122, %v3304, %v3309
        %v3311 = vrot.slane %v3092, 1
        %v3312 = vsel %vm1122, %v3307, %v3311
        %v3313 = vrot.slane %v3093, 1
        %v3314 = vrot.slane %v3095, 1
        %v3315 = vsel %vm1122, %v3313, %v3314
        %v3316 = vrot.slane %v3094, 1
        %v3317 = vrot.slane %v3096, 1
        %v3318 = vsel %vm1122, %v3316, %v3317
        %v3319 = vrot.slane %v3097, 1
        %v3320 = vsel %vm1122, %v3314, %v3319
        %v3321 = vrot.slane %v3098, 1
        %v3322 = vsel %vm1122, %v3317, %v3321
        %v3323 = vrot.slane %v3099, 1
        %v3324 = vrot.slane %v3101, 1
        %v3325 = vsel %vm1122, %v3323, %v3324
        %v3326 = vrot.slane %v3100, 1
        %v3327 = vrot.slane %v3102, 1
        %v3328 = vsel %vm1122, %v3326, %v3327
        %v3329 = vrot.slane %v3103, 1
        %v3330 = vsel %vm1122, %v3324, %v3329
        %v3331 = vrot.slane %v3104, 1
        %v3332 = vsel %vm1122, %v3327, %v3331
        %v3333 = vrot.slane %v3105, 1
        %v3334 = vrot.slane %v3107, 1
        %v3335 = vsel %vm1122, %v3333, %v3334
        %v3336 = vrot.slane %v3106, 1
        %v3337 = vrot.slane %v3108, 1
        %v3338 = vsel %vm1122, %v3336, %v3337
        %v3339 = vrot.slane %v3109, 1
        %v3340 = vsel %vm1122, %v3334, %v3339
        %v3341 = vrot.slane %v3110, 1
        %v3342 = vsel %vm1122, %v3337, %v3341
        %v3343 = vrot.slane %v3111, 1
        %v3344 = vrot.slane %v3113, 1
        %v3345 = vsel %vm1122, %v3343, %v3344
        %v3346 = vrot.slane %v3112, 1
        %v3347 = vrot.slane %v3114, 1
        %v3348 = vsel %vm1122, %v3346, %v3347
        %v3349 = vrot.slane %v3115, 1
        %v3350 = vsel %vm1122, %v3344, %v3349
        %v3351 = vrot.slane %v3116, 1
        %v3352 = vsel %vm1122, %v3347, %v3351
        %v3353 = vrot.slane %v3117, 1
        %v3354 = vrot.slane %v3119, 1
        %v3355 = vsel %vm1122, %v3353, %v3354
        %v3356 = vrot.slane %v3118, 1
        %v3357 = vrot.slane %v3120, 1
        %v3358 = vsel %vm1122, %v3356, %v3357
        %v3359 = vrot.slane %v3121, 1
        %v3360 = vsel %vm1122, %v3354, %v3359
        %v3361 = vrot.slane %v3122, 1
        %v3362 = vsel %vm1122, %v3357, %v3361
        %v3363 = vrot.slane %v3123, 1
        %v3364 = vrot.slane %v3125, 1
        %v3365 = vsel %vm1122, %v3363, %v3364
        %v3366 = vrot.slane %v3124, 1
        %v3367 = vrot.slane %v3126, 1
        %v3368 = vsel %vm1122, %v3366, %v3367
        %v3369 = vrot.slane %v3127, 1
        %v3370 = vsel %vm1122, %v3364, %v3369
        %v3371 = vrot.slane %v3128, 1
        %v3372 = vsel %vm1122, %v3367, %v3371
        %v3373 = vrot.slane %v3129, 1
        %v3374 = vrot.slane %v3131, 1
        %v3375 = vsel %vm1122, %v3373, %v3374
        %v3376 = vrot.slane %v3130, 1
        %v3377 = vrot.slane %v3132, 1
        %v3378 = vsel %vm1122, %v3376, %v3377
        %v3379 = vrot.slane %v3133, 1
        %v3380 = vsel %vm1122, %v3374, %v3379
        %v3381 = vrot.slane %v3134, 1
        %v3382 = vsel %vm1122, %v3377, %v3381
        %v3383 = vrot.slane %v3135, 1
        %v3384 = vrot.slane %v3137, 1
        %v3385 = vsel %vm1122, %v3383, %v3384
        %v3386 = vrot.slane %v3136, 1
        %v3387 = vrot.slane %v3138, 1
        %v3388 = vsel %vm1122, %v3386, %v3387
        %v3389 = vrot.slane %v3139, 1
        %v3390 = vsel %vm1122, %v3384, %v3389
        %v3391 = vrot.slane %v3140, 1
        %v3392 = vsel %vm1122, %v3387, %v3391
        %v3393 = vrot.slane %v3141, 1
        %v3394 = vrot.slane %v3143, 1
        %v3395 = vsel %vm1122, %v3393, %v3394
        %v3396 = vrot.slane %v3142, 1
        %v3397 = vrot.slane %v3144, 1
        %v3398 = vsel %vm1122, %v3396, %v3397
        %v3399 = vrot.slane %v3145, 1
        %v3400 = vsel %vm1122, %v3394, %v3399
        %v3401 = vrot.slane %v3146, 1
        %v3402 = vsel %vm1122, %v3397, %v3401
        %v3467 = vpack.c.bf16 %v3250, %v3245
        %v3468 = vpack.c.bf16 %v3252, %v3248
        %v3469 = vpack.c.bf16 %v3260, %v3255
        %v3470 = vpack.c.bf16 %v3262, %v3258
        %v3471 = vpack.c.bf16 %v3270, %v3265
        %v3472 = vpack.c.bf16 %v3272, %v3268
        %v3473 = vpack.c.bf16 %v3280, %v3275
        %v3474 = vpack.c.bf16 %v3282, %v3278
        %v3475 = vpack.c.bf16 %v3290, %v3285
        %v3476 = vpack.c.bf16 %v3292, %v3288
        %v3477 = vpack.c.bf16 %v3300, %v3295
        %v3478 = vpack.c.bf16 %v3302, %v3298
        %v3479 = vpack.c.bf16 %v3310, %v3305
        %v3480 = vpack.c.bf16 %v3312, %v3308
        %v3481 = vpack.c.bf16 %v3320, %v3315
        %v3482 = vpack.c.bf16 %v3322, %v3318
        %v3483 = vpack.c.bf16 %v3330, %v3325
        %v3484 = vpack.c.bf16 %v3332, %v3328
        %v3485 = vpack.c.bf16 %v3340, %v3335
        %v3486 = vpack.c.bf16 %v3342, %v3338
        %v3487 = vpack.c.bf16 %v3350, %v3345
        %v3488 = vpack.c.bf16 %v3352, %v3348
        %v3489 = vpack.c.bf16 %v3360, %v3355
        %v3490 = vpack.c.bf16 %v3362, %v3358
        %v3491 = vpack.c.bf16 %v3370, %v3365
        %v3492 = vpack.c.bf16 %v3372, %v3368
        %v3493 = vpack.c.bf16 %v3380, %v3375
        %v3494 = vpack.c.bf16 %v3382, %v3378
        %v3495 = vpack.c.bf16 %v3390, %v3385
        %v3496 = vpack.c.bf16 %v3392, %v3388
        %v3497 = vpack.c.bf16 %v3400, %v3395
        %v3498 = vpack.c.bf16 %v3402, %v3398
        %s3499 = scalar_lea.vmem %s2, 512
        %v3500 = vld [vmem:[%s3499] sm:$0xf]
        %v3501 = vld [vmem:[%s3499 + $0x4] sm:$0xf]
        %v3502 = vld [vmem:[%s3499 + $0x8] sm:$0xf]
        %v3503 = vld [vmem:[%s3499 + $0xc] sm:$0xf]
        %v3504 = vld [vmem:[%s3499 + $0x10] sm:$0xf]
        %v3505 = vld [vmem:[%s3499 + $0x14] sm:$0xf]
        %v3506 = vld [vmem:[%s3499 + $0x18] sm:$0xf]
        %v3507 = vld [vmem:[%s3499 + $0x1c] sm:$0xf]
        %v3508 = vld [vmem:[%s3499 + $0x20] sm:$0xf]
        %v3509 = vld [vmem:[%s3499 + $0x24] sm:$0xf]
        %v3510 = vld [vmem:[%s3499 + $0x28] sm:$0xf]
        %v3511 = vld [vmem:[%s3499 + $0x2c] sm:$0xf]
        %v3512 = vld [vmem:[%s3499 + $0x30] sm:$0xf]
        %v3513 = vld [vmem:[%s3499 + $0x34] sm:$0xf]
        %v3514 = vld [vmem:[%s3499 + $0x38] sm:$0xf]
        %v3515 = vld [vmem:[%s3499 + $0x3c] sm:$0xf]
        %v3516 = vld [vmem:[%s3499 + $0x40] sm:$0xf]
        %v3517 = vld [vmem:[%s3499 + $0x44] sm:$0xf]
        %v3518 = vld [vmem:[%s3499 + $0x48] sm:$0xf]
        %v3519 = vld [vmem:[%s3499 + $0x4c] sm:$0xf]
        %v3520 = vld [vmem:[%s3499 + $0x50] sm:$0xf]
        %v3521 = vld [vmem:[%s3499 + $0x54] sm:$0xf]
        %v3522 = vld [vmem:[%s3499 + $0x58] sm:$0xf]
        %v3523 = vld [vmem:[%s3499 + $0x5c] sm:$0xf]
        %v3524 = vld [vmem:[%s3499 + $0x60] sm:$0xf]
        %v3525 = vld [vmem:[%s3499 + $0x64] sm:$0xf]
        %v3526 = vld [vmem:[%s3499 + $0x68] sm:$0xf]
        %v3527 = vld [vmem:[%s3499 + $0x6c] sm:$0xf]
        %v3528 = vld [vmem:[%s3499 + $0x70] sm:$0xf]
        %v3529 = vld [vmem:[%s3499 + $0x74] sm:$0xf]
        %v3530 = vld [vmem:[%s3499 + $0x78] sm:$0xf]
        %v3531 = vld [vmem:[%s3499 + $0x7c] sm:$0xf]
        %v3564 = vunpack.c.l.b16 %v3500
        %v3565 = vunpack.c.l.b16 %v3501
        %v3566 = vunpack.c.l.b16 %v3502
        %v3567 = vunpack.c.l.b16 %v3503
        %v3568 = vunpack.c.l.b16 %v3504
        %v3569 = vunpack.c.l.b16 %v3505
        %v3570 = vunpack.c.l.b16 %v3506
        %v3571 = vunpack.c.l.b16 %v3507
        %v3572 = vunpack.c.l.b16 %v3508
        %v3573 = vunpack.c.l.b16 %v3509
        %v3574 = vunpack.c.l.b16 %v3510
        %v3575 = vunpack.c.l.b16 %v3511
        %v3576 = vunpack.c.l.b16 %v3512
        %v3577 = vunpack.c.l.b16 %v3513
        %v3578 = vunpack.c.l.b16 %v3514
        %v3579 = vunpack.c.l.b16 %v3515
        %v3580 = vunpack.c.l.b16 %v3516
        %v3581 = vunpack.c.l.b16 %v3517
        %v3582 = vunpack.c.l.b16 %v3518
        %v3583 = vunpack.c.l.b16 %v3519
        %v3584 = vunpack.c.l.b16 %v3520
        %v3585 = vunpack.c.l.b16 %v3521
        %v3586 = vunpack.c.l.b16 %v3522
        %v3587 = vunpack.c.l.b16 %v3523
        %v3588 = vunpack.c.l.b16 %v3524
        %v3589 = vunpack.c.l.b16 %v3525
        %v3590 = vunpack.c.l.b16 %v3526
        %v3591 = vunpack.c.l.b16 %v3527
        %v3592 = vunpack.c.l.b16 %v3528
        %v3593 = vunpack.c.l.b16 %v3529
        %v3594 = vunpack.c.l.b16 %v3530
        %v3595 = vunpack.c.l.b16 %v3531
        %v3596 = vpack.c.b16 %v3565, %v3564
        %v3597 = vpack.c.b16 %v3567, %v3566
        %v3598 = vpack.c.b16 %v3569, %v3568
        %v3599 = vpack.c.b16 %v3571, %v3570
        %v3600 = vpack.c.b16 %v3573, %v3572
        %v3601 = vpack.c.b16 %v3575, %v3574
        %v3602 = vpack.c.b16 %v3577, %v3576
        %v3603 = vpack.c.b16 %v3579, %v3578
        %v3604 = vpack.c.b16 %v3581, %v3580
        %v3605 = vpack.c.b16 %v3583, %v3582
        %v3606 = vpack.c.b16 %v3585, %v3584
        %v3607 = vpack.c.b16 %v3587, %v3586
        %v3608 = vpack.c.b16 %v3589, %v3588
        %v3609 = vpack.c.b16 %v3591, %v3590
        %v3610 = vpack.c.b16 %v3593, %v3592
        %v3611 = vpack.c.b16 %v3595, %v3594
        %3628 = vmatprep.subr.bf16.mxu0 0
        %3629 = vmatpush1.bf16.msra.mxu0 %v3603
        %3630 = vmatprep.subr.bf16.mxu0 0
        %3631 = vmatpush1.bf16.msra.mxu0 %v3602
        %3632 = vmatprep.subr.bf16.mxu0 0
        %3633 = vmatpush1.bf16.msra.mxu0 %v3601
        %3634 = vmatprep.subr.bf16.mxu0 0
        %3635 = vmatpush1.bf16.msra.mxu0 %v3600
        %3636 = vmatprep.subr.bf16.mxu0 0
        %3637 = vmatpush1.bf16.msra.mxu0 %v3599
        %3638 = vmatprep.subr.bf16.mxu0 0
        %3639 = vmatpush1.bf16.msra.mxu0 %v3598
        %3640 = vmatprep.subr.bf16.mxu0 0
        %3641 = vmatpush1.bf16.msra.mxu0 %v3597
        %3642 = vmatprep.subr.bf16.mxu0 0
        %3643 = vmatpush1.bf16.msra.mxu0 %v3596
        %3644 = vmatprep.subr.bf16.mxu0 0
        %3645 = vmatpush2.bf16.msra.mxu0 %v3611
        %3646 = vmatprep.subr.bf16.mxu0 0
        %3647 = vmatpush2.bf16.msra.mxu0 %v3610
        %3648 = vmatprep.subr.bf16.mxu0 0
        %3649 = vmatpush2.bf16.msra.mxu0 %v3609
        %3650 = vmatprep.subr.bf16.mxu0 0
        %3651 = vmatpush2.bf16.msra.mxu0 %v3608
        %3652 = vmatprep.subr.bf16.mxu0 0
        %3653 = vmatpush2.bf16.msra.mxu0 %v3607
        %3654 = vmatprep.subr.bf16.mxu0 0
        %3655 = vmatpush2.bf16.msra.mxu0 %v3606
        %3656 = vmatprep.subr.bf16.mxu0 0
        %3657 = vmatpush2.bf16.msra.mxu0 %v3605
        %3658 = vmatprep.subr.bf16.mxu0 0
        %3659 = vmatpush2.bf16.msra.mxu0 %v3604
        %3660 = vmatprep.mubr.bf16.mxu0 %v3468
        %3661 = vmatmul.mubr.bf16.gmra.mxu0 %v3467
        %v3662 = vpop.f32.mrf.mxu0
        %v3663 = vadd.f32 0.0, %v3662
        %v3664 = vpop.f32.mrf.mxu0
        %v3665 = vpop.f32.mrf.mxu0
        %v3666 = vadd.f32 0.0, %v3665
        %v3667 = vpop.f32.mrf.mxu0
        %3668 = vmatprep.mubr.bf16.mxu0 %v3470
        %3669 = vmatmul.mubr.bf16.gmra.mxu0 %v3469
        %v3670 = vpop.f32.mrf.mxu0
        %v3671 = vadd.f32 0.0, %v3670
        %v3672 = vpop.f32.mrf.mxu0
        %v3673 = vpop.f32.mrf.mxu0
        %v3674 = vadd.f32 0.0, %v3673
        %v3675 = vpop.f32.mrf.mxu0
        %3676 = vmatprep.mubr.bf16.mxu0 %v3472
        %3677 = vmatmul.mubr.bf16.gmra.mxu0 %v3471
        %v3678 = vpop.f32.mrf.mxu0
        %v3679 = vadd.f32 0.0, %v3678
        %v3680 = vpop.f32.mrf.mxu0
        %v3681 = vpop.f32.mrf.mxu0
        %v3682 = vadd.f32 0.0, %v3681
        %v3683 = vpop.f32.mrf.mxu0
        %3684 = vmatprep.mubr.bf16.mxu0 %v3474
        %3685 = vmatmul.mubr.bf16.gmra.mxu0 %v3473
        %v3686 = vpop.f32.mrf.mxu0
        %v3687 = vadd.f32 0.0, %v3686
        %v3688 = vpop.f32.mrf.mxu0
        %v3689 = vpop.f32.mrf.mxu0
        %v3690 = vadd.f32 0.0, %v3689
        %v3691 = vpop.f32.mrf.mxu0
        %3692 = vmatprep.mubr.bf16.mxu0 %v3476
        %3693 = vmatmul.mubr.bf16.gmra.mxu0 %v3475
        %v3694 = vpop.f32.mrf.mxu0
        %v3695 = vadd.f32 0.0, %v3694
        %v3696 = vpop.f32.mrf.mxu0
        %v3697 = vpop.f32.mrf.mxu0
        %v3698 = vadd.f32 0.0, %v3697
        %v3699 = vpop.f32.mrf.mxu0
        %3700 = vmatprep.mubr.bf16.mxu0 %v3478
        %3701 = vmatmul.mubr.bf16.gmra.mxu0 %v3477
        %v3702 = vpop.f32.mrf.mxu0
        %v3703 = vadd.f32 0.0, %v3702
        %v3704 = vpop.f32.mrf.mxu0
        %v3705 = vpop.f32.mrf.mxu0
        %v3706 = vadd.f32 0.0, %v3705
        %v3707 = vpop.f32.mrf.mxu0
        %3708 = vmatprep.mubr.bf16.mxu0 %v3480
        %3709 = vmatmul.mubr.bf16.gmra.mxu0 %v3479
        %v3710 = vpop.f32.mrf.mxu0
        %v3711 = vadd.f32 0.0, %v3710
        %v3712 = vpop.f32.mrf.mxu0
        %v3713 = vpop.f32.mrf.mxu0
        %v3714 = vadd.f32 0.0, %v3713
        %v3715 = vpop.f32.mrf.mxu0
        %3716 = vmatprep.mubr.bf16.mxu0 %v3482
        %3717 = vmatmul.mubr.bf16.gmra.mxu0 %v3481
        %v3718 = vpop.f32.mrf.mxu0
        %v3719 = vadd.f32 0.0, %v3718
        %v3720 = vpop.f32.mrf.mxu0
        %v3721 = vpop.f32.mrf.mxu0
        %v3722 = vadd.f32 0.0, %v3721
        %v3723 = vpop.f32.mrf.mxu0
        %3724 = vmatprep.mubr.bf16.mxu0 %v3484
        %3725 = vmatmul.mubr.bf16.gmra.mxu0 %v3483
        %v3726 = vpop.f32.mrf.mxu0
        %v3727 = vadd.f32 0.0, %v3726
        %v3728 = vpop.f32.mrf.mxu0
        %v3729 = vpop.f32.mrf.mxu0
        %v3730 = vadd.f32 0.0, %v3729
        %v3731 = vpop.f32.mrf.mxu0
        %3732 = vmatprep.mubr.bf16.mxu0 %v3486
        %3733 = vmatmul.mubr.bf16.gmra.mxu0 %v3485
        %v3734 = vpop.f32.mrf.mxu0
        %v3735 = vadd.f32 0.0, %v3734
        %v3736 = vpop.f32.mrf.mxu0
        %v3737 = vpop.f32.mrf.mxu0
        %v3738 = vadd.f32 0.0, %v3737
        %v3739 = vpop.f32.mrf.mxu0
        %3740 = vmatprep.mubr.bf16.mxu0 %v3488
        %3741 = vmatmul.mubr.bf16.gmra.mxu0 %v3487
        %v3742 = vpop.f32.mrf.mxu0
        %v3743 = vadd.f32 0.0, %v3742
        %v3744 = vpop.f32.mrf.mxu0
        %v3745 = vpop.f32.mrf.mxu0
        %v3746 = vadd.f32 0.0, %v3745
        %v3747 = vpop.f32.mrf.mxu0
        %3748 = vmatprep.mubr.bf16.mxu0 %v3490
        %3749 = vmatmul.mubr.bf16.gmra.mxu0 %v3489
        %v3750 = vpop.f32.mrf.mxu0
        %v3751 = vadd.f32 0.0, %v3750
        %v3752 = vpop.f32.mrf.mxu0
        %v3753 = vpop.f32.mrf.mxu0
        %v3754 = vadd.f32 0.0, %v3753
        %v3755 = vpop.f32.mrf.mxu0
        %3756 = vmatprep.mubr.bf16.mxu0 %v3492
        %3757 = vmatmul.mubr.bf16.gmra.mxu0 %v3491
        %v3758 = vpop.f32.mrf.mxu0
        %v3759 = vadd.f32 0.0, %v3758
        %v3760 = vpop.f32.mrf.mxu0
        %v3761 = vpop.f32.mrf.mxu0
        %v3762 = vadd.f32 0.0, %v3761
        %v3763 = vpop.f32.mrf.mxu0
        %3764 = vmatprep.mubr.bf16.mxu0 %v3494
        %3765 = vmatmul.mubr.bf16.gmra.mxu0 %v3493
        %v3766 = vpop.f32.mrf.mxu0
        %v3767 = vadd.f32 0.0, %v3766
        %v3768 = vpop.f32.mrf.mxu0
        %v3769 = vpop.f32.mrf.mxu0
        %v3770 = vadd.f32 0.0, %v3769
        %v3771 = vpop.f32.mrf.mxu0
        %3772 = vmatprep.mubr.bf16.mxu0 %v3496
        %3773 = vmatmul.mubr.bf16.gmra.mxu0 %v3495
        %v3774 = vpop.f32.mrf.mxu0
        %v3775 = vadd.f32 0.0, %v3774
        %v3776 = vpop.f32.mrf.mxu0
        %v3777 = vpop.f32.mrf.mxu0
        %v3778 = vadd.f32 0.0, %v3777
        %v3779 = vpop.f32.mrf.mxu0
        %3780 = vmatprep.mubr.bf16.mxu0 %v3498
        %3781 = vmatmul.mubr.bf16.gmra.mxu0 %v3497
        %v3782 = vpop.f32.mrf.mxu0
        %v3783 = vadd.f32 0.0, %v3782
        %v3784 = vpop.f32.mrf.mxu0
        %v3785 = vpop.f32.mrf.mxu0
        %v3786 = vadd.f32 0.0, %v3785
        %v3787 = vpop.f32.mrf.mxu0
        %3788 = vdwg.mxu0
        %v3789 = vadd.f32 %v3019, %v3663
        %v3790 = vadd.f32 %v3020, %v3666
        %v3791 = vadd.f32 %v3021, %v3671
        %v3792 = vadd.f32 %v3022, %v3674
        %v3793 = vadd.f32 %v3023, %v3679
        %v3794 = vadd.f32 %v3024, %v3682
        %v3795 = vadd.f32 %v3025, %v3687
        %v3796 = vadd.f32 %v3026, %v3690
        %v3797 = vadd.f32 %v3027, %v3695
        %v3798 = vadd.f32 %v3028, %v3698
        %v3799 = vadd.f32 %v3029, %v3703
        %v3800 = vadd.f32 %v3030, %v3706
        %v3801 = vadd.f32 %v3031, %v3711
        %v3802 = vadd.f32 %v3032, %v3714
        %v3803 = vadd.f32 %v3033, %v3719
        %v3804 = vadd.f32 %v3034, %v3722
        %v3805 = vadd.f32 %v3035, %v3727
        %v3806 = vadd.f32 %v3036, %v3730
        %v3807 = vadd.f32 %v3037, %v3735
        %v3808 = vadd.f32 %v3038, %v3738
        %v3809 = vadd.f32 %v3039, %v3743
        %v3810 = vadd.f32 %v3040, %v3746
        %v3811 = vadd.f32 %v3041, %v3751
        %v3812 = vadd.f32 %v3042, %v3754
        %v3813 = vadd.f32 %v3043, %v3759
        %v3814 = vadd.f32 %v3044, %v3762
        %v3815 = vadd.f32 %v3045, %v3767
        %v3816 = vadd.f32 %v3046, %v3770
        %v3817 = vadd.f32 %v3047, %v3775
        %v3818 = vadd.f32 %v3048, %v3778
        %v3819 = vadd.f32 %v3049, %v3783
        %v3820 = vadd.f32 %v3050, %v3786
        %v3821 = vld [vmem:[%s545] sm:$0xfc]
        %v3822 = vld [vmem:[%s545 + $0x8] sm:$0xfc]
        %v3823 = vld [vmem:[%s545 + $0x20] sm:$0x3]
        %v3824 = vld [vmem:[%s545 + $0x28] sm:$0x3]
        %v3825 = vld [vmem:[%s545 + $0x30] sm:$0xfc]
        %v3826 = vld [vmem:[%s545 + $0x38] sm:$0xfc]
        %v3827 = vld [vmem:[%s545 + $0x50] sm:$0x3]
        %v3828 = vld [vmem:[%s545 + $0x58] sm:$0x3]
        %v3829 = vld [vmem:[%s545 + $0x60] sm:$0xfc]
        %v3830 = vld [vmem:[%s545 + $0x68] sm:$0xfc]
        %v3831 = vld [vmem:[%s545 + $0x80] sm:$0x3]
        %v3832 = vld [vmem:[%s545 + $0x88] sm:$0x3]
        %v3833 = vld [vmem:[%s545 + $0x90] sm:$0xfc]
        %v3834 = vld [vmem:[%s545 + $0x98] sm:$0xfc]
        %v3835 = vld [vmem:[%s545 + $0xb0] sm:$0x3]
        %v3836 = vld [vmem:[%s545 + $0xb8] sm:$0x3]
        %v3837 = vld [vmem:[%s545 + $0xc0] sm:$0xfc]
        %v3838 = vld [vmem:[%s545 + $0xc8] sm:$0xfc]
        %v3839 = vld [vmem:[%s545 + $0xe0] sm:$0x3]
        %v3840 = vld [vmem:[%s545 + $0xe8] sm:$0x3]
        %v3841 = vld [vmem:[%s545 + $0xf0] sm:$0xfc]
        %v3842 = vld [vmem:[%s545 + $0xf8] sm:$0xfc]
        %v3843 = vld [vmem:[%s545 + $0x110] sm:$0x3]
        %v3844 = vld [vmem:[%s545 + $0x118] sm:$0x3]
        %v3845 = vld [vmem:[%s545 + $0x120] sm:$0xfc]
        %v3846 = vld [vmem:[%s545 + $0x128] sm:$0xfc]
        %v3847 = vld [vmem:[%s545 + $0x140] sm:$0x3]
        %v3848 = vld [vmem:[%s545 + $0x148] sm:$0x3]
        %v3849 = vld [vmem:[%s545 + $0x150] sm:$0xfc]
        %v3850 = vld [vmem:[%s545 + $0x158] sm:$0xfc]
        %v3851 = vld [vmem:[%s545 + $0x170] sm:$0x3]
        %v3852 = vld [vmem:[%s545 + $0x178] sm:$0x3]
        %v3853 = vld [vmem:[%s545 + $0x180] sm:$0xfc]
        %v3854 = vld [vmem:[%s545 + $0x188] sm:$0xfc]
        %v3855 = vld [vmem:[%s545 + $0x1a0] sm:$0x3]
        %v3856 = vld [vmem:[%s545 + $0x1a8] sm:$0x3]
        %v3857 = vld [vmem:[%s545 + $0x1b0] sm:$0xfc]
        %v3858 = vld [vmem:[%s545 + $0x1b8] sm:$0xfc]
        %v3859 = vld [vmem:[%s545 + $0x1d0] sm:$0x3]
        %v3860 = vld [vmem:[%s545 + $0x1d8] sm:$0x3]
        %v3861 = vld [vmem:[%s545 + $0x1e0] sm:$0xfc]
        %v3862 = vld [vmem:[%s545 + $0x1e8] sm:$0xfc]
        %v3863 = vld [vmem:[%s545 + $0x200] sm:$0x3]
        %v3864 = vld [vmem:[%s545 + $0x208] sm:$0x3]
        %v3865 = vld [vmem:[%s545 + $0x210] sm:$0xfc]
        %v3866 = vld [vmem:[%s545 + $0x218] sm:$0xfc]
        %v3867 = vld [vmem:[%s545 + $0x230] sm:$0x3]
        %v3868 = vld [vmem:[%s545 + $0x238] sm:$0x3]
        %v3869 = vld [vmem:[%s545 + $0x240] sm:$0xfc]
        %v3870 = vld [vmem:[%s545 + $0x248] sm:$0xfc]
        %v3871 = vld [vmem:[%s545 + $0x260] sm:$0x3]
        %v3872 = vld [vmem:[%s545 + $0x268] sm:$0x3]
        %v3873 = vld [vmem:[%s545 + $0x270] sm:$0xfc]
        %v3874 = vld [vmem:[%s545 + $0x278] sm:$0xfc]
        %v3875 = vld [vmem:[%s545 + $0x290] sm:$0x3]
        %v3876 = vld [vmem:[%s545 + $0x298] sm:$0x3]
        %v3877 = vld [vmem:[%s545 + $0x2a0] sm:$0xfc]
        %v3878 = vld [vmem:[%s545 + $0x2a8] sm:$0xfc]
        %v3879 = vld [vmem:[%s545 + $0x2c0] sm:$0x3]
        %v3880 = vld [vmem:[%s545 + $0x2c8] sm:$0x3]
        %v3881 = vld [vmem:[%s545 + $0x2d0] sm:$0xfc]
        %v3882 = vld [vmem:[%s545 + $0x2d8] sm:$0xfc]
        %v3883 = vld [vmem:[%s545 + $0x2f0] sm:$0x3]
        %v3884 = vld [vmem:[%s545 + $0x2f8] sm:$0x3]
        %v3949 = vrot.slane %v3821, 2
        %v3950 = vrot.slane %v3053, 2
        %v3951 = vsel %vm2054, %v3949, %v3950
        %v3952 = vrot.slane %v3822, 2
        %v3953 = vrot.slane %v3054, 2
        %v3954 = vsel %vm2054, %v3952, %v3953
        %v3955 = vrot.slane %v3823, 2
        %v3956 = vsel %vm2054, %v3950, %v3955
        %v3957 = vrot.slane %v3824, 2
        %v3958 = vsel %vm2054, %v3953, %v3957
        %v3959 = vrot.slane %v3825, 2
        %v3960 = vrot.slane %v3059, 2
        %v3961 = vsel %vm2054, %v3959, %v3960
        %v3962 = vrot.slane %v3826, 2
        %v3963 = vrot.slane %v3060, 2
        %v3964 = vsel %vm2054, %v3962, %v3963
        %v3965 = vrot.slane %v3827, 2
        %v3966 = vsel %vm2054, %v3960, %v3965
        %v3967 = vrot.slane %v3828, 2
        %v3968 = vsel %vm2054, %v3963, %v3967
        %v3969 = vrot.slane %v3829, 2
        %v3970 = vrot.slane %v3065, 2
        %v3971 = vsel %vm2054, %v3969, %v3970
        %v3972 = vrot.slane %v3830, 2
        %v3973 = vrot.slane %v3066, 2
        %v3974 = vsel %vm2054, %v3972, %v3973
        %v3975 = vrot.slane %v3831, 2
        %v3976 = vsel %vm2054, %v3970, %v3975
        %v3977 = vrot.slane %v3832, 2
        %v3978 = vsel %vm2054, %v3973, %v3977
        %v3979 = vrot.slane %v3833, 2
        %v3980 = vrot.slane %v3071, 2
        %v3981 = vsel %vm2054, %v3979, %v3980
        %v3982 = vrot.slane %v3834, 2
        %v3983 = vrot.slane %v3072, 2
        %v3984 = vsel %vm2054, %v3982, %v3983
        %v3985 = vrot.slane %v3835, 2
        %v3986 = vsel %vm2054, %v3980, %v3985
        %v3987 = vrot.slane %v3836, 2
        %v3988 = vsel %vm2054, %v3983, %v3987
        %v3989 = vrot.slane %v3837, 2
        %v3990 = vrot.slane %v3077, 2
        %v3991 = vsel %vm2054, %v3989, %v3990
        %v3992 = vrot.slane %v3838, 2
        %v3993 = vrot.slane %v3078, 2
        %v3994 = vsel %vm2054, %v3992, %v3993
        %v3995 = vrot.slane %v3839, 2
        %v3996 = vsel %vm2054, %v3990, %v3995
        %v3997 = vrot.slane %v3840, 2
        %v3998 = vsel %vm2054, %v3993, %v3997
        %v3999 = vrot.slane %v3841, 2
        %v4000 = vrot.slane %v3083, 2
        %v4001 = vsel %vm2054, %v3999, %v4000
        %v4002 = vrot.slane %v3842, 2
        %v4003 = vrot.slane %v3084, 2
        %v4004 = vsel %vm2054, %v4002, %v4003
        %v4005 = vrot.slane %v3843, 2
        %v4006 = vsel %vm2054, %v4000, %v4005
        %v4007 = vrot.slane %v3844, 2
        %v4008 = vsel %vm2054, %v4003, %v4007
        %v4009 = vrot.slane %v3845, 2
        %v4010 = vrot.slane %v3089, 2
        %v4011 = vsel %vm2054, %v4009, %v4010
        %v4012 = vrot.slane %v3846, 2
        %v4013 = vrot.slane %v3090, 2
        %v4014 = vsel %vm2054, %v4012, %v4013
        %v4015 = vrot.slane %v3847, 2
        %v4016 = vsel %vm2054, %v4010, %v4015
        %v4017 = vrot.slane %v3848, 2
        %v4018 = vsel %vm2054, %v4013, %v4017
        %v4019 = vrot.slane %v3849, 2
        %v4020 = vrot.slane %v3095, 2
        %v4021 = vsel %vm2054, %v4019, %v4020
        %v4022 = vrot.slane %v3850, 2
        %v4023 = vrot.slane %v3096, 2
        %v4024 = vsel %vm2054, %v4022, %v4023
        %v4025 = vrot.slane %v3851, 2
        %v4026 = vsel %vm2054, %v4020, %v4025
        %v4027 = vrot.slane %v3852, 2
        %v4028 = vsel %vm2054, %v4023, %v4027
        %v4029 = vrot.slane %v3853, 2
        %v4030 = vrot.slane %v3101, 2
        %v4031 = vsel %vm2054, %v4029, %v4030
        %v4032 = vrot.slane %v3854, 2
        %v4033 = vrot.slane %v3102, 2
        %v4034 = vsel %vm2054, %v4032, %v4033
        %v4035 = vrot.slane %v3855, 2
        %v4036 = vsel %vm2054, %v4030, %v4035
        %v4037 = vrot.slane %v3856, 2
        %v4038 = vsel %vm2054, %v4033, %v4037
        %v4039 = vrot.slane %v3857, 2
        %v4040 = vrot.slane %v3107, 2
        %v4041 = vsel %vm2054, %v4039, %v4040
        %v4042 = vrot.slane %v3858, 2
        %v4043 = vrot.slane %v3108, 2
        %v4044 = vsel %vm2054, %v4042, %v4043
        %v4045 = vrot.slane %v3859, 2
        %v4046 = vsel %vm2054, %v4040, %v4045
        %v4047 = vrot.slane %v3860, 2
        %v4048 = vsel %vm2054, %v4043, %v4047
        %v4049 = vrot.slane %v3861, 2
        %v4050 = vrot.slane %v3113, 2
        %v4051 = vsel %vm2054, %v4049, %v4050
        %v4052 = vrot.slane %v3862, 2
        %v4053 = vrot.slane %v3114, 2
        %v4054 = vsel %vm2054, %v4052, %v4053
        %v4055 = vrot.slane %v3863, 2
        %v4056 = vsel %vm2054, %v4050, %v4055
        %v4057 = vrot.slane %v3864, 2
        %v4058 = vsel %vm2054, %v4053, %v4057
        %v4059 = vrot.slane %v3865, 2
        %v4060 = vrot.slane %v3119, 2
        %v4061 = vsel %vm2054, %v4059, %v4060
        %v4062 = vrot.slane %v3866, 2
        %v4063 = vrot.slane %v3120, 2
        %v4064 = vsel %vm2054, %v4062, %v4063
        %v4065 = vrot.slane %v3867, 2
        %v4066 = vsel %vm2054, %v4060, %v4065
        %v4067 = vrot.slane %v3868, 2
        %v4068 = vsel %vm2054, %v4063, %v4067
        %v4069 = vrot.slane %v3869, 2
        %v4070 = vrot.slane %v3125, 2
        %v4071 = vsel %vm2054, %v4069, %v4070
        %v4072 = vrot.slane %v3870, 2
        %v4073 = vrot.slane %v3126, 2
        %v4074 = vsel %vm2054, %v4072, %v4073
        %v4075 = vrot.slane %v3871, 2
        %v4076 = vsel %vm2054, %v4070, %v4075
        %v4077 = vrot.slane %v3872, 2
        %v4078 = vsel %vm2054, %v4073, %v4077
        %v4079 = vrot.slane %v3873, 2
        %v4080 = vrot.slane %v3131, 2
        %v4081 = vsel %vm2054, %v4079, %v4080
        %v4082 = vrot.slane %v3874, 2
        %v4083 = vrot.slane %v3132, 2
        %v4084 = vsel %vm2054, %v4082, %v4083
        %v4085 = vrot.slane %v3875, 2
        %v4086 = vsel %vm2054, %v4080, %v4085
        %v4087 = vrot.slane %v3876, 2
        %v4088 = vsel %vm2054, %v4083, %v4087
        %v4089 = vrot.slane %v3877, 2
        %v4090 = vrot.slane %v3137, 2
        %v4091 = vsel %vm2054, %v4089, %v4090
        %v4092 = vrot.slane %v3878, 2
        %v4093 = vrot.slane %v3138, 2
        %v4094 = vsel %vm2054, %v4092, %v4093
        %v4095 = vrot.slane %v3879, 2
        %v4096 = vsel %vm2054, %v4090, %v4095
        %v4097 = vrot.slane %v3880, 2
        %v4098 = vsel %vm2054, %v4093, %v4097
        %v4099 = vrot.slane %v3881, 2
        %v4100 = vrot.slane %v3143, 2
        %v4101 = vsel %vm2054, %v4099, %v4100
        %v4102 = vrot.slane %v3882, 2
        %v4103 = vrot.slane %v3144, 2
        %v4104 = vsel %vm2054, %v4102, %v4103
        %v4105 = vrot.slane %v3883, 2
        %v4106 = vsel %vm2054, %v4100, %v4105
        %v4107 = vrot.slane %v3884, 2
        %v4108 = vsel %vm2054, %v4103, %v4107
        %v4173 = vpack.c.bf16 %v3956, %v3951
        %v4174 = vpack.c.bf16 %v3958, %v3954
        %v4175 = vpack.c.bf16 %v3966, %v3961
        %v4176 = vpack.c.bf16 %v3968, %v3964
        %v4177 = vpack.c.bf16 %v3976, %v3971
        %v4178 = vpack.c.bf16 %v3978, %v3974
        %v4179 = vpack.c.bf16 %v3986, %v3981
        %v4180 = vpack.c.bf16 %v3988, %v3984
        %v4181 = vpack.c.bf16 %v3996, %v3991
        %v4182 = vpack.c.bf16 %v3998, %v3994
        %v4183 = vpack.c.bf16 %v4006, %v4001
        %v4184 = vpack.c.bf16 %v4008, %v4004
        %v4185 = vpack.c.bf16 %v4016, %v4011
        %v4186 = vpack.c.bf16 %v4018, %v4014
        %v4187 = vpack.c.bf16 %v4026, %v4021
        %v4188 = vpack.c.bf16 %v4028, %v4024
        %v4189 = vpack.c.bf16 %v4036, %v4031
        %v4190 = vpack.c.bf16 %v4038, %v4034
        %v4191 = vpack.c.bf16 %v4046, %v4041
        %v4192 = vpack.c.bf16 %v4048, %v4044
        %v4193 = vpack.c.bf16 %v4056, %v4051
        %v4194 = vpack.c.bf16 %v4058, %v4054
        %v4195 = vpack.c.bf16 %v4066, %v4061
        %v4196 = vpack.c.bf16 %v4068, %v4064
        %v4197 = vpack.c.bf16 %v4076, %v4071
        %v4198 = vpack.c.bf16 %v4078, %v4074
        %v4199 = vpack.c.bf16 %v4086, %v4081
        %v4200 = vpack.c.bf16 %v4088, %v4084
        %v4201 = vpack.c.bf16 %v4096, %v4091
        %v4202 = vpack.c.bf16 %v4098, %v4094
        %v4203 = vpack.c.bf16 %v4106, %v4101
        %v4204 = vpack.c.bf16 %v4108, %v4104
        %s4205 = scalar_lea.vmem %s2, 640
        %v4206 = vld [vmem:[%s4205] sm:$0xf]
        %v4207 = vld [vmem:[%s4205 + $0x4] sm:$0xf]
        %v4208 = vld [vmem:[%s4205 + $0x8] sm:$0xf]
        %v4209 = vld [vmem:[%s4205 + $0xc] sm:$0xf]
        %v4210 = vld [vmem:[%s4205 + $0x10] sm:$0xf]
        %v4211 = vld [vmem:[%s4205 + $0x14] sm:$0xf]
        %v4212 = vld [vmem:[%s4205 + $0x18] sm:$0xf]
        %v4213 = vld [vmem:[%s4205 + $0x1c] sm:$0xf]
        %v4214 = vld [vmem:[%s4205 + $0x20] sm:$0xf]
        %v4215 = vld [vmem:[%s4205 + $0x24] sm:$0xf]
        %v4216 = vld [vmem:[%s4205 + $0x28] sm:$0xf]
        %v4217 = vld [vmem:[%s4205 + $0x2c] sm:$0xf]
        %v4218 = vld [vmem:[%s4205 + $0x30] sm:$0xf]
        %v4219 = vld [vmem:[%s4205 + $0x34] sm:$0xf]
        %v4220 = vld [vmem:[%s4205 + $0x38] sm:$0xf]
        %v4221 = vld [vmem:[%s4205 + $0x3c] sm:$0xf]
        %v4222 = vld [vmem:[%s4205 + $0x40] sm:$0xf]
        %v4223 = vld [vmem:[%s4205 + $0x44] sm:$0xf]
        %v4224 = vld [vmem:[%s4205 + $0x48] sm:$0xf]
        %v4225 = vld [vmem:[%s4205 + $0x4c] sm:$0xf]
        %v4226 = vld [vmem:[%s4205 + $0x50] sm:$0xf]
        %v4227 = vld [vmem:[%s4205 + $0x54] sm:$0xf]
        %v4228 = vld [vmem:[%s4205 + $0x58] sm:$0xf]
        %v4229 = vld [vmem:[%s4205 + $0x5c] sm:$0xf]
        %v4230 = vld [vmem:[%s4205 + $0x60] sm:$0xf]
        %v4231 = vld [vmem:[%s4205 + $0x64] sm:$0xf]
        %v4232 = vld [vmem:[%s4205 + $0x68] sm:$0xf]
        %v4233 = vld [vmem:[%s4205 + $0x6c] sm:$0xf]
        %v4234 = vld [vmem:[%s4205 + $0x70] sm:$0xf]
        %v4235 = vld [vmem:[%s4205 + $0x74] sm:$0xf]
        %v4236 = vld [vmem:[%s4205 + $0x78] sm:$0xf]
        %v4237 = vld [vmem:[%s4205 + $0x7c] sm:$0xf]
        %v4270 = vunpack.c.l.b16 %v4206
        %v4271 = vunpack.c.l.b16 %v4207
        %v4272 = vunpack.c.l.b16 %v4208
        %v4273 = vunpack.c.l.b16 %v4209
        %v4274 = vunpack.c.l.b16 %v4210
        %v4275 = vunpack.c.l.b16 %v4211
        %v4276 = vunpack.c.l.b16 %v4212
        %v4277 = vunpack.c.l.b16 %v4213
        %v4278 = vunpack.c.l.b16 %v4214
        %v4279 = vunpack.c.l.b16 %v4215
        %v4280 = vunpack.c.l.b16 %v4216
        %v4281 = vunpack.c.l.b16 %v4217
        %v4282 = vunpack.c.l.b16 %v4218
        %v4283 = vunpack.c.l.b16 %v4219
        %v4284 = vunpack.c.l.b16 %v4220
        %v4285 = vunpack.c.l.b16 %v4221
        %v4286 = vunpack.c.l.b16 %v4222
        %v4287 = vunpack.c.l.b16 %v4223
        %v4288 = vunpack.c.l.b16 %v4224
        %v4289 = vunpack.c.l.b16 %v4225
        %v4290 = vunpack.c.l.b16 %v4226
        %v4291 = vunpack.c.l.b16 %v4227
        %v4292 = vunpack.c.l.b16 %v4228
        %v4293 = vunpack.c.l.b16 %v4229
        %v4294 = vunpack.c.l.b16 %v4230
        %v4295 = vunpack.c.l.b16 %v4231
        %v4296 = vunpack.c.l.b16 %v4232
        %v4297 = vunpack.c.l.b16 %v4233
        %v4298 = vunpack.c.l.b16 %v4234
        %v4299 = vunpack.c.l.b16 %v4235
        %v4300 = vunpack.c.l.b16 %v4236
        %v4301 = vunpack.c.l.b16 %v4237
        %v4302 = vpack.c.b16 %v4271, %v4270
        %v4303 = vpack.c.b16 %v4273, %v4272
        %v4304 = vpack.c.b16 %v4275, %v4274
        %v4305 = vpack.c.b16 %v4277, %v4276
        %v4306 = vpack.c.b16 %v4279, %v4278
        %v4307 = vpack.c.b16 %v4281, %v4280
        %v4308 = vpack.c.b16 %v4283, %v4282
        %v4309 = vpack.c.b16 %v4285, %v4284
        %v4310 = vpack.c.b16 %v4287, %v4286
        %v4311 = vpack.c.b16 %v4289, %v4288
        %v4312 = vpack.c.b16 %v4291, %v4290
        %v4313 = vpack.c.b16 %v4293, %v4292
        %v4314 = vpack.c.b16 %v4295, %v4294
        %v4315 = vpack.c.b16 %v4297, %v4296
        %v4316 = vpack.c.b16 %v4299, %v4298
        %v4317 = vpack.c.b16 %v4301, %v4300
        %4334 = vmatprep.subr.bf16.mxu0 0
        %4335 = vmatpush1.bf16.msra.mxu0 %v4309
        %4336 = vmatprep.subr.bf16.mxu0 0
        %4337 = vmatpush1.bf16.msra.mxu0 %v4308
        %4338 = vmatprep.subr.bf16.mxu0 0
        %4339 = vmatpush1.bf16.msra.mxu0 %v4307
        %4340 = vmatprep.subr.bf16.mxu0 0
        %4341 = vmatpush1.bf16.msra.mxu0 %v4306
        %4342 = vmatprep.subr.bf16.mxu0 0
        %4343 = vmatpush1.bf16.msra.mxu0 %v4305
        %4344 = vmatprep.subr.bf16.mxu0 0
        %4345 = vmatpush1.bf16.msra.mxu0 %v4304
        %4346 = vmatprep.subr.bf16.mxu0 0
        %4347 = vmatpush1.bf16.msra.mxu0 %v4303
        %4348 = vmatprep.subr.bf16.mxu0 0
        %4349 = vmatpush1.bf16.msra.mxu0 %v4302
        %4350 = vmatprep.subr.bf16.mxu0 0
        %4351 = vmatpush2.bf16.msra.mxu0 %v4317
        %4352 = vmatprep.subr.bf16.mxu0 0
        %4353 = vmatpush2.bf16.msra.mxu0 %v4316
        %4354 = vmatprep.subr.bf16.mxu0 0
        %4355 = vmatpush2.bf16.msra.mxu0 %v4315
        %4356 = vmatprep.subr.bf16.mxu0 0
        %4357 = vmatpush2.bf16.msra.mxu0 %v4314
        %4358 = vmatprep.subr.bf16.mxu0 0
        %4359 = vmatpush2.bf16.msra.mxu0 %v4313
        %4360 = vmatprep.subr.bf16.mxu0 0
        %4361 = vmatpush2.bf16.msra.mxu0 %v4312
        %4362 = vmatprep.subr.bf16.mxu0 0
        %4363 = vmatpush2.bf16.msra.mxu0 %v4311
        %4364 = vmatprep.subr.bf16.mxu0 0
        %4365 = vmatpush2.bf16.msra.mxu0 %v4310
        %4366 = vmatprep.mubr.bf16.mxu0 %v4174
        %4367 = vmatmul.mubr.bf16.gmra.mxu0 %v4173
        %v4368 = vpop.f32.mrf.mxu0
        %v4369 = vadd.f32 0.0, %v4368
        %v4370 = vpop.f32.mrf.mxu0
        %v4371 = vpop.f32.mrf.mxu0
        %v4372 = vadd.f32 0.0, %v4371
        %v4373 = vpop.f32.mrf.mxu0
        %4374 = vmatprep.mubr.bf16.mxu0 %v4176
        %4375 = vmatmul.mubr.bf16.gmra.mxu0 %v4175
        %v4376 = vpop.f32.mrf.mxu0
        %v4377 = vadd.f32 0.0, %v4376
        %v4378 = vpop.f32.mrf.mxu0
        %v4379 = vpop.f32.mrf.mxu0
        %v4380 = vadd.f32 0.0, %v4379
        %v4381 = vpop.f32.mrf.mxu0
        %4382 = vmatprep.mubr.bf16.mxu0 %v4178
        %4383 = vmatmul.mubr.bf16.gmra.mxu0 %v4177
        %v4384 = vpop.f32.mrf.mxu0
        %v4385 = vadd.f32 0.0, %v4384
        %v4386 = vpop.f32.mrf.mxu0
        %v4387 = vpop.f32.mrf.mxu0
        %v4388 = vadd.f32 0.0, %v4387
        %v4389 = vpop.f32.mrf.mxu0
        %4390 = vmatprep.mubr.bf16.mxu0 %v4180
        %4391 = vmatmul.mubr.bf16.gmra.mxu0 %v4179
        %v4392 = vpop.f32.mrf.mxu0
        %v4393 = vadd.f32 0.0, %v4392
        %v4394 = vpop.f32.mrf.mxu0
        %v4395 = vpop.f32.mrf.mxu0
        %v4396 = vadd.f32 0.0, %v4395
        %v4397 = vpop.f32.mrf.mxu0
        %4398 = vmatprep.mubr.bf16.mxu0 %v4182
        %4399 = vmatmul.mubr.bf16.gmra.mxu0 %v4181
        %v4400 = vpop.f32.mrf.mxu0
        %v4401 = vadd.f32 0.0, %v4400
        %v4402 = vpop.f32.mrf.mxu0
        %v4403 = vpop.f32.mrf.mxu0
        %v4404 = vadd.f32 0.0, %v4403
        %v4405 = vpop.f32.mrf.mxu0
        %4406 = vmatprep.mubr.bf16.mxu0 %v4184
        %4407 = vmatmul.mubr.bf16.gmra.mxu0 %v4183
        %v4408 = vpop.f32.mrf.mxu0
        %v4409 = vadd.f32 0.0, %v4408
        %v4410 = vpop.f32.mrf.mxu0
        %v4411 = vpop.f32.mrf.mxu0
        %v4412 = vadd.f32 0.0, %v4411
        %v4413 = vpop.f32.mrf.mxu0
        %4414 = vmatprep.mubr.bf16.mxu0 %v4186
        %4415 = vmatmul.mubr.bf16.gmra.mxu0 %v4185
        %v4416 = vpop.f32.mrf.mxu0
        %v4417 = vadd.f32 0.0, %v4416
        %v4418 = vpop.f32.mrf.mxu0
        %v4419 = vpop.f32.mrf.mxu0
        %v4420 = vadd.f32 0.0, %v4419
        %v4421 = vpop.f32.mrf.mxu0
        %4422 = vmatprep.mubr.bf16.mxu0 %v4188
        %4423 = vmatmul.mubr.bf16.gmra.mxu0 %v4187
        %v4424 = vpop.f32.mrf.mxu0
        %v4425 = vadd.f32 0.0, %v4424
        %v4426 = vpop.f32.mrf.mxu0
        %v4427 = vpop.f32.mrf.mxu0
        %v4428 = vadd.f32 0.0, %v4427
        %v4429 = vpop.f32.mrf.mxu0
        %4430 = vmatprep.mubr.bf16.mxu0 %v4190
        %4431 = vmatmul.mubr.bf16.gmra.mxu0 %v4189
        %v4432 = vpop.f32.mrf.mxu0
        %v4433 = vadd.f32 0.0, %v4432
        %v4434 = vpop.f32.mrf.mxu0
        %v4435 = vpop.f32.mrf.mxu0
        %v4436 = vadd.f32 0.0, %v4435
        %v4437 = vpop.f32.mrf.mxu0
        %4438 = vmatprep.mubr.bf16.mxu0 %v4192
        %4439 = vmatmul.mubr.bf16.gmra.mxu0 %v4191
        %v4440 = vpop.f32.mrf.mxu0
        %v4441 = vadd.f32 0.0, %v4440
        %v4442 = vpop.f32.mrf.mxu0
        %v4443 = vpop.f32.mrf.mxu0
        %v4444 = vadd.f32 0.0, %v4443
        %v4445 = vpop.f32.mrf.mxu0
        %4446 = vmatprep.mubr.bf16.mxu0 %v4194
        %4447 = vmatmul.mubr.bf16.gmra.mxu0 %v4193
        %v4448 = vpop.f32.mrf.mxu0
        %v4449 = vadd.f32 0.0, %v4448
        %v4450 = vpop.f32.mrf.mxu0
        %v4451 = vpop.f32.mrf.mxu0
        %v4452 = vadd.f32 0.0, %v4451
        %v4453 = vpop.f32.mrf.mxu0
        %4454 = vmatprep.mubr.bf16.mxu0 %v4196
        %4455 = vmatmul.mubr.bf16.gmra.mxu0 %v4195
        %v4456 = vpop.f32.mrf.mxu0
        %v4457 = vadd.f32 0.0, %v4456
        %v4458 = vpop.f32.mrf.mxu0
        %v4459 = vpop.f32.mrf.mxu0
        %v4460 = vadd.f32 0.0, %v4459
        %v4461 = vpop.f32.mrf.mxu0
        %4462 = vmatprep.mubr.bf16.mxu0 %v4198
        %4463 = vmatmul.mubr.bf16.gmra.mxu0 %v4197
        %v4464 = vpop.f32.mrf.mxu0
        %v4465 = vadd.f32 0.0, %v4464
        %v4466 = vpop.f32.mrf.mxu0
        %v4467 = vpop.f32.mrf.mxu0
        %v4468 = vadd.f32 0.0, %v4467
        %v4469 = vpop.f32.mrf.mxu0
        %4470 = vmatprep.mubr.bf16.mxu0 %v4200
        %4471 = vmatmul.mubr.bf16.gmra.mxu0 %v4199
        %v4472 = vpop.f32.mrf.mxu0
        %v4473 = vadd.f32 0.0, %v4472
        %v4474 = vpop.f32.mrf.mxu0
        %v4475 = vpop.f32.mrf.mxu0
        %v4476 = vadd.f32 0.0, %v4475
        %v4477 = vpop.f32.mrf.mxu0
        %4478 = vmatprep.mubr.bf16.mxu0 %v4202
        %4479 = vmatmul.mubr.bf16.gmra.mxu0 %v4201
        %v4480 = vpop.f32.mrf.mxu0
        %v4481 = vadd.f32 0.0, %v4480
        %v4482 = vpop.f32.mrf.mxu0
        %v4483 = vpop.f32.mrf.mxu0
        %v4484 = vadd.f32 0.0, %v4483
        %v4485 = vpop.f32.mrf.mxu0
        %4486 = vmatprep.mubr.bf16.mxu0 %v4204
        %4487 = vmatmul.mubr.bf16.gmra.mxu0 %v4203
        %v4488 = vpop.f32.mrf.mxu0
        %v4489 = vadd.f32 0.0, %v4488
        %v4490 = vpop.f32.mrf.mxu0
        %v4491 = vpop.f32.mrf.mxu0
        %v4492 = vadd.f32 0.0, %v4491
        %v4493 = vpop.f32.mrf.mxu0
        %4494 = vdwg.mxu0
        %v4495 = vadd.f32 %v3789, %v4369
        %v4496 = vadd.f32 %v3790, %v4372
        %v4497 = vadd.f32 %v3791, %v4377
        %v4498 = vadd.f32 %v3792, %v4380
        %v4499 = vadd.f32 %v3793, %v4385
        %v4500 = vadd.f32 %v3794, %v4388
        %v4501 = vadd.f32 %v3795, %v4393
        %v4502 = vadd.f32 %v3796, %v4396
        %v4503 = vadd.f32 %v3797, %v4401
        %v4504 = vadd.f32 %v3798, %v4404
        %v4505 = vadd.f32 %v3799, %v4409
        %v4506 = vadd.f32 %v3800, %v4412
        %v4507 = vadd.f32 %v3801, %v4417
        %v4508 = vadd.f32 %v3802, %v4420
        %v4509 = vadd.f32 %v3803, %v4425
        %v4510 = vadd.f32 %v3804, %v4428
        %v4511 = vadd.f32 %v3805, %v4433
        %v4512 = vadd.f32 %v3806, %v4436
        %v4513 = vadd.f32 %v3807, %v4441
        %v4514 = vadd.f32 %v3808, %v4444
        %v4515 = vadd.f32 %v3809, %v4449
        %v4516 = vadd.f32 %v3810, %v4452
        %v4517 = vadd.f32 %v3811, %v4457
        %v4518 = vadd.f32 %v3812, %v4460
        %v4519 = vadd.f32 %v3813, %v4465
        %v4520 = vadd.f32 %v3814, %v4468
        %v4521 = vadd.f32 %v3815, %v4473
        %v4522 = vadd.f32 %v3816, %v4476
        %v4523 = vadd.f32 %v3817, %v4481
        %v4524 = vadd.f32 %v3818, %v4484
        %v4525 = vadd.f32 %v3819, %v4489
        %v4526 = vadd.f32 %v3820, %v4492
        %s4527 = scalar_lea.vmem [#allocation2], 96
        %v4528 = vld [vmem:[%s4527] sm:$0xff]
        %v4529 = vld [vmem:[%s4527 + $0x8] sm:$0xff]
        %v4530 = vld [vmem:[%s4527 + $0x10] sm:$0xff]
        %v4531 = vld [vmem:[%s4527 + $0x18] sm:$0xff]
        %v4532 = vld [vmem:[%s4527 + $0x30] sm:$0xff]
        %v4533 = vld [vmem:[%s4527 + $0x38] sm:$0xff]
        %v4534 = vld [vmem:[%s4527 + $0x40] sm:$0xff]
        %v4535 = vld [vmem:[%s4527 + $0x48] sm:$0xff]
        %v4536 = vld [vmem:[%s4527 + $0x60] sm:$0xff]
        %v4537 = vld [vmem:[%s4527 + $0x68] sm:$0xff]
        %v4538 = vld [vmem:[%s4527 + $0x70] sm:$0xff]
        %v4539 = vld [vmem:[%s4527 + $0x78] sm:$0xff]
        %v4540 = vld [vmem:[%s4527 + $0x90] sm:$0xff]
        %v4541 = vld [vmem:[%s4527 + $0x98] sm:$0xff]
        %v4542 = vld [vmem:[%s4527 + $0xa0] sm:$0xff]
        %v4543 = vld [vmem:[%s4527 + $0xa8] sm:$0xff]
        %v4544 = vld [vmem:[%s4527 + $0xc0] sm:$0xff]
        %v4545 = vld [vmem:[%s4527 + $0xc8] sm:$0xff]
        %v4546 = vld [vmem:[%s4527 + $0xd0] sm:$0xff]
        %v4547 = vld [vmem:[%s4527 + $0xd8] sm:$0xff]
        %v4548 = vld [vmem:[%s4527 + $0xf0] sm:$0xff]
        %v4549 = vld [vmem:[%s4527 + $0xf8] sm:$0xff]
        %v4550 = vld [vmem:[%s4527 + $0x100] sm:$0xff]
        %v4551 = vld [vmem:[%s4527 + $0x108] sm:$0xff]
        %v4552 = vld [vmem:[%s4527 + $0x120] sm:$0xff]
        %v4553 = vld [vmem:[%s4527 + $0x128] sm:$0xff]
        %v4554 = vld [vmem:[%s4527 + $0x130] sm:$0xff]
        %v4555 = vld [vmem:[%s4527 + $0x138] sm:$0xff]
        %v4556 = vld [vmem:[%s4527 + $0x150] sm:$0xff]
        %v4557 = vld [vmem:[%s4527 + $0x158] sm:$0xff]
        %v4558 = vld [vmem:[%s4527 + $0x160] sm:$0xff]
        %v4559 = vld [vmem:[%s4527 + $0x168] sm:$0xff]
        %v4560 = vld [vmem:[%s4527 + $0x180] sm:$0xff]
        %v4561 = vld [vmem:[%s4527 + $0x188] sm:$0xff]
        %v4562 = vld [vmem:[%s4527 + $0x190] sm:$0xff]
        %v4563 = vld [vmem:[%s4527 + $0x198] sm:$0xff]
        %v4564 = vld [vmem:[%s4527 + $0x1b0] sm:$0xff]
        %v4565 = vld [vmem:[%s4527 + $0x1b8] sm:$0xff]
        %v4566 = vld [vmem:[%s4527 + $0x1c0] sm:$0xff]
        %v4567 = vld [vmem:[%s4527 + $0x1c8] sm:$0xff]
        %v4568 = vld [vmem:[%s4527 + $0x1e0] sm:$0xff]
        %v4569 = vld [vmem:[%s4527 + $0x1e8] sm:$0xff]
        %v4570 = vld [vmem:[%s4527 + $0x1f0] sm:$0xff]
        %v4571 = vld [vmem:[%s4527 + $0x1f8] sm:$0xff]
        %v4572 = vld [vmem:[%s4527 + $0x210] sm:$0xff]
        %v4573 = vld [vmem:[%s4527 + $0x218] sm:$0xff]
        %v4574 = vld [vmem:[%s4527 + $0x220] sm:$0xff]
        %v4575 = vld [vmem:[%s4527 + $0x228] sm:$0xff]
        %v4576 = vld [vmem:[%s4527 + $0x240] sm:$0xff]
        %v4577 = vld [vmem:[%s4527 + $0x248] sm:$0xff]
        %v4578 = vld [vmem:[%s4527 + $0x250] sm:$0xff]
        %v4579 = vld [vmem:[%s4527 + $0x258] sm:$0xff]
        %v4580 = vld [vmem:[%s4527 + $0x270] sm:$0xff]
        %v4581 = vld [vmem:[%s4527 + $0x278] sm:$0xff]
        %v4582 = vld [vmem:[%s4527 + $0x280] sm:$0xff]
        %v4583 = vld [vmem:[%s4527 + $0x288] sm:$0xff]
        %v4584 = vld [vmem:[%s4527 + $0x2a0] sm:$0xff]
        %v4585 = vld [vmem:[%s4527 + $0x2a8] sm:$0xff]
        %v4586 = vld [vmem:[%s4527 + $0x2b0] sm:$0xff]
        %v4587 = vld [vmem:[%s4527 + $0x2b8] sm:$0xff]
        %v4588 = vld [vmem:[%s4527 + $0x2d0] sm:$0xff]
        %v4589 = vld [vmem:[%s4527 + $0x2d8] sm:$0xff]
        %v4590 = vld [vmem:[%s4527 + $0x2e0] sm:$0xff]
        %v4591 = vld [vmem:[%s4527 + $0x2e8] sm:$0xff]
        %v4592 = vpack.c.bf16 %v4530, %v4528
        %v4593 = vpack.c.bf16 %v4531, %v4529
        %v4594 = vpack.c.bf16 %v4534, %v4532
        %v4595 = vpack.c.bf16 %v4535, %v4533
        %v4596 = vpack.c.bf16 %v4538, %v4536
        %v4597 = vpack.c.bf16 %v4539, %v4537
        %v4598 = vpack.c.bf16 %v4542, %v4540
        %v4599 = vpack.c.bf16 %v4543, %v4541
        %v4600 = vpack.c.bf16 %v4546, %v4544
        %v4601 = vpack.c.bf16 %v4547, %v4545
        %v4602 = vpack.c.bf16 %v4550, %v4548
        %v4603 = vpack.c.bf16 %v4551, %v4549
        %v4604 = vpack.c.bf16 %v4554, %v4552
        %v4605 = vpack.c.bf16 %v4555, %v4553
        %v4606 = vpack.c.bf16 %v4558, %v4556
        %v4607 = vpack.c.bf16 %v4559, %v4557
        %v4608 = vpack.c.bf16 %v4562, %v4560
        %v4609 = vpack.c.bf16 %v4563, %v4561
        %v4610 = vpack.c.bf16 %v4566, %v4564
        %v4611 = vpack.c.bf16 %v4567, %v4565
        %v4612 = vpack.c.bf16 %v4570, %v4568
        %v4613 = vpack.c.bf16 %v4571, %v4569
        %v4614 = vpack.c.bf16 %v4574, %v4572
        %v4615 = vpack.c.bf16 %v4575, %v4573
        %v4616 = vpack.c.bf16 %v4578, %v4576
        %v4617 = vpack.c.bf16 %v4579, %v4577
        %v4618 = vpack.c.bf16 %v4582, %v4580
        %v4619 = vpack.c.bf16 %v4583, %v4581
        %v4620 = vpack.c.bf16 %v4586, %v4584
        %v4621 = vpack.c.bf16 %v4587, %v4585
        %v4622 = vpack.c.bf16 %v4590, %v4588
        %v4623 = vpack.c.bf16 %v4591, %v4589
        %s4624 = scalar_lea.vmem %s2, 768
        %v4625 = vld [vmem:[%s4624] sm:$0xf]
        %v4626 = vld [vmem:[%s4624 + $0x4] sm:$0xf]
        %v4627 = vld [vmem:[%s4624 + $0x8] sm:$0xf]
        %v4628 = vld [vmem:[%s4624 + $0xc] sm:$0xf]
        %v4629 = vld [vmem:[%s4624 + $0x10] sm:$0xf]
        %v4630 = vld [vmem:[%s4624 + $0x14] sm:$0xf]
        %v4631 = vld [vmem:[%s4624 + $0x18] sm:$0xf]
        %v4632 = vld [vmem:[%s4624 + $0x1c] sm:$0xf]
        %v4633 = vld [vmem:[%s4624 + $0x20] sm:$0xf]
        %v4634 = vld [vmem:[%s4624 + $0x24] sm:$0xf]
        %v4635 = vld [vmem:[%s4624 + $0x28] sm:$0xf]
        %v4636 = vld [vmem:[%s4624 + $0x2c] sm:$0xf]
        %v4637 = vld [vmem:[%s4624 + $0x30] sm:$0xf]
        %v4638 = vld [vmem:[%s4624 + $0x34] sm:$0xf]
        %v4639 = vld [vmem:[%s4624 + $0x38] sm:$0xf]
        %v4640 = vld [vmem:[%s4624 + $0x3c] sm:$0xf]
        %v4641 = vld [vmem:[%s4624 + $0x40] sm:$0xf]
        %v4642 = vld [vmem:[%s4624 + $0x44] sm:$0xf]
        %v4643 = vld [vmem:[%s4624 + $0x48] sm:$0xf]
        %v4644 = vld [vmem:[%s4624 + $0x4c] sm:$0xf]
        %v4645 = vld [vmem:[%s4624 + $0x50] sm:$0xf]
        %v4646 = vld [vmem:[%s4624 + $0x54] sm:$0xf]
        %v4647 = vld [vmem:[%s4624 + $0x58] sm:$0xf]
        %v4648 = vld [vmem:[%s4624 + $0x5c] sm:$0xf]
        %v4649 = vld [vmem:[%s4624 + $0x60] sm:$0xf]
        %v4650 = vld [vmem:[%s4624 + $0x64] sm:$0xf]
        %v4651 = vld [vmem:[%s4624 + $0x68] sm:$0xf]
        %v4652 = vld [vmem:[%s4624 + $0x6c] sm:$0xf]
        %v4653 = vld [vmem:[%s4624 + $0x70] sm:$0xf]
        %v4654 = vld [vmem:[%s4624 + $0x74] sm:$0xf]
        %v4655 = vld [vmem:[%s4624 + $0x78] sm:$0xf]
        %v4656 = vld [vmem:[%s4624 + $0x7c] sm:$0xf]
        %v4689 = vunpack.c.l.b16 %v4625
        %v4690 = vunpack.c.l.b16 %v4626
        %v4691 = vunpack.c.l.b16 %v4627
        %v4692 = vunpack.c.l.b16 %v4628
        %v4693 = vunpack.c.l.b16 %v4629
        %v4694 = vunpack.c.l.b16 %v4630
        %v4695 = vunpack.c.l.b16 %v4631
        %v4696 = vunpack.c.l.b16 %v4632
        %v4697 = vunpack.c.l.b16 %v4633
        %v4698 = vunpack.c.l.b16 %v4634
        %v4699 = vunpack.c.l.b16 %v4635
        %v4700 = vunpack.c.l.b16 %v4636
        %v4701 = vunpack.c.l.b16 %v4637
        %v4702 = vunpack.c.l.b16 %v4638
        %v4703 = vunpack.c.l.b16 %v4639
        %v4704 = vunpack.c.l.b16 %v4640
        %v4705 = vunpack.c.l.b16 %v4641
        %v4706 = vunpack.c.l.b16 %v4642
        %v4707 = vunpack.c.l.b16 %v4643
        %v4708 = vunpack.c.l.b16 %v4644
        %v4709 = vunpack.c.l.b16 %v4645
        %v4710 = vunpack.c.l.b16 %v4646
        %v4711 = vunpack.c.l.b16 %v4647
        %v4712 = vunpack.c.l.b16 %v4648
        %v4713 = vunpack.c.l.b16 %v4649
        %v4714 = vunpack.c.l.b16 %v4650
        %v4715 = vunpack.c.l.b16 %v4651
        %v4716 = vunpack.c.l.b16 %v4652
        %v4717 = vunpack.c.l.b16 %v4653
        %v4718 = vunpack.c.l.b16 %v4654
        %v4719 = vunpack.c.l.b16 %v4655
        %v4720 = vunpack.c.l.b16 %v4656
        %v4721 = vpack.c.b16 %v4690, %v4689
        %v4722 = vpack.c.b16 %v4692, %v4691
        %v4723 = vpack.c.b16 %v4694, %v4693
        %v4724 = vpack.c.b16 %v4696, %v4695
        %v4725 = vpack.c.b16 %v4698, %v4697
        %v4726 = vpack.c.b16 %v4700, %v4699
        %v4727 = vpack.c.b16 %v4702, %v4701
        %v4728 = vpack.c.b16 %v4704, %v4703
        %v4729 = vpack.c.b16 %v4706, %v4705
        %v4730 = vpack.c.b16 %v4708, %v4707
        %v4731 = vpack.c.b16 %v4710, %v4709
        %v4732 = vpack.c.b16 %v4712, %v4711
        %v4733 = vpack.c.b16 %v4714, %v4713
        %v4734 = vpack.c.b16 %v4716, %v4715
        %v4735 = vpack.c.b16 %v4718, %v4717
        %v4736 = vpack.c.b16 %v4720, %v4719
        %4753 = vmatprep.subr.bf16.mxu0 0
        %4754 = vmatpush1.bf16.msra.mxu0 %v4728
        %4755 = vmatprep.subr.bf16.mxu0 0
        %4756 = vmatpush1.bf16.msra.mxu0 %v4727
        %4757 = vmatprep.subr.bf16.mxu0 0
        %4758 = vmatpush1.bf16.msra.mxu0 %v4726
        %4759 = vmatprep.subr.bf16.mxu0 0
        %4760 = vmatpush1.bf16.msra.mxu0 %v4725
        %4761 = vmatprep.subr.bf16.mxu0 0
        %4762 = vmatpush1.bf16.msra.mxu0 %v4724
        %4763 = vmatprep.subr.bf16.mxu0 0
        %4764 = vmatpush1.bf16.msra.mxu0 %v4723
        %4765 = vmatprep.subr.bf16.mxu0 0
        %4766 = vmatpush1.bf16.msra.mxu0 %v4722
        %4767 = vmatprep.subr.bf16.mxu0 0
        %4768 = vmatpush1.bf16.msra.mxu0 %v4721
        %4769 = vmatprep.subr.bf16.mxu0 0
        %4770 = vmatpush2.bf16.msra.mxu0 %v4736
        %4771 = vmatprep.subr.bf16.mxu0 0
        %4772 = vmatpush2.bf16.msra.mxu0 %v4735
        %4773 = vmatprep.subr.bf16.mxu0 0
        %4774 = vmatpush2.bf16.msra.mxu0 %v4734
        %4775 = vmatprep.subr.bf16.mxu0 0
        %4776 = vmatpush2.bf16.msra.mxu0 %v4733
        %4777 = vmatprep.subr.bf16.mxu0 0
        %4778 = vmatpush2.bf16.msra.mxu0 %v4732
        %4779 = vmatprep.subr.bf16.mxu0 0
        %4780 = vmatpush2.bf16.msra.mxu0 %v4731
        %4781 = vmatprep.subr.bf16.mxu0 0
        %4782 = vmatpush2.bf16.msra.mxu0 %v4730
        %4783 = vmatprep.subr.bf16.mxu0 0
        %4784 = vmatpush2.bf16.msra.mxu0 %v4729
        %4785 = vmatprep.mubr.bf16.mxu0 %v4593
        %4786 = vmatmul.mubr.bf16.gmra.mxu0 %v4592
        %v4787 = vpop.f32.mrf.mxu0
        %v4788 = vadd.f32 0.0, %v4787
        %v4789 = vpop.f32.mrf.mxu0
        %v4790 = vpop.f32.mrf.mxu0
        %v4791 = vadd.f32 0.0, %v4790
        %v4792 = vpop.f32.mrf.mxu0
        %4793 = vmatprep.mubr.bf16.mxu0 %v4595
        %4794 = vmatmul.mubr.bf16.gmra.mxu0 %v4594
        %v4795 = vpop.f32.mrf.mxu0
        %v4796 = vadd.f32 0.0, %v4795
        %v4797 = vpop.f32.mrf.mxu0
        %v4798 = vpop.f32.mrf.mxu0
        %v4799 = vadd.f32 0.0, %v4798
        %v4800 = vpop.f32.mrf.mxu0
        %4801 = vmatprep.mubr.bf16.mxu0 %v4597
        %4802 = vmatmul.mubr.bf16.gmra.mxu0 %v4596
        %v4803 = vpop.f32.mrf.mxu0
        %v4804 = vadd.f32 0.0, %v4803
        %v4805 = vpop.f32.mrf.mxu0
        %v4806 = vpop.f32.mrf.mxu0
        %v4807 = vadd.f32 0.0, %v4806
        %v4808 = vpop.f32.mrf.mxu0
        %4809 = vmatprep.mubr.bf16.mxu0 %v4599
        %4810 = vmatmul.mubr.bf16.gmra.mxu0 %v4598
        %v4811 = vpop.f32.mrf.mxu0
        %v4812 = vadd.f32 0.0, %v4811
        %v4813 = vpop.f32.mrf.mxu0
        %v4814 = vpop.f32.mrf.mxu0
        %v4815 = vadd.f32 0.0, %v4814
        %v4816 = vpop.f32.mrf.mxu0
        %4817 = vmatprep.mubr.bf16.mxu0 %v4601
        %4818 = vmatmul.mubr.bf16.gmra.mxu0 %v4600
        %v4819 = vpop.f32.mrf.mxu0
        %v4820 = vadd.f32 0.0, %v4819
        %v4821 = vpop.f32.mrf.mxu0
        %v4822 = vpop.f32.mrf.mxu0
        %v4823 = vadd.f32 0.0, %v4822
        %v4824 = vpop.f32.mrf.mxu0
        %4825 = vmatprep.mubr.bf16.mxu0 %v4603
        %4826 = vmatmul.mubr.bf16.gmra.mxu0 %v4602
        %v4827 = vpop.f32.mrf.mxu0
        %v4828 = vadd.f32 0.0, %v4827
        %v4829 = vpop.f32.mrf.mxu0
        %v4830 = vpop.f32.mrf.mxu0
        %v4831 = vadd.f32 0.0, %v4830
        %v4832 = vpop.f32.mrf.mxu0
        %4833 = vmatprep.mubr.bf16.mxu0 %v4605
        %4834 = vmatmul.mubr.bf16.gmra.mxu0 %v4604
        %v4835 = vpop.f32.mrf.mxu0
        %v4836 = vadd.f32 0.0, %v4835
        %v4837 = vpop.f32.mrf.mxu0
        %v4838 = vpop.f32.mrf.mxu0
        %v4839 = vadd.f32 0.0, %v4838
        %v4840 = vpop.f32.mrf.mxu0
        %4841 = vmatprep.mubr.bf16.mxu0 %v4607
        %4842 = vmatmul.mubr.bf16.gmra.mxu0 %v4606
        %v4843 = vpop.f32.mrf.mxu0
        %v4844 = vadd.f32 0.0, %v4843
        %v4845 = vpop.f32.mrf.mxu0
        %v4846 = vpop.f32.mrf.mxu0
        %v4847 = vadd.f32 0.0, %v4846
        %v4848 = vpop.f32.mrf.mxu0
        %4849 = vmatprep.mubr.bf16.mxu0 %v4609
        %4850 = vmatmul.mubr.bf16.gmra.mxu0 %v4608
        %v4851 = vpop.f32.mrf.mxu0
        %v4852 = vadd.f32 0.0, %v4851
        %v4853 = vpop.f32.mrf.mxu0
        %v4854 = vpop.f32.mrf.mxu0
        %v4855 = vadd.f32 0.0, %v4854
        %v4856 = vpop.f32.mrf.mxu0
        %4857 = vmatprep.mubr.bf16.mxu0 %v4611
        %4858 = vmatmul.mubr.bf16.gmra.mxu0 %v4610
        %v4859 = vpop.f32.mrf.mxu0
        %v4860 = vadd.f32 0.0, %v4859
        %v4861 = vpop.f32.mrf.mxu0
        %v4862 = vpop.f32.mrf.mxu0
        %v4863 = vadd.f32 0.0, %v4862
        %v4864 = vpop.f32.mrf.mxu0
        %4865 = vmatprep.mubr.bf16.mxu0 %v4613
        %4866 = vmatmul.mubr.bf16.gmra.mxu0 %v4612
        %v4867 = vpop.f32.mrf.mxu0
        %v4868 = vadd.f32 0.0, %v4867
        %v4869 = vpop.f32.mrf.mxu0
        %v4870 = vpop.f32.mrf.mxu0
        %v4871 = vadd.f32 0.0, %v4870
        %v4872 = vpop.f32.mrf.mxu0
        %4873 = vmatprep.mubr.bf16.mxu0 %v4615
        %4874 = vmatmul.mubr.bf16.gmra.mxu0 %v4614
        %v4875 = vpop.f32.mrf.mxu0
        %v4876 = vadd.f32 0.0, %v4875
        %v4877 = vpop.f32.mrf.mxu0
        %v4878 = vpop.f32.mrf.mxu0
        %v4879 = vadd.f32 0.0, %v4878
        %v4880 = vpop.f32.mrf.mxu0
        %4881 = vmatprep.mubr.bf16.mxu0 %v4617
        %4882 = vmatmul.mubr.bf16.gmra.mxu0 %v4616
        %v4883 = vpop.f32.mrf.mxu0
        %v4884 = vadd.f32 0.0, %v4883
        %v4885 = vpop.f32.mrf.mxu0
        %v4886 = vpop.f32.mrf.mxu0
        %v4887 = vadd.f32 0.0, %v4886
        %v4888 = vpop.f32.mrf.mxu0
        %4889 = vmatprep.mubr.bf16.mxu0 %v4619
        %4890 = vmatmul.mubr.bf16.gmra.mxu0 %v4618
        %v4891 = vpop.f32.mrf.mxu0
        %v4892 = vadd.f32 0.0, %v4891
        %v4893 = vpop.f32.mrf.mxu0
        %v4894 = vpop.f32.mrf.mxu0
        %v4895 = vadd.f32 0.0, %v4894
        %v4896 = vpop.f32.mrf.mxu0
        %4897 = vmatprep.mubr.bf16.mxu0 %v4621
        %4898 = vmatmul.mubr.bf16.gmra.mxu0 %v4620
        %v4899 = vpop.f32.mrf.mxu0
        %v4900 = vadd.f32 0.0, %v4899
        %v4901 = vpop.f32.mrf.mxu0
        %v4902 = vpop.f32.mrf.mxu0
        %v4903 = vadd.f32 0.0, %v4902
        %v4904 = vpop.f32.mrf.mxu0
        %4905 = vmatprep.mubr.bf16.mxu0 %v4623
        %4906 = vmatmul.mubr.bf16.gmra.mxu0 %v4622
        %v4907 = vpop.f32.mrf.mxu0
        %v4908 = vadd.f32 0.0, %v4907
        %v4909 = vpop.f32.mrf.mxu0
        %v4910 = vpop.f32.mrf.mxu0
        %v4911 = vadd.f32 0.0, %v4910
        %v4912 = vpop.f32.mrf.mxu0
        %4913 = vdwg.mxu0
        %v4914 = vadd.f32 %v4495, %v4788
        %v4915 = vadd.f32 %v4496, %v4791
        %v4916 = vadd.f32 %v4497, %v4796
        %v4917 = vadd.f32 %v4498, %v4799
        %v4918 = vadd.f32 %v4499, %v4804
        %v4919 = vadd.f32 %v4500, %v4807
        %v4920 = vadd.f32 %v4501, %v4812
        %v4921 = vadd.f32 %v4502, %v4815
        %v4922 = vadd.f32 %v4503, %v4820
        %v4923 = vadd.f32 %v4504, %v4823
        %v4924 = vadd.f32 %v4505, %v4828
        %v4925 = vadd.f32 %v4506, %v4831
        %v4926 = vadd.f32 %v4507, %v4836
        %v4927 = vadd.f32 %v4508, %v4839
        %v4928 = vadd.f32 %v4509, %v4844
        %v4929 = vadd.f32 %v4510, %v4847
        %v4930 = vadd.f32 %v4511, %v4852
        %v4931 = vadd.f32 %v4512, %v4855
        %v4932 = vadd.f32 %v4513, %v4860
        %v4933 = vadd.f32 %v4514, %v4863
        %v4934 = vadd.f32 %v4515, %v4868
        %v4935 = vadd.f32 %v4516, %v4871
        %v4936 = vadd.f32 %v4517, %v4876
        %v4937 = vadd.f32 %v4518, %v4879
        %v4938 = vadd.f32 %v4519, %v4884
        %v4939 = vadd.f32 %v4520, %v4887
        %v4940 = vadd.f32 %v4521, %v4892
        %v4941 = vadd.f32 %v4522, %v4895
        %v4942 = vadd.f32 %v4523, %v4900
        %v4943 = vadd.f32 %v4524, %v4903
        %v4944 = vadd.f32 %v4525, %v4908
        %v4945 = vadd.f32 %v4526, %v4911
        %v4946 = vld [vmem:[%s4527] sm:$0xfe]
        %v4947 = vld [vmem:[%s4527 + $0x8] sm:$0xfe]
        %v4948 = vld [vmem:[%s4527 + $0x10] sm:$0xff]
        %v4949 = vld [vmem:[%s4527 + $0x18] sm:$0xff]
        %v4950 = vld [vmem:[%s4527 + $0x20] sm:$0x1]
        %v4951 = vld [vmem:[%s4527 + $0x28] sm:$0x1]
        %v4952 = vld [vmem:[%s4527 + $0x30] sm:$0xfe]
        %v4953 = vld [vmem:[%s4527 + $0x38] sm:$0xfe]
        %v4954 = vld [vmem:[%s4527 + $0x40] sm:$0xff]
        %v4955 = vld [vmem:[%s4527 + $0x48] sm:$0xff]
        %v4956 = vld [vmem:[%s4527 + $0x50] sm:$0x1]
        %v4957 = vld [vmem:[%s4527 + $0x58] sm:$0x1]
        %v4958 = vld [vmem:[%s4527 + $0x60] sm:$0xfe]
        %v4959 = vld [vmem:[%s4527 + $0x68] sm:$0xfe]
        %v4960 = vld [vmem:[%s4527 + $0x70] sm:$0xff]
        %v4961 = vld [vmem:[%s4527 + $0x78] sm:$0xff]
        %v4962 = vld [vmem:[%s4527 + $0x80] sm:$0x1]
        %v4963 = vld [vmem:[%s4527 + $0x88] sm:$0x1]
        %v4964 = vld [vmem:[%s4527 + $0x90] sm:$0xfe]
        %v4965 = vld [vmem:[%s4527 + $0x98] sm:$0xfe]
        %v4966 = vld [vmem:[%s4527 + $0xa0] sm:$0xff]
        %v4967 = vld [vmem:[%s4527 + $0xa8] sm:$0xff]
        %v4968 = vld [vmem:[%s4527 + $0xb0] sm:$0x1]
        %v4969 = vld [vmem:[%s4527 + $0xb8] sm:$0x1]
        %v4970 = vld [vmem:[%s4527 + $0xc0] sm:$0xfe]
        %v4971 = vld [vmem:[%s4527 + $0xc8] sm:$0xfe]
        %v4972 = vld [vmem:[%s4527 + $0xd0] sm:$0xff]
        %v4973 = vld [vmem:[%s4527 + $0xd8] sm:$0xff]
        %v4974 = vld [vmem:[%s4527 + $0xe0] sm:$0x1]
        %v4975 = vld [vmem:[%s4527 + $0xe8] sm:$0x1]
        %v4976 = vld [vmem:[%s4527 + $0xf0] sm:$0xfe]
        %v4977 = vld [vmem:[%s4527 + $0xf8] sm:$0xfe]
        %v4978 = vld [vmem:[%s4527 + $0x100] sm:$0xff]
        %v4979 = vld [vmem:[%s4527 + $0x108] sm:$0xff]
        %v4980 = vld [vmem:[%s4527 + $0x110] sm:$0x1]
        %v4981 = vld [vmem:[%s4527 + $0x118] sm:$0x1]
        %v4982 = vld [vmem:[%s4527 + $0x120] sm:$0xfe]
        %v4983 = vld [vmem:[%s4527 + $0x128] sm:$0xfe]
        %v4984 = vld [vmem:[%s4527 + $0x130] sm:$0xff]
        %v4985 = vld [vmem:[%s4527 + $0x138] sm:$0xff]
        %v4986 = vld [vmem:[%s4527 + $0x140] sm:$0x1]
        %v4987 = vld [vmem:[%s4527 + $0x148] sm:$0x1]
        %v4988 = vld [vmem:[%s4527 + $0x150] sm:$0xfe]
        %v4989 = vld [vmem:[%s4527 + $0x158] sm:$0xfe]
        %v4990 = vld [vmem:[%s4527 + $0x160] sm:$0xff]
        %v4991 = vld [vmem:[%s4527 + $0x168] sm:$0xff]
        %v4992 = vld [vmem:[%s4527 + $0x170] sm:$0x1]
        %v4993 = vld [vmem:[%s4527 + $0x178] sm:$0x1]
        %v4994 = vld [vmem:[%s4527 + $0x180] sm:$0xfe]
        %v4995 = vld [vmem:[%s4527 + $0x188] sm:$0xfe]
        %v4996 = vld [vmem:[%s4527 + $0x190] sm:$0xff]
        %v4997 = vld [vmem:[%s4527 + $0x198] sm:$0xff]
        %v4998 = vld [vmem:[%s4527 + $0x1a0] sm:$0x1]
        %v4999 = vld [vmem:[%s4527 + $0x1a8] sm:$0x1]
        %v5000 = vld [vmem:[%s4527 + $0x1b0] sm:$0xfe]
        %v5001 = vld [vmem:[%s4527 + $0x1b8] sm:$0xfe]
        %v5002 = vld [vmem:[%s4527 + $0x1c0] sm:$0xff]
        %v5003 = vld [vmem:[%s4527 + $0x1c8] sm:$0xff]
        %v5004 = vld [vmem:[%s4527 + $0x1d0] sm:$0x1]
        %v5005 = vld [vmem:[%s4527 + $0x1d8] sm:$0x1]
        %v5006 = vld [vmem:[%s4527 + $0x1e0] sm:$0xfe]
        %v5007 = vld [vmem:[%s4527 + $0x1e8] sm:$0xfe]
        %v5008 = vld [vmem:[%s4527 + $0x1f0] sm:$0xff]
        %v5009 = vld [vmem:[%s4527 + $0x1f8] sm:$0xff]
        %v5010 = vld [vmem:[%s4527 + $0x200] sm:$0x1]
        %v5011 = vld [vmem:[%s4527 + $0x208] sm:$0x1]
        %v5012 = vld [vmem:[%s4527 + $0x210] sm:$0xfe]
        %v5013 = vld [vmem:[%s4527 + $0x218] sm:$0xfe]
        %v5014 = vld [vmem:[%s4527 + $0x220] sm:$0xff]
        %v5015 = vld [vmem:[%s4527 + $0x228] sm:$0xff]
        %v5016 = vld [vmem:[%s4527 + $0x230] sm:$0x1]
        %v5017 = vld [vmem:[%s4527 + $0x238] sm:$0x1]
        %v5018 = vld [vmem:[%s4527 + $0x240] sm:$0xfe]
        %v5019 = vld [vmem:[%s4527 + $0x248] sm:$0xfe]
        %v5020 = vld [vmem:[%s4527 + $0x250] sm:$0xff]
        %v5021 = vld [vmem:[%s4527 + $0x258] sm:$0xff]
        %v5022 = vld [vmem:[%s4527 + $0x260] sm:$0x1]
        %v5023 = vld [vmem:[%s4527 + $0x268] sm:$0x1]
        %v5024 = vld [vmem:[%s4527 + $0x270] sm:$0xfe]
        %v5025 = vld [vmem:[%s4527 + $0x278] sm:$0xfe]
        %v5026 = vld [vmem:[%s4527 + $0x280] sm:$0xff]
        %v5027 = vld [vmem:[%s4527 + $0x288] sm:$0xff]
        %v5028 = vld [vmem:[%s4527 + $0x290] sm:$0x1]
        %v5029 = vld [vmem:[%s4527 + $0x298] sm:$0x1]
        %v5030 = vld [vmem:[%s4527 + $0x2a0] sm:$0xfe]
        %v5031 = vld [vmem:[%s4527 + $0x2a8] sm:$0xfe]
        %v5032 = vld [vmem:[%s4527 + $0x2b0] sm:$0xff]
        %v5033 = vld [vmem:[%s4527 + $0x2b8] sm:$0xff]
        %v5034 = vld [vmem:[%s4527 + $0x2c0] sm:$0x1]
        %v5035 = vld [vmem:[%s4527 + $0x2c8] sm:$0x1]
        %v5036 = vld [vmem:[%s4527 + $0x2d0] sm:$0xfe]
        %v5037 = vld [vmem:[%s4527 + $0x2d8] sm:$0xfe]
        %v5038 = vld [vmem:[%s4527 + $0x2e0] sm:$0xff]
        %v5039 = vld [vmem:[%s4527 + $0x2e8] sm:$0xff]
        %v5040 = vld [vmem:[%s4527 + $0x2f0] sm:$0x1]
        %v5041 = vld [vmem:[%s4527 + $0x2f8] sm:$0x1]
        %v5138 = vrot.slane %v4946, 1
        %v5139 = vrot.slane %v4948, 1
        %v5140 = vsel %vm1122, %v5138, %v5139
        %v5141 = vrot.slane %v4947, 1
        %v5142 = vrot.slane %v4949, 1
        %v5143 = vsel %vm1122, %v5141, %v5142
        %v5144 = vrot.slane %v4950, 1
        %v5145 = vsel %vm1122, %v5139, %v5144
        %v5146 = vrot.slane %v4951, 1
        %v5147 = vsel %vm1122, %v5142, %v5146
        %v5148 = vrot.slane %v4952, 1
        %v5149 = vrot.slane %v4954, 1
        %v5150 = vsel %vm1122, %v5148, %v5149
        %v5151 = vrot.slane %v4953, 1
        %v5152 = vrot.slane %v4955, 1
        %v5153 = vsel %vm1122, %v5151, %v5152
        %v5154 = vrot.slane %v4956, 1
        %v5155 = vsel %vm1122, %v5149, %v5154
        %v5156 = vrot.slane %v4957, 1
        %v5157 = vsel %vm1122, %v5152, %v5156
        %v5158 = vrot.slane %v4958, 1
        %v5159 = vrot.slane %v4960, 1
        %v5160 = vsel %vm1122, %v5158, %v5159
        %v5161 = vrot.slane %v4959, 1
        %v5162 = vrot.slane %v4961, 1
        %v5163 = vsel %vm1122, %v5161, %v5162
        %v5164 = vrot.slane %v4962, 1
        %v5165 = vsel %vm1122, %v5159, %v5164
        %v5166 = vrot.slane %v4963, 1
        %v5167 = vsel %vm1122, %v5162, %v5166
        %v5168 = vrot.slane %v4964, 1
        %v5169 = vrot.slane %v4966, 1
        %v5170 = vsel %vm1122, %v5168, %v5169
        %v5171 = vrot.slane %v4965, 1
        %v5172 = vrot.slane %v4967, 1
        %v5173 = vsel %vm1122, %v5171, %v5172
        %v5174 = vrot.slane %v4968, 1
        %v5175 = vsel %vm1122, %v5169, %v5174
        %v5176 = vrot.slane %v4969, 1
        %v5177 = vsel %vm1122, %v5172, %v5176
        %v5178 = vrot.slane %v4970, 1
        %v5179 = vrot.slane %v4972, 1
        %v5180 = vsel %vm1122, %v5178, %v5179
        %v5181 = vrot.slane %v4971, 1
        %v5182 = vrot.slane %v4973, 1
        %v5183 = vsel %vm1122, %v5181, %v5182
        %v5184 = vrot.slane %v4974, 1
        %v5185 = vsel %vm1122, %v5179, %v5184
        %v5186 = vrot.slane %v4975, 1
        %v5187 = vsel %vm1122, %v5182, %v5186
        %v5188 = vrot.slane %v4976, 1
        %v5189 = vrot.slane %v4978, 1
        %v5190 = vsel %vm1122, %v5188, %v5189
        %v5191 = vrot.slane %v4977, 1
        %v5192 = vrot.slane %v4979, 1
        %v5193 = vsel %vm1122, %v5191, %v5192
        %v5194 = vrot.slane %v4980, 1
        %v5195 = vsel %vm1122, %v5189, %v5194
        %v5196 = vrot.slane %v4981, 1
        %v5197 = vsel %vm1122, %v5192, %v5196
        %v5198 = vrot.slane %v4982, 1
        %v5199 = vrot.slane %v4984, 1
        %v5200 = vsel %vm1122, %v5198, %v5199
        %v5201 = vrot.slane %v4983, 1
        %v5202 = vrot.slane %v4985, 1
        %v5203 = vsel %vm1122, %v5201, %v5202
        %v5204 = vrot.slane %v4986, 1
        %v5205 = vsel %vm1122, %v5199, %v5204
        %v5206 = vrot.slane %v4987, 1
        %v5207 = vsel %vm1122, %v5202, %v5206
        %v5208 = vrot.slane %v4988, 1
        %v5209 = vrot.slane %v4990, 1
        %v5210 = vsel %vm1122, %v5208, %v5209
        %v5211 = vrot.slane %v4989, 1
        %v5212 = vrot.slane %v4991, 1
        %v5213 = vsel %vm1122, %v5211, %v5212
        %v5214 = vrot.slane %v4992, 1
        %v5215 = vsel %vm1122, %v5209, %v5214
        %v5216 = vrot.slane %v4993, 1
        %v5217 = vsel %vm1122, %v5212, %v5216
        %v5218 = vrot.slane %v4994, 1
        %v5219 = vrot.slane %v4996, 1
        %v5220 = vsel %vm1122, %v5218, %v5219
        %v5221 = vrot.slane %v4995, 1
        %v5222 = vrot.slane %v4997, 1
        %v5223 = vsel %vm1122, %v5221, %v5222
        %v5224 = vrot.slane %v4998, 1
        %v5225 = vsel %vm1122, %v5219, %v5224
        %v5226 = vrot.slane %v4999, 1
        %v5227 = vsel %vm1122, %v5222, %v5226
        %v5228 = vrot.slane %v5000, 1
        %v5229 = vrot.slane %v5002, 1
        %v5230 = vsel %vm1122, %v5228, %v5229
        %v5231 = vrot.slane %v5001, 1
        %v5232 = vrot.slane %v5003, 1
        %v5233 = vsel %vm1122, %v5231, %v5232
        %v5234 = vrot.slane %v5004, 1
        %v5235 = vsel %vm1122, %v5229, %v5234
        %v5236 = vrot.slane %v5005, 1
        %v5237 = vsel %vm1122, %v5232, %v5236
        %v5238 = vrot.slane %v5006, 1
        %v5239 = vrot.slane %v5008, 1
        %v5240 = vsel %vm1122, %v5238, %v5239
        %v5241 = vrot.slane %v5007, 1
        %v5242 = vrot.slane %v5009, 1
        %v5243 = vsel %vm1122, %v5241, %v5242
        %v5244 = vrot.slane %v5010, 1
        %v5245 = vsel %vm1122, %v5239, %v5244
        %v5246 = vrot.slane %v5011, 1
        %v5247 = vsel %vm1122, %v5242, %v5246
        %v5248 = vrot.slane %v5012, 1
        %v5249 = vrot.slane %v5014, 1
        %v5250 = vsel %vm1122, %v5248, %v5249
        %v5251 = vrot.slane %v5013, 1
        %v5252 = vrot.slane %v5015, 1
        %v5253 = vsel %vm1122, %v5251, %v5252
        %v5254 = vrot.slane %v5016, 1
        %v5255 = vsel %vm1122, %v5249, %v5254
        %v5256 = vrot.slane %v5017, 1
        %v5257 = vsel %vm1122, %v5252, %v5256
        %v5258 = vrot.slane %v5018, 1
        %v5259 = vrot.slane %v5020, 1
        %v5260 = vsel %vm1122, %v5258, %v5259
        %v5261 = vrot.slane %v5019, 1
        %v5262 = vrot.slane %v5021, 1
        %v5263 = vsel %vm1122, %v5261, %v5262
        %v5264 = vrot.slane %v5022, 1
        %v5265 = vsel %vm1122, %v5259, %v5264
        %v5266 = vrot.slane %v5023, 1
        %v5267 = vsel %vm1122, %v5262, %v5266
        %v5268 = vrot.slane %v5024, 1
        %v5269 = vrot.slane %v5026, 1
        %v5270 = vsel %vm1122, %v5268, %v5269
        %v5271 = vrot.slane %v5025, 1
        %v5272 = vrot.slane %v5027, 1
        %v5273 = vsel %vm1122, %v5271, %v5272
        %v5274 = vrot.slane %v5028, 1
        %v5275 = vsel %vm1122, %v5269, %v5274
        %v5276 = vrot.slane %v5029, 1
        %v5277 = vsel %vm1122, %v5272, %v5276
        %v5278 = vrot.slane %v5030, 1
        %v5279 = vrot.slane %v5032, 1
        %v5280 = vsel %vm1122, %v5278, %v5279
        %v5281 = vrot.slane %v5031, 1
        %v5282 = vrot.slane %v5033, 1
        %v5283 = vsel %vm1122, %v5281, %v5282
        %v5284 = vrot.slane %v5034, 1
        %v5285 = vsel %vm1122, %v5279, %v5284
        %v5286 = vrot.slane %v5035, 1
        %v5287 = vsel %vm1122, %v5282, %v5286
        %v5288 = vrot.slane %v5036, 1
        %v5289 = vrot.slane %v5038, 1
        %v5290 = vsel %vm1122, %v5288, %v5289
        %v5291 = vrot.slane %v5037, 1
        %v5292 = vrot.slane %v5039, 1
        %v5293 = vsel %vm1122, %v5291, %v5292
        %v5294 = vrot.slane %v5040, 1
        %v5295 = vsel %vm1122, %v5289, %v5294
        %v5296 = vrot.slane %v5041, 1
        %v5297 = vsel %vm1122, %v5292, %v5296
        %v5362 = vpack.c.bf16 %v5145, %v5140
        %v5363 = vpack.c.bf16 %v5147, %v5143
        %v5364 = vpack.c.bf16 %v5155, %v5150
        %v5365 = vpack.c.bf16 %v5157, %v5153
        %v5366 = vpack.c.bf16 %v5165, %v5160
        %v5367 = vpack.c.bf16 %v5167, %v5163
        %v5368 = vpack.c.bf16 %v5175, %v5170
        %v5369 = vpack.c.bf16 %v5177, %v5173
        %v5370 = vpack.c.bf16 %v5185, %v5180
        %v5371 = vpack.c.bf16 %v5187, %v5183
        %v5372 = vpack.c.bf16 %v5195, %v5190
        %v5373 = vpack.c.bf16 %v5197, %v5193
        %v5374 = vpack.c.bf16 %v5205, %v5200
        %v5375 = vpack.c.bf16 %v5207, %v5203
        %v5376 = vpack.c.bf16 %v5215, %v5210
        %v5377 = vpack.c.bf16 %v5217, %v5213
        %v5378 = vpack.c.bf16 %v5225, %v5220
        %v5379 = vpack.c.bf16 %v5227, %v5223
        %v5380 = vpack.c.bf16 %v5235, %v5230
        %v5381 = vpack.c.bf16 %v5237, %v5233
        %v5382 = vpack.c.bf16 %v5245, %v5240
        %v5383 = vpack.c.bf16 %v5247, %v5243
        %v5384 = vpack.c.bf16 %v5255, %v5250
        %v5385 = vpack.c.bf16 %v5257, %v5253
        %v5386 = vpack.c.bf16 %v5265, %v5260
        %v5387 = vpack.c.bf16 %v5267, %v5263
        %v5388 = vpack.c.bf16 %v5275, %v5270
        %v5389 = vpack.c.bf16 %v5277, %v5273
        %v5390 = vpack.c.bf16 %v5285, %v5280
        %v5391 = vpack.c.bf16 %v5287, %v5283
        %v5392 = vpack.c.bf16 %v5295, %v5290
        %v5393 = vpack.c.bf16 %v5297, %v5293
        %s5394 = scalar_lea.vmem %s2, 896
        %v5395 = vld [vmem:[%s5394] sm:$0xf]
        %v5396 = vld [vmem:[%s5394 + $0x4] sm:$0xf]
        %v5397 = vld [vmem:[%s5394 + $0x8] sm:$0xf]
        %v5398 = vld [vmem:[%s5394 + $0xc] sm:$0xf]
        %v5399 = vld [vmem:[%s5394 + $0x10] sm:$0xf]
        %v5400 = vld [vmem:[%s5394 + $0x14] sm:$0xf]
        %v5401 = vld [vmem:[%s5394 + $0x18] sm:$0xf]
        %v5402 = vld [vmem:[%s5394 + $0x1c] sm:$0xf]
        %v5403 = vld [vmem:[%s5394 + $0x20] sm:$0xf]
        %v5404 = vld [vmem:[%s5394 + $0x24] sm:$0xf]
        %v5405 = vld [vmem:[%s5394 + $0x28] sm:$0xf]
        %v5406 = vld [vmem:[%s5394 + $0x2c] sm:$0xf]
        %v5407 = vld [vmem:[%s5394 + $0x30] sm:$0xf]
        %v5408 = vld [vmem:[%s5394 + $0x34] sm:$0xf]
        %v5409 = vld [vmem:[%s5394 + $0x38] sm:$0xf]
        %v5410 = vld [vmem:[%s5394 + $0x3c] sm:$0xf]
        %v5411 = vld [vmem:[%s5394 + $0x40] sm:$0xf]
        %v5412 = vld [vmem:[%s5394 + $0x44] sm:$0xf]
        %v5413 = vld [vmem:[%s5394 + $0x48] sm:$0xf]
        %v5414 = vld [vmem:[%s5394 + $0x4c] sm:$0xf]
        %v5415 = vld [vmem:[%s5394 + $0x50] sm:$0xf]
        %v5416 = vld [vmem:[%s5394 + $0x54] sm:$0xf]
        %v5417 = vld [vmem:[%s5394 + $0x58] sm:$0xf]
        %v5418 = vld [vmem:[%s5394 + $0x5c] sm:$0xf]
        %v5419 = vld [vmem:[%s5394 + $0x60] sm:$0xf]
        %v5420 = vld [vmem:[%s5394 + $0x64] sm:$0xf]
        %v5421 = vld [vmem:[%s5394 + $0x68] sm:$0xf]
        %v5422 = vld [vmem:[%s5394 + $0x6c] sm:$0xf]
        %v5423 = vld [vmem:[%s5394 + $0x70] sm:$0xf]
        %v5424 = vld [vmem:[%s5394 + $0x74] sm:$0xf]
        %v5425 = vld [vmem:[%s5394 + $0x78] sm:$0xf]
        %v5426 = vld [vmem:[%s5394 + $0x7c] sm:$0xf]
        %v5459 = vunpack.c.l.b16 %v5395
        %v5460 = vunpack.c.l.b16 %v5396
        %v5461 = vunpack.c.l.b16 %v5397
        %v5462 = vunpack.c.l.b16 %v5398
        %v5463 = vunpack.c.l.b16 %v5399
        %v5464 = vunpack.c.l.b16 %v5400
        %v5465 = vunpack.c.l.b16 %v5401
        %v5466 = vunpack.c.l.b16 %v5402
        %v5467 = vunpack.c.l.b16 %v5403
        %v5468 = vunpack.c.l.b16 %v5404
        %v5469 = vunpack.c.l.b16 %v5405
        %v5470 = vunpack.c.l.b16 %v5406
        %v5471 = vunpack.c.l.b16 %v5407
        %v5472 = vunpack.c.l.b16 %v5408
        %v5473 = vunpack.c.l.b16 %v5409
        %v5474 = vunpack.c.l.b16 %v5410
        %v5475 = vunpack.c.l.b16 %v5411
        %v5476 = vunpack.c.l.b16 %v5412
        %v5477 = vunpack.c.l.b16 %v5413
        %v5478 = vunpack.c.l.b16 %v5414
        %v5479 = vunpack.c.l.b16 %v5415
        %v5480 = vunpack.c.l.b16 %v5416
        %v5481 = vunpack.c.l.b16 %v5417
        %v5482 = vunpack.c.l.b16 %v5418
        %v5483 = vunpack.c.l.b16 %v5419
        %v5484 = vunpack.c.l.b16 %v5420
        %v5485 = vunpack.c.l.b16 %v5421
        %v5486 = vunpack.c.l.b16 %v5422
        %v5487 = vunpack.c.l.b16 %v5423
        %v5488 = vunpack.c.l.b16 %v5424
        %v5489 = vunpack.c.l.b16 %v5425
        %v5490 = vunpack.c.l.b16 %v5426
        %v5491 = vpack.c.b16 %v5460, %v5459
        %v5492 = vpack.c.b16 %v5462, %v5461
        %v5493 = vpack.c.b16 %v5464, %v5463
        %v5494 = vpack.c.b16 %v5466, %v5465
        %v5495 = vpack.c.b16 %v5468, %v5467
        %v5496 = vpack.c.b16 %v5470, %v5469
        %v5497 = vpack.c.b16 %v5472, %v5471
        %v5498 = vpack.c.b16 %v5474, %v5473
        %v5499 = vpack.c.b16 %v5476, %v5475
        %v5500 = vpack.c.b16 %v5478, %v5477
        %v5501 = vpack.c.b16 %v5480, %v5479
        %v5502 = vpack.c.b16 %v5482, %v5481
        %v5503 = vpack.c.b16 %v5484, %v5483
        %v5504 = vpack.c.b16 %v5486, %v5485
        %v5505 = vpack.c.b16 %v5488, %v5487
        %v5506 = vpack.c.b16 %v5490, %v5489
        %5523 = vmatprep.subr.bf16.mxu0 0
        %5524 = vmatpush1.bf16.msra.mxu0 %v5498
        %5525 = vmatprep.subr.bf16.mxu0 0
        %5526 = vmatpush1.bf16.msra.mxu0 %v5497
        %5527 = vmatprep.subr.bf16.mxu0 0
        %5528 = vmatpush1.bf16.msra.mxu0 %v5496
        %5529 = vmatprep.subr.bf16.mxu0 0
        %5530 = vmatpush1.bf16.msra.mxu0 %v5495
        %5531 = vmatprep.subr.bf16.mxu0 0
        %5532 = vmatpush1.bf16.msra.mxu0 %v5494
        %5533 = vmatprep.subr.bf16.mxu0 0
        %5534 = vmatpush1.bf16.msra.mxu0 %v5493
        %5535 = vmatprep.subr.bf16.mxu0 0
        %5536 = vmatpush1.bf16.msra.mxu0 %v5492
        %5537 = vmatprep.subr.bf16.mxu0 0
        %5538 = vmatpush1.bf16.msra.mxu0 %v5491
        %5539 = vmatprep.subr.bf16.mxu0 0
        %5540 = vmatpush2.bf16.msra.mxu0 %v5506
        %5541 = vmatprep.subr.bf16.mxu0 0
        %5542 = vmatpush2.bf16.msra.mxu0 %v5505
        %5543 = vmatprep.subr.bf16.mxu0 0
        %5544 = vmatpush2.bf16.msra.mxu0 %v5504
        %5545 = vmatprep.subr.bf16.mxu0 0
        %5546 = vmatpush2.bf16.msra.mxu0 %v5503
        %5547 = vmatprep.subr.bf16.mxu0 0
        %5548 = vmatpush2.bf16.msra.mxu0 %v5502
        %5549 = vmatprep.subr.bf16.mxu0 0
        %5550 = vmatpush2.bf16.msra.mxu0 %v5501
        %5551 = vmatprep.subr.bf16.mxu0 0
        %5552 = vmatpush2.bf16.msra.mxu0 %v5500
        %5553 = vmatprep.subr.bf16.mxu0 0
        %5554 = vmatpush2.bf16.msra.mxu0 %v5499
        %5555 = vmatprep.mubr.bf16.mxu0 %v5363
        %5556 = vmatmul.mubr.bf16.gmra.mxu0 %v5362
        %v5557 = vpop.f32.mrf.mxu0
        %v5558 = vadd.f32 0.0, %v5557
        %v5559 = vpop.f32.mrf.mxu0
        %v5560 = vpop.f32.mrf.mxu0
        %v5561 = vadd.f32 0.0, %v5560
        %v5562 = vpop.f32.mrf.mxu0
        %5563 = vmatprep.mubr.bf16.mxu0 %v5365
        %5564 = vmatmul.mubr.bf16.gmra.mxu0 %v5364
        %v5565 = vpop.f32.mrf.mxu0
        %v5566 = vadd.f32 0.0, %v5565
        %v5567 = vpop.f32.mrf.mxu0
        %v5568 = vpop.f32.mrf.mxu0
        %v5569 = vadd.f32 0.0, %v5568
        %v5570 = vpop.f32.mrf.mxu0
        %5571 = vmatprep.mubr.bf16.mxu0 %v5367
        %5572 = vmatmul.mubr.bf16.gmra.mxu0 %v5366
        %v5573 = vpop.f32.mrf.mxu0
        %v5574 = vadd.f32 0.0, %v5573
        %v5575 = vpop.f32.mrf.mxu0
        %v5576 = vpop.f32.mrf.mxu0
        %v5577 = vadd.f32 0.0, %v5576
        %v5578 = vpop.f32.mrf.mxu0
        %5579 = vmatprep.mubr.bf16.mxu0 %v5369
        %5580 = vmatmul.mubr.bf16.gmra.mxu0 %v5368
        %v5581 = vpop.f32.mrf.mxu0
        %v5582 = vadd.f32 0.0, %v5581
        %v5583 = vpop.f32.mrf.mxu0
        %v5584 = vpop.f32.mrf.mxu0
        %v5585 = vadd.f32 0.0, %v5584
        %v5586 = vpop.f32.mrf.mxu0
        %5587 = vmatprep.mubr.bf16.mxu0 %v5371
        %5588 = vmatmul.mubr.bf16.gmra.mxu0 %v5370
        %v5589 = vpop.f32.mrf.mxu0
        %v5590 = vadd.f32 0.0, %v5589
        %v5591 = vpop.f32.mrf.mxu0
        %v5592 = vpop.f32.mrf.mxu0
        %v5593 = vadd.f32 0.0, %v5592
        %v5594 = vpop.f32.mrf.mxu0
        %5595 = vmatprep.mubr.bf16.mxu0 %v5373
        %5596 = vmatmul.mubr.bf16.gmra.mxu0 %v5372
        %v5597 = vpop.f32.mrf.mxu0
        %v5598 = vadd.f32 0.0, %v5597
        %v5599 = vpop.f32.mrf.mxu0
        %v5600 = vpop.f32.mrf.mxu0
        %v5601 = vadd.f32 0.0, %v5600
        %v5602 = vpop.f32.mrf.mxu0
        %5603 = vmatprep.mubr.bf16.mxu0 %v5375
        %5604 = vmatmul.mubr.bf16.gmra.mxu0 %v5374
        %v5605 = vpop.f32.mrf.mxu0
        %v5606 = vadd.f32 0.0, %v5605
        %v5607 = vpop.f32.mrf.mxu0
        %v5608 = vpop.f32.mrf.mxu0
        %v5609 = vadd.f32 0.0, %v5608
        %v5610 = vpop.f32.mrf.mxu0
        %5611 = vmatprep.mubr.bf16.mxu0 %v5377
        %5612 = vmatmul.mubr.bf16.gmra.mxu0 %v5376
        %v5613 = vpop.f32.mrf.mxu0
        %v5614 = vadd.f32 0.0, %v5613
        %v5615 = vpop.f32.mrf.mxu0
        %v5616 = vpop.f32.mrf.mxu0
        %v5617 = vadd.f32 0.0, %v5616
        %v5618 = vpop.f32.mrf.mxu0
        %5619 = vmatprep.mubr.bf16.mxu0 %v5379
        %5620 = vmatmul.mubr.bf16.gmra.mxu0 %v5378
        %v5621 = vpop.f32.mrf.mxu0
        %v5622 = vadd.f32 0.0, %v5621
        %v5623 = vpop.f32.mrf.mxu0
        %v5624 = vpop.f32.mrf.mxu0
        %v5625 = vadd.f32 0.0, %v5624
        %v5626 = vpop.f32.mrf.mxu0
        %5627 = vmatprep.mubr.bf16.mxu0 %v5381
        %5628 = vmatmul.mubr.bf16.gmra.mxu0 %v5380
        %v5629 = vpop.f32.mrf.mxu0
        %v5630 = vadd.f32 0.0, %v5629
        %v5631 = vpop.f32.mrf.mxu0
        %v5632 = vpop.f32.mrf.mxu0
        %v5633 = vadd.f32 0.0, %v5632
        %v5634 = vpop.f32.mrf.mxu0
        %5635 = vmatprep.mubr.bf16.mxu0 %v5383
        %5636 = vmatmul.mubr.bf16.gmra.mxu0 %v5382
        %v5637 = vpop.f32.mrf.mxu0
        %v5638 = vadd.f32 0.0, %v5637
        %v5639 = vpop.f32.mrf.mxu0
        %v5640 = vpop.f32.mrf.mxu0
        %v5641 = vadd.f32 0.0, %v5640
        %v5642 = vpop.f32.mrf.mxu0
        %5643 = vmatprep.mubr.bf16.mxu0 %v5385
        %5644 = vmatmul.mubr.bf16.gmra.mxu0 %v5384
        %v5645 = vpop.f32.mrf.mxu0
        %v5646 = vadd.f32 0.0, %v5645
        %v5647 = vpop.f32.mrf.mxu0
        %v5648 = vpop.f32.mrf.mxu0
        %v5649 = vadd.f32 0.0, %v5648
        %v5650 = vpop.f32.mrf.mxu0
        %5651 = vmatprep.mubr.bf16.mxu0 %v5387
        %5652 = vmatmul.mubr.bf16.gmra.mxu0 %v5386
        %v5653 = vpop.f32.mrf.mxu0
        %v5654 = vadd.f32 0.0, %v5653
        %v5655 = vpop.f32.mrf.mxu0
        %v5656 = vpop.f32.mrf.mxu0
        %v5657 = vadd.f32 0.0, %v5656
        %v5658 = vpop.f32.mrf.mxu0
        %5659 = vmatprep.mubr.bf16.mxu0 %v5389
        %5660 = vmatmul.mubr.bf16.gmra.mxu0 %v5388
        %v5661 = vpop.f32.mrf.mxu0
        %v5662 = vadd.f32 0.0, %v5661
        %v5663 = vpop.f32.mrf.mxu0
        %v5664 = vpop.f32.mrf.mxu0
        %v5665 = vadd.f32 0.0, %v5664
        %v5666 = vpop.f32.mrf.mxu0
        %5667 = vmatprep.mubr.bf16.mxu0 %v5391
        %5668 = vmatmul.mubr.bf16.gmra.mxu0 %v5390
        %v5669 = vpop.f32.mrf.mxu0
        %v5670 = vadd.f32 0.0, %v5669
        %v5671 = vpop.f32.mrf.mxu0
        %v5672 = vpop.f32.mrf.mxu0
        %v5673 = vadd.f32 0.0, %v5672
        %v5674 = vpop.f32.mrf.mxu0
        %5675 = vmatprep.mubr.bf16.mxu0 %v5393
        %5676 = vmatmul.mubr.bf16.gmra.mxu0 %v5392
        %v5677 = vpop.f32.mrf.mxu0
        %v5678 = vadd.f32 0.0, %v5677
        %v5679 = vpop.f32.mrf.mxu0
        %v5680 = vpop.f32.mrf.mxu0
        %v5681 = vadd.f32 0.0, %v5680
        %v5682 = vpop.f32.mrf.mxu0
        %5683 = vdwg.mxu0
        %v5684 = vadd.f32 %v4914, %v5558
        %v5685 = vadd.f32 %v4915, %v5561
        %v5686 = vadd.f32 %v4916, %v5566
        %v5687 = vadd.f32 %v4917, %v5569
        %v5688 = vadd.f32 %v4918, %v5574
        %v5689 = vadd.f32 %v4919, %v5577
        %v5690 = vadd.f32 %v4920, %v5582
        %v5691 = vadd.f32 %v4921, %v5585
        %v5692 = vadd.f32 %v4922, %v5590
        %v5693 = vadd.f32 %v4923, %v5593
        %v5694 = vadd.f32 %v4924, %v5598
        %v5695 = vadd.f32 %v4925, %v5601
        %v5696 = vadd.f32 %v4926, %v5606
        %v5697 = vadd.f32 %v4927, %v5609
        %v5698 = vadd.f32 %v4928, %v5614
        %v5699 = vadd.f32 %v4929, %v5617
        %v5700 = vadd.f32 %v4930, %v5622
        %v5701 = vadd.f32 %v4931, %v5625
        %v5702 = vadd.f32 %v4932, %v5630
        %v5703 = vadd.f32 %v4933, %v5633
        %v5704 = vadd.f32 %v4934, %v5638
        %v5705 = vadd.f32 %v4935, %v5641
        %v5706 = vadd.f32 %v4936, %v5646
        %v5707 = vadd.f32 %v4937, %v5649
        %v5708 = vadd.f32 %v4938, %v5654
        %v5709 = vadd.f32 %v4939, %v5657
        %v5710 = vadd.f32 %v4940, %v5662
        %v5711 = vadd.f32 %v4941, %v5665
        %v5712 = vadd.f32 %v4942, %v5670
        %v5713 = vadd.f32 %v4943, %v5673
        %v5714 = vadd.f32 %v4944, %v5678
        %v5715 = vadd.f32 %v4945, %v5681
        %v5716 = vld [vmem:[%s4527] sm:$0xfc]
        %v5717 = vld [vmem:[%s4527 + $0x8] sm:$0xfc]
        %v5718 = vld [vmem:[%s4527 + $0x20] sm:$0x3]
        %v5719 = vld [vmem:[%s4527 + $0x28] sm:$0x3]
        %v5720 = vld [vmem:[%s4527 + $0x30] sm:$0xfc]
        %v5721 = vld [vmem:[%s4527 + $0x38] sm:$0xfc]
        %v5722 = vld [vmem:[%s4527 + $0x50] sm:$0x3]
        %v5723 = vld [vmem:[%s4527 + $0x58] sm:$0x3]
        %v5724 = vld [vmem:[%s4527 + $0x60] sm:$0xfc]
        %v5725 = vld [vmem:[%s4527 + $0x68] sm:$0xfc]
        %v5726 = vld [vmem:[%s4527 + $0x80] sm:$0x3]
        %v5727 = vld [vmem:[%s4527 + $0x88] sm:$0x3]
        %v5728 = vld [vmem:[%s4527 + $0x90] sm:$0xfc]
        %v5729 = vld [vmem:[%s4527 + $0x98] sm:$0xfc]
        %v5730 = vld [vmem:[%s4527 + $0xb0] sm:$0x3]
        %v5731 = vld [vmem:[%s4527 + $0xb8] sm:$0x3]
        %v5732 = vld [vmem:[%s4527 + $0xc0] sm:$0xfc]
        %v5733 = vld [vmem:[%s4527 + $0xc8] sm:$0xfc]
        %v5734 = vld [vmem:[%s4527 + $0xe0] sm:$0x3]
        %v5735 = vld [vmem:[%s4527 + $0xe8] sm:$0x3]
        %v5736 = vld [vmem:[%s4527 + $0xf0] sm:$0xfc]
        %v5737 = vld [vmem:[%s4527 + $0xf8] sm:$0xfc]
        %v5738 = vld [vmem:[%s4527 + $0x110] sm:$0x3]
        %v5739 = vld [vmem:[%s4527 + $0x118] sm:$0x3]
        %v5740 = vld [vmem:[%s4527 + $0x120] sm:$0xfc]
        %v5741 = vld [vmem:[%s4527 + $0x128] sm:$0xfc]
        %v5742 = vld [vmem:[%s4527 + $0x140] sm:$0x3]
        %v5743 = vld [vmem:[%s4527 + $0x148] sm:$0x3]
        %v5744 = vld [vmem:[%s4527 + $0x150] sm:$0xfc]
        %v5745 = vld [vmem:[%s4527 + $0x158] sm:$0xfc]
        %v5746 = vld [vmem:[%s4527 + $0x170] sm:$0x3]
        %v5747 = vld [vmem:[%s4527 + $0x178] sm:$0x3]
        %v5748 = vld [vmem:[%s4527 + $0x180] sm:$0xfc]
        %v5749 = vld [vmem:[%s4527 + $0x188] sm:$0xfc]
        %v5750 = vld [vmem:[%s4527 + $0x1a0] sm:$0x3]
        %v5751 = vld [vmem:[%s4527 + $0x1a8] sm:$0x3]
        %v5752 = vld [vmem:[%s4527 + $0x1b0] sm:$0xfc]
        %v5753 = vld [vmem:[%s4527 + $0x1b8] sm:$0xfc]
        %v5754 = vld [vmem:[%s4527 + $0x1d0] sm:$0x3]
        %v5755 = vld [vmem:[%s4527 + $0x1d8] sm:$0x3]
        %v5756 = vld [vmem:[%s4527 + $0x1e0] sm:$0xfc]
        %v5757 = vld [vmem:[%s4527 + $0x1e8] sm:$0xfc]
        %v5758 = vld [vmem:[%s4527 + $0x200] sm:$0x3]
        %v5759 = vld [vmem:[%s4527 + $0x208] sm:$0x3]
        %v5760 = vld [vmem:[%s4527 + $0x210] sm:$0xfc]
        %v5761 = vld [vmem:[%s4527 + $0x218] sm:$0xfc]
        %v5762 = vld [vmem:[%s4527 + $0x230] sm:$0x3]
        %v5763 = vld [vmem:[%s4527 + $0x238] sm:$0x3]
        %v5764 = vld [vmem:[%s4527 + $0x240] sm:$0xfc]
        %v5765 = vld [vmem:[%s4527 + $0x248] sm:$0xfc]
        %v5766 = vld [vmem:[%s4527 + $0x260] sm:$0x3]
        %v5767 = vld [vmem:[%s4527 + $0x268] sm:$0x3]
        %v5768 = vld [vmem:[%s4527 + $0x270] sm:$0xfc]
        %v5769 = vld [vmem:[%s4527 + $0x278] sm:$0xfc]
        %v5770 = vld [vmem:[%s4527 + $0x290] sm:$0x3]
        %v5771 = vld [vmem:[%s4527 + $0x298] sm:$0x3]
        %v5772 = vld [vmem:[%s4527 + $0x2a0] sm:$0xfc]
        %v5773 = vld [vmem:[%s4527 + $0x2a8] sm:$0xfc]
        %v5774 = vld [vmem:[%s4527 + $0x2c0] sm:$0x3]
        %v5775 = vld [vmem:[%s4527 + $0x2c8] sm:$0x3]
        %v5776 = vld [vmem:[%s4527 + $0x2d0] sm:$0xfc]
        %v5777 = vld [vmem:[%s4527 + $0x2d8] sm:$0xfc]
        %v5778 = vld [vmem:[%s4527 + $0x2f0] sm:$0x3]
        %v5779 = vld [vmem:[%s4527 + $0x2f8] sm:$0x3]
        %v5844 = vrot.slane %v5716, 2
        %v5845 = vrot.slane %v4948, 2
        %v5846 = vsel %vm2054, %v5844, %v5845
        %v5847 = vrot.slane %v5717, 2
        %v5848 = vrot.slane %v4949, 2
        %v5849 = vsel %vm2054, %v5847, %v5848
        %v5850 = vrot.slane %v5718, 2
        %v5851 = vsel %vm2054, %v5845, %v5850
        %v5852 = vrot.slane %v5719, 2
        %v5853 = vsel %vm2054, %v5848, %v5852
        %v5854 = vrot.slane %v5720, 2
        %v5855 = vrot.slane %v4954, 2
        %v5856 = vsel %vm2054, %v5854, %v5855
        %v5857 = vrot.slane %v5721, 2
        %v5858 = vrot.slane %v4955, 2
        %v5859 = vsel %vm2054, %v5857, %v5858
        %v5860 = vrot.slane %v5722, 2
        %v5861 = vsel %vm2054, %v5855, %v5860
        %v5862 = vrot.slane %v5723, 2
        %v5863 = vsel %vm2054, %v5858, %v5862
        %v5864 = vrot.slane %v5724, 2
        %v5865 = vrot.slane %v4960, 2
        %v5866 = vsel %vm2054, %v5864, %v5865
        %v5867 = vrot.slane %v5725, 2
        %v5868 = vrot.slane %v4961, 2
        %v5869 = vsel %vm2054, %v5867, %v5868
        %v5870 = vrot.slane %v5726, 2
        %v5871 = vsel %vm2054, %v5865, %v5870
        %v5872 = vrot.slane %v5727, 2
        %v5873 = vsel %vm2054, %v5868, %v5872
        %v5874 = vrot.slane %v5728, 2
        %v5875 = vrot.slane %v4966, 2
        %v5876 = vsel %vm2054, %v5874, %v5875
        %v5877 = vrot.slane %v5729, 2
        %v5878 = vrot.slane %v4967, 2
        %v5879 = vsel %vm2054, %v5877, %v5878
        %v5880 = vrot.slane %v5730, 2
        %v5881 = vsel %vm2054, %v5875, %v5880
        %v5882 = vrot.slane %v5731, 2
        %v5883 = vsel %vm2054, %v5878, %v5882
        %v5884 = vrot.slane %v5732, 2
        %v5885 = vrot.slane %v4972, 2
        %v5886 = vsel %vm2054, %v5884, %v5885
        %v5887 = vrot.slane %v5733, 2
        %v5888 = vrot.slane %v4973, 2
        %v5889 = vsel %vm2054, %v5887, %v5888
        %v5890 = vrot.slane %v5734, 2
        %v5891 = vsel %vm2054, %v5885, %v5890
        %v5892 = vrot.slane %v5735, 2
        %v5893 = vsel %vm2054, %v5888, %v5892
        %v5894 = vrot.slane %v5736, 2
        %v5895 = vrot.slane %v4978, 2
        %v5896 = vsel %vm2054, %v5894, %v5895
        %v5897 = vrot.slane %v5737, 2
        %v5898 = vrot.slane %v4979, 2
        %v5899 = vsel %vm2054, %v5897, %v5898
        %v5900 = vrot.slane %v5738, 2
        %v5901 = vsel %vm2054, %v5895, %v5900
        %v5902 = vrot.slane %v5739, 2
        %v5903 = vsel %vm2054, %v5898, %v5902
        %v5904 = vrot.slane %v5740, 2
        %v5905 = vrot.slane %v4984, 2
        %v5906 = vsel %vm2054, %v5904, %v5905
        %v5907 = vrot.slane %v5741, 2
        %v5908 = vrot.slane %v4985, 2
        %v5909 = vsel %vm2054, %v5907, %v5908
        %v5910 = vrot.slane %v5742, 2
        %v5911 = vsel %vm2054, %v5905, %v5910
        %v5912 = vrot.slane %v5743, 2
        %v5913 = vsel %vm2054, %v5908, %v5912
        %v5914 = vrot.slane %v5744, 2
        %v5915 = vrot.slane %v4990, 2
        %v5916 = vsel %vm2054, %v5914, %v5915
        %v5917 = vrot.slane %v5745, 2
        %v5918 = vrot.slane %v4991, 2
        %v5919 = vsel %vm2054, %v5917, %v5918
        %v5920 = vrot.slane %v5746, 2
        %v5921 = vsel %vm2054, %v5915, %v5920
        %v5922 = vrot.slane %v5747, 2
        %v5923 = vsel %vm2054, %v5918, %v5922
        %v5924 = vrot.slane %v5748, 2
        %v5925 = vrot.slane %v4996, 2
        %v5926 = vsel %vm2054, %v5924, %v5925
        %v5927 = vrot.slane %v5749, 2
        %v5928 = vrot.slane %v4997, 2
        %v5929 = vsel %vm2054, %v5927, %v5928
        %v5930 = vrot.slane %v5750, 2
        %v5931 = vsel %vm2054, %v5925, %v5930
        %v5932 = vrot.slane %v5751, 2
        %v5933 = vsel %vm2054, %v5928, %v5932
        %v5934 = vrot.slane %v5752, 2
        %v5935 = vrot.slane %v5002, 2
        %v5936 = vsel %vm2054, %v5934, %v5935
        %v5937 = vrot.slane %v5753, 2
        %v5938 = vrot.slane %v5003, 2
        %v5939 = vsel %vm2054, %v5937, %v5938
        %v5940 = vrot.slane %v5754, 2
        %v5941 = vsel %vm2054, %v5935, %v5940
        %v5942 = vrot.slane %v5755, 2
        %v5943 = vsel %vm2054, %v5938, %v5942
        %v5944 = vrot.slane %v5756, 2
        %v5945 = vrot.slane %v5008, 2
        %v5946 = vsel %vm2054, %v5944, %v5945
        %v5947 = vrot.slane %v5757, 2
        %v5948 = vrot.slane %v5009, 2
        %v5949 = vsel %vm2054, %v5947, %v5948
        %v5950 = vrot.slane %v5758, 2
        %v5951 = vsel %vm2054, %v5945, %v5950
        %v5952 = vrot.slane %v5759, 2
        %v5953 = vsel %vm2054, %v5948, %v5952
        %v5954 = vrot.slane %v5760, 2
        %v5955 = vrot.slane %v5014, 2
        %v5956 = vsel %vm2054, %v5954, %v5955
        %v5957 = vrot.slane %v5761, 2
        %v5958 = vrot.slane %v5015, 2
        %v5959 = vsel %vm2054, %v5957, %v5958
        %v5960 = vrot.slane %v5762, 2
        %v5961 = vsel %vm2054, %v5955, %v5960
        %v5962 = vrot.slane %v5763, 2
        %v5963 = vsel %vm2054, %v5958, %v5962
        %v5964 = vrot.slane %v5764, 2
        %v5965 = vrot.slane %v5020, 2
        %v5966 = vsel %vm2054, %v5964, %v5965
        %v5967 = vrot.slane %v5765, 2
        %v5968 = vrot.slane %v5021, 2
        %v5969 = vsel %vm2054, %v5967, %v5968
        %v5970 = vrot.slane %v5766, 2
        %v5971 = vsel %vm2054, %v5965, %v5970
        %v5972 = vrot.slane %v5767, 2
        %v5973 = vsel %vm2054, %v5968, %v5972
        %v5974 = vrot.slane %v5768, 2
        %v5975 = vrot.slane %v5026, 2
        %v5976 = vsel %vm2054, %v5974, %v5975
        %v5977 = vrot.slane %v5769, 2
        %v5978 = vrot.slane %v5027, 2
        %v5979 = vsel %vm2054, %v5977, %v5978
        %v5980 = vrot.slane %v5770, 2
        %v5981 = vsel %vm2054, %v5975, %v5980
        %v5982 = vrot.slane %v5771, 2
        %v5983 = vsel %vm2054, %v5978, %v5982
        %v5984 = vrot.slane %v5772, 2
        %v5985 = vrot.slane %v5032, 2
        %v5986 = vsel %vm2054, %v5984, %v5985
        %v5987 = vrot.slane %v5773, 2
        %v5988 = vrot.slane %v5033, 2
        %v5989 = vsel %vm2054, %v5987, %v5988
        %v5990 = vrot.slane %v5774, 2
        %v5991 = vsel %vm2054, %v5985, %v5990
        %v5992 = vrot.slane %v5775, 2
        %v5993 = vsel %vm2054, %v5988, %v5992
        %v5994 = vrot.slane %v5776, 2
        %v5995 = vrot.slane %v5038, 2
        %v5996 = vsel %vm2054, %v5994, %v5995
        %v5997 = vrot.slane %v5777, 2
        %v5998 = vrot.slane %v5039, 2
        %v5999 = vsel %vm2054, %v5997, %v5998
        %v6000 = vrot.slane %v5778, 2
        %v6001 = vsel %vm2054, %v5995, %v6000
        %v6002 = vrot.slane %v5779, 2
        %v6003 = vsel %vm2054, %v5998, %v6002
        %v6068 = vpack.c.bf16 %v5851, %v5846
        %v6069 = vpack.c.bf16 %v5853, %v5849
        %v6070 = vpack.c.bf16 %v5861, %v5856
        %v6071 = vpack.c.bf16 %v5863, %v5859
        %v6072 = vpack.c.bf16 %v5871, %v5866
        %v6073 = vpack.c.bf16 %v5873, %v5869
        %v6074 = vpack.c.bf16 %v5881, %v5876
        %v6075 = vpack.c.bf16 %v5883, %v5879
        %v6076 = vpack.c.bf16 %v5891, %v5886
        %v6077 = vpack.c.bf16 %v5893, %v5889
        %v6078 = vpack.c.bf16 %v5901, %v5896
        %v6079 = vpack.c.bf16 %v5903, %v5899
        %v6080 = vpack.c.bf16 %v5911, %v5906
        %v6081 = vpack.c.bf16 %v5913, %v5909
        %v6082 = vpack.c.bf16 %v5921, %v5916
        %v6083 = vpack.c.bf16 %v5923, %v5919
        %v6084 = vpack.c.bf16 %v5931, %v5926
        %v6085 = vpack.c.bf16 %v5933, %v5929
        %v6086 = vpack.c.bf16 %v5941, %v5936
        %v6087 = vpack.c.bf16 %v5943, %v5939
        %v6088 = vpack.c.bf16 %v5951, %v5946
        %v6089 = vpack.c.bf16 %v5953, %v5949
        %v6090 = vpack.c.bf16 %v5961, %v5956
        %v6091 = vpack.c.bf16 %v5963, %v5959
        %v6092 = vpack.c.bf16 %v5971, %v5966
        %v6093 = vpack.c.bf16 %v5973, %v5969
        %v6094 = vpack.c.bf16 %v5981, %v5976
        %v6095 = vpack.c.bf16 %v5983, %v5979
        %v6096 = vpack.c.bf16 %v5991, %v5986
        %v6097 = vpack.c.bf16 %v5993, %v5989
        %v6098 = vpack.c.bf16 %v6001, %v5996
        %v6099 = vpack.c.bf16 %v6003, %v5999
        %s6100 = scalar_lea.vmem %s2, 1024
        %v6101 = vld [vmem:[%s6100] sm:$0xf]
        %v6102 = vld [vmem:[%s6100 + $0x4] sm:$0xf]
        %v6103 = vld [vmem:[%s6100 + $0x8] sm:$0xf]
        %v6104 = vld [vmem:[%s6100 + $0xc] sm:$0xf]
        %v6105 = vld [vmem:[%s6100 + $0x10] sm:$0xf]
        %v6106 = vld [vmem:[%s6100 + $0x14] sm:$0xf]
        %v6107 = vld [vmem:[%s6100 + $0x18] sm:$0xf]
        %v6108 = vld [vmem:[%s6100 + $0x1c] sm:$0xf]
        %v6109 = vld [vmem:[%s6100 + $0x20] sm:$0xf]
        %v6110 = vld [vmem:[%s6100 + $0x24] sm:$0xf]
        %v6111 = vld [vmem:[%s6100 + $0x28] sm:$0xf]
        %v6112 = vld [vmem:[%s6100 + $0x2c] sm:$0xf]
        %v6113 = vld [vmem:[%s6100 + $0x30] sm:$0xf]
        %v6114 = vld [vmem:[%s6100 + $0x34] sm:$0xf]
        %v6115 = vld [vmem:[%s6100 + $0x38] sm:$0xf]
        %v6116 = vld [vmem:[%s6100 + $0x3c] sm:$0xf]
        %v6117 = vld [vmem:[%s6100 + $0x40] sm:$0xf]
        %v6118 = vld [vmem:[%s6100 + $0x44] sm:$0xf]
        %v6119 = vld [vmem:[%s6100 + $0x48] sm:$0xf]
        %v6120 = vld [vmem:[%s6100 + $0x4c] sm:$0xf]
        %v6121 = vld [vmem:[%s6100 + $0x50] sm:$0xf]
        %v6122 = vld [vmem:[%s6100 + $0x54] sm:$0xf]
        %v6123 = vld [vmem:[%s6100 + $0x58] sm:$0xf]
        %v6124 = vld [vmem:[%s6100 + $0x5c] sm:$0xf]
        %v6125 = vld [vmem:[%s6100 + $0x60] sm:$0xf]
        %v6126 = vld [vmem:[%s6100 + $0x64] sm:$0xf]
        %v6127 = vld [vmem:[%s6100 + $0x68] sm:$0xf]
        %v6128 = vld [vmem:[%s6100 + $0x6c] sm:$0xf]
        %v6129 = vld [vmem:[%s6100 + $0x70] sm:$0xf]
        %v6130 = vld [vmem:[%s6100 + $0x74] sm:$0xf]
        %v6131 = vld [vmem:[%s6100 + $0x78] sm:$0xf]
        %v6132 = vld [vmem:[%s6100 + $0x7c] sm:$0xf]
        %v6165 = vunpack.c.l.b16 %v6101
        %v6166 = vunpack.c.l.b16 %v6102
        %v6167 = vunpack.c.l.b16 %v6103
        %v6168 = vunpack.c.l.b16 %v6104
        %v6169 = vunpack.c.l.b16 %v6105
        %v6170 = vunpack.c.l.b16 %v6106
        %v6171 = vunpack.c.l.b16 %v6107
        %v6172 = vunpack.c.l.b16 %v6108
        %v6173 = vunpack.c.l.b16 %v6109
        %v6174 = vunpack.c.l.b16 %v6110
        %v6175 = vunpack.c.l.b16 %v6111
        %v6176 = vunpack.c.l.b16 %v6112
        %v6177 = vunpack.c.l.b16 %v6113
        %v6178 = vunpack.c.l.b16 %v6114
        %v6179 = vunpack.c.l.b16 %v6115
        %v6180 = vunpack.c.l.b16 %v6116
        %v6181 = vunpack.c.l.b16 %v6117
        %v6182 = vunpack.c.l.b16 %v6118
        %v6183 = vunpack.c.l.b16 %v6119
        %v6184 = vunpack.c.l.b16 %v6120
        %v6185 = vunpack.c.l.b16 %v6121
        %v6186 = vunpack.c.l.b16 %v6122
        %v6187 = vunpack.c.l.b16 %v6123
        %v6188 = vunpack.c.l.b16 %v6124
        %v6189 = vunpack.c.l.b16 %v6125
        %v6190 = vunpack.c.l.b16 %v6126
        %v6191 = vunpack.c.l.b16 %v6127
        %v6192 = vunpack.c.l.b16 %v6128
        %v6193 = vunpack.c.l.b16 %v6129
        %v6194 = vunpack.c.l.b16 %v6130
        %v6195 = vunpack.c.l.b16 %v6131
        %v6196 = vunpack.c.l.b16 %v6132
        %v6197 = vpack.c.b16 %v6166, %v6165
        %v6198 = vpack.c.b16 %v6168, %v6167
        %v6199 = vpack.c.b16 %v6170, %v6169
        %v6200 = vpack.c.b16 %v6172, %v6171
        %v6201 = vpack.c.b16 %v6174, %v6173
        %v6202 = vpack.c.b16 %v6176, %v6175
        %v6203 = vpack.c.b16 %v6178, %v6177
        %v6204 = vpack.c.b16 %v6180, %v6179
        %v6205 = vpack.c.b16 %v6182, %v6181
        %v6206 = vpack.c.b16 %v6184, %v6183
        %v6207 = vpack.c.b16 %v6186, %v6185
        %v6208 = vpack.c.b16 %v6188, %v6187
        %v6209 = vpack.c.b16 %v6190, %v6189
        %v6210 = vpack.c.b16 %v6192, %v6191
        %v6211 = vpack.c.b16 %v6194, %v6193
        %v6212 = vpack.c.b16 %v6196, %v6195
        %6229 = vmatprep.subr.bf16.mxu0 0
        %6230 = vmatpush1.bf16.msra.mxu0 %v6204
        %6231 = vmatprep.subr.bf16.mxu0 0
        %6232 = vmatpush1.bf16.msra.mxu0 %v6203
        %6233 = vmatprep.subr.bf16.mxu0 0
        %6234 = vmatpush1.bf16.msra.mxu0 %v6202
        %6235 = vmatprep.subr.bf16.mxu0 0
        %6236 = vmatpush1.bf16.msra.mxu0 %v6201
        %6237 = vmatprep.subr.bf16.mxu0 0
        %6238 = vmatpush1.bf16.msra.mxu0 %v6200
        %6239 = vmatprep.subr.bf16.mxu0 0
        %6240 = vmatpush1.bf16.msra.mxu0 %v6199
        %6241 = vmatprep.subr.bf16.mxu0 0
        %6242 = vmatpush1.bf16.msra.mxu0 %v6198
        %6243 = vmatprep.subr.bf16.mxu0 0
        %6244 = vmatpush1.bf16.msra.mxu0 %v6197
        %6245 = vmatprep.subr.bf16.mxu0 0
        %6246 = vmatpush2.bf16.msra.mxu0 %v6212
        %6247 = vmatprep.subr.bf16.mxu0 0
        %6248 = vmatpush2.bf16.msra.mxu0 %v6211
        %6249 = vmatprep.subr.bf16.mxu0 0
        %6250 = vmatpush2.bf16.msra.mxu0 %v6210
        %6251 = vmatprep.subr.bf16.mxu0 0
        %6252 = vmatpush2.bf16.msra.mxu0 %v6209
        %6253 = vmatprep.subr.bf16.mxu0 0
        %6254 = vmatpush2.bf16.msra.mxu0 %v6208
        %6255 = vmatprep.subr.bf16.mxu0 0
        %6256 = vmatpush2.bf16.msra.mxu0 %v6207
        %6257 = vmatprep.subr.bf16.mxu0 0
        %6258 = vmatpush2.bf16.msra.mxu0 %v6206
        %6259 = vmatprep.subr.bf16.mxu0 0
        %6260 = vmatpush2.bf16.msra.mxu0 %v6205
        %6261 = vmatprep.mubr.bf16.mxu0 %v6069
        %6262 = vmatmul.mubr.bf16.gmra.mxu0 %v6068
        %v6263 = vpop.f32.mrf.mxu0
        %v6264 = vadd.f32 0.0, %v6263
        %v6265 = vpop.f32.mrf.mxu0
        %v6266 = vpop.f32.mrf.mxu0
        %v6267 = vadd.f32 0.0, %v6266
        %v6268 = vpop.f32.mrf.mxu0
        %6269 = vmatprep.mubr.bf16.mxu0 %v6071
        %6270 = vmatmul.mubr.bf16.gmra.mxu0 %v6070
        %v6271 = vpop.f32.mrf.mxu0
        %v6272 = vadd.f32 0.0, %v6271
        %v6273 = vpop.f32.mrf.mxu0
        %v6274 = vpop.f32.mrf.mxu0
        %v6275 = vadd.f32 0.0, %v6274
        %v6276 = vpop.f32.mrf.mxu0
        %6277 = vmatprep.mubr.bf16.mxu0 %v6073
        %6278 = vmatmul.mubr.bf16.gmra.mxu0 %v6072
        %v6279 = vpop.f32.mrf.mxu0
        %v6280 = vadd.f32 0.0, %v6279
        %v6281 = vpop.f32.mrf.mxu0
        %v6282 = vpop.f32.mrf.mxu0
        %v6283 = vadd.f32 0.0, %v6282
        %v6284 = vpop.f32.mrf.mxu0
        %6285 = vmatprep.mubr.bf16.mxu0 %v6075
        %6286 = vmatmul.mubr.bf16.gmra.mxu0 %v6074
        %v6287 = vpop.f32.mrf.mxu0
        %v6288 = vadd.f32 0.0, %v6287
        %v6289 = vpop.f32.mrf.mxu0
        %v6290 = vpop.f32.mrf.mxu0
        %v6291 = vadd.f32 0.0, %v6290
        %v6292 = vpop.f32.mrf.mxu0
        %6293 = vmatprep.mubr.bf16.mxu0 %v6077
        %6294 = vmatmul.mubr.bf16.gmra.mxu0 %v6076
        %v6295 = vpop.f32.mrf.mxu0
        %v6296 = vadd.f32 0.0, %v6295
        %v6297 = vpop.f32.mrf.mxu0
        %v6298 = vpop.f32.mrf.mxu0
        %v6299 = vadd.f32 0.0, %v6298
        %v6300 = vpop.f32.mrf.mxu0
        %6301 = vmatprep.mubr.bf16.mxu0 %v6079
        %6302 = vmatmul.mubr.bf16.gmra.mxu0 %v6078
        %v6303 = vpop.f32.mrf.mxu0
        %v6304 = vadd.f32 0.0, %v6303
        %v6305 = vpop.f32.mrf.mxu0
        %v6306 = vpop.f32.mrf.mxu0
        %v6307 = vadd.f32 0.0, %v6306
        %v6308 = vpop.f32.mrf.mxu0
        %6309 = vmatprep.mubr.bf16.mxu0 %v6081
        %6310 = vmatmul.mubr.bf16.gmra.mxu0 %v6080
        %v6311 = vpop.f32.mrf.mxu0
        %v6312 = vadd.f32 0.0, %v6311
        %v6313 = vpop.f32.mrf.mxu0
        %v6314 = vpop.f32.mrf.mxu0
        %v6315 = vadd.f32 0.0, %v6314
        %v6316 = vpop.f32.mrf.mxu0
        %6317 = vmatprep.mubr.bf16.mxu0 %v6083
        %6318 = vmatmul.mubr.bf16.gmra.mxu0 %v6082
        %v6319 = vpop.f32.mrf.mxu0
        %v6320 = vadd.f32 0.0, %v6319
        %v6321 = vpop.f32.mrf.mxu0
        %v6322 = vpop.f32.mrf.mxu0
        %v6323 = vadd.f32 0.0, %v6322
        %v6324 = vpop.f32.mrf.mxu0
        %6325 = vmatprep.mubr.bf16.mxu0 %v6085
        %6326 = vmatmul.mubr.bf16.gmra.mxu0 %v6084
        %v6327 = vpop.f32.mrf.mxu0
        %v6328 = vadd.f32 0.0, %v6327
        %v6329 = vpop.f32.mrf.mxu0
        %v6330 = vpop.f32.mrf.mxu0
        %v6331 = vadd.f32 0.0, %v6330
        %v6332 = vpop.f32.mrf.mxu0
        %6333 = vmatprep.mubr.bf16.mxu0 %v6087
        %6334 = vmatmul.mubr.bf16.gmra.mxu0 %v6086
        %v6335 = vpop.f32.mrf.mxu0
        %v6336 = vadd.f32 0.0, %v6335
        %v6337 = vpop.f32.mrf.mxu0
        %v6338 = vpop.f32.mrf.mxu0
        %v6339 = vadd.f32 0.0, %v6338
        %v6340 = vpop.f32.mrf.mxu0
        %6341 = vmatprep.mubr.bf16.mxu0 %v6089
        %6342 = vmatmul.mubr.bf16.gmra.mxu0 %v6088
        %v6343 = vpop.f32.mrf.mxu0
        %v6344 = vadd.f32 0.0, %v6343
        %v6345 = vpop.f32.mrf.mxu0
        %v6346 = vpop.f32.mrf.mxu0
        %v6347 = vadd.f32 0.0, %v6346
        %v6348 = vpop.f32.mrf.mxu0
        %6349 = vmatprep.mubr.bf16.mxu0 %v6091
        %6350 = vmatmul.mubr.bf16.gmra.mxu0 %v6090
        %v6351 = vpop.f32.mrf.mxu0
        %v6352 = vadd.f32 0.0, %v6351
        %v6353 = vpop.f32.mrf.mxu0
        %v6354 = vpop.f32.mrf.mxu0
        %v6355 = vadd.f32 0.0, %v6354
        %v6356 = vpop.f32.mrf.mxu0
        %6357 = vmatprep.mubr.bf16.mxu0 %v6093
        %6358 = vmatmul.mubr.bf16.gmra.mxu0 %v6092
        %v6359 = vpop.f32.mrf.mxu0
        %v6360 = vadd.f32 0.0, %v6359
        %v6361 = vpop.f32.mrf.mxu0
        %v6362 = vpop.f32.mrf.mxu0
        %v6363 = vadd.f32 0.0, %v6362
        %v6364 = vpop.f32.mrf.mxu0
        %6365 = vmatprep.mubr.bf16.mxu0 %v6095
        %6366 = vmatmul.mubr.bf16.gmra.mxu0 %v6094
        %v6367 = vpop.f32.mrf.mxu0
        %v6368 = vadd.f32 0.0, %v6367
        %v6369 = vpop.f32.mrf.mxu0
        %v6370 = vpop.f32.mrf.mxu0
        %v6371 = vadd.f32 0.0, %v6370
        %v6372 = vpop.f32.mrf.mxu0
        %6373 = vmatprep.mubr.bf16.mxu0 %v6097
        %6374 = vmatmul.mubr.bf16.gmra.mxu0 %v6096
        %v6375 = vpop.f32.mrf.mxu0
        %v6376 = vadd.f32 0.0, %v6375
        %v6377 = vpop.f32.mrf.mxu0
        %v6378 = vpop.f32.mrf.mxu0
        %v6379 = vadd.f32 0.0, %v6378
        %v6380 = vpop.f32.mrf.mxu0
        %6381 = vmatprep.mubr.bf16.mxu0 %v6099
        %6382 = vmatmul.mubr.bf16.gmra.mxu0 %v6098
        %v6383 = vpop.f32.mrf.mxu0
        %v6384 = vadd.f32 0.0, %v6383
        %v6385 = vpop.f32.mrf.mxu0
        %v6386 = vpop.f32.mrf.mxu0
        %v6387 = vadd.f32 0.0, %v6386
        %v6388 = vpop.f32.mrf.mxu0
        %6389 = vdwg.mxu0
        %v6390 = vadd.f32 %v5684, %v6264
        %v6391 = vadd.f32 %v5685, %v6267
        %v6392 = vadd.f32 %v5686, %v6272
        %v6393 = vadd.f32 %v5687, %v6275
        %v6394 = vadd.f32 %v5688, %v6280
        %v6395 = vadd.f32 %v5689, %v6283
        %v6396 = vadd.f32 %v5690, %v6288
        %v6397 = vadd.f32 %v5691, %v6291
        %v6398 = vadd.f32 %v5692, %v6296
        %v6399 = vadd.f32 %v5693, %v6299
        %v6400 = vadd.f32 %v5694, %v6304
        %v6401 = vadd.f32 %v5695, %v6307
        %v6402 = vadd.f32 %v5696, %v6312
        %v6403 = vadd.f32 %v5697, %v6315
        %v6404 = vadd.f32 %v5698, %v6320
        %v6405 = vadd.f32 %v5699, %v6323
        %v6406 = vadd.f32 %v5700, %v6328
        %v6407 = vadd.f32 %v5701, %v6331
        %v6408 = vadd.f32 %v5702, %v6336
        %v6409 = vadd.f32 %v5703, %v6339
        %v6410 = vadd.f32 %v5704, %v6344
        %v6411 = vadd.f32 %v5705, %v6347
        %v6412 = vadd.f32 %v5706, %v6352
        %v6413 = vadd.f32 %v5707, %v6355
        %v6414 = vadd.f32 %v5708, %v6360
        %v6415 = vadd.f32 %v5709, %v6363
        %v6416 = vadd.f32 %v5710, %v6368
        %v6417 = vadd.f32 %v5711, %v6371
        %v6418 = vadd.f32 %v5712, %v6376
        %v6419 = vadd.f32 %v5713, %v6379
        %v6420 = vadd.f32 %v5714, %v6384
        %v6421 = vadd.f32 %v5715, %v6387
        %v6422 = vld [vmem:[%s3] sm:$0x1]
        %v6424 = vlaneseq
        %v6425 = vshrl.u32 %v6424, 7
        %v6426 = vsub.s32 0, %v6425
        %v6427 = vrot.slane %v6422, %v6426
        %v6429 = vmul.f32 %v6390, %v6427
        %v6430 = vmul.f32 %v6391, %v6427
        %v6431 = vmul.f32 %v6392, %v6427
        %v6432 = vmul.f32 %v6393, %v6427
        %v6433 = vmul.f32 %v6394, %v6427
        %v6434 = vmul.f32 %v6395, %v6427
        %v6435 = vmul.f32 %v6396, %v6427
        %v6436 = vmul.f32 %v6397, %v6427
        %v6437 = vmul.f32 %v6398, %v6427
        %v6438 = vmul.f32 %v6399, %v6427
        %v6439 = vmul.f32 %v6400, %v6427
        %v6440 = vmul.f32 %v6401, %v6427
        %v6441 = vmul.f32 %v6402, %v6427
        %v6442 = vmul.f32 %v6403, %v6427
        %v6443 = vmul.f32 %v6404, %v6427
        %v6444 = vmul.f32 %v6405, %v6427
        %v6445 = vmul.f32 %v6406, %v6427
        %v6446 = vmul.f32 %v6407, %v6427
        %v6447 = vmul.f32 %v6408, %v6427
        %v6448 = vmul.f32 %v6409, %v6427
        %v6449 = vmul.f32 %v6410, %v6427
        %v6450 = vmul.f32 %v6411, %v6427
        %v6451 = vmul.f32 %v6412, %v6427
        %v6452 = vmul.f32 %v6413, %v6427
        %v6453 = vmul.f32 %v6414, %v6427
        %v6454 = vmul.f32 %v6415, %v6427
        %v6455 = vmul.f32 %v6416, %v6427
        %v6456 = vmul.f32 %v6417, %v6427
        %v6457 = vmul.f32 %v6418, %v6427
        %v6458 = vmul.f32 %v6419, %v6427
        %v6459 = vmul.f32 %v6420, %v6427
        %v6460 = vmul.f32 %v6421, %v6427
        %v6461 = vld [vmem:[%s4] sm:$0x1]
        %v6463 = vlaneseq
        %v6464 = vshrl.u32 %v6463, 7
        %v6465 = vsub.s32 0, %v6464
        %v6466 = vrot.slane %v6461, %v6465
        %v6468 = vadd.f32 %v6429, %v6466
        %v6469 = vadd.f32 %v6430, %v6466
        %v6470 = vadd.f32 %v6431, %v6466
        %v6471 = vadd.f32 %v6432, %v6466
        %v6472 = vadd.f32 %v6433, %v6466
        %v6473 = vadd.f32 %v6434, %v6466
        %v6474 = vadd.f32 %v6435, %v6466
        %v6475 = vadd.f32 %v6436, %v6466
        %v6476 = vadd.f32 %v6437, %v6466
        %v6477 = vadd.f32 %v6438, %v6466
        %v6478 = vadd.f32 %v6439, %v6466
        %v6479 = vadd.f32 %v6440, %v6466
        %v6480 = vadd.f32 %v6441, %v6466
        %v6481 = vadd.f32 %v6442, %v6466
        %v6482 = vadd.f32 %v6443, %v6466
        %v6483 = vadd.f32 %v6444, %v6466
        %v6484 = vadd.f32 %v6445, %v6466
        %v6485 = vadd.f32 %v6446, %v6466
        %v6486 = vadd.f32 %v6447, %v6466
        %v6487 = vadd.f32 %v6448, %v6466
        %v6488 = vadd.f32 %v6449, %v6466
        %v6489 = vadd.f32 %v6450, %v6466
        %v6490 = vadd.f32 %v6451, %v6466
        %v6491 = vadd.f32 %v6452, %v6466
        %v6492 = vadd.f32 %v6453, %v6466
        %v6493 = vadd.f32 %v6454, %v6466
        %v6494 = vadd.f32 %v6455, %v6466
        %v6495 = vadd.f32 %v6456, %v6466
        %v6496 = vadd.f32 %v6457, %v6466
        %v6497 = vadd.f32 %v6458, %v6466
        %v6498 = vadd.f32 %v6459, %v6466
        %v6499 = vadd.f32 %v6460, %v6466
        %v6500 = vmax.f32 %v6468, 0.0
        %v6501 = vmax.f32 %v6469, 0.0
        %v6502 = vmax.f32 %v6470, 0.0
        %v6503 = vmax.f32 %v6471, 0.0
        %v6504 = vmax.f32 %v6472, 0.0
        %v6505 = vmax.f32 %v6473, 0.0
        %v6506 = vmax.f32 %v6474, 0.0
        %v6507 = vmax.f32 %v6475, 0.0
        %v6508 = vmax.f32 %v6476, 0.0
        %v6509 = vmax.f32 %v6477, 0.0
        %v6510 = vmax.f32 %v6478, 0.0
        %v6511 = vmax.f32 %v6479, 0.0
        %v6512 = vmax.f32 %v6480, 0.0
        %v6513 = vmax.f32 %v6481, 0.0
        %v6514 = vmax.f32 %v6482, 0.0
        %v6515 = vmax.f32 %v6483, 0.0
        %v6516 = vmax.f32 %v6484, 0.0
        %v6517 = vmax.f32 %v6485, 0.0
        %v6518 = vmax.f32 %v6486, 0.0
        %v6519 = vmax.f32 %v6487, 0.0
        %v6520 = vmax.f32 %v6488, 0.0
        %v6521 = vmax.f32 %v6489, 0.0
        %v6522 = vmax.f32 %v6490, 0.0
        %v6523 = vmax.f32 %v6491, 0.0
        %v6524 = vmax.f32 %v6492, 0.0
        %v6525 = vmax.f32 %v6493, 0.0
        %v6526 = vmax.f32 %v6494, 0.0
        %v6527 = vmax.f32 %v6495, 0.0
        %v6528 = vmax.f32 %v6496, 0.0
        %v6529 = vmax.f32 %v6497, 0.0
        %v6530 = vmax.f32 %v6498, 0.0
        %v6531 = vmax.f32 %v6499, 0.0
        %6532 = vst [vmem:[%s232] sm:$0xff] %v6500
        %6533 = vst [vmem:[%s232 + $0x8] sm:$0xff] %v6501
        %6534 = vst [vmem:[%s232 + $0x10] sm:$0xff] %v6502
        %6535 = vst [vmem:[%s232 + $0x18] sm:$0xff] %v6503
        %6536 = vst [vmem:[%s232 + $0x20] sm:$0xff] %v6504
        %6537 = vst [vmem:[%s232 + $0x28] sm:$0xff] %v6505
        %6538 = vst [vmem:[%s232 + $0x30] sm:$0xff] %v6506
        %6539 = vst [vmem:[%s232 + $0x38] sm:$0xff] %v6507
        %6540 = vst [vmem:[%s232 + $0x40] sm:$0xff] %v6508
        %6541 = vst [vmem:[%s232 + $0x48] sm:$0xff] %v6509
        %6542 = vst [vmem:[%s232 + $0x50] sm:$0xff] %v6510
        %6543 = vst [vmem:[%s232 + $0x58] sm:$0xff] %v6511
        %6544 = vst [vmem:[%s232 + $0x60] sm:$0xff] %v6512
        %6545 = vst [vmem:[%s232 + $0x68] sm:$0xff] %v6513
        %6546 = vst [vmem:[%s232 + $0x70] sm:$0xff] %v6514
        %6547 = vst [vmem:[%s232 + $0x78] sm:$0xff] %v6515
        %6548 = vst [vmem:[%s232 + $0x80] sm:$0xff] %v6516
        %6549 = vst [vmem:[%s232 + $0x88] sm:$0xff] %v6517
        %6550 = vst [vmem:[%s232 + $0x90] sm:$0xff] %v6518
        %6551 = vst [vmem:[%s232 + $0x98] sm:$0xff] %v6519
        %6552 = vst [vmem:[%s232 + $0xa0] sm:$0xff] %v6520
        %6553 = vst [vmem:[%s232 + $0xa8] sm:$0xff] %v6521
        %6554 = vst [vmem:[%s232 + $0xb0] sm:$0xff] %v6522
        %6555 = vst [vmem:[%s232 + $0xb8] sm:$0xff] %v6523
        %6556 = vst [vmem:[%s232 + $0xc0] sm:$0xff] %v6524
        %6557 = vst [vmem:[%s232 + $0xc8] sm:$0xff] %v6525
        %6558 = vst [vmem:[%s232 + $0xd0] sm:$0xff] %v6526
        %6559 = vst [vmem:[%s232 + $0xd8] sm:$0xff] %v6527
        %6560 = vst [vmem:[%s232 + $0xe0] sm:$0xff] %v6528
        %6561 = vst [vmem:[%s232 + $0xe8] sm:$0xff] %v6529
        %6562 = vst [vmem:[%s232 + $0xf0] sm:$0xff] %v6530
        %6563 = vst [vmem:[%s232 + $0xf8] sm:$0xff] %v6531
        %s6564 = sand.u32 %s142, 1
        %s6565 = scalar_lea.sflag [#allocation4], %s6564
        %s6566 = sand.u32 %s142, 1
        %s6567 = smul.addr %s6566, 256
        %s6568 = scalar_lea.vmem [#allocation3], %s6567
        // Predicated region
        $region41: #{object_context_block.11} parent=39 // pred_check
          %p6569 = pneg %p152
        $region42: #{object_context_block.11} parent=39 // pred_check_branch
          %6571 = sbr.rel (%p6569) target = $region44
        $region43: #{object_context_block.11} parent=39 // pred_region
          %s6573 = ssub.s32 4096, 4096
          %6574 = vsyncadd %s6565, %s6573
          %s6575 = smul.addr %s19, 32
          %s6576 = smul.addr %s6575, 128
          %s6577 = scalar_lea.hbm %s5, %s6576
          %s6578 = sshll.u32 %s6568, 4
          %s6579 = int_to_ptr.vmem [resolvable:$true] %s6578
          %6584 = dma.vmem_to_hbm [thread:$0]  %s6579, 4096, %s6577, %s6565, 128, 128, 8
        $region44: #{object_context_block.11} parent=39 // pred_fallthru
          _
      $region40: #{object_context_block.11} parent=5 // pred_fallthru
        _
      %p6585 = scmp.le.s32.totalorder 2, %s14
      // Predicated region
      $region45: #{object_context_block.11} parent=5 // pred_check
        %p6586 = pneg %p6585
      $region46: #{object_context_block.11} parent=5 // pred_check_branch
        %6588 = sbr.rel (%p6586) target = $region48
      $region47: #{object_context_block.11} parent=5 // pred_region
        %s6589 = ssub.s32 %s14, 2
        // Predicated region
        $region49: #{object_context_block.11} parent=47 // pred_check
          %p6590 = pneg %p158
        $region50: #{object_context_block.11} parent=47 // pred_check_branch
          %6592 = sbr.rel (%p6590) target = $region52
        $region51: #{object_context_block.11} parent=47 // pred_region
          %s6593 = sand.u32 %s143, 1
          %s6594 = scalar_lea.sflag [#allocation4], %s6593
          %s6595 = sand.u32 %s143, 1
          %s6596 = smul.addr %s6595, 256
          %s6597 = scalar_lea.vmem [#allocation3], %s6596
          %6598 = dma.done %s6594, 4096
        $region52: #{object_context_block.11} parent=47 // pred_fallthru
          _
      $region48: #{object_context_block.11} parent=5 // pred_fallthru
        _
    $region6: #{object_context_block.11} parent=1 // loop_footer
      %s18 = sadd.s32 1, %s14
    $region7: #{object_context_block.11} parent=1 // loop_footer_branch
      %13 = sbr.rel target = $region3
    $region8: #{object_context_block.11} parent=1 // loop_exit
      _
    %6599 = vsyncpa [#allocation4], 1
    %s6600 = scalar_lea.sflag [#allocation4], 1
    %6601 = vsyncpa %s6600, 1

</llo_original>
